<compile_context>
chip_gen: v7x
topology: tpu7x:2x2x1
jax: 0.10.0
libtpu: 0.0.40
codegen_flags: <defaults>
</compile_context>

<pallas_src>
import functools

import jax
import jax.numpy as jnp
from jax.experimental import pallas as pl
from jax.experimental.pallas import tpu as pltpu


_OFFSETS = tuple((dh, dw) for dh in (-1, 0, 1) for dw in (-1, 0, 1))


# ----------------------------------------------------------------------------
# Fused Pallas kernel
# ----------------------------------------------------------------------------
def _score_kernel(masks_ref, x_ref,
                  w0_ref, b0_ref, w1_ref, b1_ref, w2_ref, b2_ref,
                  w3_ref, b3_ref, w4x_ref, w4s_ref, b4_ref,
                  w5x_ref, w5s_ref, b5_ref,
                  o_ref, *, W, L):
    """Whole network for `images_per_step` images; everything stays on-chip."""
    m = masks_ref[...]                              # (9, L) f32 precomputed border masks

    def tap(a, k):
        """Shift activation (Cin, L) f32 to tap k, mask borders, cast to bf16."""
        dh, dw = _OFFSETS[k]
        s = (-(dh * W + dw)) % L                    # static python int, per packed axis
        sh = a if s == 0 else pltpu.roll(a, s, 1)
        if (dh, dw) != (0, 0):                      # center tap: mask is all-ones, skip
            sh = sh * m[k:k + 1, :]
        return sh.astype(jnp.bfloat16)

    def make_taps(a):
        # Materialize the 9 taps (reused later by a decoder skip matmul).
        return [tap(a, k) for k in range(9)]

    def conv_from_taps(w_ref, taps, acc=None):
        for k in range(9):
            p = jnp.dot(w_ref[k], taps[k], preferred_element_type=jnp.float32)
            acc = p if acc is None else acc + p
        return acc

    def conv_direct(w_ref, a, acc=None):
        # Build each tap on the fly: only one tap live at a time (stays in vregs).
        for k in range(9):
            p = jnp.dot(w_ref[k], tap(a, k), preferred_element_type=jnp.float32)
            acc = p if acc is None else acc + p
        return acc

    relu = lambda v: jnp.maximum(v, 0.0)

    x = x_ref[0]                                                   # (8, L) f32: [x.., t, 0-pad]
    # encoder
    e0 = relu(conv_direct(w0_ref, x) + b0_ref[...])                # (8, L)   skip 0
    taps_e0 = make_taps(e0)                                        # reused by decoder layer 2
    e1 = relu(conv_from_taps(w1_ref, taps_e0) + b1_ref[...])       # (16, L)  skip 1
    taps_e1 = make_taps(e1)                                        # reused by decoder layer 1
    e2 = relu(conv_from_taps(w2_ref, taps_e1) + b2_ref[...])       # (32, L)
    # decoder (skip concats folded into split-weight accumulating matmuls)
    d0 = relu(conv_direct(w3_ref, e2) + b3_ref[...])               # (16, L)
    d1 = relu(conv_from_taps(w4s_ref, taps_e1,
                             acc=conv_direct(w4x_ref, d0)) + b4_ref[...])   # (8, L)
    out = conv_from_taps(w5s_ref, taps_e0,
                         acc=conv_direct(w5x_ref, d1)) + b5_ref[...]        # (8, L) no ReLU
    o_ref[0] = out


# ----------------------------------------------------------------------------
# Wrapper: weight repacking, channel padding, batch-on-lanes packing
# ----------------------------------------------------------------------------
def _w_to_taps(w_hwio, cin_pad=None, cout_pad=None):
    """(3,3,Cin,Cout) HWIO -> (9, Cout_p, Cin_p) bf16, zero-padding channels."""
    kh, kw, cin, cout = w_hwio.shape
    w = w_hwio
    if cin_pad is not None and cin_pad > cin:
        w = jnp.concatenate(
            [w, jnp.zeros((kh, kw, cin_pad - cin, cout), w.dtype)], axis=2)
    if cout_pad is not None and cout_pad > cout:
        w = jnp.concatenate(
            [w, jnp.zeros((kh, kw, w.shape[2], cout_pad - cout), w.dtype)], axis=3)
    co, ci = w.shape[3], w.shape[2]
    return jnp.transpose(w, (0, 1, 3, 2)).reshape(9, co, ci).astype(jnp.bfloat16)


def _bias_col(b, cout_pad=None):
    if cout_pad is not None and cout_pad > b.shape[0]:
        b = jnp.concatenate([b, jnp.zeros((cout_pad - b.shape[0],), b.dtype)])
    return b.reshape(-1, 1).astype(jnp.float32)


def _border_masks(H, W, bt):
    """Per-image 3x3 border masks, tiled over the packed lane axis: (9, bt*H*W)."""
    pos = jnp.arange(H * W)
    row, col = pos // W, pos % W
    ms = []
    for dh, dw in _OFFSETS:
        ok = (row + dh >= 0) & (row + dh < H) & (col + dw >= 0) & (col + dw < W)
        ms.append(ok)
    m = jnp.stack(ms).astype(jnp.float32)            # (9, HW) per-image
    return jnp.tile(m, (1, bt))                      # (9, bt*HW)


def score_network_forward_pallas(x_nchw, t, params, *, images_per_step=None):
    """Fused forward pass. x_nchw: (B, C, H, W), t: (B,). Returns (B, C, H, W)."""
    B, C, H, W = x_nchw.shape
    HW = H * W
    CP = 8                                           # sublane-aligned channel count
    assert C + 1 <= CP

    if images_per_step is None:
        # keep >= 2 grid steps (both v7x TCs); pack wider on larger batches
        images_per_step = B // 2 if (B >= 4 and B % 2 == 0) else 1
    assert B % images_per_step == 0
    bt = images_per_step
    steps = B // bt
    L = bt * HW

    (w0, b0), (w1, b1), (w2, b2) = params["convs"]
    (w3, b3), (w4, b4), (w5, b5) = params["tconvs"]
    c_d0 = w3.shape[-1]          # decoder-0 output channels (before skip cat)
    c_d1 = w4.shape[-1]          # decoder-1 output channels (before skip cat)

    # Per-tap weight stacks (bf16); cat-convs split so skips become accumulations.
    weights = [
        _w_to_taps(w0, cin_pad=CP), _bias_col(b0),                     # layer 0 (x|t|0-pad)
        _w_to_taps(w1), _bias_col(b1),
        _w_to_taps(w2), _bias_col(b2),
        _w_to_taps(w3), _bias_col(b3),
        _w_to_taps(w4[:, :, :c_d0, :]), _w_to_taps(w4[:, :, c_d0:, :]), _bias_col(b4),
        _w_to_taps(w5[:, :, :c_d1, :], cout_pad=CP),
        _w_to_taps(w5[:, :, c_d1:, :], cout_pad=CP),
        _bias_col(b5, cout_pad=CP),
    ]

    # Pack input: channels -> [x, t-channel, zeros] (CP total), images -> lane axis.
    x_f = x_nchw.astype(jnp.float32).reshape(steps, bt, C, HW)
    t_ch = jnp.broadcast_to(
        t.astype(jnp.float32).reshape(steps, bt, 1, 1), (steps, bt, 1, HW))
    pad = jnp.zeros((steps, bt, CP - C - 1, HW), jnp.float32)
    xin = jnp.concatenate([x_f, t_ch, pad], axis=2)                 # (steps, bt, CP, HW)
    xin = jnp.transpose(xin, (0, 2, 1, 3)).reshape(steps, CP, L)    # (steps, CP, L)

    masks = _border_masks(H, W, bt)                                 # (9, L) f32

    w_elems = sum(int(a.size) for a in weights if a.ndim == 3)
    cost = pl.CostEstimate(
        flops=2 * w_elems * L * steps,
        transcendentals=0,
        bytes_accessed=int(2 * xin.size * 4 + masks.size * 4
                           + sum(int(a.size) * a.dtype.itemsize for a in weights)))

    kernel = functools.partial(_score_kernel, W=W, L=L)
    out = pl.pallas_call(
        kernel,
        out_shape=jax.ShapeDtypeStruct((steps, CP, L), jnp.float32),
        grid=(steps,),
        in_specs=[
            pl.BlockSpec((9, L), lambda i: (0, 0)),                  # border masks (resident)
            pl.BlockSpec((1, CP, L), lambda i: (i, 0, 0)),           # packed input
        ] + [pl.BlockSpec(a.shape, lambda i, nd=a.ndim: (0,) * nd) for a in weights],
        out_specs=pl.BlockSpec((1, CP, L), lambda i: (i, 0, 0)),
        compiler_params=pltpu.CompilerParams(
            dimension_semantics=("parallel",)),
        cost_estimate=cost,
    )(masks, xin, *weights)

    out = out.reshape(steps, CP, bt, HW)
    out = jnp.transpose(out, (0, 2, 1, 3)).reshape(B, CP, H, W)
    return out[:, :C]                                                # drop channel padding


# ----------------------------------------------------------------------------
# Pure-JAX reference (full f32 weights, explicit concatenations)
# ----------------------------------------------------------------------------
def conv2d_3x3_same_ref(x, w, b, *, relu):
    y = jax.lax.conv_general_dilated(
        x, w, window_strides=(1, 1), padding="SAME",
        dimension_numbers=("NHWC", "HWIO", "NHWC"),
        precision=jax.lax.Precision.HIGHEST)
    y = y + b
    if relu:
        y = jnp.maximum(y, 0.0)
    return y


def score_network_forward_ref(x_nchw, t, params):
    B, C, H, W = x_nchw.shape
    x = jnp.transpose(x_nchw, (0, 2, 3, 1))  # -> NHWC
    tt = jnp.broadcast_to(t.reshape(B, 1, 1, 1), (B, H, W, 1)).astype(x.dtype)
    x = jnp.concatenate([x, tt], axis=-1)
    enc_signals = []
    convs = params["convs"]
    for i, (w, b) in enumerate(convs):
        x = conv2d_3x3_same_ref(x, w, b, relu=True)
        if i < len(convs) - 1:
            enc_signals.append(x)
    tconvs = params["tconvs"]
    for i, (w, b) in enumerate(tconvs):
        if i > 0:
            x = jnp.concatenate([x, enc_signals[-i]], axis=-1)
        x = conv2d_3x3_same_ref(x, w, b, relu=(i < len(tconvs) - 1))
    return jnp.transpose(x, (0, 3, 1, 2))  # back to NCHW


def init_params(key, in_channels):
    """Deterministic synthetic weights for the encoder / decoder stacks (HWIO)."""
    enc_io = [(in_channels + 1, 8), (8, 16), (16, 32)]
    # decoder input channels include the skip concatenation (as in forward()).
    dec_io = [(32, 16), (16 + 16, 8), (8 + 8, in_channels)]
    keys = jax.random.split(key, len(enc_io) + len(dec_io))
    params = {"convs": [], "tconvs": []}
    for k, (cin, cout) in zip(keys[: len(enc_io)], enc_io):
        w = jax.random.normal(k, (3, 3, cin, cout), jnp.float32)
        w = w * (1.0 / (3.0 * float(cin) ** 0.5))
        b = jnp.full((cout,), 0.01, jnp.float32)
        params["convs"].append((w, b))
    for k, (cin, cout) in zip(keys[len(enc_io):], dec_io):
        w = jax.random.normal(k, (3, 3, cin, cout), jnp.float32)
        w = w * (1.0 / (3.0 * float(cin) ** 0.5))
        b = jnp.full((cout,), 0.01, jnp.float32)
        params["tconvs"].append((w, b))
    return params


if __name__ == "__main__":
    key = jax.random.PRNGKey(0)
    kx, kt, kp = jax.random.split(key, 3)

    B, C, H, W = 2, 3, 16, 16
    x = jax.random.normal(kx, (B, C, H, W), jnp.float32)
    t = jax.random.uniform(kt, (B,), jnp.float32)
    params = init_params(kp, C)

    out = jax.block_until_ready(score_network_forward_pallas(x, t, params))
    ref = jax.block_until_ready(score_network_forward_ref(x, t, params))

    assert out.shape == (B, C, H, W), out.shape
    # bf16 MXU operands (f32 accumulation) vs pure-f32 reference -> loosened tolerance.
    assert jnp.allclose(out, ref, rtol=3e-2, atol=3e-2), (
        float(jnp.max(jnp.abs(out - ref))))
    print("KERNEL_OK")
</pallas_src>

<mosaic_0001>
module attributes {stable_mosaic.version = 11 : i64} {
  func.func @_score_kernel(%arg0: i32, %arg1: memref<9x256xf32, #tpu.memory_space<vmem>>, %arg2: memref<1x8x256xf32, #tpu.memory_space<vmem>>, %arg3: memref<9x8x8xbf16, #tpu.memory_space<vmem>>, %arg4: memref<8x1xf32, #tpu.memory_space<vmem>>, %arg5: memref<9x16x8xbf16, #tpu.memory_space<vmem>>, %arg6: memref<16x1xf32, #tpu.memory_space<vmem>>, %arg7: memref<9x32x16xbf16, #tpu.memory_space<vmem>>, %arg8: memref<32x1xf32, #tpu.memory_space<vmem>>, %arg9: memref<9x16x32xbf16, #tpu.memory_space<vmem>>, %arg10: memref<16x1xf32, #tpu.memory_space<vmem>>, %arg11: memref<9x8x16xbf16, #tpu.memory_space<vmem>>, %arg12: memref<9x8x16xbf16, #tpu.memory_space<vmem>>, %arg13: memref<8x1xf32, #tpu.memory_space<vmem>>, %arg14: memref<9x8x8xbf16, #tpu.memory_space<vmem>>, %arg15: memref<9x8x8xbf16, #tpu.memory_space<vmem>>, %arg16: memref<8x1xf32, #tpu.memory_space<vmem>>, %arg17: memref<1x8x256xf32, #tpu.memory_space<vmem>>) attributes {dimension_semantics = [#tpu.dimension_semantics<parallel>], iteration_bounds = array<i64: 2>, scalar_prefetch = 0 : i64, scratch_operands = 0 : i64, tpu.core_type = #tpu.core_type<tc>, window_params = [{pipeline_mode = #tpu.pipeline_mode<synchronous>, transform_indices = @transform_0, window_bounds = array<i64: 9, 256>}, {transform_indices = @transform_1, window_bounds = array<i64: 1, 8, 256>}, {pipeline_mode = #tpu.pipeline_mode<synchronous>, transform_indices = @transform_2, window_bounds = array<i64: 9, 8, 8>}, {pipeline_mode = #tpu.pipeline_mode<synchronous>, transform_indices = @transform_3, window_bounds = array<i64: 8, 1>}, {pipeline_mode = #tpu.pipeline_mode<synchronous>, transform_indices = @transform_4, window_bounds = array<i64: 9, 16, 8>}, {pipeline_mode = #tpu.pipeline_mode<synchronous>, transform_indices = @transform_5, window_bounds = array<i64: 16, 1>}, {pipeline_mode = #tpu.pipeline_mode<synchronous>, transform_indices = @transform_6, window_bounds = array<i64: 9, 32, 16>}, {pipeline_mode = #tpu.pipeline_mode<synchronous>, transform_indices = @transform_7, window_bounds = array<i64: 32, 1>}, {pipeline_mode = #tpu.pipeline_mode<synchronous>, transform_indices = @transform_8, window_bounds = array<i64: 9, 16, 32>}, {pipeline_mode = #tpu.pipeline_mode<synchronous>, transform_indices = @transform_9, window_bounds = array<i64: 16, 1>}, {pipeline_mode = #tpu.pipeline_mode<synchronous>, transform_indices = @transform_10, window_bounds = array<i64: 9, 8, 16>}, {pipeline_mode = #tpu.pipeline_mode<synchronous>, transform_indices = @transform_11, window_bounds = array<i64: 9, 8, 16>}, {pipeline_mode = #tpu.pipeline_mode<synchronous>, transform_indices = @transform_12, window_bounds = array<i64: 8, 1>}, {pipeline_mode = #tpu.pipeline_mode<synchronous>, transform_indices = @transform_13, window_bounds = array<i64: 9, 8, 8>}, {pipeline_mode = #tpu.pipeline_mode<synchronous>, transform_indices = @transform_14, window_bounds = array<i64: 9, 8, 8>}, {pipeline_mode = #tpu.pipeline_mode<synchronous>, transform_indices = @transform_15, window_bounds = array<i64: 8, 1>}, {transform_indices = @transform_16, window_bounds = array<i64: 1, 8, 256>}]} {
    %c0 = arith.constant 0 : index
    %c0_0 = arith.constant 0 : index
    %0 = vector.load %arg1[%c0, %c0_0] : memref<9x256xf32, #tpu.memory_space<vmem>>, vector<9x256xf32>
    %c0_1 = arith.constant 0 : index
    %c0_2 = arith.constant 0 : index
    %c0_3 = arith.constant 0 : index
    %1 = vector.load %arg2[%c0_1, %c0_2, %c0_3] : memref<1x8x256xf32, #tpu.memory_space<vmem>>, vector<1x8x256xf32>
    %2 = vector.shape_cast %1 : vector<1x8x256xf32> to vector<8x256xf32>
    %c0_4 = arith.constant 0 : index
    %c0_5 = arith.constant 0 : index
    %c0_6 = arith.constant 0 : index
    %3 = vector.load %arg3[%c0_4, %c0_5, %c0_6] : memref<9x8x8xbf16, #tpu.memory_space<vmem>>, vector<1x8x8xbf16>
    %4 = vector.shape_cast %3 : vector<1x8x8xbf16> to vector<8x8xbf16>
    %c17_i32 = arith.constant 17 : i32
    %5 = tpu.dynamic_rotate %2 by %c17_i32 dim 1 : vector<8x256xf32>, i32 -> vector<8x256xf32>
    %6 = vector.extract_strided_slice %0 {offsets = [0, 0], sizes = [1, 256], strides = [1, 1]} : vector<9x256xf32> to vector<1x256xf32>
    %7 = vector.broadcast %6 : vector<1x256xf32> to vector<8x256xf32>
    %8 = arith.mulf %5, %7 : vector<8x256xf32>
    %9 = arith.truncf %8 : vector<8x256xf32> to vector<8x256xbf16>
    %cst = arith.constant dense<0.000000e+00> : vector<8x256xf32>
    %10 = tpu.matmul %4, %9, %cst {dimension_numbers = #tpu.dot_dimension_numbers<[1], [0], [0], [1], [0, 0, 1, 1], [], []>} : vector<8x8xbf16>, vector<8x256xbf16>, vector<8x256xf32> -> vector<8x256xf32>
    %c1 = arith.constant 1 : index
    %c0_7 = arith.constant 0 : index
    %c0_8 = arith.constant 0 : index
    %11 = vector.load %arg3[%c1, %c0_7, %c0_8] : memref<9x8x8xbf16, #tpu.memory_space<vmem>>, vector<1x8x8xbf16>
    %12 = vector.shape_cast %11 : vector<1x8x8xbf16> to vector<8x8xbf16>
    %c16_i32 = arith.constant 16 : i32
    %13 = tpu.dynamic_rotate %2 by %c16_i32 dim 1 : vector<8x256xf32>, i32 -> vector<8x256xf32>
    %14 = vector.extract_strided_slice %0 {offsets = [1, 0], sizes = [1, 256], strides = [1, 1]} : vector<9x256xf32> to vector<1x256xf32>
    %15 = vector.broadcast %14 : vector<1x256xf32> to vector<8x256xf32>
    %16 = arith.mulf %13, %15 : vector<8x256xf32>
    %17 = arith.truncf %16 : vector<8x256xf32> to vector<8x256xbf16>
    %cst_9 = arith.constant dense<0.000000e+00> : vector<8x256xf32>
    %18 = tpu.matmul %12, %17, %cst_9 {dimension_numbers = #tpu.dot_dimension_numbers<[1], [0], [0], [1], [0, 0, 1, 1], [], []>} : vector<8x8xbf16>, vector<8x256xbf16>, vector<8x256xf32> -> vector<8x256xf32>
    %19 = arith.addf %10, %18 : vector<8x256xf32>
    %c2 = arith.constant 2 : index
    %c0_10 = arith.constant 0 : index
    %c0_11 = arith.constant 0 : index
    %20 = vector.load %arg3[%c2, %c0_10, %c0_11] : memref<9x8x8xbf16, #tpu.memory_space<vmem>>, vector<1x8x8xbf16>
    %21 = vector.shape_cast %20 : vector<1x8x8xbf16> to vector<8x8xbf16>
    %c15_i32 = arith.constant 15 : i32
    %22 = tpu.dynamic_rotate %2 by %c15_i32 dim 1 : vector<8x256xf32>, i32 -> vector<8x256xf32>
    %23 = vector.extract_strided_slice %0 {offsets = [2, 0], sizes = [1, 256], strides = [1, 1]} : vector<9x256xf32> to vector<1x256xf32>
    %24 = vector.broadcast %23 : vector<1x256xf32> to vector<8x256xf32>
    %25 = arith.mulf %22, %24 : vector<8x256xf32>
    %26 = arith.truncf %25 : vector<8x256xf32> to vector<8x256xbf16>
    %cst_12 = arith.constant dense<0.000000e+00> : vector<8x256xf32>
    %27 = tpu.matmul %21, %26, %cst_12 {dimension_numbers = #tpu.dot_dimension_numbers<[1], [0], [0], [1], [0, 0, 1, 1], [], []>} : vector<8x8xbf16>, vector<8x256xbf16>, vector<8x256xf32> -> vector<8x256xf32>
    %28 = arith.addf %19, %27 : vector<8x256xf32>
    %c3 = arith.constant 3 : index
    %c0_13 = arith.constant 0 : index
    %c0_14 = arith.constant 0 : index
    %29 = vector.load %arg3[%c3, %c0_13, %c0_14] : memref<9x8x8xbf16, #tpu.memory_space<vmem>>, vector<1x8x8xbf16>
    %30 = vector.shape_cast %29 : vector<1x8x8xbf16> to vector<8x8xbf16>
    %c1_i32 = arith.constant 1 : i32
    %31 = tpu.dynamic_rotate %2 by %c1_i32 dim 1 : vector<8x256xf32>, i32 -> vector<8x256xf32>
    %32 = vector.extract_strided_slice %0 {offsets = [3, 0], sizes = [1, 256], strides = [1, 1]} : vector<9x256xf32> to vector<1x256xf32>
    %33 = vector.broadcast %32 : vector<1x256xf32> to vector<8x256xf32>
    %34 = arith.mulf %31, %33 : vector<8x256xf32>
    %35 = arith.truncf %34 : vector<8x256xf32> to vector<8x256xbf16>
    %cst_15 = arith.constant dense<0.000000e+00> : vector<8x256xf32>
    %36 = tpu.matmul %30, %35, %cst_15 {dimension_numbers = #tpu.dot_dimension_numbers<[1], [0], [0], [1], [0, 0, 1, 1], [], []>} : vector<8x8xbf16>, vector<8x256xbf16>, vector<8x256xf32> -> vector<8x256xf32>
    %37 = arith.addf %28, %36 : vector<8x256xf32>
    %c4 = arith.constant 4 : index
    %c0_16 = arith.constant 0 : index
    %c0_17 = arith.constant 0 : index
    %38 = vector.load %arg3[%c4, %c0_16, %c0_17] : memref<9x8x8xbf16, #tpu.memory_space<vmem>>, vector<1x8x8xbf16>
    %39 = vector.shape_cast %38 : vector<1x8x8xbf16> to vector<8x8xbf16>
    %40 = arith.truncf %2 : vector<8x256xf32> to vector<8x256xbf16>
    %cst_18 = arith.constant dense<0.000000e+00> : vector<8x256xf32>
    %41 = tpu.matmul %39, %40, %cst_18 {dimension_numbers = #tpu.dot_dimension_numbers<[1], [0], [0], [1], [0, 0, 1, 1], [], []>} : vector<8x8xbf16>, vector<8x256xbf16>, vector<8x256xf32> -> vector<8x256xf32>
    %42 = arith.addf %37, %41 : vector<8x256xf32>
    %c5 = arith.constant 5 : index
    %c0_19 = arith.constant 0 : index
    %c0_20 = arith.constant 0 : index
    %43 = vector.load %arg3[%c5, %c0_19, %c0_20] : memref<9x8x8xbf16, #tpu.memory_space<vmem>>, vector<1x8x8xbf16>
    %44 = vector.shape_cast %43 : vector<1x8x8xbf16> to vector<8x8xbf16>
    %c255_i32 = arith.constant 255 : i32
    %45 = tpu.dynamic_rotate %2 by %c255_i32 dim 1 : vector<8x256xf32>, i32 -> vector<8x256xf32>
    %46 = vector.extract_strided_slice %0 {offsets = [5, 0], sizes = [1, 256], strides = [1, 1]} : vector<9x256xf32> to vector<1x256xf32>
    %47 = vector.broadcast %46 : vector<1x256xf32> to vector<8x256xf32>
    %48 = arith.mulf %45, %47 : vector<8x256xf32>
    %49 = arith.truncf %48 : vector<8x256xf32> to vector<8x256xbf16>
    %cst_21 = arith.constant dense<0.000000e+00> : vector<8x256xf32>
    %50 = tpu.matmul %44, %49, %cst_21 {dimension_numbers = #tpu.dot_dimension_numbers<[1], [0], [0], [1], [0, 0, 1, 1], [], []>} : vector<8x8xbf16>, vector<8x256xbf16>, vector<8x256xf32> -> vector<8x256xf32>
    %51 = arith.addf %42, %50 : vector<8x256xf32>
    %c6 = arith.constant 6 : index
    %c0_22 = arith.constant 0 : index
    %c0_23 = arith.constant 0 : index
    %52 = vector.load %arg3[%c6, %c0_22, %c0_23] : memref<9x8x8xbf16, #tpu.memory_space<vmem>>, vector<1x8x8xbf16>
    %53 = vector.shape_cast %52 : vector<1x8x8xbf16> to vector<8x8xbf16>
    %c241_i32 = arith.constant 241 : i32
    %54 = tpu.dynamic_rotate %2 by %c241_i32 dim 1 : vector<8x256xf32>, i32 -> vector<8x256xf32>
    %55 = vector.extract_strided_slice %0 {offsets = [6, 0], sizes = [1, 256], strides = [1, 1]} : vector<9x256xf32> to vector<1x256xf32>
    %56 = vector.broadcast %55 : vector<1x256xf32> to vector<8x256xf32>
    %57 = arith.mulf %54, %56 : vector<8x256xf32>
    %58 = arith.truncf %57 : vector<8x256xf32> to vector<8x256xbf16>
    %cst_24 = arith.constant dense<0.000000e+00> : vector<8x256xf32>
    %59 = tpu.matmul %53, %58, %cst_24 {dimension_numbers = #tpu.dot_dimension_numbers<[1], [0], [0], [1], [0, 0, 1, 1], [], []>} : vector<8x8xbf16>, vector<8x256xbf16>, vector<8x256xf32> -> vector<8x256xf32>
    %60 = arith.addf %51, %59 : vector<8x256xf32>
    %c7 = arith.constant 7 : index
    %c0_25 = arith.constant 0 : index
    %c0_26 = arith.constant 0 : index
    %61 = vector.load %arg3[%c7, %c0_25, %c0_26] : memref<9x8x8xbf16, #tpu.memory_space<vmem>>, vector<1x8x8xbf16>
    %62 = vector.shape_cast %61 : vector<1x8x8xbf16> to vector<8x8xbf16>
    %c240_i32 = arith.constant 240 : i32
    %63 = tpu.dynamic_rotate %2 by %c240_i32 dim 1 : vector<8x256xf32>, i32 -> vector<8x256xf32>
    %64 = vector.extract_strided_slice %0 {offsets = [7, 0], sizes = [1, 256], strides = [1, 1]} : vector<9x256xf32> to vector<1x256xf32>
    %65 = vector.broadcast %64 : vector<1x256xf32> to vector<8x256xf32>
    %66 = arith.mulf %63, %65 : vector<8x256xf32>
    %67 = arith.truncf %66 : vector<8x256xf32> to vector<8x256xbf16>
    %cst_27 = arith.constant dense<0.000000e+00> : vector<8x256xf32>
    %68 = tpu.matmul %62, %67, %cst_27 {dimension_numbers = #tpu.dot_dimension_numbers<[1], [0], [0], [1], [0, 0, 1, 1], [], []>} : vector<8x8xbf16>, vector<8x256xbf16>, vector<8x256xf32> -> vector<8x256xf32>
    %69 = arith.addf %60, %68 : vector<8x256xf32>
    %c8 = arith.constant 8 : index
    %c0_28 = arith.constant 0 : index
    %c0_29 = arith.constant 0 : index
    %70 = vector.load %arg3[%c8, %c0_28, %c0_29] : memref<9x8x8xbf16, #tpu.memory_space<vmem>>, vector<1x8x8xbf16>
    %71 = vector.shape_cast %70 : vector<1x8x8xbf16> to vector<8x8xbf16>
    %c239_i32 = arith.constant 239 : i32
    %72 = tpu.dynamic_rotate %2 by %c239_i32 dim 1 : vector<8x256xf32>, i32 -> vector<8x256xf32>
    %73 = vector.extract_strided_slice %0 {offsets = [8, 0], sizes = [1, 256], strides = [1, 1]} : vector<9x256xf32> to vector<1x256xf32>
    %74 = vector.broadcast %73 : vector<1x256xf32> to vector<8x256xf32>
    %75 = arith.mulf %72, %74 : vector<8x256xf32>
    %76 = arith.truncf %75 : vector<8x256xf32> to vector<8x256xbf16>
    %cst_30 = arith.constant dense<0.000000e+00> : vector<8x256xf32>
    %77 = tpu.matmul %71, %76, %cst_30 {dimension_numbers = #tpu.dot_dimension_numbers<[1], [0], [0], [1], [0, 0, 1, 1], [], []>} : vector<8x8xbf16>, vector<8x256xbf16>, vector<8x256xf32> -> vector<8x256xf32>
    %78 = arith.addf %69, %77 : vector<8x256xf32>
    %c0_31 = arith.constant 0 : index
    %c0_32 = arith.constant 0 : index
    %79 = vector.load %arg4[%c0_31, %c0_32] : memref<8x1xf32, #tpu.memory_space<vmem>>, vector<8x1xf32>
    %80 = vector.broadcast %79 : vector<8x1xf32> to vector<8x256xf32>
    %81 = arith.addf %78, %80 : vector<8x256xf32>
    %cst_33 = arith.constant 0.000000e+00 : f32
    %82 = vector.broadcast %cst_33 : f32 to vector<8x256xf32>
    %83 = arith.maximumf %81, %82 : vector<8x256xf32>
    %c17_i32_34 = arith.constant 17 : i32
    %84 = tpu.dynamic_rotate %83 by %c17_i32_34 dim 1 : vector<8x256xf32>, i32 -> vector<8x256xf32>
    %85 = vector.extract_strided_slice %0 {offsets = [0, 0], sizes = [1, 256], strides = [1, 1]} : vector<9x256xf32> to vector<1x256xf32>
    %86 = vector.broadcast %85 : vector<1x256xf32> to vector<8x256xf32>
    %87 = arith.mulf %84, %86 : vector<8x256xf32>
    %88 = arith.truncf %87 : vector<8x256xf32> to vector<8x256xbf16>
    %c16_i32_35 = arith.constant 16 : i32
    %89 = tpu.dynamic_rotate %83 by %c16_i32_35 dim 1 : vector<8x256xf32>, i32 -> vector<8x256xf32>
    %90 = vector.extract_strided_slice %0 {offsets = [1, 0], sizes = [1, 256], strides = [1, 1]} : vector<9x256xf32> to vector<1x256xf32>
    %91 = vector.broadcast %90 : vector<1x256xf32> to vector<8x256xf32>
    %92 = arith.mulf %89, %91 : vector<8x256xf32>
    %93 = arith.truncf %92 : vector<8x256xf32> to vector<8x256xbf16>
    %c15_i32_36 = arith.constant 15 : i32
    %94 = tpu.dynamic_rotate %83 by %c15_i32_36 dim 1 : vector<8x256xf32>, i32 -> vector<8x256xf32>
    %95 = vector.extract_strided_slice %0 {offsets = [2, 0], sizes = [1, 256], strides = [1, 1]} : vector<9x256xf32> to vector<1x256xf32>
    %96 = vector.broadcast %95 : vector<1x256xf32> to vector<8x256xf32>
    %97 = arith.mulf %94, %96 : vector<8x256xf32>
    %98 = arith.truncf %97 : vector<8x256xf32> to vector<8x256xbf16>
    %c1_i32_37 = arith.constant 1 : i32
    %99 = tpu.dynamic_rotate %83 by %c1_i32_37 dim 1 : vector<8x256xf32>, i32 -> vector<8x256xf32>
    %100 = vector.extract_strided_slice %0 {offsets = [3, 0], sizes = [1, 256], strides = [1, 1]} : vector<9x256xf32> to vector<1x256xf32>
    %101 = vector.broadcast %100 : vector<1x256xf32> to vector<8x256xf32>
    %102 = arith.mulf %99, %101 : vector<8x256xf32>
    %103 = arith.truncf %102 : vector<8x256xf32> to vector<8x256xbf16>
    %104 = arith.truncf %83 : vector<8x256xf32> to vector<8x256xbf16>
    %c255_i32_38 = arith.constant 255 : i32
    %105 = tpu.dynamic_rotate %83 by %c255_i32_38 dim 1 : vector<8x256xf32>, i32 -> vector<8x256xf32>
    %106 = vector.extract_strided_slice %0 {offsets = [5, 0], sizes = [1, 256], strides = [1, 1]} : vector<9x256xf32> to vector<1x256xf32>
    %107 = vector.broadcast %106 : vector<1x256xf32> to vector<8x256xf32>
    %108 = arith.mulf %105, %107 : vector<8x256xf32>
    %109 = arith.truncf %108 : vector<8x256xf32> to vector<8x256xbf16>
    %c241_i32_39 = arith.constant 241 : i32
    %110 = tpu.dynamic_rotate %83 by %c241_i32_39 dim 1 : vector<8x256xf32>, i32 -> vector<8x256xf32>
    %111 = vector.extract_strided_slice %0 {offsets = [6, 0], sizes = [1, 256], strides = [1, 1]} : vector<9x256xf32> to vector<1x256xf32>
    %112 = vector.broadcast %111 : vector<1x256xf32> to vector<8x256xf32>
    %113 = arith.mulf %110, %112 : vector<8x256xf32>
    %114 = arith.truncf %113 : vector<8x256xf32> to vector<8x256xbf16>
    %c240_i32_40 = arith.constant 240 : i32
    %115 = tpu.dynamic_rotate %83 by %c240_i32_40 dim 1 : vector<8x256xf32>, i32 -> vector<8x256xf32>
    %116 = vector.extract_strided_slice %0 {offsets = [7, 0], sizes = [1, 256], strides = [1, 1]} : vector<9x256xf32> to vector<1x256xf32>
    %117 = vector.broadcast %116 : vector<1x256xf32> to vector<8x256xf32>
    %118 = arith.mulf %115, %117 : vector<8x256xf32>
    %119 = arith.truncf %118 : vector<8x256xf32> to vector<8x256xbf16>
    %c239_i32_41 = arith.constant 239 : i32
    %120 = tpu.dynamic_rotate %83 by %c239_i32_41 dim 1 : vector<8x256xf32>, i32 -> vector<8x256xf32>
    %121 = vector.extract_strided_slice %0 {offsets = [8, 0], sizes = [1, 256], strides = [1, 1]} : vector<9x256xf32> to vector<1x256xf32>
    %122 = vector.broadcast %121 : vector<1x256xf32> to vector<8x256xf32>
    %123 = arith.mulf %120, %122 : vector<8x256xf32>
    %124 = arith.truncf %123 : vector<8x256xf32> to vector<8x256xbf16>
    %c0_42 = arith.constant 0 : index
    %c0_43 = arith.constant 0 : index
    %c0_44 = arith.constant 0 : index
    %125 = vector.load %arg5[%c0_42, %c0_43, %c0_44] : memref<9x16x8xbf16, #tpu.memory_space<vmem>>, vector<1x16x8xbf16>
    %126 = vector.shape_cast %125 : vector<1x16x8xbf16> to vector<16x8xbf16>
    %cst_45 = arith.constant dense<0.000000e+00> : vector<16x256xf32>
    %127 = tpu.matmul %126, %88, %cst_45 {dimension_numbers = #tpu.dot_dimension_numbers<[1], [0], [0], [1], [0, 0, 1, 1], [], []>} : vector<16x8xbf16>, vector<8x256xbf16>, vector<16x256xf32> -> vector<16x256xf32>
    %c1_46 = arith.constant 1 : index
    %c0_47 = arith.constant 0 : index
    %c0_48 = arith.constant 0 : index
    %128 = vector.load %arg5[%c1_46, %c0_47, %c0_48] : memref<9x16x8xbf16, #tpu.memory_space<vmem>>, vector<1x16x8xbf16>
    %129 = vector.shape_cast %128 : vector<1x16x8xbf16> to vector<16x8xbf16>
    %cst_49 = arith.constant dense<0.000000e+00> : vector<16x256xf32>
    %130 = tpu.matmul %129, %93, %cst_49 {dimension_numbers = #tpu.dot_dimension_numbers<[1], [0], [0], [1], [0, 0, 1, 1], [], []>} : vector<16x8xbf16>, vector<8x256xbf16>, vector<16x256xf32> -> vector<16x256xf32>
    %131 = arith.addf %127, %130 : vector<16x256xf32>
    %c2_50 = arith.constant 2 : index
    %c0_51 = arith.constant 0 : index
    %c0_52 = arith.constant 0 : index
    %132 = vector.load %arg5[%c2_50, %c0_51, %c0_52] : memref<9x16x8xbf16, #tpu.memory_space<vmem>>, vector<1x16x8xbf16>
    %133 = vector.shape_cast %132 : vector<1x16x8xbf16> to vector<16x8xbf16>
    %cst_53 = arith.constant dense<0.000000e+00> : vector<16x256xf32>
    %134 = tpu.matmul %133, %98, %cst_53 {dimension_numbers = #tpu.dot_dimension_numbers<[1], [0], [0], [1], [0, 0, 1, 1], [], []>} : vector<16x8xbf16>, vector<8x256xbf16>, vector<16x256xf32> -> vector<16x256xf32>
    %135 = arith.addf %131, %134 : vector<16x256xf32>
    %c3_54 = arith.constant 3 : index
    %c0_55 = arith.constant 0 : index
    %c0_56 = arith.constant 0 : index
    %136 = vector.load %arg5[%c3_54, %c0_55, %c0_56] : memref<9x16x8xbf16, #tpu.memory_space<vmem>>, vector<1x16x8xbf16>
    %137 = vector.shape_cast %136 : vector<1x16x8xbf16> to vector<16x8xbf16>
    %cst_57 = arith.constant dense<0.000000e+00> : vector<16x256xf32>
    %138 = tpu.matmul %137, %103, %cst_57 {dimension_numbers = #tpu.dot_dimension_numbers<[1], [0], [0], [1], [0, 0, 1, 1], [], []>} : vector<16x8xbf16>, vector<8x256xbf16>, vector<16x256xf32> -> vector<16x256xf32>
    %139 = arith.addf %135, %138 : vector<16x256xf32>
    %c4_58 = arith.constant 4 : index
    %c0_59 = arith.constant 0 : index
    %c0_60 = arith.constant 0 : index
    %140 = vector.load %arg5[%c4_58, %c0_59, %c0_60] : memref<9x16x8xbf16, #tpu.memory_space<vmem>>, vector<1x16x8xbf16>
    %141 = vector.shape_cast %140 : vector<1x16x8xbf16> to vector<16x8xbf16>
    %cst_61 = arith.constant dense<0.000000e+00> : vector<16x256xf32>
    %142 = tpu.matmul %141, %104, %cst_61 {dimension_numbers = #tpu.dot_dimension_numbers<[1], [0], [0], [1], [0, 0, 1, 1], [], []>} : vector<16x8xbf16>, vector<8x256xbf16>, vector<16x256xf32> -> vector<16x256xf32>
    %143 = arith.addf %139, %142 : vector<16x256xf32>
    %c5_62 = arith.constant 5 : index
    %c0_63 = arith.constant 0 : index
    %c0_64 = arith.constant 0 : index
    %144 = vector.load %arg5[%c5_62, %c0_63, %c0_64] : memref<9x16x8xbf16, #tpu.memory_space<vmem>>, vector<1x16x8xbf16>
    %145 = vector.shape_cast %144 : vector<1x16x8xbf16> to vector<16x8xbf16>
    %cst_65 = arith.constant dense<0.000000e+00> : vector<16x256xf32>
    %146 = tpu.matmul %145, %109, %cst_65 {dimension_numbers = #tpu.dot_dimension_numbers<[1], [0], [0], [1], [0, 0, 1, 1], [], []>} : vector<16x8xbf16>, vector<8x256xbf16>, vector<16x256xf32> -> vector<16x256xf32>
    %147 = arith.addf %143, %146 : vector<16x256xf32>
    %c6_66 = arith.constant 6 : index
    %c0_67 = arith.constant 0 : index
    %c0_68 = arith.constant 0 : index
    %148 = vector.load %arg5[%c6_66, %c0_67, %c0_68] : memref<9x16x8xbf16, #tpu.memory_space<vmem>>, vector<1x16x8xbf16>
    %149 = vector.shape_cast %148 : vector<1x16x8xbf16> to vector<16x8xbf16>
    %cst_69 = arith.constant dense<0.000000e+00> : vector<16x256xf32>
    %150 = tpu.matmul %149, %114, %cst_69 {dimension_numbers = #tpu.dot_dimension_numbers<[1], [0], [0], [1], [0, 0, 1, 1], [], []>} : vector<16x8xbf16>, vector<8x256xbf16>, vector<16x256xf32> -> vector<16x256xf32>
    %151 = arith.addf %147, %150 : vector<16x256xf32>
    %c7_70 = arith.constant 7 : index
    %c0_71 = arith.constant 0 : index
    %c0_72 = arith.constant 0 : index
    %152 = vector.load %arg5[%c7_70, %c0_71, %c0_72] : memref<9x16x8xbf16, #tpu.memory_space<vmem>>, vector<1x16x8xbf16>
    %153 = vector.shape_cast %152 : vector<1x16x8xbf16> to vector<16x8xbf16>
    %cst_73 = arith.constant dense<0.000000e+00> : vector<16x256xf32>
    %154 = tpu.matmul %153, %119, %cst_73 {dimension_numbers = #tpu.dot_dimension_numbers<[1], [0], [0], [1], [0, 0, 1, 1], [], []>} : vector<16x8xbf16>, vector<8x256xbf16>, vector<16x256xf32> -> vector<16x256xf32>
    %155 = arith.addf %151, %154 : vector<16x256xf32>
    %c8_74 = arith.constant 8 : index
    %c0_75 = arith.constant 0 : index
    %c0_76 = arith.constant 0 : index
    %156 = vector.load %arg5[%c8_74, %c0_75, %c0_76] : memref<9x16x8xbf16, #tpu.memory_space<vmem>>, vector<1x16x8xbf16>
    %157 = vector.shape_cast %156 : vector<1x16x8xbf16> to vector<16x8xbf16>
    %cst_77 = arith.constant dense<0.000000e+00> : vector<16x256xf32>
    %158 = tpu.matmul %157, %124, %cst_77 {dimension_numbers = #tpu.dot_dimension_numbers<[1], [0], [0], [1], [0, 0, 1, 1], [], []>} : vector<16x8xbf16>, vector<8x256xbf16>, vector<16x256xf32> -> vector<16x256xf32>
    %159 = arith.addf %155, %158 : vector<16x256xf32>
    %c0_78 = arith.constant 0 : index
    %c0_79 = arith.constant 0 : index
    %160 = vector.load %arg6[%c0_78, %c0_79] : memref<16x1xf32, #tpu.memory_space<vmem>>, vector<16x1xf32>
    %161 = vector.broadcast %160 : vector<16x1xf32> to vector<16x256xf32>
    %162 = arith.addf %159, %161 : vector<16x256xf32>
    %cst_80 = arith.constant 0.000000e+00 : f32
    %163 = vector.broadcast %cst_80 : f32 to vector<16x256xf32>
    %164 = arith.maximumf %162, %163 : vector<16x256xf32>
    %c17_i32_81 = arith.constant 17 : i32
    %165 = tpu.dynamic_rotate %164 by %c17_i32_81 dim 1 : vector<16x256xf32>, i32 -> vector<16x256xf32>
    %166 = vector.extract_strided_slice %0 {offsets = [0, 0], sizes = [1, 256], strides = [1, 1]} : vector<9x256xf32> to vector<1x256xf32>
    %167 = vector.broadcast %166 : vector<1x256xf32> to vector<16x256xf32>
    %168 = arith.mulf %165, %167 : vector<16x256xf32>
    %169 = arith.truncf %168 : vector<16x256xf32> to vector<16x256xbf16>
    %c16_i32_82 = arith.constant 16 : i32
    %170 = tpu.dynamic_rotate %164 by %c16_i32_82 dim 1 : vector<16x256xf32>, i32 -> vector<16x256xf32>
    %171 = vector.extract_strided_slice %0 {offsets = [1, 0], sizes = [1, 256], strides = [1, 1]} : vector<9x256xf32> to vector<1x256xf32>
    %172 = vector.broadcast %171 : vector<1x256xf32> to vector<16x256xf32>
    %173 = arith.mulf %170, %172 : vector<16x256xf32>
    %174 = arith.truncf %173 : vector<16x256xf32> to vector<16x256xbf16>
    %c15_i32_83 = arith.constant 15 : i32
    %175 = tpu.dynamic_rotate %164 by %c15_i32_83 dim 1 : vector<16x256xf32>, i32 -> vector<16x256xf32>
    %176 = vector.extract_strided_slice %0 {offsets = [2, 0], sizes = [1, 256], strides = [1, 1]} : vector<9x256xf32> to vector<1x256xf32>
    %177 = vector.broadcast %176 : vector<1x256xf32> to vector<16x256xf32>
    %178 = arith.mulf %175, %177 : vector<16x256xf32>
    %179 = arith.truncf %178 : vector<16x256xf32> to vector<16x256xbf16>
    %c1_i32_84 = arith.constant 1 : i32
    %180 = tpu.dynamic_rotate %164 by %c1_i32_84 dim 1 : vector<16x256xf32>, i32 -> vector<16x256xf32>
    %181 = vector.extract_strided_slice %0 {offsets = [3, 0], sizes = [1, 256], strides = [1, 1]} : vector<9x256xf32> to vector<1x256xf32>
    %182 = vector.broadcast %181 : vector<1x256xf32> to vector<16x256xf32>
    %183 = arith.mulf %180, %182 : vector<16x256xf32>
    %184 = arith.truncf %183 : vector<16x256xf32> to vector<16x256xbf16>
    %185 = arith.truncf %164 : vector<16x256xf32> to vector<16x256xbf16>
    %c255_i32_85 = arith.constant 255 : i32
    %186 = tpu.dynamic_rotate %164 by %c255_i32_85 dim 1 : vector<16x256xf32>, i32 -> vector<16x256xf32>
    %187 = vector.extract_strided_slice %0 {offsets = [5, 0], sizes = [1, 256], strides = [1, 1]} : vector<9x256xf32> to vector<1x256xf32>
    %188 = vector.broadcast %187 : vector<1x256xf32> to vector<16x256xf32>
    %189 = arith.mulf %186, %188 : vector<16x256xf32>
    %190 = arith.truncf %189 : vector<16x256xf32> to vector<16x256xbf16>
    %c241_i32_86 = arith.constant 241 : i32
    %191 = tpu.dynamic_rotate %164 by %c241_i32_86 dim 1 : vector<16x256xf32>, i32 -> vector<16x256xf32>
    %192 = vector.extract_strided_slice %0 {offsets = [6, 0], sizes = [1, 256], strides = [1, 1]} : vector<9x256xf32> to vector<1x256xf32>
    %193 = vector.broadcast %192 : vector<1x256xf32> to vector<16x256xf32>
    %194 = arith.mulf %191, %193 : vector<16x256xf32>
    %195 = arith.truncf %194 : vector<16x256xf32> to vector<16x256xbf16>
    %c240_i32_87 = arith.constant 240 : i32
    %196 = tpu.dynamic_rotate %164 by %c240_i32_87 dim 1 : vector<16x256xf32>, i32 -> vector<16x256xf32>
    %197 = vector.extract_strided_slice %0 {offsets = [7, 0], sizes = [1, 256], strides = [1, 1]} : vector<9x256xf32> to vector<1x256xf32>
    %198 = vector.broadcast %197 : vector<1x256xf32> to vector<16x256xf32>
    %199 = arith.mulf %196, %198 : vector<16x256xf32>
    %200 = arith.truncf %199 : vector<16x256xf32> to vector<16x256xbf16>
    %c239_i32_88 = arith.constant 239 : i32
    %201 = tpu.dynamic_rotate %164 by %c239_i32_88 dim 1 : vector<16x256xf32>, i32 -> vector<16x256xf32>
    %202 = vector.extract_strided_slice %0 {offsets = [8, 0], sizes = [1, 256], strides = [1, 1]} : vector<9x256xf32> to vector<1x256xf32>
    %203 = vector.broadcast %202 : vector<1x256xf32> to vector<16x256xf32>
    %204 = arith.mulf %201, %203 : vector<16x256xf32>
    %205 = arith.truncf %204 : vector<16x256xf32> to vector<16x256xbf16>
    %c0_89 = arith.constant 0 : index
    %c0_90 = arith.constant 0 : index
    %c0_91 = arith.constant 0 : index
    %206 = vector.load %arg7[%c0_89, %c0_90, %c0_91] : memref<9x32x16xbf16, #tpu.memory_space<vmem>>, vector<1x32x16xbf16>
    %207 = vector.shape_cast %206 : vector<1x32x16xbf16> to vector<32x16xbf16>
    %cst_92 = arith.constant dense<0.000000e+00> : vector<32x256xf32>
    %208 = tpu.matmul %207, %169, %cst_92 {dimension_numbers = #tpu.dot_dimension_numbers<[1], [0], [0], [1], [0, 0, 1, 1], [], []>} : vector<32x16xbf16>, vector<16x256xbf16>, vector<32x256xf32> -> vector<32x256xf32>
    %c1_93 = arith.constant 1 : index
    %c0_94 = arith.constant 0 : index
    %c0_95 = arith.constant 0 : index
    %209 = vector.load %arg7[%c1_93, %c0_94, %c0_95] : memref<9x32x16xbf16, #tpu.memory_space<vmem>>, vector<1x32x16xbf16>
    %210 = vector.shape_cast %209 : vector<1x32x16xbf16> to vector<32x16xbf16>
    %cst_96 = arith.constant dense<0.000000e+00> : vector<32x256xf32>
    %211 = tpu.matmul %210, %174, %cst_96 {dimension_numbers = #tpu.dot_dimension_numbers<[1], [0], [0], [1], [0, 0, 1, 1], [], []>} : vector<32x16xbf16>, vector<16x256xbf16>, vector<32x256xf32> -> vector<32x256xf32>
    %212 = arith.addf %208, %211 : vector<32x256xf32>
    %c2_97 = arith.constant 2 : index
    %c0_98 = arith.constant 0 : index
    %c0_99 = arith.constant 0 : index
    %213 = vector.load %arg7[%c2_97, %c0_98, %c0_99] : memref<9x32x16xbf16, #tpu.memory_space<vmem>>, vector<1x32x16xbf16>
    %214 = vector.shape_cast %213 : vector<1x32x16xbf16> to vector<32x16xbf16>
    %cst_100 = arith.constant dense<0.000000e+00> : vector<32x256xf32>
    %215 = tpu.matmul %214, %179, %cst_100 {dimension_numbers = #tpu.dot_dimension_numbers<[1], [0], [0], [1], [0, 0, 1, 1], [], []>} : vector<32x16xbf16>, vector<16x256xbf16>, vector<32x256xf32> -> vector<32x256xf32>
    %216 = arith.addf %212, %215 : vector<32x256xf32>
    %c3_101 = arith.constant 3 : index
    %c0_102 = arith.constant 0 : index
    %c0_103 = arith.constant 0 : index
    %217 = vector.load %arg7[%c3_101, %c0_102, %c0_103] : memref<9x32x16xbf16, #tpu.memory_space<vmem>>, vector<1x32x16xbf16>
    %218 = vector.shape_cast %217 : vector<1x32x16xbf16> to vector<32x16xbf16>
    %cst_104 = arith.constant dense<0.000000e+00> : vector<32x256xf32>
    %219 = tpu.matmul %218, %184, %cst_104 {dimension_numbers = #tpu.dot_dimension_numbers<[1], [0], [0], [1], [0, 0, 1, 1], [], []>} : vector<32x16xbf16>, vector<16x256xbf16>, vector<32x256xf32> -> vector<32x256xf32>
    %220 = arith.addf %216, %219 : vector<32x256xf32>
    %c4_105 = arith.constant 4 : index
    %c0_106 = arith.constant 0 : index
    %c0_107 = arith.constant 0 : index
    %221 = vector.load %arg7[%c4_105, %c0_106, %c0_107] : memref<9x32x16xbf16, #tpu.memory_space<vmem>>, vector<1x32x16xbf16>
    %222 = vector.shape_cast %221 : vector<1x32x16xbf16> to vector<32x16xbf16>
    %cst_108 = arith.constant dense<0.000000e+00> : vector<32x256xf32>
    %223 = tpu.matmul %222, %185, %cst_108 {dimension_numbers = #tpu.dot_dimension_numbers<[1], [0], [0], [1], [0, 0, 1, 1], [], []>} : vector<32x16xbf16>, vector<16x256xbf16>, vector<32x256xf32> -> vector<32x256xf32>
    %224 = arith.addf %220, %223 : vector<32x256xf32>
    %c5_109 = arith.constant 5 : index
    %c0_110 = arith.constant 0 : index
    %c0_111 = arith.constant 0 : index
    %225 = vector.load %arg7[%c5_109, %c0_110, %c0_111] : memref<9x32x16xbf16, #tpu.memory_space<vmem>>, vector<1x32x16xbf16>
    %226 = vector.shape_cast %225 : vector<1x32x16xbf16> to vector<32x16xbf16>
    %cst_112 = arith.constant dense<0.000000e+00> : vector<32x256xf32>
    %227 = tpu.matmul %226, %190, %cst_112 {dimension_numbers = #tpu.dot_dimension_numbers<[1], [0], [0], [1], [0, 0, 1, 1], [], []>} : vector<32x16xbf16>, vector<16x256xbf16>, vector<32x256xf32> -> vector<32x256xf32>
    %228 = arith.addf %224, %227 : vector<32x256xf32>
    %c6_113 = arith.constant 6 : index
    %c0_114 = arith.constant 0 : index
    %c0_115 = arith.constant 0 : index
    %229 = vector.load %arg7[%c6_113, %c0_114, %c0_115] : memref<9x32x16xbf16, #tpu.memory_space<vmem>>, vector<1x32x16xbf16>
    %230 = vector.shape_cast %229 : vector<1x32x16xbf16> to vector<32x16xbf16>
    %cst_116 = arith.constant dense<0.000000e+00> : vector<32x256xf32>
    %231 = tpu.matmul %230, %195, %cst_116 {dimension_numbers = #tpu.dot_dimension_numbers<[1], [0], [0], [1], [0, 0, 1, 1], [], []>} : vector<32x16xbf16>, vector<16x256xbf16>, vector<32x256xf32> -> vector<32x256xf32>
    %232 = arith.addf %228, %231 : vector<32x256xf32>
    %c7_117 = arith.constant 7 : index
    %c0_118 = arith.constant 0 : index
    %c0_119 = arith.constant 0 : index
    %233 = vector.load %arg7[%c7_117, %c0_118, %c0_119] : memref<9x32x16xbf16, #tpu.memory_space<vmem>>, vector<1x32x16xbf16>
    %234 = vector.shape_cast %233 : vector<1x32x16xbf16> to vector<32x16xbf16>
    %cst_120 = arith.constant dense<0.000000e+00> : vector<32x256xf32>
    %235 = tpu.matmul %234, %200, %cst_120 {dimension_numbers = #tpu.dot_dimension_numbers<[1], [0], [0], [1], [0, 0, 1, 1], [], []>} : vector<32x16xbf16>, vector<16x256xbf16>, vector<32x256xf32> -> vector<32x256xf32>
    %236 = arith.addf %232, %235 : vector<32x256xf32>
    %c8_121 = arith.constant 8 : index
    %c0_122 = arith.constant 0 : index
    %c0_123 = arith.constant 0 : index
    %237 = vector.load %arg7[%c8_121, %c0_122, %c0_123] : memref<9x32x16xbf16, #tpu.memory_space<vmem>>, vector<1x32x16xbf16>
    %238 = vector.shape_cast %237 : vector<1x32x16xbf16> to vector<32x16xbf16>
    %cst_124 = arith.constant dense<0.000000e+00> : vector<32x256xf32>
    %239 = tpu.matmul %238, %205, %cst_124 {dimension_numbers = #tpu.dot_dimension_numbers<[1], [0], [0], [1], [0, 0, 1, 1], [], []>} : vector<32x16xbf16>, vector<16x256xbf16>, vector<32x256xf32> -> vector<32x256xf32>
    %240 = arith.addf %236, %239 : vector<32x256xf32>
    %c0_125 = arith.constant 0 : index
    %c0_126 = arith.constant 0 : index
    %241 = vector.load %arg8[%c0_125, %c0_126] : memref<32x1xf32, #tpu.memory_space<vmem>>, vector<32x1xf32>
    %242 = vector.broadcast %241 : vector<32x1xf32> to vector<32x256xf32>
    %243 = arith.addf %240, %242 : vector<32x256xf32>
    %cst_127 = arith.constant 0.000000e+00 : f32
    %244 = vector.broadcast %cst_127 : f32 to vector<32x256xf32>
    %245 = arith.maximumf %243, %244 : vector<32x256xf32>
    %c0_128 = arith.constant 0 : index
    %c0_129 = arith.constant 0 : index
    %c0_130 = arith.constant 0 : index
    %246 = vector.load %arg9[%c0_128, %c0_129, %c0_130] : memref<9x16x32xbf16, #tpu.memory_space<vmem>>, vector<1x16x32xbf16>
    %247 = vector.shape_cast %246 : vector<1x16x32xbf16> to vector<16x32xbf16>
    %c17_i32_131 = arith.constant 17 : i32
    %248 = tpu.dynamic_rotate %245 by %c17_i32_131 dim 1 : vector<32x256xf32>, i32 -> vector<32x256xf32>
    %249 = vector.extract_strided_slice %0 {offsets = [0, 0], sizes = [1, 256], strides = [1, 1]} : vector<9x256xf32> to vector<1x256xf32>
    %250 = vector.broadcast %249 : vector<1x256xf32> to vector<32x256xf32>
    %251 = arith.mulf %248, %250 : vector<32x256xf32>
    %252 = arith.truncf %251 : vector<32x256xf32> to vector<32x256xbf16>
    %cst_132 = arith.constant dense<0.000000e+00> : vector<16x256xf32>
    %253 = tpu.matmul %247, %252, %cst_132 {dimension_numbers = #tpu.dot_dimension_numbers<[1], [0], [0], [1], [0, 0, 1, 1], [], []>} : vector<16x32xbf16>, vector<32x256xbf16>, vector<16x256xf32> -> vector<16x256xf32>
    %c1_133 = arith.constant 1 : index
    %c0_134 = arith.constant 0 : index
    %c0_135 = arith.constant 0 : index
    %254 = vector.load %arg9[%c1_133, %c0_134, %c0_135] : memref<9x16x32xbf16, #tpu.memory_space<vmem>>, vector<1x16x32xbf16>
    %255 = vector.shape_cast %254 : vector<1x16x32xbf16> to vector<16x32xbf16>
    %c16_i32_136 = arith.constant 16 : i32
    %256 = tpu.dynamic_rotate %245 by %c16_i32_136 dim 1 : vector<32x256xf32>, i32 -> vector<32x256xf32>
    %257 = vector.extract_strided_slice %0 {offsets = [1, 0], sizes = [1, 256], strides = [1, 1]} : vector<9x256xf32> to vector<1x256xf32>
    %258 = vector.broadcast %257 : vector<1x256xf32> to vector<32x256xf32>
    %259 = arith.mulf %256, %258 : vector<32x256xf32>
    %260 = arith.truncf %259 : vector<32x256xf32> to vector<32x256xbf16>
    %cst_137 = arith.constant dense<0.000000e+00> : vector<16x256xf32>
    %261 = tpu.matmul %255, %260, %cst_137 {dimension_numbers = #tpu.dot_dimension_numbers<[1], [0], [0], [1], [0, 0, 1, 1], [], []>} : vector<16x32xbf16>, vector<32x256xbf16>, vector<16x256xf32> -> vector<16x256xf32>
    %262 = arith.addf %253, %261 : vector<16x256xf32>
    %c2_138 = arith.constant 2 : index
    %c0_139 = arith.constant 0 : index
    %c0_140 = arith.constant 0 : index
    %263 = vector.load %arg9[%c2_138, %c0_139, %c0_140] : memref<9x16x32xbf16, #tpu.memory_space<vmem>>, vector<1x16x32xbf16>
    %264 = vector.shape_cast %263 : vector<1x16x32xbf16> to vector<16x32xbf16>
    %c15_i32_141 = arith.constant 15 : i32
    %265 = tpu.dynamic_rotate %245 by %c15_i32_141 dim 1 : vector<32x256xf32>, i32 -> vector<32x256xf32>
    %266 = vector.extract_strided_slice %0 {offsets = [2, 0], sizes = [1, 256], strides = [1, 1]} : vector<9x256xf32> to vector<1x256xf32>
    %267 = vector.broadcast %266 : vector<1x256xf32> to vector<32x256xf32>
    %268 = arith.mulf %265, %267 : vector<32x256xf32>
    %269 = arith.truncf %268 : vector<32x256xf32> to vector<32x256xbf16>
    %cst_142 = arith.constant dense<0.000000e+00> : vector<16x256xf32>
    %270 = tpu.matmul %264, %269, %cst_142 {dimension_numbers = #tpu.dot_dimension_numbers<[1], [0], [0], [1], [0, 0, 1, 1], [], []>} : vector<16x32xbf16>, vector<32x256xbf16>, vector<16x256xf32> -> vector<16x256xf32>
    %271 = arith.addf %262, %270 : vector<16x256xf32>
    %c3_143 = arith.constant 3 : index
    %c0_144 = arith.constant 0 : index
    %c0_145 = arith.constant 0 : index
    %272 = vector.load %arg9[%c3_143, %c0_144, %c0_145] : memref<9x16x32xbf16, #tpu.memory_space<vmem>>, vector<1x16x32xbf16>
    %273 = vector.shape_cast %272 : vector<1x16x32xbf16> to vector<16x32xbf16>
    %c1_i32_146 = arith.constant 1 : i32
    %274 = tpu.dynamic_rotate %245 by %c1_i32_146 dim 1 : vector<32x256xf32>, i32 -> vector<32x256xf32>
    %275 = vector.extract_strided_slice %0 {offsets = [3, 0], sizes = [1, 256], strides = [1, 1]} : vector<9x256xf32> to vector<1x256xf32>
    %276 = vector.broadcast %275 : vector<1x256xf32> to vector<32x256xf32>
    %277 = arith.mulf %274, %276 : vector<32x256xf32>
    %278 = arith.truncf %277 : vector<32x256xf32> to vector<32x256xbf16>
    %cst_147 = arith.constant dense<0.000000e+00> : vector<16x256xf32>
    %279 = tpu.matmul %273, %278, %cst_147 {dimension_numbers = #tpu.dot_dimension_numbers<[1], [0], [0], [1], [0, 0, 1, 1], [], []>} : vector<16x32xbf16>, vector<32x256xbf16>, vector<16x256xf32> -> vector<16x256xf32>
    %280 = arith.addf %271, %279 : vector<16x256xf32>
    %c4_148 = arith.constant 4 : index
    %c0_149 = arith.constant 0 : index
    %c0_150 = arith.constant 0 : index
    %281 = vector.load %arg9[%c4_148, %c0_149, %c0_150] : memref<9x16x32xbf16, #tpu.memory_space<vmem>>, vector<1x16x32xbf16>
    %282 = vector.shape_cast %281 : vector<1x16x32xbf16> to vector<16x32xbf16>
    %283 = arith.truncf %245 : vector<32x256xf32> to vector<32x256xbf16>
    %cst_151 = arith.constant dense<0.000000e+00> : vector<16x256xf32>
    %284 = tpu.matmul %282, %283, %cst_151 {dimension_numbers = #tpu.dot_dimension_numbers<[1], [0], [0], [1], [0, 0, 1, 1], [], []>} : vector<16x32xbf16>, vector<32x256xbf16>, vector<16x256xf32> -> vector<16x256xf32>
    %285 = arith.addf %280, %284 : vector<16x256xf32>
    %c5_152 = arith.constant 5 : index
    %c0_153 = arith.constant 0 : index
    %c0_154 = arith.constant 0 : index
    %286 = vector.load %arg9[%c5_152, %c0_153, %c0_154] : memref<9x16x32xbf16, #tpu.memory_space<vmem>>, vector<1x16x32xbf16>
    %287 = vector.shape_cast %286 : vector<1x16x32xbf16> to vector<16x32xbf16>
    %c255_i32_155 = arith.constant 255 : i32
    %288 = tpu.dynamic_rotate %245 by %c255_i32_155 dim 1 : vector<32x256xf32>, i32 -> vector<32x256xf32>
    %289 = vector.extract_strided_slice %0 {offsets = [5, 0], sizes = [1, 256], strides = [1, 1]} : vector<9x256xf32> to vector<1x256xf32>
    %290 = vector.broadcast %289 : vector<1x256xf32> to vector<32x256xf32>
    %291 = arith.mulf %288, %290 : vector<32x256xf32>
    %292 = arith.truncf %291 : vector<32x256xf32> to vector<32x256xbf16>
    %cst_156 = arith.constant dense<0.000000e+00> : vector<16x256xf32>
    %293 = tpu.matmul %287, %292, %cst_156 {dimension_numbers = #tpu.dot_dimension_numbers<[1], [0], [0], [1], [0, 0, 1, 1], [], []>} : vector<16x32xbf16>, vector<32x256xbf16>, vector<16x256xf32> -> vector<16x256xf32>
    %294 = arith.addf %285, %293 : vector<16x256xf32>
    %c6_157 = arith.constant 6 : index
    %c0_158 = arith.constant 0 : index
    %c0_159 = arith.constant 0 : index
    %295 = vector.load %arg9[%c6_157, %c0_158, %c0_159] : memref<9x16x32xbf16, #tpu.memory_space<vmem>>, vector<1x16x32xbf16>
    %296 = vector.shape_cast %295 : vector<1x16x32xbf16> to vector<16x32xbf16>
    %c241_i32_160 = arith.constant 241 : i32
    %297 = tpu.dynamic_rotate %245 by %c241_i32_160 dim 1 : vector<32x256xf32>, i32 -> vector<32x256xf32>
    %298 = vector.extract_strided_slice %0 {offsets = [6, 0], sizes = [1, 256], strides = [1, 1]} : vector<9x256xf32> to vector<1x256xf32>
    %299 = vector.broadcast %298 : vector<1x256xf32> to vector<32x256xf32>
    %300 = arith.mulf %297, %299 : vector<32x256xf32>
    %301 = arith.truncf %300 : vector<32x256xf32> to vector<32x256xbf16>
    %cst_161 = arith.constant dense<0.000000e+00> : vector<16x256xf32>
    %302 = tpu.matmul %296, %301, %cst_161 {dimension_numbers = #tpu.dot_dimension_numbers<[1], [0], [0], [1], [0, 0, 1, 1], [], []>} : vector<16x32xbf16>, vector<32x256xbf16>, vector<16x256xf32> -> vector<16x256xf32>
    %303 = arith.addf %294, %302 : vector<16x256xf32>
    %c7_162 = arith.constant 7 : index
    %c0_163 = arith.constant 0 : index
    %c0_164 = arith.constant 0 : index
    %304 = vector.load %arg9[%c7_162, %c0_163, %c0_164] : memref<9x16x32xbf16, #tpu.memory_space<vmem>>, vector<1x16x32xbf16>
    %305 = vector.shape_cast %304 : vector<1x16x32xbf16> to vector<16x32xbf16>
    %c240_i32_165 = arith.constant 240 : i32
    %306 = tpu.dynamic_rotate %245 by %c240_i32_165 dim 1 : vector<32x256xf32>, i32 -> vector<32x256xf32>
    %307 = vector.extract_strided_slice %0 {offsets = [7, 0], sizes = [1, 256], strides = [1, 1]} : vector<9x256xf32> to vector<1x256xf32>
    %308 = vector.broadcast %307 : vector<1x256xf32> to vector<32x256xf32>
    %309 = arith.mulf %306, %308 : vector<32x256xf32>
    %310 = arith.truncf %309 : vector<32x256xf32> to vector<32x256xbf16>
    %cst_166 = arith.constant dense<0.000000e+00> : vector<16x256xf32>
    %311 = tpu.matmul %305, %310, %cst_166 {dimension_numbers = #tpu.dot_dimension_numbers<[1], [0], [0], [1], [0, 0, 1, 1], [], []>} : vector<16x32xbf16>, vector<32x256xbf16>, vector<16x256xf32> -> vector<16x256xf32>
    %312 = arith.addf %303, %311 : vector<16x256xf32>
    %c8_167 = arith.constant 8 : index
    %c0_168 = arith.constant 0 : index
    %c0_169 = arith.constant 0 : index
    %313 = vector.load %arg9[%c8_167, %c0_168, %c0_169] : memref<9x16x32xbf16, #tpu.memory_space<vmem>>, vector<1x16x32xbf16>
    %314 = vector.shape_cast %313 : vector<1x16x32xbf16> to vector<16x32xbf16>
    %c239_i32_170 = arith.constant 239 : i32
    %315 = tpu.dynamic_rotate %245 by %c239_i32_170 dim 1 : vector<32x256xf32>, i32 -> vector<32x256xf32>
    %316 = vector.extract_strided_slice %0 {offsets = [8, 0], sizes = [1, 256], strides = [1, 1]} : vector<9x256xf32> to vector<1x256xf32>
    %317 = vector.broadcast %316 : vector<1x256xf32> to vector<32x256xf32>
    %318 = arith.mulf %315, %317 : vector<32x256xf32>
    %319 = arith.truncf %318 : vector<32x256xf32> to vector<32x256xbf16>
    %cst_171 = arith.constant dense<0.000000e+00> : vector<16x256xf32>
    %320 = tpu.matmul %314, %319, %cst_171 {dimension_numbers = #tpu.dot_dimension_numbers<[1], [0], [0], [1], [0, 0, 1, 1], [], []>} : vector<16x32xbf16>, vector<32x256xbf16>, vector<16x256xf32> -> vector<16x256xf32>
    %321 = arith.addf %312, %320 : vector<16x256xf32>
    %c0_172 = arith.constant 0 : index
    %c0_173 = arith.constant 0 : index
    %322 = vector.load %arg10[%c0_172, %c0_173] : memref<16x1xf32, #tpu.memory_space<vmem>>, vector<16x1xf32>
    %323 = vector.broadcast %322 : vector<16x1xf32> to vector<16x256xf32>
    %324 = arith.addf %321, %323 : vector<16x256xf32>
    %cst_174 = arith.constant 0.000000e+00 : f32
    %325 = vector.broadcast %cst_174 : f32 to vector<16x256xf32>
    %326 = arith.maximumf %324, %325 : vector<16x256xf32>
    %c0_175 = arith.constant 0 : index
    %c0_176 = arith.constant 0 : index
    %c0_177 = arith.constant 0 : index
    %327 = vector.load %arg11[%c0_175, %c0_176, %c0_177] : memref<9x8x16xbf16, #tpu.memory_space<vmem>>, vector<1x8x16xbf16>
    %328 = vector.shape_cast %327 : vector<1x8x16xbf16> to vector<8x16xbf16>
    %c17_i32_178 = arith.constant 17 : i32
    %329 = tpu.dynamic_rotate %326 by %c17_i32_178 dim 1 : vector<16x256xf32>, i32 -> vector<16x256xf32>
    %330 = vector.extract_strided_slice %0 {offsets = [0, 0], sizes = [1, 256], strides = [1, 1]} : vector<9x256xf32> to vector<1x256xf32>
    %331 = vector.broadcast %330 : vector<1x256xf32> to vector<16x256xf32>
    %332 = arith.mulf %329, %331 : vector<16x256xf32>
    %333 = arith.truncf %332 : vector<16x256xf32> to vector<16x256xbf16>
    %cst_179 = arith.constant dense<0.000000e+00> : vector<8x256xf32>
    %334 = tpu.matmul %328, %333, %cst_179 {dimension_numbers = #tpu.dot_dimension_numbers<[1], [0], [0], [1], [0, 0, 1, 1], [], []>} : vector<8x16xbf16>, vector<16x256xbf16>, vector<8x256xf32> -> vector<8x256xf32>
    %c1_180 = arith.constant 1 : index
    %c0_181 = arith.constant 0 : index
    %c0_182 = arith.constant 0 : index
    %335 = vector.load %arg11[%c1_180, %c0_181, %c0_182] : memref<9x8x16xbf16, #tpu.memory_space<vmem>>, vector<1x8x16xbf16>
    %336 = vector.shape_cast %335 : vector<1x8x16xbf16> to vector<8x16xbf16>
    %c16_i32_183 = arith.constant 16 : i32
    %337 = tpu.dynamic_rotate %326 by %c16_i32_183 dim 1 : vector<16x256xf32>, i32 -> vector<16x256xf32>
    %338 = vector.extract_strided_slice %0 {offsets = [1, 0], sizes = [1, 256], strides = [1, 1]} : vector<9x256xf32> to vector<1x256xf32>
    %339 = vector.broadcast %338 : vector<1x256xf32> to vector<16x256xf32>
    %340 = arith.mulf %337, %339 : vector<16x256xf32>
    %341 = arith.truncf %340 : vector<16x256xf32> to vector<16x256xbf16>
    %cst_184 = arith.constant dense<0.000000e+00> : vector<8x256xf32>
    %342 = tpu.matmul %336, %341, %cst_184 {dimension_numbers = #tpu.dot_dimension_numbers<[1], [0], [0], [1], [0, 0, 1, 1], [], []>} : vector<8x16xbf16>, vector<16x256xbf16>, vector<8x256xf32> -> vector<8x256xf32>
    %343 = arith.addf %334, %342 : vector<8x256xf32>
    %c2_185 = arith.constant 2 : index
    %c0_186 = arith.constant 0 : index
    %c0_187 = arith.constant 0 : index
    %344 = vector.load %arg11[%c2_185, %c0_186, %c0_187] : memref<9x8x16xbf16, #tpu.memory_space<vmem>>, vector<1x8x16xbf16>
    %345 = vector.shape_cast %344 : vector<1x8x16xbf16> to vector<8x16xbf16>
    %c15_i32_188 = arith.constant 15 : i32
    %346 = tpu.dynamic_rotate %326 by %c15_i32_188 dim 1 : vector<16x256xf32>, i32 -> vector<16x256xf32>
    %347 = vector.extract_strided_slice %0 {offsets = [2, 0], sizes = [1, 256], strides = [1, 1]} : vector<9x256xf32> to vector<1x256xf32>
    %348 = vector.broadcast %347 : vector<1x256xf32> to vector<16x256xf32>
    %349 = arith.mulf %346, %348 : vector<16x256xf32>
    %350 = arith.truncf %349 : vector<16x256xf32> to vector<16x256xbf16>
    %cst_189 = arith.constant dense<0.000000e+00> : vector<8x256xf32>
    %351 = tpu.matmul %345, %350, %cst_189 {dimension_numbers = #tpu.dot_dimension_numbers<[1], [0], [0], [1], [0, 0, 1, 1], [], []>} : vector<8x16xbf16>, vector<16x256xbf16>, vector<8x256xf32> -> vector<8x256xf32>
    %352 = arith.addf %343, %351 : vector<8x256xf32>
    %c3_190 = arith.constant 3 : index
    %c0_191 = arith.constant 0 : index
    %c0_192 = arith.constant 0 : index
    %353 = vector.load %arg11[%c3_190, %c0_191, %c0_192] : memref<9x8x16xbf16, #tpu.memory_space<vmem>>, vector<1x8x16xbf16>
    %354 = vector.shape_cast %353 : vector<1x8x16xbf16> to vector<8x16xbf16>
    %c1_i32_193 = arith.constant 1 : i32
    %355 = tpu.dynamic_rotate %326 by %c1_i32_193 dim 1 : vector<16x256xf32>, i32 -> vector<16x256xf32>
    %356 = vector.extract_strided_slice %0 {offsets = [3, 0], sizes = [1, 256], strides = [1, 1]} : vector<9x256xf32> to vector<1x256xf32>
    %357 = vector.broadcast %356 : vector<1x256xf32> to vector<16x256xf32>
    %358 = arith.mulf %355, %357 : vector<16x256xf32>
    %359 = arith.truncf %358 : vector<16x256xf32> to vector<16x256xbf16>
    %cst_194 = arith.constant dense<0.000000e+00> : vector<8x256xf32>
    %360 = tpu.matmul %354, %359, %cst_194 {dimension_numbers = #tpu.dot_dimension_numbers<[1], [0], [0], [1], [0, 0, 1, 1], [], []>} : vector<8x16xbf16>, vector<16x256xbf16>, vector<8x256xf32> -> vector<8x256xf32>
    %361 = arith.addf %352, %360 : vector<8x256xf32>
    %c4_195 = arith.constant 4 : index
    %c0_196 = arith.constant 0 : index
    %c0_197 = arith.constant 0 : index
    %362 = vector.load %arg11[%c4_195, %c0_196, %c0_197] : memref<9x8x16xbf16, #tpu.memory_space<vmem>>, vector<1x8x16xbf16>
    %363 = vector.shape_cast %362 : vector<1x8x16xbf16> to vector<8x16xbf16>
    %364 = arith.truncf %326 : vector<16x256xf32> to vector<16x256xbf16>
    %cst_198 = arith.constant dense<0.000000e+00> : vector<8x256xf32>
    %365 = tpu.matmul %363, %364, %cst_198 {dimension_numbers = #tpu.dot_dimension_numbers<[1], [0], [0], [1], [0, 0, 1, 1], [], []>} : vector<8x16xbf16>, vector<16x256xbf16>, vector<8x256xf32> -> vector<8x256xf32>
    %366 = arith.addf %361, %365 : vector<8x256xf32>
    %c5_199 = arith.constant 5 : index
    %c0_200 = arith.constant 0 : index
    %c0_201 = arith.constant 0 : index
    %367 = vector.load %arg11[%c5_199, %c0_200, %c0_201] : memref<9x8x16xbf16, #tpu.memory_space<vmem>>, vector<1x8x16xbf16>
    %368 = vector.shape_cast %367 : vector<1x8x16xbf16> to vector<8x16xbf16>
    %c255_i32_202 = arith.constant 255 : i32
    %369 = tpu.dynamic_rotate %326 by %c255_i32_202 dim 1 : vector<16x256xf32>, i32 -> vector<16x256xf32>
    %370 = vector.extract_strided_slice %0 {offsets = [5, 0], sizes = [1, 256], strides = [1, 1]} : vector<9x256xf32> to vector<1x256xf32>
    %371 = vector.broadcast %370 : vector<1x256xf32> to vector<16x256xf32>
    %372 = arith.mulf %369, %371 : vector<16x256xf32>
    %373 = arith.truncf %372 : vector<16x256xf32> to vector<16x256xbf16>
    %cst_203 = arith.constant dense<0.000000e+00> : vector<8x256xf32>
    %374 = tpu.matmul %368, %373, %cst_203 {dimension_numbers = #tpu.dot_dimension_numbers<[1], [0], [0], [1], [0, 0, 1, 1], [], []>} : vector<8x16xbf16>, vector<16x256xbf16>, vector<8x256xf32> -> vector<8x256xf32>
    %375 = arith.addf %366, %374 : vector<8x256xf32>
    %c6_204 = arith.constant 6 : index
    %c0_205 = arith.constant 0 : index
    %c0_206 = arith.constant 0 : index
    %376 = vector.load %arg11[%c6_204, %c0_205, %c0_206] : memref<9x8x16xbf16, #tpu.memory_space<vmem>>, vector<1x8x16xbf16>
    %377 = vector.shape_cast %376 : vector<1x8x16xbf16> to vector<8x16xbf16>
    %c241_i32_207 = arith.constant 241 : i32
    %378 = tpu.dynamic_rotate %326 by %c241_i32_207 dim 1 : vector<16x256xf32>, i32 -> vector<16x256xf32>
    %379 = vector.extract_strided_slice %0 {offsets = [6, 0], sizes = [1, 256], strides = [1, 1]} : vector<9x256xf32> to vector<1x256xf32>
    %380 = vector.broadcast %379 : vector<1x256xf32> to vector<16x256xf32>
    %381 = arith.mulf %378, %380 : vector<16x256xf32>
    %382 = arith.truncf %381 : vector<16x256xf32> to vector<16x256xbf16>
    %cst_208 = arith.constant dense<0.000000e+00> : vector<8x256xf32>
    %383 = tpu.matmul %377, %382, %cst_208 {dimension_numbers = #tpu.dot_dimension_numbers<[1], [0], [0], [1], [0, 0, 1, 1], [], []>} : vector<8x16xbf16>, vector<16x256xbf16>, vector<8x256xf32> -> vector<8x256xf32>
    %384 = arith.addf %375, %383 : vector<8x256xf32>
    %c7_209 = arith.constant 7 : index
    %c0_210 = arith.constant 0 : index
    %c0_211 = arith.constant 0 : index
    %385 = vector.load %arg11[%c7_209, %c0_210, %c0_211] : memref<9x8x16xbf16, #tpu.memory_space<vmem>>, vector<1x8x16xbf16>
    %386 = vector.shape_cast %385 : vector<1x8x16xbf16> to vector<8x16xbf16>
    %c240_i32_212 = arith.constant 240 : i32
    %387 = tpu.dynamic_rotate %326 by %c240_i32_212 dim 1 : vector<16x256xf32>, i32 -> vector<16x256xf32>
    %388 = vector.extract_strided_slice %0 {offsets = [7, 0], sizes = [1, 256], strides = [1, 1]} : vector<9x256xf32> to vector<1x256xf32>
    %389 = vector.broadcast %388 : vector<1x256xf32> to vector<16x256xf32>
    %390 = arith.mulf %387, %389 : vector<16x256xf32>
    %391 = arith.truncf %390 : vector<16x256xf32> to vector<16x256xbf16>
    %cst_213 = arith.constant dense<0.000000e+00> : vector<8x256xf32>
    %392 = tpu.matmul %386, %391, %cst_213 {dimension_numbers = #tpu.dot_dimension_numbers<[1], [0], [0], [1], [0, 0, 1, 1], [], []>} : vector<8x16xbf16>, vector<16x256xbf16>, vector<8x256xf32> -> vector<8x256xf32>
    %393 = arith.addf %384, %392 : vector<8x256xf32>
    %c8_214 = arith.constant 8 : index
    %c0_215 = arith.constant 0 : index
    %c0_216 = arith.constant 0 : index
    %394 = vector.load %arg11[%c8_214, %c0_215, %c0_216] : memref<9x8x16xbf16, #tpu.memory_space<vmem>>, vector<1x8x16xbf16>
    %395 = vector.shape_cast %394 : vector<1x8x16xbf16> to vector<8x16xbf16>
    %c239_i32_217 = arith.constant 239 : i32
    %396 = tpu.dynamic_rotate %326 by %c239_i32_217 dim 1 : vector<16x256xf32>, i32 -> vector<16x256xf32>
    %397 = vector.extract_strided_slice %0 {offsets = [8, 0], sizes = [1, 256], strides = [1, 1]} : vector<9x256xf32> to vector<1x256xf32>
    %398 = vector.broadcast %397 : vector<1x256xf32> to vector<16x256xf32>
    %399 = arith.mulf %396, %398 : vector<16x256xf32>
    %400 = arith.truncf %399 : vector<16x256xf32> to vector<16x256xbf16>
    %cst_218 = arith.constant dense<0.000000e+00> : vector<8x256xf32>
    %401 = tpu.matmul %395, %400, %cst_218 {dimension_numbers = #tpu.dot_dimension_numbers<[1], [0], [0], [1], [0, 0, 1, 1], [], []>} : vector<8x16xbf16>, vector<16x256xbf16>, vector<8x256xf32> -> vector<8x256xf32>
    %402 = arith.addf %393, %401 : vector<8x256xf32>
    %c0_219 = arith.constant 0 : index
    %c0_220 = arith.constant 0 : index
    %c0_221 = arith.constant 0 : index
    %403 = vector.load %arg12[%c0_219, %c0_220, %c0_221] : memref<9x8x16xbf16, #tpu.memory_space<vmem>>, vector<1x8x16xbf16>
    %404 = vector.shape_cast %403 : vector<1x8x16xbf16> to vector<8x16xbf16>
    %cst_222 = arith.constant dense<0.000000e+00> : vector<8x256xf32>
    %405 = tpu.matmul %404, %169, %cst_222 {dimension_numbers = #tpu.dot_dimension_numbers<[1], [0], [0], [1], [0, 0, 1, 1], [], []>} : vector<8x16xbf16>, vector<16x256xbf16>, vector<8x256xf32> -> vector<8x256xf32>
    %406 = arith.addf %402, %405 : vector<8x256xf32>
    %c1_223 = arith.constant 1 : index
    %c0_224 = arith.constant 0 : index
    %c0_225 = arith.constant 0 : index
    %407 = vector.load %arg12[%c1_223, %c0_224, %c0_225] : memref<9x8x16xbf16, #tpu.memory_space<vmem>>, vector<1x8x16xbf16>
    %408 = vector.shape_cast %407 : vector<1x8x16xbf16> to vector<8x16xbf16>
    %cst_226 = arith.constant dense<0.000000e+00> : vector<8x256xf32>
    %409 = tpu.matmul %408, %174, %cst_226 {dimension_numbers = #tpu.dot_dimension_numbers<[1], [0], [0], [1], [0, 0, 1, 1], [], []>} : vector<8x16xbf16>, vector<16x256xbf16>, vector<8x256xf32> -> vector<8x256xf32>
    %410 = arith.addf %406, %409 : vector<8x256xf32>
    %c2_227 = arith.constant 2 : index
    %c0_228 = arith.constant 0 : index
    %c0_229 = arith.constant 0 : index
    %411 = vector.load %arg12[%c2_227, %c0_228, %c0_229] : memref<9x8x16xbf16, #tpu.memory_space<vmem>>, vector<1x8x16xbf16>
    %412 = vector.shape_cast %411 : vector<1x8x16xbf16> to vector<8x16xbf16>
    %cst_230 = arith.constant dense<0.000000e+00> : vector<8x256xf32>
    %413 = tpu.matmul %412, %179, %cst_230 {dimension_numbers = #tpu.dot_dimension_numbers<[1], [0], [0], [1], [0, 0, 1, 1], [], []>} : vector<8x16xbf16>, vector<16x256xbf16>, vector<8x256xf32> -> vector<8x256xf32>
    %414 = arith.addf %410, %413 : vector<8x256xf32>
    %c3_231 = arith.constant 3 : index
    %c0_232 = arith.constant 0 : index
    %c0_233 = arith.constant 0 : index
    %415 = vector.load %arg12[%c3_231, %c0_232, %c0_233] : memref<9x8x16xbf16, #tpu.memory_space<vmem>>, vector<1x8x16xbf16>
    %416 = vector.shape_cast %415 : vector<1x8x16xbf16> to vector<8x16xbf16>
    %cst_234 = arith.constant dense<0.000000e+00> : vector<8x256xf32>
    %417 = tpu.matmul %416, %184, %cst_234 {dimension_numbers = #tpu.dot_dimension_numbers<[1], [0], [0], [1], [0, 0, 1, 1], [], []>} : vector<8x16xbf16>, vector<16x256xbf16>, vector<8x256xf32> -> vector<8x256xf32>
    %418 = arith.addf %414, %417 : vector<8x256xf32>
    %c4_235 = arith.constant 4 : index
    %c0_236 = arith.constant 0 : index
    %c0_237 = arith.constant 0 : index
    %419 = vector.load %arg12[%c4_235, %c0_236, %c0_237] : memref<9x8x16xbf16, #tpu.memory_space<vmem>>, vector<1x8x16xbf16>
    %420 = vector.shape_cast %419 : vector<1x8x16xbf16> to vector<8x16xbf16>
    %cst_238 = arith.constant dense<0.000000e+00> : vector<8x256xf32>
    %421 = tpu.matmul %420, %185, %cst_238 {dimension_numbers = #tpu.dot_dimension_numbers<[1], [0], [0], [1], [0, 0, 1, 1], [], []>} : vector<8x16xbf16>, vector<16x256xbf16>, vector<8x256xf32> -> vector<8x256xf32>
    %422 = arith.addf %418, %421 : vector<8x256xf32>
    %c5_239 = arith.constant 5 : index
    %c0_240 = arith.constant 0 : index
    %c0_241 = arith.constant 0 : index
    %423 = vector.load %arg12[%c5_239, %c0_240, %c0_241] : memref<9x8x16xbf16, #tpu.memory_space<vmem>>, vector<1x8x16xbf16>
    %424 = vector.shape_cast %423 : vector<1x8x16xbf16> to vector<8x16xbf16>
    %cst_242 = arith.constant dense<0.000000e+00> : vector<8x256xf32>
    %425 = tpu.matmul %424, %190, %cst_242 {dimension_numbers = #tpu.dot_dimension_numbers<[1], [0], [0], [1], [0, 0, 1, 1], [], []>} : vector<8x16xbf16>, vector<16x256xbf16>, vector<8x256xf32> -> vector<8x256xf32>
    %426 = arith.addf %422, %425 : vector<8x256xf32>
    %c6_243 = arith.constant 6 : index
    %c0_244 = arith.constant 0 : index
    %c0_245 = arith.constant 0 : index
    %427 = vector.load %arg12[%c6_243, %c0_244, %c0_245] : memref<9x8x16xbf16, #tpu.memory_space<vmem>>, vector<1x8x16xbf16>
    %428 = vector.shape_cast %427 : vector<1x8x16xbf16> to vector<8x16xbf16>
    %cst_246 = arith.constant dense<0.000000e+00> : vector<8x256xf32>
    %429 = tpu.matmul %428, %195, %cst_246 {dimension_numbers = #tpu.dot_dimension_numbers<[1], [0], [0], [1], [0, 0, 1, 1], [], []>} : vector<8x16xbf16>, vector<16x256xbf16>, vector<8x256xf32> -> vector<8x256xf32>
    %430 = arith.addf %426, %429 : vector<8x256xf32>
    %c7_247 = arith.constant 7 : index
    %c0_248 = arith.constant 0 : index
    %c0_249 = arith.constant 0 : index
    %431 = vector.load %arg12[%c7_247, %c0_248, %c0_249] : memref<9x8x16xbf16, #tpu.memory_space<vmem>>, vector<1x8x16xbf16>
    %432 = vector.shape_cast %431 : vector<1x8x16xbf16> to vector<8x16xbf16>
    %cst_250 = arith.constant dense<0.000000e+00> : vector<8x256xf32>
    %433 = tpu.matmul %432, %200, %cst_250 {dimension_numbers = #tpu.dot_dimension_numbers<[1], [0], [0], [1], [0, 0, 1, 1], [], []>} : vector<8x16xbf16>, vector<16x256xbf16>, vector<8x256xf32> -> vector<8x256xf32>
    %434 = arith.addf %430, %433 : vector<8x256xf32>
    %c8_251 = arith.constant 8 : index
    %c0_252 = arith.constant 0 : index
    %c0_253 = arith.constant 0 : index
    %435 = vector.load %arg12[%c8_251, %c0_252, %c0_253] : memref<9x8x16xbf16, #tpu.memory_space<vmem>>, vector<1x8x16xbf16>
    %436 = vector.shape_cast %435 : vector<1x8x16xbf16> to vector<8x16xbf16>
    %cst_254 = arith.constant dense<0.000000e+00> : vector<8x256xf32>
    %437 = tpu.matmul %436, %205, %cst_254 {dimension_numbers = #tpu.dot_dimension_numbers<[1], [0], [0], [1], [0, 0, 1, 1], [], []>} : vector<8x16xbf16>, vector<16x256xbf16>, vector<8x256xf32> -> vector<8x256xf32>
    %438 = arith.addf %434, %437 : vector<8x256xf32>
    %c0_255 = arith.constant 0 : index
    %c0_256 = arith.constant 0 : index
    %439 = vector.load %arg13[%c0_255, %c0_256] : memref<8x1xf32, #tpu.memory_space<vmem>>, vector<8x1xf32>
    %440 = vector.broadcast %439 : vector<8x1xf32> to vector<8x256xf32>
    %441 = arith.addf %438, %440 : vector<8x256xf32>
    %cst_257 = arith.constant 0.000000e+00 : f32
    %442 = vector.broadcast %cst_257 : f32 to vector<8x256xf32>
    %443 = arith.maximumf %441, %442 : vector<8x256xf32>
    %c0_258 = arith.constant 0 : index
    %c0_259 = arith.constant 0 : index
    %c0_260 = arith.constant 0 : index
    %444 = vector.load %arg14[%c0_258, %c0_259, %c0_260] : memref<9x8x8xbf16, #tpu.memory_space<vmem>>, vector<1x8x8xbf16>
    %445 = vector.shape_cast %444 : vector<1x8x8xbf16> to vector<8x8xbf16>
    %c17_i32_261 = arith.constant 17 : i32
    %446 = tpu.dynamic_rotate %443 by %c17_i32_261 dim 1 : vector<8x256xf32>, i32 -> vector<8x256xf32>
    %447 = vector.extract_strided_slice %0 {offsets = [0, 0], sizes = [1, 256], strides = [1, 1]} : vector<9x256xf32> to vector<1x256xf32>
    %448 = vector.broadcast %447 : vector<1x256xf32> to vector<8x256xf32>
    %449 = arith.mulf %446, %448 : vector<8x256xf32>
    %450 = arith.truncf %449 : vector<8x256xf32> to vector<8x256xbf16>
    %cst_262 = arith.constant dense<0.000000e+00> : vector<8x256xf32>
    %451 = tpu.matmul %445, %450, %cst_262 {dimension_numbers = #tpu.dot_dimension_numbers<[1], [0], [0], [1], [0, 0, 1, 1], [], []>} : vector<8x8xbf16>, vector<8x256xbf16>, vector<8x256xf32> -> vector<8x256xf32>
    %c1_263 = arith.constant 1 : index
    %c0_264 = arith.constant 0 : index
    %c0_265 = arith.constant 0 : index
    %452 = vector.load %arg14[%c1_263, %c0_264, %c0_265] : memref<9x8x8xbf16, #tpu.memory_space<vmem>>, vector<1x8x8xbf16>
    %453 = vector.shape_cast %452 : vector<1x8x8xbf16> to vector<8x8xbf16>
    %c16_i32_266 = arith.constant 16 : i32
    %454 = tpu.dynamic_rotate %443 by %c16_i32_266 dim 1 : vector<8x256xf32>, i32 -> vector<8x256xf32>
    %455 = vector.extract_strided_slice %0 {offsets = [1, 0], sizes = [1, 256], strides = [1, 1]} : vector<9x256xf32> to vector<1x256xf32>
    %456 = vector.broadcast %455 : vector<1x256xf32> to vector<8x256xf32>
    %457 = arith.mulf %454, %456 : vector<8x256xf32>
    %458 = arith.truncf %457 : vector<8x256xf32> to vector<8x256xbf16>
    %cst_267 = arith.constant dense<0.000000e+00> : vector<8x256xf32>
    %459 = tpu.matmul %453, %458, %cst_267 {dimension_numbers = #tpu.dot_dimension_numbers<[1], [0], [0], [1], [0, 0, 1, 1], [], []>} : vector<8x8xbf16>, vector<8x256xbf16>, vector<8x256xf32> -> vector<8x256xf32>
    %460 = arith.addf %451, %459 : vector<8x256xf32>
    %c2_268 = arith.constant 2 : index
    %c0_269 = arith.constant 0 : index
    %c0_270 = arith.constant 0 : index
    %461 = vector.load %arg14[%c2_268, %c0_269, %c0_270] : memref<9x8x8xbf16, #tpu.memory_space<vmem>>, vector<1x8x8xbf16>
    %462 = vector.shape_cast %461 : vector<1x8x8xbf16> to vector<8x8xbf16>
    %c15_i32_271 = arith.constant 15 : i32
    %463 = tpu.dynamic_rotate %443 by %c15_i32_271 dim 1 : vector<8x256xf32>, i32 -> vector<8x256xf32>
    %464 = vector.extract_strided_slice %0 {offsets = [2, 0], sizes = [1, 256], strides = [1, 1]} : vector<9x256xf32> to vector<1x256xf32>
    %465 = vector.broadcast %464 : vector<1x256xf32> to vector<8x256xf32>
    %466 = arith.mulf %463, %465 : vector<8x256xf32>
    %467 = arith.truncf %466 : vector<8x256xf32> to vector<8x256xbf16>
    %cst_272 = arith.constant dense<0.000000e+00> : vector<8x256xf32>
    %468 = tpu.matmul %462, %467, %cst_272 {dimension_numbers = #tpu.dot_dimension_numbers<[1], [0], [0], [1], [0, 0, 1, 1], [], []>} : vector<8x8xbf16>, vector<8x256xbf16>, vector<8x256xf32> -> vector<8x256xf32>
    %469 = arith.addf %460, %468 : vector<8x256xf32>
    %c3_273 = arith.constant 3 : index
    %c0_274 = arith.constant 0 : index
    %c0_275 = arith.constant 0 : index
    %470 = vector.load %arg14[%c3_273, %c0_274, %c0_275] : memref<9x8x8xbf16, #tpu.memory_space<vmem>>, vector<1x8x8xbf16>
    %471 = vector.shape_cast %470 : vector<1x8x8xbf16> to vector<8x8xbf16>
    %c1_i32_276 = arith.constant 1 : i32
    %472 = tpu.dynamic_rotate %443 by %c1_i32_276 dim 1 : vector<8x256xf32>, i32 -> vector<8x256xf32>
    %473 = vector.extract_strided_slice %0 {offsets = [3, 0], sizes = [1, 256], strides = [1, 1]} : vector<9x256xf32> to vector<1x256xf32>
    %474 = vector.broadcast %473 : vector<1x256xf32> to vector<8x256xf32>
    %475 = arith.mulf %472, %474 : vector<8x256xf32>
    %476 = arith.truncf %475 : vector<8x256xf32> to vector<8x256xbf16>
    %cst_277 = arith.constant dense<0.000000e+00> : vector<8x256xf32>
    %477 = tpu.matmul %471, %476, %cst_277 {dimension_numbers = #tpu.dot_dimension_numbers<[1], [0], [0], [1], [0, 0, 1, 1], [], []>} : vector<8x8xbf16>, vector<8x256xbf16>, vector<8x256xf32> -> vector<8x256xf32>
    %478 = arith.addf %469, %477 : vector<8x256xf32>
    %c4_278 = arith.constant 4 : index
    %c0_279 = arith.constant 0 : index
    %c0_280 = arith.constant 0 : index
    %479 = vector.load %arg14[%c4_278, %c0_279, %c0_280] : memref<9x8x8xbf16, #tpu.memory_space<vmem>>, vector<1x8x8xbf16>
    %480 = vector.shape_cast %479 : vector<1x8x8xbf16> to vector<8x8xbf16>
    %481 = arith.truncf %443 : vector<8x256xf32> to vector<8x256xbf16>
    %cst_281 = arith.constant dense<0.000000e+00> : vector<8x256xf32>
    %482 = tpu.matmul %480, %481, %cst_281 {dimension_numbers = #tpu.dot_dimension_numbers<[1], [0], [0], [1], [0, 0, 1, 1], [], []>} : vector<8x8xbf16>, vector<8x256xbf16>, vector<8x256xf32> -> vector<8x256xf32>
    %483 = arith.addf %478, %482 : vector<8x256xf32>
    %c5_282 = arith.constant 5 : index
    %c0_283 = arith.constant 0 : index
    %c0_284 = arith.constant 0 : index
    %484 = vector.load %arg14[%c5_282, %c0_283, %c0_284] : memref<9x8x8xbf16, #tpu.memory_space<vmem>>, vector<1x8x8xbf16>
    %485 = vector.shape_cast %484 : vector<1x8x8xbf16> to vector<8x8xbf16>
    %c255_i32_285 = arith.constant 255 : i32
    %486 = tpu.dynamic_rotate %443 by %c255_i32_285 dim 1 : vector<8x256xf32>, i32 -> vector<8x256xf32>
    %487 = vector.extract_strided_slice %0 {offsets = [5, 0], sizes = [1, 256], strides = [1, 1]} : vector<9x256xf32> to vector<1x256xf32>
    %488 = vector.broadcast %487 : vector<1x256xf32> to vector<8x256xf32>
    %489 = arith.mulf %486, %488 : vector<8x256xf32>
    %490 = arith.truncf %489 : vector<8x256xf32> to vector<8x256xbf16>
    %cst_286 = arith.constant dense<0.000000e+00> : vector<8x256xf32>
    %491 = tpu.matmul %485, %490, %cst_286 {dimension_numbers = #tpu.dot_dimension_numbers<[1], [0], [0], [1], [0, 0, 1, 1], [], []>} : vector<8x8xbf16>, vector<8x256xbf16>, vector<8x256xf32> -> vector<8x256xf32>
    %492 = arith.addf %483, %491 : vector<8x256xf32>
    %c6_287 = arith.constant 6 : index
    %c0_288 = arith.constant 0 : index
    %c0_289 = arith.constant 0 : index
    %493 = vector.load %arg14[%c6_287, %c0_288, %c0_289] : memref<9x8x8xbf16, #tpu.memory_space<vmem>>, vector<1x8x8xbf16>
    %494 = vector.shape_cast %493 : vector<1x8x8xbf16> to vector<8x8xbf16>
    %c241_i32_290 = arith.constant 241 : i32
    %495 = tpu.dynamic_rotate %443 by %c241_i32_290 dim 1 : vector<8x256xf32>, i32 -> vector<8x256xf32>
    %496 = vector.extract_strided_slice %0 {offsets = [6, 0], sizes = [1, 256], strides = [1, 1]} : vector<9x256xf32> to vector<1x256xf32>
    %497 = vector.broadcast %496 : vector<1x256xf32> to vector<8x256xf32>
    %498 = arith.mulf %495, %497 : vector<8x256xf32>
    %499 = arith.truncf %498 : vector<8x256xf32> to vector<8x256xbf16>
    %cst_291 = arith.constant dense<0.000000e+00> : vector<8x256xf32>
    %500 = tpu.matmul %494, %499, %cst_291 {dimension_numbers = #tpu.dot_dimension_numbers<[1], [0], [0], [1], [0, 0, 1, 1], [], []>} : vector<8x8xbf16>, vector<8x256xbf16>, vector<8x256xf32> -> vector<8x256xf32>
    %501 = arith.addf %492, %500 : vector<8x256xf32>
    %c7_292 = arith.constant 7 : index
    %c0_293 = arith.constant 0 : index
    %c0_294 = arith.constant 0 : index
    %502 = vector.load %arg14[%c7_292, %c0_293, %c0_294] : memref<9x8x8xbf16, #tpu.memory_space<vmem>>, vector<1x8x8xbf16>
    %503 = vector.shape_cast %502 : vector<1x8x8xbf16> to vector<8x8xbf16>
    %c240_i32_295 = arith.constant 240 : i32
    %504 = tpu.dynamic_rotate %443 by %c240_i32_295 dim 1 : vector<8x256xf32>, i32 -> vector<8x256xf32>
    %505 = vector.extract_strided_slice %0 {offsets = [7, 0], sizes = [1, 256], strides = [1, 1]} : vector<9x256xf32> to vector<1x256xf32>
    %506 = vector.broadcast %505 : vector<1x256xf32> to vector<8x256xf32>
    %507 = arith.mulf %504, %506 : vector<8x256xf32>
    %508 = arith.truncf %507 : vector<8x256xf32> to vector<8x256xbf16>
    %cst_296 = arith.constant dense<0.000000e+00> : vector<8x256xf32>
    %509 = tpu.matmul %503, %508, %cst_296 {dimension_numbers = #tpu.dot_dimension_numbers<[1], [0], [0], [1], [0, 0, 1, 1], [], []>} : vector<8x8xbf16>, vector<8x256xbf16>, vector<8x256xf32> -> vector<8x256xf32>
    %510 = arith.addf %501, %509 : vector<8x256xf32>
    %c8_297 = arith.constant 8 : index
    %c0_298 = arith.constant 0 : index
    %c0_299 = arith.constant 0 : index
    %511 = vector.load %arg14[%c8_297, %c0_298, %c0_299] : memref<9x8x8xbf16, #tpu.memory_space<vmem>>, vector<1x8x8xbf16>
    %512 = vector.shape_cast %511 : vector<1x8x8xbf16> to vector<8x8xbf16>
    %c239_i32_300 = arith.constant 239 : i32
    %513 = tpu.dynamic_rotate %443 by %c239_i32_300 dim 1 : vector<8x256xf32>, i32 -> vector<8x256xf32>
    %514 = vector.extract_strided_slice %0 {offsets = [8, 0], sizes = [1, 256], strides = [1, 1]} : vector<9x256xf32> to vector<1x256xf32>
    %515 = vector.broadcast %514 : vector<1x256xf32> to vector<8x256xf32>
    %516 = arith.mulf %513, %515 : vector<8x256xf32>
    %517 = arith.truncf %516 : vector<8x256xf32> to vector<8x256xbf16>
    %cst_301 = arith.constant dense<0.000000e+00> : vector<8x256xf32>
    %518 = tpu.matmul %512, %517, %cst_301 {dimension_numbers = #tpu.dot_dimension_numbers<[1], [0], [0], [1], [0, 0, 1, 1], [], []>} : vector<8x8xbf16>, vector<8x256xbf16>, vector<8x256xf32> -> vector<8x256xf32>
    %519 = arith.addf %510, %518 : vector<8x256xf32>
    %c0_302 = arith.constant 0 : index
    %c0_303 = arith.constant 0 : index
    %c0_304 = arith.constant 0 : index
    %520 = vector.load %arg15[%c0_302, %c0_303, %c0_304] : memref<9x8x8xbf16, #tpu.memory_space<vmem>>, vector<1x8x8xbf16>
    %521 = vector.shape_cast %520 : vector<1x8x8xbf16> to vector<8x8xbf16>
    %cst_305 = arith.constant dense<0.000000e+00> : vector<8x256xf32>
    %522 = tpu.matmul %521, %88, %cst_305 {dimension_numbers = #tpu.dot_dimension_numbers<[1], [0], [0], [1], [0, 0, 1, 1], [], []>} : vector<8x8xbf16>, vector<8x256xbf16>, vector<8x256xf32> -> vector<8x256xf32>
    %523 = arith.addf %519, %522 : vector<8x256xf32>
    %c1_306 = arith.constant 1 : index
    %c0_307 = arith.constant 0 : index
    %c0_308 = arith.constant 0 : index
    %524 = vector.load %arg15[%c1_306, %c0_307, %c0_308] : memref<9x8x8xbf16, #tpu.memory_space<vmem>>, vector<1x8x8xbf16>
    %525 = vector.shape_cast %524 : vector<1x8x8xbf16> to vector<8x8xbf16>
    %cst_309 = arith.constant dense<0.000000e+00> : vector<8x256xf32>
    %526 = tpu.matmul %525, %93, %cst_309 {dimension_numbers = #tpu.dot_dimension_numbers<[1], [0], [0], [1], [0, 0, 1, 1], [], []>} : vector<8x8xbf16>, vector<8x256xbf16>, vector<8x256xf32> -> vector<8x256xf32>
    %527 = arith.addf %523, %526 : vector<8x256xf32>
    %c2_310 = arith.constant 2 : index
    %c0_311 = arith.constant 0 : index
    %c0_312 = arith.constant 0 : index
    %528 = vector.load %arg15[%c2_310, %c0_311, %c0_312] : memref<9x8x8xbf16, #tpu.memory_space<vmem>>, vector<1x8x8xbf16>
    %529 = vector.shape_cast %528 : vector<1x8x8xbf16> to vector<8x8xbf16>
    %cst_313 = arith.constant dense<0.000000e+00> : vector<8x256xf32>
    %530 = tpu.matmul %529, %98, %cst_313 {dimension_numbers = #tpu.dot_dimension_numbers<[1], [0], [0], [1], [0, 0, 1, 1], [], []>} : vector<8x8xbf16>, vector<8x256xbf16>, vector<8x256xf32> -> vector<8x256xf32>
    %531 = arith.addf %527, %530 : vector<8x256xf32>
    %c3_314 = arith.constant 3 : index
    %c0_315 = arith.constant 0 : index
    %c0_316 = arith.constant 0 : index
    %532 = vector.load %arg15[%c3_314, %c0_315, %c0_316] : memref<9x8x8xbf16, #tpu.memory_space<vmem>>, vector<1x8x8xbf16>
    %533 = vector.shape_cast %532 : vector<1x8x8xbf16> to vector<8x8xbf16>
    %cst_317 = arith.constant dense<0.000000e+00> : vector<8x256xf32>
    %534 = tpu.matmul %533, %103, %cst_317 {dimension_numbers = #tpu.dot_dimension_numbers<[1], [0], [0], [1], [0, 0, 1, 1], [], []>} : vector<8x8xbf16>, vector<8x256xbf16>, vector<8x256xf32> -> vector<8x256xf32>
    %535 = arith.addf %531, %534 : vector<8x256xf32>
    %c4_318 = arith.constant 4 : index
    %c0_319 = arith.constant 0 : index
    %c0_320 = arith.constant 0 : index
    %536 = vector.load %arg15[%c4_318, %c0_319, %c0_320] : memref<9x8x8xbf16, #tpu.memory_space<vmem>>, vector<1x8x8xbf16>
    %537 = vector.shape_cast %536 : vector<1x8x8xbf16> to vector<8x8xbf16>
    %cst_321 = arith.constant dense<0.000000e+00> : vector<8x256xf32>
    %538 = tpu.matmul %537, %104, %cst_321 {dimension_numbers = #tpu.dot_dimension_numbers<[1], [0], [0], [1], [0, 0, 1, 1], [], []>} : vector<8x8xbf16>, vector<8x256xbf16>, vector<8x256xf32> -> vector<8x256xf32>
    %539 = arith.addf %535, %538 : vector<8x256xf32>
    %c5_322 = arith.constant 5 : index
    %c0_323 = arith.constant 0 : index
    %c0_324 = arith.constant 0 : index
    %540 = vector.load %arg15[%c5_322, %c0_323, %c0_324] : memref<9x8x8xbf16, #tpu.memory_space<vmem>>, vector<1x8x8xbf16>
    %541 = vector.shape_cast %540 : vector<1x8x8xbf16> to vector<8x8xbf16>
    %cst_325 = arith.constant dense<0.000000e+00> : vector<8x256xf32>
    %542 = tpu.matmul %541, %109, %cst_325 {dimension_numbers = #tpu.dot_dimension_numbers<[1], [0], [0], [1], [0, 0, 1, 1], [], []>} : vector<8x8xbf16>, vector<8x256xbf16>, vector<8x256xf32> -> vector<8x256xf32>
    %543 = arith.addf %539, %542 : vector<8x256xf32>
    %c6_326 = arith.constant 6 : index
    %c0_327 = arith.constant 0 : index
    %c0_328 = arith.constant 0 : index
    %544 = vector.load %arg15[%c6_326, %c0_327, %c0_328] : memref<9x8x8xbf16, #tpu.memory_space<vmem>>, vector<1x8x8xbf16>
    %545 = vector.shape_cast %544 : vector<1x8x8xbf16> to vector<8x8xbf16>
    %cst_329 = arith.constant dense<0.000000e+00> : vector<8x256xf32>
    %546 = tpu.matmul %545, %114, %cst_329 {dimension_numbers = #tpu.dot_dimension_numbers<[1], [0], [0], [1], [0, 0, 1, 1], [], []>} : vector<8x8xbf16>, vector<8x256xbf16>, vector<8x256xf32> -> vector<8x256xf32>
    %547 = arith.addf %543, %546 : vector<8x256xf32>
    %c7_330 = arith.constant 7 : index
    %c0_331 = arith.constant 0 : index
    %c0_332 = arith.constant 0 : index
    %548 = vector.load %arg15[%c7_330, %c0_331, %c0_332] : memref<9x8x8xbf16, #tpu.memory_space<vmem>>, vector<1x8x8xbf16>
    %549 = vector.shape_cast %548 : vector<1x8x8xbf16> to vector<8x8xbf16>
    %cst_333 = arith.constant dense<0.000000e+00> : vector<8x256xf32>
    %550 = tpu.matmul %549, %119, %cst_333 {dimension_numbers = #tpu.dot_dimension_numbers<[1], [0], [0], [1], [0, 0, 1, 1], [], []>} : vector<8x8xbf16>, vector<8x256xbf16>, vector<8x256xf32> -> vector<8x256xf32>
    %551 = arith.addf %547, %550 : vector<8x256xf32>
    %c8_334 = arith.constant 8 : index
    %c0_335 = arith.constant 0 : index
    %c0_336 = arith.constant 0 : index
    %552 = vector.load %arg15[%c8_334, %c0_335, %c0_336] : memref<9x8x8xbf16, #tpu.memory_space<vmem>>, vector<1x8x8xbf16>
    %553 = vector.shape_cast %552 : vector<1x8x8xbf16> to vector<8x8xbf16>
    %cst_337 = arith.constant dense<0.000000e+00> : vector<8x256xf32>
    %554 = tpu.matmul %553, %124, %cst_337 {dimension_numbers = #tpu.dot_dimension_numbers<[1], [0], [0], [1], [0, 0, 1, 1], [], []>} : vector<8x8xbf16>, vector<8x256xbf16>, vector<8x256xf32> -> vector<8x256xf32>
    %555 = arith.addf %551, %554 : vector<8x256xf32>
    %c0_338 = arith.constant 0 : index
    %c0_339 = arith.constant 0 : index
    %556 = vector.load %arg16[%c0_338, %c0_339] : memref<8x1xf32, #tpu.memory_space<vmem>>, vector<8x1xf32>
    %557 = vector.broadcast %556 : vector<8x1xf32> to vector<8x256xf32>
    %558 = arith.addf %555, %557 : vector<8x256xf32>
    %c0_340 = arith.constant 0 : index
    %c0_341 = arith.constant 0 : index
    %c0_342 = arith.constant 0 : index
    %559 = vector.load %arg17[%c0_340, %c0_341, %c0_342] : memref<1x8x256xf32, #tpu.memory_space<vmem>>, vector<1x8x256xf32>
    %560 = vector.shape_cast %559 : vector<1x8x256xf32> to vector<8x256xf32>
    %561 = vector.shape_cast %558 : vector<8x256xf32> to vector<1x8x256xf32>
    tpu.vector_store %arg17[%c0_340, %c0_341, %c0_342], %561 {strides = array<i32>} : memref<1x8x256xf32, #tpu.memory_space<vmem>>, vector<1x8x256xf32>,
    return
  }
  func.func @transform_0(%arg0: i32) -> (i32, i32) {
    %c0_i32 = arith.constant 0 : i32
    %c0_i32_0 = arith.constant 0 : i32
    %c0_i32_1 = arith.constant 0 : i32
    return %c0_i32, %c0_i32_0 : i32, i32
  }
  func.func @transform_1(%arg0: i32) -> (i32, i32, i32) {
    %c0_i32 = arith.constant 0 : i32
    %c0_i32_0 = arith.constant 0 : i32
    %c0_i32_1 = arith.constant 0 : i32
    return %arg0, %c0_i32, %c0_i32_0 : i32, i32, i32
  }
  func.func @transform_2(%arg0: i32) -> (i32, i32, i32) {
    %c0_i32 = arith.constant 0 : i32
    %c0_i32_0 = arith.constant 0 : i32
    %c0_i32_1 = arith.constant 0 : i32
    %c0_i32_2 = arith.constant 0 : i32
    return %c0_i32, %c0_i32_0, %c0_i32_1 : i32, i32, i32
  }
  func.func @transform_3(%arg0: i32) -> (i32, i32) {
    %c0_i32 = arith.constant 0 : i32
    %c0_i32_0 = arith.constant 0 : i32
    %c0_i32_1 = arith.constant 0 : i32
    return %c0_i32, %c0_i32_0 : i32, i32
  }
  func.func @transform_4(%arg0: i32) -> (i32, i32, i32) {
    %c0_i32 = arith.constant 0 : i32
    %c0_i32_0 = arith.constant 0 : i32
    %c0_i32_1 = arith.constant 0 : i32
    %c0_i32_2 = arith.constant 0 : i32
    return %c0_i32, %c0_i32_0, %c0_i32_1 : i32, i32, i32
  }
  func.func @transform_5(%arg0: i32) -> (i32, i32) {
    %c0_i32 = arith.constant 0 : i32
    %c0_i32_0 = arith.constant 0 : i32
    %c0_i32_1 = arith.constant 0 : i32
    return %c0_i32, %c0_i32_0 : i32, i32
  }
  func.func @transform_6(%arg0: i32) -> (i32, i32, i32) {
    %c0_i32 = arith.constant 0 : i32
    %c0_i32_0 = arith.constant 0 : i32
    %c0_i32_1 = arith.constant 0 : i32
    %c0_i32_2 = arith.constant 0 : i32
    return %c0_i32, %c0_i32_0, %c0_i32_1 : i32, i32, i32
  }
  func.func @transform_7(%arg0: i32) -> (i32, i32) {
    %c0_i32 = arith.constant 0 : i32
    %c0_i32_0 = arith.constant 0 : i32
    %c0_i32_1 = arith.constant 0 : i32
    return %c0_i32, %c0_i32_0 : i32, i32
  }
  func.func @transform_8(%arg0: i32) -> (i32, i32, i32) {
    %c0_i32 = arith.constant 0 : i32
    %c0_i32_0 = arith.constant 0 : i32
    %c0_i32_1 = arith.constant 0 : i32
    %c0_i32_2 = arith.constant 0 : i32
    return %c0_i32, %c0_i32_0, %c0_i32_1 : i32, i32, i32
  }
  func.func @transform_9(%arg0: i32) -> (i32, i32) {
    %c0_i32 = arith.constant 0 : i32
    %c0_i32_0 = arith.constant 0 : i32
    %c0_i32_1 = arith.constant 0 : i32
    return %c0_i32, %c0_i32_0 : i32, i32
  }
  func.func @transform_10(%arg0: i32) -> (i32, i32, i32) {
    %c0_i32 = arith.constant 0 : i32
    %c0_i32_0 = arith.constant 0 : i32
    %c0_i32_1 = arith.constant 0 : i32
    %c0_i32_2 = arith.constant 0 : i32
    return %c0_i32, %c0_i32_0, %c0_i32_1 : i32, i32, i32
  }
  func.func @transform_11(%arg0: i32) -> (i32, i32, i32) {
    %c0_i32 = arith.constant 0 : i32
    %c0_i32_0 = arith.constant 0 : i32
    %c0_i32_1 = arith.constant 0 : i32
    %c0_i32_2 = arith.constant 0 : i32
    return %c0_i32, %c0_i32_0, %c0_i32_1 : i32, i32, i32
  }
  func.func @transform_12(%arg0: i32) -> (i32, i32) {
    %c0_i32 = arith.constant 0 : i32
    %c0_i32_0 = arith.constant 0 : i32
    %c0_i32_1 = arith.constant 0 : i32
    return %c0_i32, %c0_i32_0 : i32, i32
  }
  func.func @transform_13(%arg0: i32) -> (i32, i32, i32) {
    %c0_i32 = arith.constant 0 : i32
    %c0_i32_0 = arith.constant 0 : i32
    %c0_i32_1 = arith.constant 0 : i32
    %c0_i32_2 = arith.constant 0 : i32
    return %c0_i32, %c0_i32_0, %c0_i32_1 : i32, i32, i32
  }
  func.func @transform_14(%arg0: i32) -> (i32, i32, i32) {
    %c0_i32 = arith.constant 0 : i32
    %c0_i32_0 = arith.constant 0 : i32
    %c0_i32_1 = arith.constant 0 : i32
    %c0_i32_2 = arith.constant 0 : i32
    return %c0_i32, %c0_i32_0, %c0_i32_1 : i32, i32, i32
  }
  func.func @transform_15(%arg0: i32) -> (i32, i32) {
    %c0_i32 = arith.constant 0 : i32
    %c0_i32_0 = arith.constant 0 : i32
    %c0_i32_1 = arith.constant 0 : i32
    return %c0_i32, %c0_i32_0 : i32, i32
  }
  func.func @transform_16(%arg0: i32) -> (i32, i32, i32) {
    %c0_i32 = arith.constant 0 : i32
    %c0_i32_0 = arith.constant 0 : i32
    %c0_i32_1 = arith.constant 0 : i32
    return %arg0, %c0_i32, %c0_i32_0 : i32, i32, i32
  }
}

</mosaic_0001>

<llo_original>
// kernel: tpu_custom_call.1
$region0: #{tpu_custom_call.1}
  #allocation0 [shape = 'u32[]', space=smem, size = 0x4, offset = 0x4, fixed_abs, tag = 'smem constant byte address 0x4 - core index']
  #allocation1 [shape = 'u32[144,128]{1,0:T(1,128)}', space=vmem, size = 0x12000, scoped, tag = 'internal scratch']
  %s0 = inlined_call_operand.vmem [shape: f32[9,256], index: 0, kind: input, shape index: {}]
  %s1 = inlined_call_operand.vmem [shape: f32[2,8,256], index: 1, kind: input, shape index: {}]
  %s2 = inlined_call_operand.vmem [shape: bf16[9,8,8], index: 2, kind: input, shape index: {}]
  %s3 = inlined_call_operand.vmem [shape: f32[8,1], index: 3, kind: input, shape index: {}]
  %s4 = inlined_call_operand.vmem [shape: bf16[9,16,8], index: 4, kind: input, shape index: {}]
  %s5 = inlined_call_operand.vmem [shape: f32[16,1], index: 5, kind: input, shape index: {}]
  %s6 = inlined_call_operand.vmem [shape: bf16[9,32,16], index: 6, kind: input, shape index: {}]
  %s7 = inlined_call_operand.vmem [shape: f32[32,1], index: 7, kind: input, shape index: {}]
  %s8 = inlined_call_operand.vmem [shape: bf16[9,16,32], index: 8, kind: input, shape index: {}]
  %s9 = inlined_call_operand.vmem [shape: f32[16,1], index: 9, kind: input, shape index: {}]
  %s10 = inlined_call_operand.vmem [shape: bf16[9,8,16], index: 10, kind: input, shape index: {}]
  %s11 = inlined_call_operand.vmem [shape: bf16[9,8,16], index: 11, kind: input, shape index: {}]
  %s12 = inlined_call_operand.vmem [shape: f32[8,1], index: 12, kind: input, shape index: {}]
  %s13 = inlined_call_operand.vmem [shape: bf16[9,8,8], index: 13, kind: input, shape index: {}]
  %s14 = inlined_call_operand.vmem [shape: bf16[9,8,8], index: 14, kind: input, shape index: {}]
  %s15 = inlined_call_operand.vmem [shape: f32[8,1], index: 15, kind: input, shape index: {}]
  %s16 = inlined_call_operand.hbm [shape: f32[2,8,256], index: 16, kind: output, shape index: {}]
  %s17 = sld [smem:[#allocation0]]
  $region97: #{tpu_custom_call.1} parent=0
    _
  %s19 = ssub.s32 1, %s17
  %s20 = scalar_select 0, %s19, %s17
  $region1: #{tpu_custom_call.1} parent=0
    #allocation2 [shape = 'u8[16384]{0}', space=vmem, size = 0x4000, scoped, tag = 'output window, operand 0']
    #allocation3 [shape = 's32[2]{0}', space=sflag, size = 0x8, scoped, tag = 'scoped memory for tpu_custom_call.1']
    %21 = vsyncpa [#allocation3], 0
    %s22 = scalar_lea.sflag [#allocation3], 1
    %23 = vsyncpa %s22, 0
    loop: start=0, step=1, limit=4
    $region2: #{tpu_custom_call.1} parent=1 // loop_pre_header
      _
    $region3: #{tpu_custom_call.1} parent=1 // loop_header
      %s25 = sphi 0, %s29
      %p26 = scmp.ge.s32.totalorder %s25, 4
      %s33 = sphi 0, %s33
      %s35 = sphi 0, %s33
      %s36 = sphi 0, %s35
      %s50 = sphi 0, %s36
      %s56 = sphi 0, %s58
      %s59 = sphi 0, %s56
      %s60 = sphi 0, %s59
      %s76 = sphi 0, %s60
      %s80 = sphi 0, %s80
      %s82 = sphi 0, %s80
      %s83 = sphi 0, %s82
      %s97 = sphi 0, %s83
      %s101 = sphi 0, %s101
      %s103 = sphi 0, %s101
      %s104 = sphi 0, %s103
      %s118 = sphi 0, %s104
      %s122 = sphi 0, %s122
      %s124 = sphi 0, %s122
      %s125 = sphi 0, %s124
      %s139 = sphi 0, %s125
      %s143 = sphi 0, %s143
      %s145 = sphi 0, %s143
      %s146 = sphi 0, %s145
      %s160 = sphi 0, %s146
      %s164 = sphi 0, %s164
      %s166 = sphi 0, %s164
      %s167 = sphi 0, %s166
      %s181 = sphi 0, %s167
      %s185 = sphi 0, %s185
      %s187 = sphi 0, %s185
      %s188 = sphi 0, %s187
      %s202 = sphi 0, %s188
      %s206 = sphi 0, %s206
      %s208 = sphi 0, %s206
      %s209 = sphi 0, %s208
      %s223 = sphi 0, %s209
      %s227 = sphi 0, %s227
      %s229 = sphi 0, %s227
      %s230 = sphi 0, %s229
      %s244 = sphi 0, %s230
      %s248 = sphi 0, %s248
      %s250 = sphi 0, %s248
      %s251 = sphi 0, %s250
      %s265 = sphi 0, %s251
      %s269 = sphi 0, %s269
      %s271 = sphi 0, %s269
      %s272 = sphi 0, %s271
      %s286 = sphi 0, %s272
      %s290 = sphi 0, %s290
      %s292 = sphi 0, %s290
      %s293 = sphi 0, %s292
      %s307 = sphi 0, %s293
      %s311 = sphi 0, %s311
      %s313 = sphi 0, %s311
      %s314 = sphi 0, %s313
      %s328 = sphi 0, %s314
      %s332 = sphi 0, %s332
      %s334 = sphi 0, %s332
      %s335 = sphi 0, %s334
      %s349 = sphi 0, %s335
      %s353 = sphi 0, %s353
      %s355 = sphi 0, %s353
      %s356 = sphi 0, %s355
      %s370 = sphi 0, %s356
      %s376 = sphi 0, %s378
      %s379 = sphi 0, %s376
      %s380 = sphi 0, %s379
      %s396 = sphi 0, %s380
    $region4: #{tpu_custom_call.1} parent=1 // loop_header_branch
      %28 = sbr.rel (%p26) target = $region8
    $region5: #{tpu_custom_call.1} parent=1 // loop_body
      %s30 = ssub.s32 %s25, 1
      %s31 = ssub.s32 %s25, 2
      %s32 = sadd.s32 %s25, 1
      %s34 = sadd.s32 %s33, 1
      %p37 = scmp.eq.s32.totalorder %s25, 1
      %p38 = scmp.ne.s32.totalorder %s33, %s35
      %p39 = scmp.eq.s32.totalorder %s25, 0
      %p40 = por %p38, %p39
      %p41 = scmp.ne.s32.totalorder %s33, %s35
      %p42 = scmp.eq.s32.totalorder %s30, 1
      %p43 = por %p41, %p42
      %p44 = scmp.ne.s32.totalorder %s35, %s36
      %p45 = scmp.eq.s32.totalorder %s30, 0
      %p46 = por %p44, %p45
      %p47 = scmp.ne.s32.totalorder %s35, %s36
      %p48 = scmp.eq.s32.totalorder %s31, 1
      %p49 = por %p47, %p48
      %p51 = scmp.ne.s32.totalorder %s36, %s50
      %p52 = scmp.eq.s32.totalorder %s31, 0
      %p53 = por %p51, %p52
      %s54 = ssub.s32 %s25, %s32
      %p55 = scmp.eq.s32.totalorder %s54, 0
      %s57 = sadd.s32 %s56, 1
      %s58 = scalar_select %p55, %s56, %s57
      %p61 = pneg %p55
      %p62 = scmp.eq.s32.totalorder %s25, 1
      %p63 = por %p61, %p62
      %p64 = scmp.ne.s32.totalorder %s56, %s59
      %p65 = scmp.eq.s32.totalorder %s25, 0
      %p66 = por %p64, %p65
      %p67 = scmp.ne.s32.totalorder %s56, %s59
      %p68 = scmp.eq.s32.totalorder %s30, 1
      %p69 = por %p67, %p68
      %p70 = scmp.ne.s32.totalorder %s59, %s60
      %p71 = scmp.eq.s32.totalorder %s30, 0
      %p72 = por %p70, %p71
      %p73 = scmp.ne.s32.totalorder %s59, %s60
      %p74 = scmp.eq.s32.totalorder %s31, 1
      %p75 = por %p73, %p74
      %p77 = scmp.ne.s32.totalorder %s60, %s76
      %p78 = scmp.eq.s32.totalorder %s31, 0
      %p79 = por %p77, %p78
      %s81 = sadd.s32 %s80, 1
      %p84 = scmp.eq.s32.totalorder %s25, 1
      %p85 = scmp.ne.s32.totalorder %s80, %s82
      %p86 = scmp.eq.s32.totalorder %s25, 0
      %p87 = por %p85, %p86
      %p88 = scmp.ne.s32.totalorder %s80, %s82
      %p89 = scmp.eq.s32.totalorder %s30, 1
      %p90 = por %p88, %p89
      %p91 = scmp.ne.s32.totalorder %s82, %s83
      %p92 = scmp.eq.s32.totalorder %s30, 0
      %p93 = por %p91, %p92
      %p94 = scmp.ne.s32.totalorder %s82, %s83
      %p95 = scmp.eq.s32.totalorder %s31, 1
      %p96 = por %p94, %p95
      %p98 = scmp.ne.s32.totalorder %s83, %s97
      %p99 = scmp.eq.s32.totalorder %s31, 0
      %p100 = por %p98, %p99
      %s102 = sadd.s32 %s101, 1
      %p105 = scmp.eq.s32.totalorder %s25, 1
      %p106 = scmp.ne.s32.totalorder %s101, %s103
      %p107 = scmp.eq.s32.totalorder %s25, 0
      %p108 = por %p106, %p107
      %p109 = scmp.ne.s32.totalorder %s101, %s103
      %p110 = scmp.eq.s32.totalorder %s30, 1
      %p111 = por %p109, %p110
      %p112 = scmp.ne.s32.totalorder %s103, %s104
      %p113 = scmp.eq.s32.totalorder %s30, 0
      %p114 = por %p112, %p113
      %p115 = scmp.ne.s32.totalorder %s103, %s104
      %p116 = scmp.eq.s32.totalorder %s31, 1
      %p117 = por %p115, %p116
      %p119 = scmp.ne.s32.totalorder %s104, %s118
      %p120 = scmp.eq.s32.totalorder %s31, 0
      %p121 = por %p119, %p120
      %s123 = sadd.s32 %s122, 1
      %p126 = scmp.eq.s32.totalorder %s25, 1
      %p127 = scmp.ne.s32.totalorder %s122, %s124
      %p128 = scmp.eq.s32.totalorder %s25, 0
      %p129 = por %p127, %p128
      %p130 = scmp.ne.s32.totalorder %s122, %s124
      %p131 = scmp.eq.s32.totalorder %s30, 1
      %p132 = por %p130, %p131
      %p133 = scmp.ne.s32.totalorder %s124, %s125
      %p134 = scmp.eq.s32.totalorder %s30, 0
      %p135 = por %p133, %p134
      %p136 = scmp.ne.s32.totalorder %s124, %s125
      %p137 = scmp.eq.s32.totalorder %s31, 1
      %p138 = por %p136, %p137
      %p140 = scmp.ne.s32.totalorder %s125, %s139
      %p141 = scmp.eq.s32.totalorder %s31, 0
      %p142 = por %p140, %p141
      %s144 = sadd.s32 %s143, 1
      %p147 = scmp.eq.s32.totalorder %s25, 1
      %p148 = scmp.ne.s32.totalorder %s143, %s145
      %p149 = scmp.eq.s32.totalorder %s25, 0
      %p150 = por %p148, %p149
      %p151 = scmp.ne.s32.totalorder %s143, %s145
      %p152 = scmp.eq.s32.totalorder %s30, 1
      %p153 = por %p151, %p152
      %p154 = scmp.ne.s32.totalorder %s145, %s146
      %p155 = scmp.eq.s32.totalorder %s30, 0
      %p156 = por %p154, %p155
      %p157 = scmp.ne.s32.totalorder %s145, %s146
      %p158 = scmp.eq.s32.totalorder %s31, 1
      %p159 = por %p157, %p158
      %p161 = scmp.ne.s32.totalorder %s146, %s160
      %p162 = scmp.eq.s32.totalorder %s31, 0
      %p163 = por %p161, %p162
      %s165 = sadd.s32 %s164, 1
      %p168 = scmp.eq.s32.totalorder %s25, 1
      %p169 = scmp.ne.s32.totalorder %s164, %s166
      %p170 = scmp.eq.s32.totalorder %s25, 0
      %p171 = por %p169, %p170
      %p172 = scmp.ne.s32.totalorder %s164, %s166
      %p173 = scmp.eq.s32.totalorder %s30, 1
      %p174 = por %p172, %p173
      %p175 = scmp.ne.s32.totalorder %s166, %s167
      %p176 = scmp.eq.s32.totalorder %s30, 0
      %p177 = por %p175, %p176
      %p178 = scmp.ne.s32.totalorder %s166, %s167
      %p179 = scmp.eq.s32.totalorder %s31, 1
      %p180 = por %p178, %p179
      %p182 = scmp.ne.s32.totalorder %s167, %s181
      %p183 = scmp.eq.s32.totalorder %s31, 0
      %p184 = por %p182, %p183
      %s186 = sadd.s32 %s185, 1
      %p189 = scmp.eq.s32.totalorder %s25, 1
      %p190 = scmp.ne.s32.totalorder %s185, %s187
      %p191 = scmp.eq.s32.totalorder %s25, 0
      %p192 = por %p190, %p191
      %p193 = scmp.ne.s32.totalorder %s185, %s187
      %p194 = scmp.eq.s32.totalorder %s30, 1
      %p195 = por %p193, %p194
      %p196 = scmp.ne.s32.totalorder %s187, %s188
      %p197 = scmp.eq.s32.totalorder %s30, 0
      %p198 = por %p196, %p197
      %p199 = scmp.ne.s32.totalorder %s187, %s188
      %p200 = scmp.eq.s32.totalorder %s31, 1
      %p201 = por %p199, %p200
      %p203 = scmp.ne.s32.totalorder %s188, %s202
      %p204 = scmp.eq.s32.totalorder %s31, 0
      %p205 = por %p203, %p204
      %s207 = sadd.s32 %s206, 1
      %p210 = scmp.eq.s32.totalorder %s25, 1
      %p211 = scmp.ne.s32.totalorder %s206, %s208
      %p212 = scmp.eq.s32.totalorder %s25, 0
      %p213 = por %p211, %p212
      %p214 = scmp.ne.s32.totalorder %s206, %s208
      %p215 = scmp.eq.s32.totalorder %s30, 1
      %p216 = por %p214, %p215
      %p217 = scmp.ne.s32.totalorder %s208, %s209
      %p218 = scmp.eq.s32.totalorder %s30, 0
      %p219 = por %p217, %p218
      %p220 = scmp.ne.s32.totalorder %s208, %s209
      %p221 = scmp.eq.s32.totalorder %s31, 1
      %p222 = por %p220, %p221
      %p224 = scmp.ne.s32.totalorder %s209, %s223
      %p225 = scmp.eq.s32.totalorder %s31, 0
      %p226 = por %p224, %p225
      %s228 = sadd.s32 %s227, 1
      %p231 = scmp.eq.s32.totalorder %s25, 1
      %p232 = scmp.ne.s32.totalorder %s227, %s229
      %p233 = scmp.eq.s32.totalorder %s25, 0
      %p234 = por %p232, %p233
      %p235 = scmp.ne.s32.totalorder %s227, %s229
      %p236 = scmp.eq.s32.totalorder %s30, 1
      %p237 = por %p235, %p236
      %p238 = scmp.ne.s32.totalorder %s229, %s230
      %p239 = scmp.eq.s32.totalorder %s30, 0
      %p240 = por %p238, %p239
      %p241 = scmp.ne.s32.totalorder %s229, %s230
      %p242 = scmp.eq.s32.totalorder %s31, 1
      %p243 = por %p241, %p242
      %p245 = scmp.ne.s32.totalorder %s230, %s244
      %p246 = scmp.eq.s32.totalorder %s31, 0
      %p247 = por %p245, %p246
      %s249 = sadd.s32 %s248, 1
      %p252 = scmp.eq.s32.totalorder %s25, 1
      %p253 = scmp.ne.s32.totalorder %s248, %s250
      %p254 = scmp.eq.s32.totalorder %s25, 0
      %p255 = por %p253, %p254
      %p256 = scmp.ne.s32.totalorder %s248, %s250
      %p257 = scmp.eq.s32.totalorder %s30, 1
      %p258 = por %p256, %p257
      %p259 = scmp.ne.s32.totalorder %s250, %s251
      %p260 = scmp.eq.s32.totalorder %s30, 0
      %p261 = por %p259, %p260
      %p262 = scmp.ne.s32.totalorder %s250, %s251
      %p263 = scmp.eq.s32.totalorder %s31, 1
      %p264 = por %p262, %p263
      %p266 = scmp.ne.s32.totalorder %s251, %s265
      %p267 = scmp.eq.s32.totalorder %s31, 0
      %p268 = por %p266, %p267
      %s270 = sadd.s32 %s269, 1
      %p273 = scmp.eq.s32.totalorder %s25, 1
      %p274 = scmp.ne.s32.totalorder %s269, %s271
      %p275 = scmp.eq.s32.totalorder %s25, 0
      %p276 = por %p274, %p275
      %p277 = scmp.ne.s32.totalorder %s269, %s271
      %p278 = scmp.eq.s32.totalorder %s30, 1
      %p279 = por %p277, %p278
      %p280 = scmp.ne.s32.totalorder %s271, %s272
      %p281 = scmp.eq.s32.totalorder %s30, 0
      %p282 = por %p280, %p281
      %p283 = scmp.ne.s32.totalorder %s271, %s272
      %p284 = scmp.eq.s32.totalorder %s31, 1
      %p285 = por %p283, %p284
      %p287 = scmp.ne.s32.totalorder %s272, %s286
      %p288 = scmp.eq.s32.totalorder %s31, 0
      %p289 = por %p287, %p288
      %s291 = sadd.s32 %s290, 1
      %p294 = scmp.eq.s32.totalorder %s25, 1
      %p295 = scmp.ne.s32.totalorder %s290, %s292
      %p296 = scmp.eq.s32.totalorder %s25, 0
      %p297 = por %p295, %p296
      %p298 = scmp.ne.s32.totalorder %s290, %s292
      %p299 = scmp.eq.s32.totalorder %s30, 1
      %p300 = por %p298, %p299
      %p301 = scmp.ne.s32.totalorder %s292, %s293
      %p302 = scmp.eq.s32.totalorder %s30, 0
      %p303 = por %p301, %p302
      %p304 = scmp.ne.s32.totalorder %s292, %s293
      %p305 = scmp.eq.s32.totalorder %s31, 1
      %p306 = por %p304, %p305
      %p308 = scmp.ne.s32.totalorder %s293, %s307
      %p309 = scmp.eq.s32.totalorder %s31, 0
      %p310 = por %p308, %p309
      %s312 = sadd.s32 %s311, 1
      %p315 = scmp.eq.s32.totalorder %s25, 1
      %p316 = scmp.ne.s32.totalorder %s311, %s313
      %p317 = scmp.eq.s32.totalorder %s25, 0
      %p318 = por %p316, %p317
      %p319 = scmp.ne.s32.totalorder %s311, %s313
      %p320 = scmp.eq.s32.totalorder %s30, 1
      %p321 = por %p319, %p320
      %p322 = scmp.ne.s32.totalorder %s313, %s314
      %p323 = scmp.eq.s32.totalorder %s30, 0
      %p324 = por %p322, %p323
      %p325 = scmp.ne.s32.totalorder %s313, %s314
      %p326 = scmp.eq.s32.totalorder %s31, 1
      %p327 = por %p325, %p326
      %p329 = scmp.ne.s32.totalorder %s314, %s328
      %p330 = scmp.eq.s32.totalorder %s31, 0
      %p331 = por %p329, %p330
      %s333 = sadd.s32 %s332, 1
      %p336 = scmp.eq.s32.totalorder %s25, 1
      %p337 = scmp.ne.s32.totalorder %s332, %s334
      %p338 = scmp.eq.s32.totalorder %s25, 0
      %p339 = por %p337, %p338
      %p340 = scmp.ne.s32.totalorder %s332, %s334
      %p341 = scmp.eq.s32.totalorder %s30, 1
      %p342 = por %p340, %p341
      %p343 = scmp.ne.s32.totalorder %s334, %s335
      %p344 = scmp.eq.s32.totalorder %s30, 0
      %p345 = por %p343, %p344
      %p346 = scmp.ne.s32.totalorder %s334, %s335
      %p347 = scmp.eq.s32.totalorder %s31, 1
      %p348 = por %p346, %p347
      %p350 = scmp.ne.s32.totalorder %s335, %s349
      %p351 = scmp.eq.s32.totalorder %s31, 0
      %p352 = por %p350, %p351
      %s354 = sadd.s32 %s353, 1
      %p357 = scmp.eq.s32.totalorder %s25, 1
      %p358 = scmp.ne.s32.totalorder %s353, %s355
      %p359 = scmp.eq.s32.totalorder %s25, 0
      %p360 = por %p358, %p359
      %p361 = scmp.ne.s32.totalorder %s353, %s355
      %p362 = scmp.eq.s32.totalorder %s30, 1
      %p363 = por %p361, %p362
      %p364 = scmp.ne.s32.totalorder %s355, %s356
      %p365 = scmp.eq.s32.totalorder %s30, 0
      %p366 = por %p364, %p365
      %p367 = scmp.ne.s32.totalorder %s355, %s356
      %p368 = scmp.eq.s32.totalorder %s31, 1
      %p369 = por %p367, %p368
      %p371 = scmp.ne.s32.totalorder %s356, %s370
      %p372 = scmp.eq.s32.totalorder %s31, 0
      %p373 = por %p371, %p372
      %s374 = ssub.s32 %s25, %s32
      %p375 = scmp.eq.s32.totalorder %s374, 0
      %s377 = sadd.s32 %s376, 1
      %s378 = scalar_select %p375, %s376, %s377
      %p381 = pneg %p375
      %p382 = scmp.eq.s32.totalorder %s25, 1
      %p383 = por %p381, %p382
      %p384 = scmp.ne.s32.totalorder %s376, %s379
      %p385 = scmp.eq.s32.totalorder %s25, 0
      %p386 = por %p384, %p385
      %p387 = scmp.ne.s32.totalorder %s376, %s379
      %p388 = scmp.eq.s32.totalorder %s30, 1
      %p389 = por %p387, %p388
      %p390 = scmp.ne.s32.totalorder %s379, %s380
      %p391 = scmp.eq.s32.totalorder %s30, 0
      %p392 = por %p390, %p391
      %p393 = scmp.ne.s32.totalorder %s379, %s380
      %p394 = scmp.eq.s32.totalorder %s31, 1
      %p395 = por %p393, %p394
      %p397 = scmp.ne.s32.totalorder %s380, %s396
      %p398 = scmp.eq.s32.totalorder %s31, 0
      %p399 = por %p397, %p398
      %p400 = scmp.le.s32.totalorder 1, %s25
      %p401 = scmp.lt.s32.totalorder %s25, 3
      %p402 = pnand %p400, %p401
      %p403 = pneg %p402
      // Predicated region
      $region9: #{tpu_custom_call.1} parent=5 // pred_check
        _
      $region10: #{tpu_custom_call.1} parent=5 // pred_check_branch
        %405 = sbr.rel (%p402) target = $region12
      $region11: #{tpu_custom_call.1} parent=5 // pred_region
        %s406 = ssub.s32 %s25, 1
        // Predicated region
        $region13: #{tpu_custom_call.1} parent=11 // pred_check
          %p407 = pneg %p46
        $region14: #{tpu_custom_call.1} parent=11 // pred_check_branch
          %409 = sbr.rel (%p407) target = $region16
        $region15: #{tpu_custom_call.1} parent=11 // pred_region
          _
        $region16: #{tpu_custom_call.1} parent=11 // pred_fallthru
          _
        // Predicated region
        $region17: #{tpu_custom_call.1} parent=11 // pred_check
          %p410 = pneg %p93
        $region18: #{tpu_custom_call.1} parent=11 // pred_check_branch
          %412 = sbr.rel (%p410) target = $region20
        $region19: #{tpu_custom_call.1} parent=11 // pred_region
          _
        $region20: #{tpu_custom_call.1} parent=11 // pred_fallthru
          _
        // Predicated region
        $region21: #{tpu_custom_call.1} parent=11 // pred_check
          %p413 = pneg %p114
        $region22: #{tpu_custom_call.1} parent=11 // pred_check_branch
          %415 = sbr.rel (%p413) target = $region24
        $region23: #{tpu_custom_call.1} parent=11 // pred_region
          _
        $region24: #{tpu_custom_call.1} parent=11 // pred_fallthru
          _
        // Predicated region
        $region25: #{tpu_custom_call.1} parent=11 // pred_check
          %p416 = pneg %p135
        $region26: #{tpu_custom_call.1} parent=11 // pred_check_branch
          %418 = sbr.rel (%p416) target = $region28
        $region27: #{tpu_custom_call.1} parent=11 // pred_region
          _
        $region28: #{tpu_custom_call.1} parent=11 // pred_fallthru
          _
        // Predicated region
        $region29: #{tpu_custom_call.1} parent=11 // pred_check
          %p419 = pneg %p156
        $region30: #{tpu_custom_call.1} parent=11 // pred_check_branch
          %421 = sbr.rel (%p419) target = $region32
        $region31: #{tpu_custom_call.1} parent=11 // pred_region
          _
        $region32: #{tpu_custom_call.1} parent=11 // pred_fallthru
          _
        // Predicated region
        $region33: #{tpu_custom_call.1} parent=11 // pred_check
          %p422 = pneg %p177
        $region34: #{tpu_custom_call.1} parent=11 // pred_check_branch
          %424 = sbr.rel (%p422) target = $region36
        $region35: #{tpu_custom_call.1} parent=11 // pred_region
          _
        $region36: #{tpu_custom_call.1} parent=11 // pred_fallthru
          _
        // Predicated region
        $region37: #{tpu_custom_call.1} parent=11 // pred_check
          %p425 = pneg %p198
        $region38: #{tpu_custom_call.1} parent=11 // pred_check_branch
          %427 = sbr.rel (%p425) target = $region40
        $region39: #{tpu_custom_call.1} parent=11 // pred_region
          _
        $region40: #{tpu_custom_call.1} parent=11 // pred_fallthru
          _
        // Predicated region
        $region41: #{tpu_custom_call.1} parent=11 // pred_check
          %p428 = pneg %p219
        $region42: #{tpu_custom_call.1} parent=11 // pred_check_branch
          %430 = sbr.rel (%p428) target = $region44
        $region43: #{tpu_custom_call.1} parent=11 // pred_region
          _
        $region44: #{tpu_custom_call.1} parent=11 // pred_fallthru
          _
        // Predicated region
        $region45: #{tpu_custom_call.1} parent=11 // pred_check
          %p431 = pneg %p240
        $region46: #{tpu_custom_call.1} parent=11 // pred_check_branch
          %433 = sbr.rel (%p431) target = $region48
        $region47: #{tpu_custom_call.1} parent=11 // pred_region
          _
        $region48: #{tpu_custom_call.1} parent=11 // pred_fallthru
          _
        // Predicated region
        $region49: #{tpu_custom_call.1} parent=11 // pred_check
          %p434 = pneg %p261
        $region50: #{tpu_custom_call.1} parent=11 // pred_check_branch
          %436 = sbr.rel (%p434) target = $region52
        $region51: #{tpu_custom_call.1} parent=11 // pred_region
          _
        $region52: #{tpu_custom_call.1} parent=11 // pred_fallthru
          _
        // Predicated region
        $region53: #{tpu_custom_call.1} parent=11 // pred_check
          %p437 = pneg %p282
        $region54: #{tpu_custom_call.1} parent=11 // pred_check_branch
          %439 = sbr.rel (%p437) target = $region56
        $region55: #{tpu_custom_call.1} parent=11 // pred_region
          _
        $region56: #{tpu_custom_call.1} parent=11 // pred_fallthru
          _
        // Predicated region
        $region57: #{tpu_custom_call.1} parent=11 // pred_check
          %p440 = pneg %p303
        $region58: #{tpu_custom_call.1} parent=11 // pred_check_branch
          %442 = sbr.rel (%p440) target = $region60
        $region59: #{tpu_custom_call.1} parent=11 // pred_region
          _
        $region60: #{tpu_custom_call.1} parent=11 // pred_fallthru
          _
        // Predicated region
        $region61: #{tpu_custom_call.1} parent=11 // pred_check
          %p443 = pneg %p324
        $region62: #{tpu_custom_call.1} parent=11 // pred_check_branch
          %445 = sbr.rel (%p443) target = $region64
        $region63: #{tpu_custom_call.1} parent=11 // pred_region
          _
        $region64: #{tpu_custom_call.1} parent=11 // pred_fallthru
          _
        // Predicated region
        $region65: #{tpu_custom_call.1} parent=11 // pred_check
          %p446 = pneg %p345
        $region66: #{tpu_custom_call.1} parent=11 // pred_check_branch
          %448 = sbr.rel (%p446) target = $region68
        $region67: #{tpu_custom_call.1} parent=11 // pred_region
          _
        $region68: #{tpu_custom_call.1} parent=11 // pred_fallthru
          _
        // Predicated region
        $region69: #{tpu_custom_call.1} parent=11 // pred_check
          %p449 = pneg %p366
        $region70: #{tpu_custom_call.1} parent=11 // pred_check_branch
          %451 = sbr.rel (%p449) target = $region72
        $region71: #{tpu_custom_call.1} parent=11 // pred_region
          _
        $region72: #{tpu_custom_call.1} parent=11 // pred_fallthru
          _
      $region12: #{tpu_custom_call.1} parent=5 // pred_fallthru
        _
      %p452 = scmp.lt.s32.totalorder %s25, 2
      // Predicated region
      $region73: #{tpu_custom_call.1} parent=5 // pred_check
        %p453 = pneg %p452
      $region74: #{tpu_custom_call.1} parent=5 // pred_check_branch
        %455 = sbr.rel (%p453) target = $region76
      $region75: #{tpu_custom_call.1} parent=5 // pred_region
        // Predicated region
        $region77: #{tpu_custom_call.1} parent=75 // pred_check
          %p456 = pneg %p66
        $region78: #{tpu_custom_call.1} parent=75 // pred_check_branch
          %458 = sbr.rel (%p456) target = $region80
        $region79: #{tpu_custom_call.1} parent=75 // pred_region
          %p459 = scmp.lt.s32.totalorder %s25, 1
          %s460 = scalar_select %p459, %s25, 1
          %s461 = smul.addr %s460, 2
          %s462 = smul.addr %s461, 8
          %s463 = scalar_lea.vmem %s1, %s462
        $region80: #{tpu_custom_call.1} parent=75 // pred_fallthru
          _
      $region76: #{tpu_custom_call.1} parent=5 // pred_fallthru
        _
      %p464 = scmp.le.s32.totalorder 1, %s25
      %p465 = scmp.lt.s32.totalorder %s25, 3
      %p466 = pnand %p464, %p465
      %p467 = pneg %p466
      // Predicated region
      $region81: #{tpu_custom_call.1} parent=5 // pred_check
        _
      $region82: #{tpu_custom_call.1} parent=5 // pred_check_branch
        %469 = sbr.rel (%p466) target = $region84
      $region83: #{tpu_custom_call.1} parent=5 // pred_region
        %s470 = ssub.s32 %s25, 1
        %p471 = pneg %p46
        %p472 = pneg %p43
        %p473 = scmp.lt.s32.totalorder %s30, 1
        %s474 = scalar_select %p473, %s30, 1
        %s475 = smul.addr %s474, 2
        %s476 = smul.addr %s475, 8
        %s477 = scalar_lea.vmem %s1, %s476
        %p478 = pneg %p72
        %p479 = pneg %p69
        %p480 = pneg %p93
        %p481 = pneg %p90
        %p482 = pneg %p114
        %p483 = pneg %p111
        %p484 = pneg %p135
        %p485 = pneg %p132
        %p486 = pneg %p156
        %p487 = pneg %p153
        %p488 = pneg %p177
        %p489 = pneg %p174
        %p490 = pneg %p198
        %p491 = pneg %p195
        %p492 = pneg %p219
        %p493 = pneg %p216
        %p494 = pneg %p240
        %p495 = pneg %p237
        %p496 = pneg %p261
        %p497 = pneg %p258
        %p498 = pneg %p282
        %p499 = pneg %p279
        %p500 = pneg %p303
        %p501 = pneg %p300
        %p502 = pneg %p324
        %p503 = pneg %p321
        %p504 = pneg %p345
        %p505 = pneg %p342
        %p506 = pneg %p366
        %p507 = pneg %p363
        %p508 = pneg %p392
        %p509 = pneg %p389
        %s510 = sand.u32 %s379, 1
        %s511 = scalar_lea.sflag [#allocation3], %s510
        %s512 = sand.u32 %s379, 1
        %s513 = smul.addr %s512, 16
        %s514 = scalar_lea.vmem [#allocation2], %s513
        %p515 = scmp.lt.s32.totalorder %s30, 1
        %s516 = scalar_select %p515, %s30, 1
        %s517 = smul.addr %s516, 2
        %s518 = smul.addr %s517, 8
        %s519 = scalar_lea.vmem %s1, %s518
        %v521 = vld [vmem:[%s0] sm:$0xff]
        %v522 = vld [vmem:[%s0 + $0x8] sm:$0xff]
        %v523 = vld [vmem:[%s0 + $0x10] sm:$0x1]
        %v524 = vld [vmem:[%s0 + $0x18] sm:$0x1]
        %v525 = vld [vmem:[%s519] sm:$0xff]
        %v526 = vld [vmem:[%s519 + $0x8] sm:$0xff]
        %v527 = vld [vmem:[%s2] sm:$0xf]
        %528 = vrot.lane.b32.xlu0 %v525, 17
        %v529 = vpop.permute.xlu0 %528
        %530 = vrot.lane.b32.xlu0 %v526, 17
        %v531 = vpop.permute.xlu0 %530
        %v532 = vlaneseq
        %v533 = vand.u32 %v532, 127
        %vm534 = vcmp.lt.s32.totalorder %v533, 17
        %v535 = vsel %vm534, %v529, %v531
        %v536 = vsel %vm534, %v531, %v529
        %v537 = vlaneseq
        %v538 = vshrl.u32 %v537, 7
        %v539 = vsub.s32 0, %v538
        %v540 = vrot.slane %v521, %v539
        %v541 = vlaneseq
        %v542 = vshrl.u32 %v541, 7
        %v543 = vsub.s32 0, %v542
        %v544 = vrot.slane %v522, %v543
        %v545 = vmul.f32 %v536, %v540
        %v546 = vmul.f32 %v535, %v544
        %v547 = vpack.c.bf16 %v545, %v545
        %v548 = vpack.c.bf16 %v546, %v546
        %s549 = scalar_lea.vmem %s2, 4
        %v550 = vld [vmem:[%s549] sm:$0xf]
        %551 = vrot.lane.b32.xlu0 %v525, 16
        %v552 = vpop.permute.xlu0 %551
        %553 = vrot.lane.b32.xlu0 %v526, 16
        %v554 = vpop.permute.xlu0 %553
        %vm555 = vcmp.lt.s32.totalorder %v533, 16
        %v556 = vsel %vm555, %v552, %v554
        %v557 = vsel %vm555, %v554, %v552
        %v558 = vlaneseq
        %v559 = vshrl.u32 %v558, 7
        %v560 = vsub.s32 1, %v559
        %v561 = vrot.slane %v521, %v560
        %v562 = vlaneseq
        %v563 = vshrl.u32 %v562, 7
        %v564 = vsub.s32 1, %v563
        %v565 = vrot.slane %v522, %v564
        %v566 = vmul.f32 %v557, %v561
        %v567 = vmul.f32 %v556, %v565
        %v568 = vpack.c.bf16 %v566, %v566
        %v569 = vpack.c.bf16 %v567, %v567
        %vm570 = vcmask 64512
        %v572 = vsel %vm570, %v550, 0
        %vm574 = vcmask 1043456
        %v576 = vsel %vm574, %v568, 0
        %v579 = vsel %vm574, %v569, 0
        %581 = vmatprep.subr.bf16.mxu0 %v579
        %582 = vmatpush1.bf16.msra.mxu0 %v576
        %583 = vmatprep.subr.bf16.mxu0 0
        %584 = vmatpush1.bf16.msra.mxu0 0
        %585 = vmatprep.subr.bf16.mxu0 0
        %586 = vmatpush1.bf16.msra.mxu0 0
        %587 = vmatprep.subr.bf16.mxu0 0
        %588 = vmatpush1.bf16.msra.mxu0 0
        %589 = vmatprep.subr.bf16.mxu0 0
        %590 = vmatpush1.bf16.msra.mxu0 0
        %591 = vmatprep.subr.bf16.mxu0 0
        %592 = vmatpush1.bf16.msra.mxu0 0
        %593 = vmatprep.subr.bf16.mxu0 0
        %594 = vmatpush1.bf16.msra.mxu0 0
        %595 = vmatprep.subr.bf16.mxu0 0
        %596 = vmatpush1.bf16.msra.mxu0 0
        %597 = vmatprep.subr.bf16.mxu0 0
        %598 = vmatpush1.bf16.msra.mxu0 0
        %599 = vmatprep.subr.bf16.mxu0 0
        %600 = vmatpush1.bf16.msra.mxu0 0
        %601 = vmatprep.subr.bf16.mxu0 0
        %602 = vmatpush1.bf16.msra.mxu0 0
        %603 = vmatprep.subr.bf16.mxu0 0
        %604 = vmatpush1.bf16.msra.mxu0 0
        %605 = vmatprep.subr.bf16.mxu0 0
        %606 = vmatpush1.bf16.msra.mxu0 0
        %607 = vmatprep.subr.bf16.mxu0 0
        %608 = vmatpush1.bf16.msra.mxu0 0
        %609 = vmatprep.subr.bf16.mxu0 0
        %610 = vmatpush1.bf16.msra.mxu0 0
        %611 = vmatprep.subr.bf16.mxu0 0
        %612 = vmatpush1.bf16.msra.mxu0 0
        %613 = vmatprep.mubr.bf16.mxu0 0
        %614 = vmatmul.mubr.bf16.gmra.mrb[0].mxu0 %v572
        %v615 = vpop.f32.mrb[0].mxu0
        %v616 = vadd.f32 0.0, %v615
        %v617 = vpop.f32.mrb[0].mxu0
        %v618 = vadd.f32 0.0, %v617
        %v619 = vpop.f32.mrb[0].mxu0
        %v620 = vpop.f32.mrb[0].mxu0
        %621 = vdwg.mxu0
        %v623 = vsel %vm570, %v527, 0
        %v626 = vsel %vm574, %v547, 0
        %v629 = vsel %vm574, %v548, 0
        %631 = vmatprep.subr.bf16.mxu0 %v629
        %632 = vmatpush1.bf16.msra.mxu0 %v626
        %633 = vmatprep.subr.bf16.mxu0 0
        %634 = vmatpush1.bf16.msra.mxu0 0
        %635 = vmatprep.subr.bf16.mxu0 0
        %636 = vmatpush1.bf16.msra.mxu0 0
        %637 = vmatprep.subr.bf16.mxu0 0
        %638 = vmatpush1.bf16.msra.mxu0 0
        %639 = vmatprep.subr.bf16.mxu0 0
        %640 = vmatpush1.bf16.msra.mxu0 0
        %641 = vmatprep.subr.bf16.mxu0 0
        %642 = vmatpush1.bf16.msra.mxu0 0
        %643 = vmatprep.subr.bf16.mxu0 0
        %644 = vmatpush1.bf16.msra.mxu0 0
        %645 = vmatprep.subr.bf16.mxu0 0
        %646 = vmatpush1.bf16.msra.mxu0 0
        %647 = vmatprep.subr.bf16.mxu0 0
        %648 = vmatpush1.bf16.msra.mxu0 0
        %649 = vmatprep.subr.bf16.mxu0 0
        %650 = vmatpush1.bf16.msra.mxu0 0
        %651 = vmatprep.subr.bf16.mxu0 0
        %652 = vmatpush1.bf16.msra.mxu0 0
        %653 = vmatprep.subr.bf16.mxu0 0
        %654 = vmatpush1.bf16.msra.mxu0 0
        %655 = vmatprep.subr.bf16.mxu0 0
        %656 = vmatpush1.bf16.msra.mxu0 0
        %657 = vmatprep.subr.bf16.mxu0 0
        %658 = vmatpush1.bf16.msra.mxu0 0
        %659 = vmatprep.subr.bf16.mxu0 0
        %660 = vmatpush1.bf16.msra.mxu0 0
        %661 = vmatprep.subr.bf16.mxu0 0
        %662 = vmatpush1.bf16.msra.mxu0 0
        %663 = vmatprep.mubr.bf16.mxu0 0
        %664 = vmatmul.mubr.bf16.gmra.mrb[0].mxu0 %v623
        %v665 = vpop.f32.mrb[0].mxu0
        %v666 = vadd.f32 %v616, %v665
        %v667 = vpop.f32.mrb[0].mxu0
        %v668 = vadd.f32 %v618, %v667
        %v669 = vpop.f32.mrb[0].mxu0
        %v670 = vpop.f32.mrb[0].mxu0
        %671 = vdwg.mxu0
        %s672 = scalar_lea.vmem %s2, 8
        %v673 = vld [vmem:[%s672] sm:$0xf]
        %674 = vrot.lane.b32.xlu0 %v525, 15
        %v675 = vpop.permute.xlu0 %674
        %676 = vrot.lane.b32.xlu0 %v526, 15
        %v677 = vpop.permute.xlu0 %676
        %vm678 = vcmp.lt.s32.totalorder %v533, 15
        %v679 = vsel %vm678, %v675, %v677
        %v680 = vsel %vm678, %v677, %v675
        %v681 = vlaneseq
        %v682 = vshrl.u32 %v681, 7
        %v683 = vsub.s32 2, %v682
        %v684 = vrot.slane %v521, %v683
        %v685 = vlaneseq
        %v686 = vshrl.u32 %v685, 7
        %v687 = vsub.s32 2, %v686
        %v688 = vrot.slane %v522, %v687
        %v689 = vmul.f32 %v680, %v684
        %v690 = vmul.f32 %v679, %v688
        %v691 = vpack.c.bf16 %v689, %v689
        %v692 = vpack.c.bf16 %v690, %v690
        %v694 = vsel %vm570, %v673, 0
        %v697 = vsel %vm574, %v691, 0
        %v700 = vsel %vm574, %v692, 0
        %702 = vmatprep.subr.bf16.mxu0 %v700
        %703 = vmatpush1.bf16.msra.mxu0 %v697
        %704 = vmatprep.subr.bf16.mxu0 0
        %705 = vmatpush1.bf16.msra.mxu0 0
        %706 = vmatprep.subr.bf16.mxu0 0
        %707 = vmatpush1.bf16.msra.mxu0 0
        %708 = vmatprep.subr.bf16.mxu0 0
        %709 = vmatpush1.bf16.msra.mxu0 0
        %710 = vmatprep.subr.bf16.mxu0 0
        %711 = vmatpush1.bf16.msra.mxu0 0
        %712 = vmatprep.subr.bf16.mxu0 0
        %713 = vmatpush1.bf16.msra.mxu0 0
        %714 = vmatprep.subr.bf16.mxu0 0
        %715 = vmatpush1.bf16.msra.mxu0 0
        %716 = vmatprep.subr.bf16.mxu0 0
        %717 = vmatpush1.bf16.msra.mxu0 0
        %718 = vmatprep.subr.bf16.mxu0 0
        %719 = vmatpush1.bf16.msra.mxu0 0
        %720 = vmatprep.subr.bf16.mxu0 0
        %721 = vmatpush1.bf16.msra.mxu0 0
        %722 = vmatprep.subr.bf16.mxu0 0
        %723 = vmatpush1.bf16.msra.mxu0 0
        %724 = vmatprep.subr.bf16.mxu0 0
        %725 = vmatpush1.bf16.msra.mxu0 0
        %726 = vmatprep.subr.bf16.mxu0 0
        %727 = vmatpush1.bf16.msra.mxu0 0
        %728 = vmatprep.subr.bf16.mxu0 0
        %729 = vmatpush1.bf16.msra.mxu0 0
        %730 = vmatprep.subr.bf16.mxu0 0
        %731 = vmatpush1.bf16.msra.mxu0 0
        %732 = vmatprep.subr.bf16.mxu0 0
        %733 = vmatpush1.bf16.msra.mxu0 0
        %734 = vmatprep.mubr.bf16.mxu0 0
        %735 = vmatmul.mubr.bf16.gmra.mrb[0].mxu0 %v694
        %v736 = vpop.f32.mrb[0].mxu0
        %v737 = vadd.f32 0.0, %v736
        %v738 = vpop.f32.mrb[0].mxu0
        %v739 = vadd.f32 0.0, %v738
        %v740 = vpop.f32.mrb[0].mxu0
        %v741 = vpop.f32.mrb[0].mxu0
        %742 = vdwg.mxu0
        %v743 = vadd.f32 %v666, %v737
        %v744 = vadd.f32 %v668, %v739
        %s745 = scalar_lea.vmem %s2, 12
        %v746 = vld [vmem:[%s745] sm:$0xf]
        %747 = vrot.lane.b32.xlu0 %v525, 1
        %v748 = vpop.permute.xlu0 %747
        %749 = vrot.lane.b32.xlu0 %v526, 1
        %v750 = vpop.permute.xlu0 %749
        %vm751 = vcmp.lt.s32.totalorder %v533, 1
        %v752 = vsel %vm751, %v748, %v750
        %v753 = vsel %vm751, %v750, %v748
        %v754 = vlaneseq
        %v755 = vshrl.u32 %v754, 7
        %v756 = vsub.s32 3, %v755
        %v757 = vrot.slane %v521, %v756
        %v758 = vlaneseq
        %v759 = vshrl.u32 %v758, 7
        %v760 = vsub.s32 3, %v759
        %v761 = vrot.slane %v522, %v760
        %v762 = vmul.f32 %v753, %v757
        %v763 = vmul.f32 %v752, %v761
        %v764 = vpack.c.bf16 %v762, %v762
        %v765 = vpack.c.bf16 %v763, %v763
        %v767 = vsel %vm570, %v746, 0
        %v770 = vsel %vm574, %v764, 0
        %v773 = vsel %vm574, %v765, 0
        %775 = vmatprep.subr.bf16.mxu0 %v773
        %776 = vmatpush1.bf16.msra.mxu0 %v770
        %777 = vmatprep.subr.bf16.mxu0 0
        %778 = vmatpush1.bf16.msra.mxu0 0
        %779 = vmatprep.subr.bf16.mxu0 0
        %780 = vmatpush1.bf16.msra.mxu0 0
        %781 = vmatprep.subr.bf16.mxu0 0
        %782 = vmatpush1.bf16.msra.mxu0 0
        %783 = vmatprep.subr.bf16.mxu0 0
        %784 = vmatpush1.bf16.msra.mxu0 0
        %785 = vmatprep.subr.bf16.mxu0 0
        %786 = vmatpush1.bf16.msra.mxu0 0
        %787 = vmatprep.subr.bf16.mxu0 0
        %788 = vmatpush1.bf16.msra.mxu0 0
        %789 = vmatprep.subr.bf16.mxu0 0
        %790 = vmatpush1.bf16.msra.mxu0 0
        %791 = vmatprep.subr.bf16.mxu0 0
        %792 = vmatpush1.bf16.msra.mxu0 0
        %793 = vmatprep.subr.bf16.mxu0 0
        %794 = vmatpush1.bf16.msra.mxu0 0
        %795 = vmatprep.subr.bf16.mxu0 0
        %796 = vmatpush1.bf16.msra.mxu0 0
        %797 = vmatprep.subr.bf16.mxu0 0
        %798 = vmatpush1.bf16.msra.mxu0 0
        %799 = vmatprep.subr.bf16.mxu0 0
        %800 = vmatpush1.bf16.msra.mxu0 0
        %801 = vmatprep.subr.bf16.mxu0 0
        %802 = vmatpush1.bf16.msra.mxu0 0
        %803 = vmatprep.subr.bf16.mxu0 0
        %804 = vmatpush1.bf16.msra.mxu0 0
        %805 = vmatprep.subr.bf16.mxu0 0
        %806 = vmatpush1.bf16.msra.mxu0 0
        %807 = vmatprep.mubr.bf16.mxu0 0
        %808 = vmatmul.mubr.bf16.gmra.mrb[0].mxu0 %v767
        %v809 = vpop.f32.mrb[0].mxu0
        %v810 = vadd.f32 0.0, %v809
        %v811 = vpop.f32.mrb[0].mxu0
        %v812 = vadd.f32 0.0, %v811
        %v813 = vpop.f32.mrb[0].mxu0
        %v814 = vpop.f32.mrb[0].mxu0
        %815 = vdwg.mxu0
        %v816 = vadd.f32 %v743, %v810
        %v817 = vadd.f32 %v744, %v812
        %s818 = scalar_lea.vmem %s2, 16
        %v819 = vld [vmem:[%s818] sm:$0xf]
        %v820 = vpack.c.bf16 %v525, %v525
        %v821 = vpack.c.bf16 %v526, %v526
        %v823 = vsel %vm570, %v819, 0
        %v826 = vsel %vm574, %v820, 0
        %v829 = vsel %vm574, %v821, 0
        %831 = vmatprep.subr.bf16.mxu0 %v829
        %832 = vmatpush1.bf16.msra.mxu0 %v826
        %833 = vmatprep.subr.bf16.mxu0 0
        %834 = vmatpush1.bf16.msra.mxu0 0
        %835 = vmatprep.subr.bf16.mxu0 0
        %836 = vmatpush1.bf16.msra.mxu0 0
        %837 = vmatprep.subr.bf16.mxu0 0
        %838 = vmatpush1.bf16.msra.mxu0 0
        %839 = vmatprep.subr.bf16.mxu0 0
        %840 = vmatpush1.bf16.msra.mxu0 0
        %841 = vmatprep.subr.bf16.mxu0 0
        %842 = vmatpush1.bf16.msra.mxu0 0
        %843 = vmatprep.subr.bf16.mxu0 0
        %844 = vmatpush1.bf16.msra.mxu0 0
        %845 = vmatprep.subr.bf16.mxu0 0
        %846 = vmatpush1.bf16.msra.mxu0 0
        %847 = vmatprep.subr.bf16.mxu0 0
        %848 = vmatpush1.bf16.msra.mxu0 0
        %849 = vmatprep.subr.bf16.mxu0 0
        %850 = vmatpush1.bf16.msra.mxu0 0
        %851 = vmatprep.subr.bf16.mxu0 0
        %852 = vmatpush1.bf16.msra.mxu0 0
        %853 = vmatprep.subr.bf16.mxu0 0
        %854 = vmatpush1.bf16.msra.mxu0 0
        %855 = vmatprep.subr.bf16.mxu0 0
        %856 = vmatpush1.bf16.msra.mxu0 0
        %857 = vmatprep.subr.bf16.mxu0 0
        %858 = vmatpush1.bf16.msra.mxu0 0
        %859 = vmatprep.subr.bf16.mxu0 0
        %860 = vmatpush1.bf16.msra.mxu0 0
        %861 = vmatprep.subr.bf16.mxu0 0
        %862 = vmatpush1.bf16.msra.mxu0 0
        %863 = vmatprep.mubr.bf16.mxu0 0
        %864 = vmatmul.mubr.bf16.gmra.mrb[0].mxu0 %v823
        %v865 = vpop.f32.mrb[0].mxu0
        %v866 = vadd.f32 0.0, %v865
        %v867 = vpop.f32.mrb[0].mxu0
        %v868 = vadd.f32 0.0, %v867
        %v869 = vpop.f32.mrb[0].mxu0
        %v870 = vpop.f32.mrb[0].mxu0
        %871 = vdwg.mxu0
        %v872 = vadd.f32 %v816, %v866
        %v873 = vadd.f32 %v817, %v868
        %s874 = scalar_lea.vmem %s2, 20
        %v875 = vld [vmem:[%s874] sm:$0xf]
        %876 = vrot.lane.b32.xlu0 %v525, 127
        %v877 = vpop.permute.xlu0 %876
        %878 = vrot.lane.b32.xlu0 %v526, 127
        %v879 = vpop.permute.xlu0 %878
        %vm880 = vcmp.lt.s32.totalorder %v533, 127
        %v881 = vsel %vm880, %v877, %v879
        %v882 = vsel %vm880, %v879, %v877
        %v883 = vlaneseq
        %v884 = vshrl.u32 %v883, 7
        %v885 = vsub.s32 5, %v884
        %v886 = vrot.slane %v521, %v885
        %v887 = vlaneseq
        %v888 = vshrl.u32 %v887, 7
        %v889 = vsub.s32 5, %v888
        %v890 = vrot.slane %v522, %v889
        %v891 = vmul.f32 %v881, %v886
        %v892 = vmul.f32 %v882, %v890
        %v893 = vpack.c.bf16 %v891, %v891
        %v894 = vpack.c.bf16 %v892, %v892
        %v896 = vsel %vm570, %v875, 0
        %v899 = vsel %vm574, %v893, 0
        %v902 = vsel %vm574, %v894, 0
        %904 = vmatprep.subr.bf16.mxu0 %v902
        %905 = vmatpush1.bf16.msra.mxu0 %v899
        %906 = vmatprep.subr.bf16.mxu0 0
        %907 = vmatpush1.bf16.msra.mxu0 0
        %908 = vmatprep.subr.bf16.mxu0 0
        %909 = vmatpush1.bf16.msra.mxu0 0
        %910 = vmatprep.subr.bf16.mxu0 0
        %911 = vmatpush1.bf16.msra.mxu0 0
        %912 = vmatprep.subr.bf16.mxu0 0
        %913 = vmatpush1.bf16.msra.mxu0 0
        %914 = vmatprep.subr.bf16.mxu0 0
        %915 = vmatpush1.bf16.msra.mxu0 0
        %916 = vmatprep.subr.bf16.mxu0 0
        %917 = vmatpush1.bf16.msra.mxu0 0
        %918 = vmatprep.subr.bf16.mxu0 0
        %919 = vmatpush1.bf16.msra.mxu0 0
        %920 = vmatprep.subr.bf16.mxu0 0
        %921 = vmatpush1.bf16.msra.mxu0 0
        %922 = vmatprep.subr.bf16.mxu0 0
        %923 = vmatpush1.bf16.msra.mxu0 0
        %924 = vmatprep.subr.bf16.mxu0 0
        %925 = vmatpush1.bf16.msra.mxu0 0
        %926 = vmatprep.subr.bf16.mxu0 0
        %927 = vmatpush1.bf16.msra.mxu0 0
        %928 = vmatprep.subr.bf16.mxu0 0
        %929 = vmatpush1.bf16.msra.mxu0 0
        %930 = vmatprep.subr.bf16.mxu0 0
        %931 = vmatpush1.bf16.msra.mxu0 0
        %932 = vmatprep.subr.bf16.mxu0 0
        %933 = vmatpush1.bf16.msra.mxu0 0
        %934 = vmatprep.subr.bf16.mxu0 0
        %935 = vmatpush1.bf16.msra.mxu0 0
        %936 = vmatprep.mubr.bf16.mxu0 0
        %937 = vmatmul.mubr.bf16.gmra.mrb[0].mxu0 %v896
        %v938 = vpop.f32.mrb[0].mxu0
        %v939 = vadd.f32 0.0, %v938
        %v940 = vpop.f32.mrb[0].mxu0
        %v941 = vadd.f32 0.0, %v940
        %v942 = vpop.f32.mrb[0].mxu0
        %v943 = vpop.f32.mrb[0].mxu0
        %944 = vdwg.mxu0
        %v945 = vadd.f32 %v872, %v939
        %v946 = vadd.f32 %v873, %v941
        %s947 = scalar_lea.vmem %s2, 24
        %v948 = vld [vmem:[%s947] sm:$0xf]
        %949 = vrot.lane.b32.xlu0 %v525, 113
        %v950 = vpop.permute.xlu0 %949
        %951 = vrot.lane.b32.xlu0 %v526, 113
        %v952 = vpop.permute.xlu0 %951
        %vm953 = vcmp.lt.s32.totalorder %v533, 113
        %v954 = vsel %vm953, %v950, %v952
        %v955 = vsel %vm953, %v952, %v950
        %v956 = vlaneseq
        %v957 = vshrl.u32 %v956, 7
        %v958 = vsub.s32 6, %v957
        %v959 = vrot.slane %v521, %v958
        %v960 = vlaneseq
        %v961 = vshrl.u32 %v960, 7
        %v962 = vsub.s32 6, %v961
        %v963 = vrot.slane %v522, %v962
        %v964 = vmul.f32 %v954, %v959
        %v965 = vmul.f32 %v955, %v963
        %v966 = vpack.c.bf16 %v964, %v964
        %v967 = vpack.c.bf16 %v965, %v965
        %v969 = vsel %vm570, %v948, 0
        %v972 = vsel %vm574, %v966, 0
        %v975 = vsel %vm574, %v967, 0
        %977 = vmatprep.subr.bf16.mxu0 %v975
        %978 = vmatpush1.bf16.msra.mxu0 %v972
        %979 = vmatprep.subr.bf16.mxu0 0
        %980 = vmatpush1.bf16.msra.mxu0 0
        %981 = vmatprep.subr.bf16.mxu0 0
        %982 = vmatpush1.bf16.msra.mxu0 0
        %983 = vmatprep.subr.bf16.mxu0 0
        %984 = vmatpush1.bf16.msra.mxu0 0
        %985 = vmatprep.subr.bf16.mxu0 0
        %986 = vmatpush1.bf16.msra.mxu0 0
        %987 = vmatprep.subr.bf16.mxu0 0
        %988 = vmatpush1.bf16.msra.mxu0 0
        %989 = vmatprep.subr.bf16.mxu0 0
        %990 = vmatpush1.bf16.msra.mxu0 0
        %991 = vmatprep.subr.bf16.mxu0 0
        %992 = vmatpush1.bf16.msra.mxu0 0
        %993 = vmatprep.subr.bf16.mxu0 0
        %994 = vmatpush1.bf16.msra.mxu0 0
        %995 = vmatprep.subr.bf16.mxu0 0
        %996 = vmatpush1.bf16.msra.mxu0 0
        %997 = vmatprep.subr.bf16.mxu0 0
        %998 = vmatpush1.bf16.msra.mxu0 0
        %999 = vmatprep.subr.bf16.mxu0 0
        %1000 = vmatpush1.bf16.msra.mxu0 0
        %1001 = vmatprep.subr.bf16.mxu0 0
        %1002 = vmatpush1.bf16.msra.mxu0 0
        %1003 = vmatprep.subr.bf16.mxu0 0
        %1004 = vmatpush1.bf16.msra.mxu0 0
        %1005 = vmatprep.subr.bf16.mxu0 0
        %1006 = vmatpush1.bf16.msra.mxu0 0
        %1007 = vmatprep.subr.bf16.mxu0 0
        %1008 = vmatpush1.bf16.msra.mxu0 0
        %1009 = vmatprep.mubr.bf16.mxu0 0
        %1010 = vmatmul.mubr.bf16.gmra.mrb[0].mxu0 %v969
        %v1011 = vpop.f32.mrb[0].mxu0
        %v1012 = vadd.f32 0.0, %v1011
        %v1013 = vpop.f32.mrb[0].mxu0
        %v1014 = vadd.f32 0.0, %v1013
        %v1015 = vpop.f32.mrb[0].mxu0
        %v1016 = vpop.f32.mrb[0].mxu0
        %1017 = vdwg.mxu0
        %v1018 = vadd.f32 %v945, %v1012
        %v1019 = vadd.f32 %v946, %v1014
        %s1020 = scalar_lea.vmem %s2, 28
        %v1021 = vld [vmem:[%s1020] sm:$0xf]
        %1022 = vrot.lane.b32.xlu0 %v525, 112
        %v1023 = vpop.permute.xlu0 %1022
        %1024 = vrot.lane.b32.xlu0 %v526, 112
        %v1025 = vpop.permute.xlu0 %1024
        %vm1026 = vcmp.lt.s32.totalorder %v533, 112
        %v1027 = vsel %vm1026, %v1023, %v1025
        %v1028 = vsel %vm1026, %v1025, %v1023
        %v1029 = vlaneseq
        %v1030 = vshrl.u32 %v1029, 7
        %v1031 = vsub.s32 7, %v1030
        %v1032 = vrot.slane %v521, %v1031
        %v1033 = vlaneseq
        %v1034 = vshrl.u32 %v1033, 7
        %v1035 = vsub.s32 7, %v1034
        %v1036 = vrot.slane %v522, %v1035
        %v1037 = vmul.f32 %v1027, %v1032
        %v1038 = vmul.f32 %v1028, %v1036
        %v1039 = vpack.c.bf16 %v1037, %v1037
        %v1040 = vpack.c.bf16 %v1038, %v1038
        %v1042 = vsel %vm570, %v1021, 0
        %v1045 = vsel %vm574, %v1039, 0
        %v1048 = vsel %vm574, %v1040, 0
        %1050 = vmatprep.subr.bf16.mxu0 %v1048
        %1051 = vmatpush1.bf16.msra.mxu0 %v1045
        %1052 = vmatprep.subr.bf16.mxu0 0
        %1053 = vmatpush1.bf16.msra.mxu0 0
        %1054 = vmatprep.subr.bf16.mxu0 0
        %1055 = vmatpush1.bf16.msra.mxu0 0
        %1056 = vmatprep.subr.bf16.mxu0 0
        %1057 = vmatpush1.bf16.msra.mxu0 0
        %1058 = vmatprep.subr.bf16.mxu0 0
        %1059 = vmatpush1.bf16.msra.mxu0 0
        %1060 = vmatprep.subr.bf16.mxu0 0
        %1061 = vmatpush1.bf16.msra.mxu0 0
        %1062 = vmatprep.subr.bf16.mxu0 0
        %1063 = vmatpush1.bf16.msra.mxu0 0
        %1064 = vmatprep.subr.bf16.mxu0 0
        %1065 = vmatpush1.bf16.msra.mxu0 0
        %1066 = vmatprep.subr.bf16.mxu0 0
        %1067 = vmatpush1.bf16.msra.mxu0 0
        %1068 = vmatprep.subr.bf16.mxu0 0
        %1069 = vmatpush1.bf16.msra.mxu0 0
        %1070 = vmatprep.subr.bf16.mxu0 0
        %1071 = vmatpush1.bf16.msra.mxu0 0
        %1072 = vmatprep.subr.bf16.mxu0 0
        %1073 = vmatpush1.bf16.msra.mxu0 0
        %1074 = vmatprep.subr.bf16.mxu0 0
        %1075 = vmatpush1.bf16.msra.mxu0 0
        %1076 = vmatprep.subr.bf16.mxu0 0
        %1077 = vmatpush1.bf16.msra.mxu0 0
        %1078 = vmatprep.subr.bf16.mxu0 0
        %1079 = vmatpush1.bf16.msra.mxu0 0
        %1080 = vmatprep.subr.bf16.mxu0 0
        %1081 = vmatpush1.bf16.msra.mxu0 0
        %1082 = vmatprep.mubr.bf16.mxu0 0
        %1083 = vmatmul.mubr.bf16.gmra.mrb[0].mxu0 %v1042
        %v1084 = vpop.f32.mrb[0].mxu0
        %v1085 = vadd.f32 0.0, %v1084
        %v1086 = vpop.f32.mrb[0].mxu0
        %v1087 = vadd.f32 0.0, %v1086
        %v1088 = vpop.f32.mrb[0].mxu0
        %v1089 = vpop.f32.mrb[0].mxu0
        %1090 = vdwg.mxu0
        %v1091 = vadd.f32 %v1018, %v1085
        %v1092 = vadd.f32 %v1019, %v1087
        %s1093 = scalar_lea.vmem %s2, 32
        %v1094 = vld [vmem:[%s1093] sm:$0xf]
        %1095 = vrot.lane.b32.xlu0 %v525, 111
        %v1096 = vpop.permute.xlu0 %1095
        %1097 = vrot.lane.b32.xlu0 %v526, 111
        %v1098 = vpop.permute.xlu0 %1097
        %vm1099 = vcmp.lt.s32.totalorder %v533, 111
        %v1100 = vsel %vm1099, %v1096, %v1098
        %v1101 = vsel %vm1099, %v1098, %v1096
        %v1102 = vlaneseq
        %v1103 = vshrl.u32 %v1102, 7
        %v1104 = vsub.s32 0, %v1103
        %v1105 = vrot.slane %v523, %v1104
        %v1106 = vlaneseq
        %v1107 = vshrl.u32 %v1106, 7
        %v1108 = vsub.s32 0, %v1107
        %v1109 = vrot.slane %v524, %v1108
        %v1110 = vmul.f32 %v1100, %v1105
        %v1111 = vmul.f32 %v1101, %v1109
        %v1112 = vpack.c.bf16 %v1110, %v1110
        %v1113 = vpack.c.bf16 %v1111, %v1111
        %v1115 = vsel %vm570, %v1094, 0
        %v1118 = vsel %vm574, %v1112, 0
        %v1121 = vsel %vm574, %v1113, 0
        %1123 = vmatprep.subr.bf16.mxu0 %v1121
        %1124 = vmatpush1.bf16.msra.mxu0 %v1118
        %1125 = vmatprep.subr.bf16.mxu0 0
        %1126 = vmatpush1.bf16.msra.mxu0 0
        %1127 = vmatprep.subr.bf16.mxu0 0
        %1128 = vmatpush1.bf16.msra.mxu0 0
        %1129 = vmatprep.subr.bf16.mxu0 0
        %1130 = vmatpush1.bf16.msra.mxu0 0
        %1131 = vmatprep.subr.bf16.mxu0 0
        %1132 = vmatpush1.bf16.msra.mxu0 0
        %1133 = vmatprep.subr.bf16.mxu0 0
        %1134 = vmatpush1.bf16.msra.mxu0 0
        %1135 = vmatprep.subr.bf16.mxu0 0
        %1136 = vmatpush1.bf16.msra.mxu0 0
        %1137 = vmatprep.subr.bf16.mxu0 0
        %1138 = vmatpush1.bf16.msra.mxu0 0
        %1139 = vmatprep.subr.bf16.mxu0 0
        %1140 = vmatpush1.bf16.msra.mxu0 0
        %1141 = vmatprep.subr.bf16.mxu0 0
        %1142 = vmatpush1.bf16.msra.mxu0 0
        %1143 = vmatprep.subr.bf16.mxu0 0
        %1144 = vmatpush1.bf16.msra.mxu0 0
        %1145 = vmatprep.subr.bf16.mxu0 0
        %1146 = vmatpush1.bf16.msra.mxu0 0
        %1147 = vmatprep.subr.bf16.mxu0 0
        %1148 = vmatpush1.bf16.msra.mxu0 0
        %1149 = vmatprep.subr.bf16.mxu0 0
        %1150 = vmatpush1.bf16.msra.mxu0 0
        %1151 = vmatprep.subr.bf16.mxu0 0
        %1152 = vmatpush1.bf16.msra.mxu0 0
        %1153 = vmatprep.subr.bf16.mxu0 0
        %1154 = vmatpush1.bf16.msra.mxu0 0
        %1155 = vmatprep.mubr.bf16.mxu0 0
        %1156 = vmatmul.mubr.bf16.gmra.mrb[0].mxu0 %v1115
        %v1157 = vpop.f32.mrb[0].mxu0
        %v1158 = vadd.f32 0.0, %v1157
        %v1159 = vpop.f32.mrb[0].mxu0
        %v1160 = vadd.f32 0.0, %v1159
        %v1161 = vpop.f32.mrb[0].mxu0
        %v1162 = vpop.f32.mrb[0].mxu0
        %1163 = vdwg.mxu0
        %v1164 = vadd.f32 %v1091, %v1158
        %v1165 = vadd.f32 %v1092, %v1160
        %v1166 = vld [vmem:[%s3] sm:$0xff]
        %1168 = vset.pattern.permute.xlu0 0
        %1169 = vperm.xlu0 %1168, %v1166
        %v1170 = vpop.permute.xlu0 %1169
        %v1172 = vadd.f32 %v1164, %v1170
        %v1173 = vadd.f32 %v1165, %v1170
        %v1174 = vmax.f32 %v1172, 0.0
        %v1175 = vmax.f32 %v1173, 0.0
        %1176 = vrot.lane.b32.xlu0 %v1174, 17
        %v1177 = vpop.permute.xlu0 %1176
        %1178 = vrot.lane.b32.xlu0 %v1175, 17
        %v1179 = vpop.permute.xlu0 %1178
        %v1180 = vsel %vm534, %v1177, %v1179
        %v1181 = vsel %vm534, %v1179, %v1177
        %v1182 = vmul.f32 %v1181, %v540
        %v1183 = vmul.f32 %v1180, %v544
        %v1184 = vpack.c.bf16 %v1182, %v1182
        %v1185 = vpack.c.bf16 %v1183, %v1183
        %1186 = vrot.lane.b32.xlu0 %v1174, 16
        %v1187 = vpop.permute.xlu0 %1186
        %1188 = vrot.lane.b32.xlu0 %v1175, 16
        %v1189 = vpop.permute.xlu0 %1188
        %v1190 = vsel %vm555, %v1187, %v1189
        %v1191 = vsel %vm555, %v1189, %v1187
        %v1192 = vmul.f32 %v1191, %v561
        %v1193 = vmul.f32 %v1190, %v565
        %v1194 = vpack.c.bf16 %v1192, %v1192
        %v1195 = vpack.c.bf16 %v1193, %v1193
        %1196 = vrot.lane.b32.xlu0 %v1174, 15
        %v1197 = vpop.permute.xlu0 %1196
        %1198 = vrot.lane.b32.xlu0 %v1175, 15
        %v1199 = vpop.permute.xlu0 %1198
        %v1200 = vsel %vm678, %v1197, %v1199
        %v1201 = vsel %vm678, %v1199, %v1197
        %v1202 = vmul.f32 %v1201, %v684
        %v1203 = vmul.f32 %v1200, %v688
        %v1204 = vpack.c.bf16 %v1202, %v1202
        %v1205 = vpack.c.bf16 %v1203, %v1203
        %1206 = vrot.lane.b32.xlu0 %v1174, 1
        %v1207 = vpop.permute.xlu0 %1206
        %1208 = vrot.lane.b32.xlu0 %v1175, 1
        %v1209 = vpop.permute.xlu0 %1208
        %v1210 = vsel %vm751, %v1207, %v1209
        %v1211 = vsel %vm751, %v1209, %v1207
        %v1212 = vmul.f32 %v1211, %v757
        %v1213 = vmul.f32 %v1210, %v761
        %v1214 = vpack.c.bf16 %v1212, %v1212
        %v1215 = vpack.c.bf16 %v1213, %v1213
        %v1216 = vpack.c.bf16 %v1174, %v1174
        %v1217 = vpack.c.bf16 %v1175, %v1175
        %1218 = vrot.lane.b32.xlu0 %v1174, 127
        %v1219 = vpop.permute.xlu0 %1218
        %1220 = vrot.lane.b32.xlu0 %v1175, 127
        %v1221 = vpop.permute.xlu0 %1220
        %v1222 = vsel %vm880, %v1219, %v1221
        %v1223 = vsel %vm880, %v1221, %v1219
        %v1224 = vmul.f32 %v1222, %v886
        %v1225 = vmul.f32 %v1223, %v890
        %v1226 = vpack.c.bf16 %v1224, %v1224
        %v1227 = vpack.c.bf16 %v1225, %v1225
        %1228 = vrot.lane.b32.xlu0 %v1174, 113
        %v1229 = vpop.permute.xlu0 %1228
        %1230 = vrot.lane.b32.xlu0 %v1175, 113
        %v1231 = vpop.permute.xlu0 %1230
        %v1232 = vsel %vm953, %v1229, %v1231
        %v1233 = vsel %vm953, %v1231, %v1229
        %v1234 = vmul.f32 %v1232, %v959
        %v1235 = vmul.f32 %v1233, %v963
        %v1236 = vpack.c.bf16 %v1234, %v1234
        %v1237 = vpack.c.bf16 %v1235, %v1235
        %1238 = vrot.lane.b32.xlu0 %v1174, 112
        %v1239 = vpop.permute.xlu0 %1238
        %1240 = vrot.lane.b32.xlu0 %v1175, 112
        %v1241 = vpop.permute.xlu0 %1240
        %v1242 = vsel %vm1026, %v1239, %v1241
        %v1243 = vsel %vm1026, %v1241, %v1239
        %v1244 = vmul.f32 %v1242, %v1032
        %v1245 = vmul.f32 %v1243, %v1036
        %v1246 = vpack.c.bf16 %v1244, %v1244
        %v1247 = vpack.c.bf16 %v1245, %v1245
        %1248 = vrot.lane.b32.xlu0 %v1174, 111
        %v1249 = vpop.permute.xlu0 %1248
        %1250 = vrot.lane.b32.xlu0 %v1175, 111
        %v1251 = vpop.permute.xlu0 %1250
        %v1252 = vsel %vm1099, %v1249, %v1251
        %v1253 = vsel %vm1099, %v1251, %v1249
        %v1254 = vmul.f32 %v1252, %v1105
        %v1255 = vmul.f32 %v1253, %v1109
        %v1256 = vpack.c.bf16 %v1254, %v1254
        %v1257 = vpack.c.bf16 %v1255, %v1255
        %v1258 = vld [vmem:[%s4] sm:$0xf]
        %v1259 = vld [vmem:[%s4 + $0x4] sm:$0xf]
        %s1260 = scalar_lea.vmem %s4, 8
        %v1261 = vld [vmem:[%s1260] sm:$0xf]
        %v1262 = vld [vmem:[%s1260 + $0x4] sm:$0xf]
        %v1265 = vunpack.c.l.b16 %v1261
        %v1266 = vunpack.c.l.b16 %v1262
        %v1267 = vpack.c.b16 %v1266, %v1265
        %v1269 = vsel %vm570, %v1267, 0
        %v1272 = vsel %vm574, %v1194, 0
        %v1275 = vsel %vm574, %v1195, 0
        %1277 = vmatprep.subr.bf16.mxu0 %v1275
        %1278 = vmatpush1.bf16.msra.mxu0 %v1272
        %1279 = vmatprep.subr.bf16.mxu0 0
        %1280 = vmatpush1.bf16.msra.mxu0 0
        %1281 = vmatprep.subr.bf16.mxu0 0
        %1282 = vmatpush1.bf16.msra.mxu0 0
        %1283 = vmatprep.subr.bf16.mxu0 0
        %1284 = vmatpush1.bf16.msra.mxu0 0
        %1285 = vmatprep.subr.bf16.mxu0 0
        %1286 = vmatpush1.bf16.msra.mxu0 0
        %1287 = vmatprep.subr.bf16.mxu0 0
        %1288 = vmatpush1.bf16.msra.mxu0 0
        %1289 = vmatprep.subr.bf16.mxu0 0
        %1290 = vmatpush1.bf16.msra.mxu0 0
        %1291 = vmatprep.subr.bf16.mxu0 0
        %1292 = vmatpush1.bf16.msra.mxu0 0
        %1293 = vmatprep.subr.bf16.mxu0 0
        %1294 = vmatpush1.bf16.msra.mxu0 0
        %1295 = vmatprep.subr.bf16.mxu0 0
        %1296 = vmatpush1.bf16.msra.mxu0 0
        %1297 = vmatprep.subr.bf16.mxu0 0
        %1298 = vmatpush1.bf16.msra.mxu0 0
        %1299 = vmatprep.subr.bf16.mxu0 0
        %1300 = vmatpush1.bf16.msra.mxu0 0
        %1301 = vmatprep.subr.bf16.mxu0 0
        %1302 = vmatpush1.bf16.msra.mxu0 0
        %1303 = vmatprep.subr.bf16.mxu0 0
        %1304 = vmatpush1.bf16.msra.mxu0 0
        %1305 = vmatprep.subr.bf16.mxu0 0
        %1306 = vmatpush1.bf16.msra.mxu0 0
        %1307 = vmatprep.subr.bf16.mxu0 0
        %1308 = vmatpush1.bf16.msra.mxu0 0
        %1309 = vmatprep.mubr.bf16.mxu0 0
        %1310 = vmatmul.mubr.bf16.gmra.mrb[0].mxu0 %v1269
        %v1311 = vpop.f32.mrb[0].mxu0
        %v1312 = vadd.f32 0.0, %v1311
        %v1313 = vpop.f32.mrb[0].mxu0
        %v1314 = vadd.f32 0.0, %v1313
        %v1315 = vpop.f32.mrb[0].mxu0
        %v1316 = vadd.f32 0.0, %v1315
        %v1317 = vpop.f32.mrb[0].mxu0
        %v1318 = vadd.f32 0.0, %v1317
        %1319 = vdwg.mxu0
        %v1322 = vunpack.c.l.b16 %v1258
        %v1323 = vunpack.c.l.b16 %v1259
        %v1324 = vpack.c.b16 %v1323, %v1322
        %v1326 = vsel %vm570, %v1324, 0
        %v1329 = vsel %vm574, %v1184, 0
        %v1332 = vsel %vm574, %v1185, 0
        %1334 = vmatprep.subr.bf16.mxu0 %v1332
        %1335 = vmatpush1.bf16.msra.mxu0 %v1329
        %1336 = vmatprep.subr.bf16.mxu0 0
        %1337 = vmatpush1.bf16.msra.mxu0 0
        %1338 = vmatprep.subr.bf16.mxu0 0
        %1339 = vmatpush1.bf16.msra.mxu0 0
        %1340 = vmatprep.subr.bf16.mxu0 0
        %1341 = vmatpush1.bf16.msra.mxu0 0
        %1342 = vmatprep.subr.bf16.mxu0 0
        %1343 = vmatpush1.bf16.msra.mxu0 0
        %1344 = vmatprep.subr.bf16.mxu0 0
        %1345 = vmatpush1.bf16.msra.mxu0 0
        %1346 = vmatprep.subr.bf16.mxu0 0
        %1347 = vmatpush1.bf16.msra.mxu0 0
        %1348 = vmatprep.subr.bf16.mxu0 0
        %1349 = vmatpush1.bf16.msra.mxu0 0
        %1350 = vmatprep.subr.bf16.mxu0 0
        %1351 = vmatpush1.bf16.msra.mxu0 0
        %1352 = vmatprep.subr.bf16.mxu0 0
        %1353 = vmatpush1.bf16.msra.mxu0 0
        %1354 = vmatprep.subr.bf16.mxu0 0
        %1355 = vmatpush1.bf16.msra.mxu0 0
        %1356 = vmatprep.subr.bf16.mxu0 0
        %1357 = vmatpush1.bf16.msra.mxu0 0
        %1358 = vmatprep.subr.bf16.mxu0 0
        %1359 = vmatpush1.bf16.msra.mxu0 0
        %1360 = vmatprep.subr.bf16.mxu0 0
        %1361 = vmatpush1.bf16.msra.mxu0 0
        %1362 = vmatprep.subr.bf16.mxu0 0
        %1363 = vmatpush1.bf16.msra.mxu0 0
        %1364 = vmatprep.subr.bf16.mxu0 0
        %1365 = vmatpush1.bf16.msra.mxu0 0
        %1366 = vmatprep.mubr.bf16.mxu0 0
        %1367 = vmatmul.mubr.bf16.gmra.mrb[0].mxu0 %v1326
        %v1368 = vpop.f32.mrb[0].mxu0
        %v1369 = vadd.f32 %v1312, %v1368
        %v1370 = vpop.f32.mrb[0].mxu0
        %v1371 = vadd.f32 %v1314, %v1370
        %v1372 = vpop.f32.mrb[0].mxu0
        %v1373 = vadd.f32 %v1316, %v1372
        %v1374 = vpop.f32.mrb[0].mxu0
        %v1375 = vadd.f32 %v1318, %v1374
        %1376 = vdwg.mxu0
        %s1377 = scalar_lea.vmem %s4, 16
        %v1378 = vld [vmem:[%s1377] sm:$0xf]
        %v1379 = vld [vmem:[%s1377 + $0x4] sm:$0xf]
        %v1382 = vunpack.c.l.b16 %v1378
        %v1383 = vunpack.c.l.b16 %v1379
        %v1384 = vpack.c.b16 %v1383, %v1382
        %v1386 = vsel %vm570, %v1384, 0
        %v1389 = vsel %vm574, %v1204, 0
        %v1392 = vsel %vm574, %v1205, 0
        %1394 = vmatprep.subr.bf16.mxu0 %v1392
        %1395 = vmatpush1.bf16.msra.mxu0 %v1389
        %1396 = vmatprep.subr.bf16.mxu0 0
        %1397 = vmatpush1.bf16.msra.mxu0 0
        %1398 = vmatprep.subr.bf16.mxu0 0
        %1399 = vmatpush1.bf16.msra.mxu0 0
        %1400 = vmatprep.subr.bf16.mxu0 0
        %1401 = vmatpush1.bf16.msra.mxu0 0
        %1402 = vmatprep.subr.bf16.mxu0 0
        %1403 = vmatpush1.bf16.msra.mxu0 0
        %1404 = vmatprep.subr.bf16.mxu0 0
        %1405 = vmatpush1.bf16.msra.mxu0 0
        %1406 = vmatprep.subr.bf16.mxu0 0
        %1407 = vmatpush1.bf16.msra.mxu0 0
        %1408 = vmatprep.subr.bf16.mxu0 0
        %1409 = vmatpush1.bf16.msra.mxu0 0
        %1410 = vmatprep.subr.bf16.mxu0 0
        %1411 = vmatpush1.bf16.msra.mxu0 0
        %1412 = vmatprep.subr.bf16.mxu0 0
        %1413 = vmatpush1.bf16.msra.mxu0 0
        %1414 = vmatprep.subr.bf16.mxu0 0
        %1415 = vmatpush1.bf16.msra.mxu0 0
        %1416 = vmatprep.subr.bf16.mxu0 0
        %1417 = vmatpush1.bf16.msra.mxu0 0
        %1418 = vmatprep.subr.bf16.mxu0 0
        %1419 = vmatpush1.bf16.msra.mxu0 0
        %1420 = vmatprep.subr.bf16.mxu0 0
        %1421 = vmatpush1.bf16.msra.mxu0 0
        %1422 = vmatprep.subr.bf16.mxu0 0
        %1423 = vmatpush1.bf16.msra.mxu0 0
        %1424 = vmatprep.subr.bf16.mxu0 0
        %1425 = vmatpush1.bf16.msra.mxu0 0
        %1426 = vmatprep.mubr.bf16.mxu0 0
        %1427 = vmatmul.mubr.bf16.gmra.mrb[0].mxu0 %v1386
        %v1428 = vpop.f32.mrb[0].mxu0
        %v1429 = vadd.f32 0.0, %v1428
        %v1430 = vpop.f32.mrb[0].mxu0
        %v1431 = vadd.f32 0.0, %v1430
        %v1432 = vpop.f32.mrb[0].mxu0
        %v1433 = vadd.f32 0.0, %v1432
        %v1434 = vpop.f32.mrb[0].mxu0
        %v1435 = vadd.f32 0.0, %v1434
        %1436 = vdwg.mxu0
        %v1437 = vadd.f32 %v1369, %v1429
        %v1438 = vadd.f32 %v1371, %v1431
        %v1439 = vadd.f32 %v1373, %v1433
        %v1440 = vadd.f32 %v1375, %v1435
        %s1441 = scalar_lea.vmem %s4, 24
        %v1442 = vld [vmem:[%s1441] sm:$0xf]
        %v1443 = vld [vmem:[%s1441 + $0x4] sm:$0xf]
        %v1446 = vunpack.c.l.b16 %v1442
        %v1447 = vunpack.c.l.b16 %v1443
        %v1448 = vpack.c.b16 %v1447, %v1446
        %v1450 = vsel %vm570, %v1448, 0
        %v1453 = vsel %vm574, %v1214, 0
        %v1456 = vsel %vm574, %v1215, 0
        %1458 = vmatprep.subr.bf16.mxu0 %v1456
        %1459 = vmatpush1.bf16.msra.mxu0 %v1453
        %1460 = vmatprep.subr.bf16.mxu0 0
        %1461 = vmatpush1.bf16.msra.mxu0 0
        %1462 = vmatprep.subr.bf16.mxu0 0
        %1463 = vmatpush1.bf16.msra.mxu0 0
        %1464 = vmatprep.subr.bf16.mxu0 0
        %1465 = vmatpush1.bf16.msra.mxu0 0
        %1466 = vmatprep.subr.bf16.mxu0 0
        %1467 = vmatpush1.bf16.msra.mxu0 0
        %1468 = vmatprep.subr.bf16.mxu0 0
        %1469 = vmatpush1.bf16.msra.mxu0 0
        %1470 = vmatprep.subr.bf16.mxu0 0
        %1471 = vmatpush1.bf16.msra.mxu0 0
        %1472 = vmatprep.subr.bf16.mxu0 0
        %1473 = vmatpush1.bf16.msra.mxu0 0
        %1474 = vmatprep.subr.bf16.mxu0 0
        %1475 = vmatpush1.bf16.msra.mxu0 0
        %1476 = vmatprep.subr.bf16.mxu0 0
        %1477 = vmatpush1.bf16.msra.mxu0 0
        %1478 = vmatprep.subr.bf16.mxu0 0
        %1479 = vmatpush1.bf16.msra.mxu0 0
        %1480 = vmatprep.subr.bf16.mxu0 0
        %1481 = vmatpush1.bf16.msra.mxu0 0
        %1482 = vmatprep.subr.bf16.mxu0 0
        %1483 = vmatpush1.bf16.msra.mxu0 0
        %1484 = vmatprep.subr.bf16.mxu0 0
        %1485 = vmatpush1.bf16.msra.mxu0 0
        %1486 = vmatprep.subr.bf16.mxu0 0
        %1487 = vmatpush1.bf16.msra.mxu0 0
        %1488 = vmatprep.subr.bf16.mxu0 0
        %1489 = vmatpush1.bf16.msra.mxu0 0
        %1490 = vmatprep.mubr.bf16.mxu0 0
        %1491 = vmatmul.mubr.bf16.gmra.mrb[0].mxu0 %v1450
        %v1492 = vpop.f32.mrb[0].mxu0
        %v1493 = vadd.f32 0.0, %v1492
        %v1494 = vpop.f32.mrb[0].mxu0
        %v1495 = vadd.f32 0.0, %v1494
        %v1496 = vpop.f32.mrb[0].mxu0
        %v1497 = vadd.f32 0.0, %v1496
        %v1498 = vpop.f32.mrb[0].mxu0
        %v1499 = vadd.f32 0.0, %v1498
        %1500 = vdwg.mxu0
        %v1501 = vadd.f32 %v1437, %v1493
        %v1502 = vadd.f32 %v1438, %v1495
        %v1503 = vadd.f32 %v1439, %v1497
        %v1504 = vadd.f32 %v1440, %v1499
        %s1505 = scalar_lea.vmem %s4, 32
        %v1506 = vld [vmem:[%s1505] sm:$0xf]
        %v1507 = vld [vmem:[%s1505 + $0x4] sm:$0xf]
        %v1510 = vunpack.c.l.b16 %v1506
        %v1511 = vunpack.c.l.b16 %v1507
        %v1512 = vpack.c.b16 %v1511, %v1510
        %v1514 = vsel %vm570, %v1512, 0
        %v1517 = vsel %vm574, %v1216, 0
        %v1520 = vsel %vm574, %v1217, 0
        %1522 = vmatprep.subr.bf16.mxu0 %v1520
        %1523 = vmatpush1.bf16.msra.mxu0 %v1517
        %1524 = vmatprep.subr.bf16.mxu0 0
        %1525 = vmatpush1.bf16.msra.mxu0 0
        %1526 = vmatprep.subr.bf16.mxu0 0
        %1527 = vmatpush1.bf16.msra.mxu0 0
        %1528 = vmatprep.subr.bf16.mxu0 0
        %1529 = vmatpush1.bf16.msra.mxu0 0
        %1530 = vmatprep.subr.bf16.mxu0 0
        %1531 = vmatpush1.bf16.msra.mxu0 0
        %1532 = vmatprep.subr.bf16.mxu0 0
        %1533 = vmatpush1.bf16.msra.mxu0 0
        %1534 = vmatprep.subr.bf16.mxu0 0
        %1535 = vmatpush1.bf16.msra.mxu0 0
        %1536 = vmatprep.subr.bf16.mxu0 0
        %1537 = vmatpush1.bf16.msra.mxu0 0
        %1538 = vmatprep.subr.bf16.mxu0 0
        %1539 = vmatpush1.bf16.msra.mxu0 0
        %1540 = vmatprep.subr.bf16.mxu0 0
        %1541 = vmatpush1.bf16.msra.mxu0 0
        %1542 = vmatprep.subr.bf16.mxu0 0
        %1543 = vmatpush1.bf16.msra.mxu0 0
        %1544 = vmatprep.subr.bf16.mxu0 0
        %1545 = vmatpush1.bf16.msra.mxu0 0
        %1546 = vmatprep.subr.bf16.mxu0 0
        %1547 = vmatpush1.bf16.msra.mxu0 0
        %1548 = vmatprep.subr.bf16.mxu0 0
        %1549 = vmatpush1.bf16.msra.mxu0 0
        %1550 = vmatprep.subr.bf16.mxu0 0
        %1551 = vmatpush1.bf16.msra.mxu0 0
        %1552 = vmatprep.subr.bf16.mxu0 0
        %1553 = vmatpush1.bf16.msra.mxu0 0
        %1554 = vmatprep.mubr.bf16.mxu0 0
        %1555 = vmatmul.mubr.bf16.gmra.mrb[0].mxu0 %v1514
        %v1556 = vpop.f32.mrb[0].mxu0
        %v1557 = vadd.f32 0.0, %v1556
        %v1558 = vpop.f32.mrb[0].mxu0
        %v1559 = vadd.f32 0.0, %v1558
        %v1560 = vpop.f32.mrb[0].mxu0
        %v1561 = vadd.f32 0.0, %v1560
        %v1562 = vpop.f32.mrb[0].mxu0
        %v1563 = vadd.f32 0.0, %v1562
        %1564 = vdwg.mxu0
        %v1565 = vadd.f32 %v1501, %v1557
        %v1566 = vadd.f32 %v1502, %v1559
        %v1567 = vadd.f32 %v1503, %v1561
        %v1568 = vadd.f32 %v1504, %v1563
        %s1569 = scalar_lea.vmem %s4, 40
        %v1570 = vld [vmem:[%s1569] sm:$0xf]
        %v1571 = vld [vmem:[%s1569 + $0x4] sm:$0xf]
        %v1574 = vunpack.c.l.b16 %v1570
        %v1575 = vunpack.c.l.b16 %v1571
        %v1576 = vpack.c.b16 %v1575, %v1574
        %v1578 = vsel %vm570, %v1576, 0
        %v1581 = vsel %vm574, %v1226, 0
        %v1584 = vsel %vm574, %v1227, 0
        %1586 = vmatprep.subr.bf16.mxu0 %v1584
        %1587 = vmatpush1.bf16.msra.mxu0 %v1581
        %1588 = vmatprep.subr.bf16.mxu0 0
        %1589 = vmatpush1.bf16.msra.mxu0 0
        %1590 = vmatprep.subr.bf16.mxu0 0
        %1591 = vmatpush1.bf16.msra.mxu0 0
        %1592 = vmatprep.subr.bf16.mxu0 0
        %1593 = vmatpush1.bf16.msra.mxu0 0
        %1594 = vmatprep.subr.bf16.mxu0 0
        %1595 = vmatpush1.bf16.msra.mxu0 0
        %1596 = vmatprep.subr.bf16.mxu0 0
        %1597 = vmatpush1.bf16.msra.mxu0 0
        %1598 = vmatprep.subr.bf16.mxu0 0
        %1599 = vmatpush1.bf16.msra.mxu0 0
        %1600 = vmatprep.subr.bf16.mxu0 0
        %1601 = vmatpush1.bf16.msra.mxu0 0
        %1602 = vmatprep.subr.bf16.mxu0 0
        %1603 = vmatpush1.bf16.msra.mxu0 0
        %1604 = vmatprep.subr.bf16.mxu0 0
        %1605 = vmatpush1.bf16.msra.mxu0 0
        %1606 = vmatprep.subr.bf16.mxu0 0
        %1607 = vmatpush1.bf16.msra.mxu0 0
        %1608 = vmatprep.subr.bf16.mxu0 0
        %1609 = vmatpush1.bf16.msra.mxu0 0
        %1610 = vmatprep.subr.bf16.mxu0 0
        %1611 = vmatpush1.bf16.msra.mxu0 0
        %1612 = vmatprep.subr.bf16.mxu0 0
        %1613 = vmatpush1.bf16.msra.mxu0 0
        %1614 = vmatprep.subr.bf16.mxu0 0
        %1615 = vmatpush1.bf16.msra.mxu0 0
        %1616 = vmatprep.subr.bf16.mxu0 0
        %1617 = vmatpush1.bf16.msra.mxu0 0
        %1618 = vmatprep.mubr.bf16.mxu0 0
        %1619 = vmatmul.mubr.bf16.gmra.mrb[0].mxu0 %v1578
        %v1620 = vpop.f32.mrb[0].mxu0
        %v1621 = vadd.f32 0.0, %v1620
        %v1622 = vpop.f32.mrb[0].mxu0
        %v1623 = vadd.f32 0.0, %v1622
        %v1624 = vpop.f32.mrb[0].mxu0
        %v1625 = vadd.f32 0.0, %v1624
        %v1626 = vpop.f32.mrb[0].mxu0
        %v1627 = vadd.f32 0.0, %v1626
        %1628 = vdwg.mxu0
        %v1629 = vadd.f32 %v1565, %v1621
        %v1630 = vadd.f32 %v1566, %v1623
        %v1631 = vadd.f32 %v1567, %v1625
        %v1632 = vadd.f32 %v1568, %v1627
        %s1633 = scalar_lea.vmem %s4, 48
        %v1634 = vld [vmem:[%s1633] sm:$0xf]
        %v1635 = vld [vmem:[%s1633 + $0x4] sm:$0xf]
        %v1638 = vunpack.c.l.b16 %v1634
        %v1639 = vunpack.c.l.b16 %v1635
        %v1640 = vpack.c.b16 %v1639, %v1638
        %v1642 = vsel %vm570, %v1640, 0
        %v1645 = vsel %vm574, %v1236, 0
        %v1648 = vsel %vm574, %v1237, 0
        %1650 = vmatprep.subr.bf16.mxu0 %v1648
        %1651 = vmatpush1.bf16.msra.mxu0 %v1645
        %1652 = vmatprep.subr.bf16.mxu0 0
        %1653 = vmatpush1.bf16.msra.mxu0 0
        %1654 = vmatprep.subr.bf16.mxu0 0
        %1655 = vmatpush1.bf16.msra.mxu0 0
        %1656 = vmatprep.subr.bf16.mxu0 0
        %1657 = vmatpush1.bf16.msra.mxu0 0
        %1658 = vmatprep.subr.bf16.mxu0 0
        %1659 = vmatpush1.bf16.msra.mxu0 0
        %1660 = vmatprep.subr.bf16.mxu0 0
        %1661 = vmatpush1.bf16.msra.mxu0 0
        %1662 = vmatprep.subr.bf16.mxu0 0
        %1663 = vmatpush1.bf16.msra.mxu0 0
        %1664 = vmatprep.subr.bf16.mxu0 0
        %1665 = vmatpush1.bf16.msra.mxu0 0
        %1666 = vmatprep.subr.bf16.mxu0 0
        %1667 = vmatpush1.bf16.msra.mxu0 0
        %1668 = vmatprep.subr.bf16.mxu0 0
        %1669 = vmatpush1.bf16.msra.mxu0 0
        %1670 = vmatprep.subr.bf16.mxu0 0
        %1671 = vmatpush1.bf16.msra.mxu0 0
        %1672 = vmatprep.subr.bf16.mxu0 0
        %1673 = vmatpush1.bf16.msra.mxu0 0
        %1674 = vmatprep.subr.bf16.mxu0 0
        %1675 = vmatpush1.bf16.msra.mxu0 0
        %1676 = vmatprep.subr.bf16.mxu0 0
        %1677 = vmatpush1.bf16.msra.mxu0 0
        %1678 = vmatprep.subr.bf16.mxu0 0
        %1679 = vmatpush1.bf16.msra.mxu0 0
        %1680 = vmatprep.subr.bf16.mxu0 0
        %1681 = vmatpush1.bf16.msra.mxu0 0
        %1682 = vmatprep.mubr.bf16.mxu0 0
        %1683 = vmatmul.mubr.bf16.gmra.mrb[0].mxu0 %v1642
        %v1684 = vpop.f32.mrb[0].mxu0
        %v1685 = vadd.f32 0.0, %v1684
        %v1686 = vpop.f32.mrb[0].mxu0
        %v1687 = vadd.f32 0.0, %v1686
        %v1688 = vpop.f32.mrb[0].mxu0
        %v1689 = vadd.f32 0.0, %v1688
        %v1690 = vpop.f32.mrb[0].mxu0
        %v1691 = vadd.f32 0.0, %v1690
        %1692 = vdwg.mxu0
        %v1693 = vadd.f32 %v1629, %v1685
        %v1694 = vadd.f32 %v1630, %v1687
        %v1695 = vadd.f32 %v1631, %v1689
        %v1696 = vadd.f32 %v1632, %v1691
        %s1697 = scalar_lea.vmem %s4, 56
        %v1698 = vld [vmem:[%s1697] sm:$0xf]
        %v1699 = vld [vmem:[%s1697 + $0x4] sm:$0xf]
        %v1702 = vunpack.c.l.b16 %v1698
        %v1703 = vunpack.c.l.b16 %v1699
        %v1704 = vpack.c.b16 %v1703, %v1702
        %v1706 = vsel %vm570, %v1704, 0
        %v1709 = vsel %vm574, %v1246, 0
        %v1712 = vsel %vm574, %v1247, 0
        %1714 = vmatprep.subr.bf16.mxu0 %v1712
        %1715 = vmatpush1.bf16.msra.mxu0 %v1709
        %1716 = vmatprep.subr.bf16.mxu0 0
        %1717 = vmatpush1.bf16.msra.mxu0 0
        %1718 = vmatprep.subr.bf16.mxu0 0
        %1719 = vmatpush1.bf16.msra.mxu0 0
        %1720 = vmatprep.subr.bf16.mxu0 0
        %1721 = vmatpush1.bf16.msra.mxu0 0
        %1722 = vmatprep.subr.bf16.mxu0 0
        %1723 = vmatpush1.bf16.msra.mxu0 0
        %1724 = vmatprep.subr.bf16.mxu0 0
        %1725 = vmatpush1.bf16.msra.mxu0 0
        %1726 = vmatprep.subr.bf16.mxu0 0
        %1727 = vmatpush1.bf16.msra.mxu0 0
        %1728 = vmatprep.subr.bf16.mxu0 0
        %1729 = vmatpush1.bf16.msra.mxu0 0
        %1730 = vmatprep.subr.bf16.mxu0 0
        %1731 = vmatpush1.bf16.msra.mxu0 0
        %1732 = vmatprep.subr.bf16.mxu0 0
        %1733 = vmatpush1.bf16.msra.mxu0 0
        %1734 = vmatprep.subr.bf16.mxu0 0
        %1735 = vmatpush1.bf16.msra.mxu0 0
        %1736 = vmatprep.subr.bf16.mxu0 0
        %1737 = vmatpush1.bf16.msra.mxu0 0
        %1738 = vmatprep.subr.bf16.mxu0 0
        %1739 = vmatpush1.bf16.msra.mxu0 0
        %1740 = vmatprep.subr.bf16.mxu0 0
        %1741 = vmatpush1.bf16.msra.mxu0 0
        %1742 = vmatprep.subr.bf16.mxu0 0
        %1743 = vmatpush1.bf16.msra.mxu0 0
        %1744 = vmatprep.subr.bf16.mxu0 0
        %1745 = vmatpush1.bf16.msra.mxu0 0
        %1746 = vmatprep.mubr.bf16.mxu0 0
        %1747 = vmatmul.mubr.bf16.gmra.mrb[0].mxu0 %v1706
        %v1748 = vpop.f32.mrb[0].mxu0
        %v1749 = vadd.f32 0.0, %v1748
        %v1750 = vpop.f32.mrb[0].mxu0
        %v1751 = vadd.f32 0.0, %v1750
        %v1752 = vpop.f32.mrb[0].mxu0
        %v1753 = vadd.f32 0.0, %v1752
        %v1754 = vpop.f32.mrb[0].mxu0
        %v1755 = vadd.f32 0.0, %v1754
        %1756 = vdwg.mxu0
        %v1757 = vadd.f32 %v1693, %v1749
        %v1758 = vadd.f32 %v1694, %v1751
        %v1759 = vadd.f32 %v1695, %v1753
        %v1760 = vadd.f32 %v1696, %v1755
        %s1761 = scalar_lea.vmem %s4, 64
        %v1762 = vld [vmem:[%s1761] sm:$0xf]
        %v1763 = vld [vmem:[%s1761 + $0x4] sm:$0xf]
        %v1766 = vunpack.c.l.b16 %v1762
        %v1767 = vunpack.c.l.b16 %v1763
        %v1768 = vpack.c.b16 %v1767, %v1766
        %v1770 = vsel %vm570, %v1768, 0
        %v1773 = vsel %vm574, %v1256, 0
        %v1776 = vsel %vm574, %v1257, 0
        %1778 = vmatprep.subr.bf16.mxu0 %v1776
        %1779 = vmatpush1.bf16.msra.mxu0 %v1773
        %1780 = vmatprep.subr.bf16.mxu0 0
        %1781 = vmatpush1.bf16.msra.mxu0 0
        %1782 = vmatprep.subr.bf16.mxu0 0
        %1783 = vmatpush1.bf16.msra.mxu0 0
        %1784 = vmatprep.subr.bf16.mxu0 0
        %1785 = vmatpush1.bf16.msra.mxu0 0
        %1786 = vmatprep.subr.bf16.mxu0 0
        %1787 = vmatpush1.bf16.msra.mxu0 0
        %1788 = vmatprep.subr.bf16.mxu0 0
        %1789 = vmatpush1.bf16.msra.mxu0 0
        %1790 = vmatprep.subr.bf16.mxu0 0
        %1791 = vmatpush1.bf16.msra.mxu0 0
        %1792 = vmatprep.subr.bf16.mxu0 0
        %1793 = vmatpush1.bf16.msra.mxu0 0
        %1794 = vmatprep.subr.bf16.mxu0 0
        %1795 = vmatpush1.bf16.msra.mxu0 0
        %1796 = vmatprep.subr.bf16.mxu0 0
        %1797 = vmatpush1.bf16.msra.mxu0 0
        %1798 = vmatprep.subr.bf16.mxu0 0
        %1799 = vmatpush1.bf16.msra.mxu0 0
        %1800 = vmatprep.subr.bf16.mxu0 0
        %1801 = vmatpush1.bf16.msra.mxu0 0
        %1802 = vmatprep.subr.bf16.mxu0 0
        %1803 = vmatpush1.bf16.msra.mxu0 0
        %1804 = vmatprep.subr.bf16.mxu0 0
        %1805 = vmatpush1.bf16.msra.mxu0 0
        %1806 = vmatprep.subr.bf16.mxu0 0
        %1807 = vmatpush1.bf16.msra.mxu0 0
        %1808 = vmatprep.subr.bf16.mxu0 0
        %1809 = vmatpush1.bf16.msra.mxu0 0
        %1810 = vmatprep.mubr.bf16.mxu0 0
        %1811 = vmatmul.mubr.bf16.gmra.mrb[0].mxu0 %v1770
        %v1812 = vpop.f32.mrb[0].mxu0
        %v1813 = vadd.f32 0.0, %v1812
        %v1814 = vpop.f32.mrb[0].mxu0
        %v1815 = vadd.f32 0.0, %v1814
        %v1816 = vpop.f32.mrb[0].mxu0
        %v1817 = vadd.f32 0.0, %v1816
        %v1818 = vpop.f32.mrb[0].mxu0
        %v1819 = vadd.f32 0.0, %v1818
        %1820 = vdwg.mxu0
        %v1821 = vadd.f32 %v1757, %v1813
        %v1822 = vadd.f32 %v1758, %v1815
        %v1823 = vadd.f32 %v1759, %v1817
        %v1824 = vadd.f32 %v1760, %v1819
        %v1825 = vld [vmem:[%s5] sm:$0xff]
        %v1826 = vld [vmem:[%s5 + $0x8] sm:$0xff]
        %1828 = vset.pattern.permute.xlu0 0
        %1829 = vperm.xlu0 %1828, %v1825
        %v1830 = vpop.permute.xlu0 %1829
        %1833 = vset.pattern.permute.xlu0 0
        %1834 = vperm.xlu0 %1833, %v1826
        %v1835 = vpop.permute.xlu0 %1834
        %v1837 = vadd.f32 %v1821, %v1830
        %v1838 = vadd.f32 %v1822, %v1830
        %v1839 = vadd.f32 %v1823, %v1835
        %v1840 = vadd.f32 %v1824, %v1835
        %v1841 = vmax.f32 %v1837, 0.0
        %v1842 = vmax.f32 %v1838, 0.0
        %v1843 = vmax.f32 %v1839, 0.0
        %v1844 = vmax.f32 %v1840, 0.0
        %1845 = vrot.lane.b32.xlu0 %v1841, 17
        %v1846 = vpop.permute.xlu0 %1845
        %1847 = vrot.lane.b32.xlu0 %v1843, 17
        %v1848 = vpop.permute.xlu0 %1847
        %1849 = vrot.lane.b32.xlu0 %v1842, 17
        %v1850 = vpop.permute.xlu0 %1849
        %1851 = vrot.lane.b32.xlu0 %v1844, 17
        %v1852 = vpop.permute.xlu0 %1851
        %v1853 = vsel %vm534, %v1846, %v1850
        %v1854 = vsel %vm534, %v1848, %v1852
        %v1855 = vsel %vm534, %v1850, %v1846
        %v1856 = vsel %vm534, %v1852, %v1848
        %v1857 = vmul.f32 %v1855, %v540
        %v1858 = vmul.f32 %v1853, %v544
        %v1859 = vmul.f32 %v1856, %v540
        %v1860 = vmul.f32 %v1854, %v544
        %v1861 = vpack.c.bf16 %v1859, %v1857
        %v1862 = vpack.c.bf16 %v1860, %v1858
        %1863 = vrot.lane.b32.xlu0 %v1841, 16
        %v1864 = vpop.permute.xlu0 %1863
        %1865 = vrot.lane.b32.xlu0 %v1843, 16
        %v1866 = vpop.permute.xlu0 %1865
        %1867 = vrot.lane.b32.xlu0 %v1842, 16
        %v1868 = vpop.permute.xlu0 %1867
        %1869 = vrot.lane.b32.xlu0 %v1844, 16
        %v1870 = vpop.permute.xlu0 %1869
        %v1871 = vsel %vm555, %v1864, %v1868
        %v1872 = vsel %vm555, %v1866, %v1870
        %v1873 = vsel %vm555, %v1868, %v1864
        %v1874 = vsel %vm555, %v1870, %v1866
        %v1875 = vmul.f32 %v1873, %v561
        %v1876 = vmul.f32 %v1871, %v565
        %v1877 = vmul.f32 %v1874, %v561
        %v1878 = vmul.f32 %v1872, %v565
        %v1879 = vpack.c.bf16 %v1877, %v1875
        %v1880 = vpack.c.bf16 %v1878, %v1876
        %1881 = vrot.lane.b32.xlu0 %v1841, 15
        %v1882 = vpop.permute.xlu0 %1881
        %1883 = vrot.lane.b32.xlu0 %v1843, 15
        %v1884 = vpop.permute.xlu0 %1883
        %1885 = vrot.lane.b32.xlu0 %v1842, 15
        %v1886 = vpop.permute.xlu0 %1885
        %1887 = vrot.lane.b32.xlu0 %v1844, 15
        %v1888 = vpop.permute.xlu0 %1887
        %v1889 = vsel %vm678, %v1882, %v1886
        %v1890 = vsel %vm678, %v1884, %v1888
        %v1891 = vsel %vm678, %v1886, %v1882
        %v1892 = vsel %vm678, %v1888, %v1884
        %v1893 = vmul.f32 %v1891, %v684
        %v1894 = vmul.f32 %v1889, %v688
        %v1895 = vmul.f32 %v1892, %v684
        %v1896 = vmul.f32 %v1890, %v688
        %v1897 = vpack.c.bf16 %v1895, %v1893
        %v1898 = vpack.c.bf16 %v1896, %v1894
        %1899 = vrot.lane.b32.xlu0 %v1841, 1
        %v1900 = vpop.permute.xlu0 %1899
        %1901 = vrot.lane.b32.xlu0 %v1843, 1
        %v1902 = vpop.permute.xlu0 %1901
        %1903 = vrot.lane.b32.xlu0 %v1842, 1
        %v1904 = vpop.permute.xlu0 %1903
        %1905 = vrot.lane.b32.xlu0 %v1844, 1
        %v1906 = vpop.permute.xlu0 %1905
        %v1907 = vsel %vm751, %v1900, %v1904
        %v1908 = vsel %vm751, %v1902, %v1906
        %v1909 = vsel %vm751, %v1904, %v1900
        %v1910 = vsel %vm751, %v1906, %v1902
        %v1911 = vmul.f32 %v1909, %v757
        %v1912 = vmul.f32 %v1907, %v761
        %v1913 = vmul.f32 %v1910, %v757
        %v1914 = vmul.f32 %v1908, %v761
        %v1915 = vpack.c.bf16 %v1913, %v1911
        %v1916 = vpack.c.bf16 %v1914, %v1912
        %v1917 = vpack.c.bf16 %v1843, %v1841
        %v1918 = vpack.c.bf16 %v1844, %v1842
        %1919 = vrot.lane.b32.xlu0 %v1841, 127
        %v1920 = vpop.permute.xlu0 %1919
        %1921 = vrot.lane.b32.xlu0 %v1843, 127
        %v1922 = vpop.permute.xlu0 %1921
        %1923 = vrot.lane.b32.xlu0 %v1842, 127
        %v1924 = vpop.permute.xlu0 %1923
        %1925 = vrot.lane.b32.xlu0 %v1844, 127
        %v1926 = vpop.permute.xlu0 %1925
        %v1927 = vsel %vm880, %v1920, %v1924
        %v1928 = vsel %vm880, %v1922, %v1926
        %v1929 = vsel %vm880, %v1924, %v1920
        %v1930 = vsel %vm880, %v1926, %v1922
        %v1931 = vmul.f32 %v1927, %v886
        %v1932 = vmul.f32 %v1929, %v890
        %v1933 = vmul.f32 %v1928, %v886
        %v1934 = vmul.f32 %v1930, %v890
        %v1935 = vpack.c.bf16 %v1933, %v1931
        %v1936 = vpack.c.bf16 %v1934, %v1932
        %1937 = vrot.lane.b32.xlu0 %v1841, 113
        %v1938 = vpop.permute.xlu0 %1937
        %1939 = vrot.lane.b32.xlu0 %v1843, 113
        %v1940 = vpop.permute.xlu0 %1939
        %1941 = vrot.lane.b32.xlu0 %v1842, 113
        %v1942 = vpop.permute.xlu0 %1941
        %1943 = vrot.lane.b32.xlu0 %v1844, 113
        %v1944 = vpop.permute.xlu0 %1943
        %v1945 = vsel %vm953, %v1938, %v1942
        %v1946 = vsel %vm953, %v1940, %v1944
        %v1947 = vsel %vm953, %v1942, %v1938
        %v1948 = vsel %vm953, %v1944, %v1940
        %v1949 = vmul.f32 %v1945, %v959
        %v1950 = vmul.f32 %v1947, %v963
        %v1951 = vmul.f32 %v1946, %v959
        %v1952 = vmul.f32 %v1948, %v963
        %v1953 = vpack.c.bf16 %v1951, %v1949
        %v1954 = vpack.c.bf16 %v1952, %v1950
        %1955 = vrot.lane.b32.xlu0 %v1841, 112
        %v1956 = vpop.permute.xlu0 %1955
        %1957 = vrot.lane.b32.xlu0 %v1843, 112
        %v1958 = vpop.permute.xlu0 %1957
        %1959 = vrot.lane.b32.xlu0 %v1842, 112
        %v1960 = vpop.permute.xlu0 %1959
        %1961 = vrot.lane.b32.xlu0 %v1844, 112
        %v1962 = vpop.permute.xlu0 %1961
        %v1963 = vsel %vm1026, %v1956, %v1960
        %v1964 = vsel %vm1026, %v1958, %v1962
        %v1965 = vsel %vm1026, %v1960, %v1956
        %v1966 = vsel %vm1026, %v1962, %v1958
        %v1967 = vmul.f32 %v1963, %v1032
        %v1968 = vmul.f32 %v1965, %v1036
        %v1969 = vmul.f32 %v1964, %v1032
        %v1970 = vmul.f32 %v1966, %v1036
        %v1971 = vpack.c.bf16 %v1969, %v1967
        %v1972 = vpack.c.bf16 %v1970, %v1968
        %1973 = vrot.lane.b32.xlu0 %v1841, 111
        %v1974 = vpop.permute.xlu0 %1973
        %1975 = vrot.lane.b32.xlu0 %v1843, 111
        %v1976 = vpop.permute.xlu0 %1975
        %1977 = vrot.lane.b32.xlu0 %v1842, 111
        %v1978 = vpop.permute.xlu0 %1977
        %1979 = vrot.lane.b32.xlu0 %v1844, 111
        %v1980 = vpop.permute.xlu0 %1979
        %v1981 = vsel %vm1099, %v1974, %v1978
        %v1982 = vsel %vm1099, %v1976, %v1980
        %v1983 = vsel %vm1099, %v1978, %v1974
        %v1984 = vsel %vm1099, %v1980, %v1976
        %v1985 = vmul.f32 %v1981, %v1105
        %v1986 = vmul.f32 %v1983, %v1109
        %v1987 = vmul.f32 %v1982, %v1105
        %v1988 = vmul.f32 %v1984, %v1109
        %v1989 = vpack.c.bf16 %v1987, %v1985
        %v1990 = vpack.c.bf16 %v1988, %v1986
        %v1991 = vld [vmem:[%s6] sm:$0xf]
        %v1992 = vld [vmem:[%s6 + $0x4] sm:$0xf]
        %v1993 = vld [vmem:[%s6 + $0x8] sm:$0xf]
        %v1994 = vld [vmem:[%s6 + $0xc] sm:$0xf]
        %s1995 = scalar_lea.vmem %s6, 16
        %v1996 = vld [vmem:[%s1995] sm:$0xf]
        %v1997 = vld [vmem:[%s1995 + $0x4] sm:$0xf]
        %v1998 = vld [vmem:[%s1995 + $0x8] sm:$0xf]
        %v1999 = vld [vmem:[%s1995 + $0xc] sm:$0xf]
        %v2004 = vunpack.c.l.b16 %v1996
        %v2005 = vunpack.c.l.b16 %v1997
        %v2006 = vunpack.c.l.b16 %v1998
        %v2007 = vunpack.c.l.b16 %v1999
        %v2008 = vpack.c.b16 %v2005, %v2004
        %v2009 = vpack.c.b16 %v2007, %v2006
        %vm2010 = vcmask 130048
        %v2012 = vsel %vm2010, %v2008, 0
        %v2015 = vsel %vm2010, %v2009, 0
        %2017 = vmatprep.subr.bf16.mxu0 %v1880
        %2018 = vmatpush1.bf16.msra.mxu0 %v1879
        %2019 = vmatprep.subr.bf16.mxu0 0
        %2020 = vmatpush1.bf16.msra.mxu0 0
        %2021 = vmatprep.subr.bf16.mxu0 0
        %2022 = vmatpush1.bf16.msra.mxu0 0
        %2023 = vmatprep.subr.bf16.mxu0 0
        %2024 = vmatpush1.bf16.msra.mxu0 0
        %2025 = vmatprep.subr.bf16.mxu0 0
        %2026 = vmatpush1.bf16.msra.mxu0 0
        %2027 = vmatprep.subr.bf16.mxu0 0
        %2028 = vmatpush1.bf16.msra.mxu0 0
        %2029 = vmatprep.subr.bf16.mxu0 0
        %2030 = vmatpush1.bf16.msra.mxu0 0
        %2031 = vmatprep.subr.bf16.mxu0 0
        %2032 = vmatpush1.bf16.msra.mxu0 0
        %2033 = vmatprep.subr.bf16.mxu0 0
        %2034 = vmatpush1.bf16.msra.mxu0 0
        %2035 = vmatprep.subr.bf16.mxu0 0
        %2036 = vmatpush1.bf16.msra.mxu0 0
        %2037 = vmatprep.subr.bf16.mxu0 0
        %2038 = vmatpush1.bf16.msra.mxu0 0
        %2039 = vmatprep.subr.bf16.mxu0 0
        %2040 = vmatpush1.bf16.msra.mxu0 0
        %2041 = vmatprep.subr.bf16.mxu0 0
        %2042 = vmatpush1.bf16.msra.mxu0 0
        %2043 = vmatprep.subr.bf16.mxu0 0
        %2044 = vmatpush1.bf16.msra.mxu0 0
        %2045 = vmatprep.subr.bf16.mxu0 0
        %2046 = vmatpush1.bf16.msra.mxu0 0
        %2047 = vmatprep.subr.bf16.mxu0 0
        %2048 = vmatpush1.bf16.msra.mxu0 0
        %2049 = vmatprep.mubr.bf16.mxu0 0
        %2050 = vmatmul.mubr.bf16.gmra.mrb[0].mxu0 %v2012
        %v2051 = vpop.f32.mrb[0].mxu0
        %v2052 = vadd.f32 0.0, %v2051
        %v2053 = vpop.f32.mrb[0].mxu0
        %v2054 = vadd.f32 0.0, %v2053
        %v2055 = vpop.f32.mrb[0].mxu0
        %v2056 = vadd.f32 0.0, %v2055
        %v2057 = vpop.f32.mrb[0].mxu0
        %v2058 = vadd.f32 0.0, %v2057
        %2059 = vmatprep.mubr.bf16.mxu0 0
        %2060 = vmatmul.mubr.bf16.gmra.mrb[0].mxu0 %v2015
        %v2061 = vpop.f32.mrb[0].mxu0
        %v2062 = vadd.f32 0.0, %v2061
        %v2063 = vpop.f32.mrb[0].mxu0
        %v2064 = vadd.f32 0.0, %v2063
        %v2065 = vpop.f32.mrb[0].mxu0
        %v2066 = vadd.f32 0.0, %v2065
        %v2067 = vpop.f32.mrb[0].mxu0
        %v2068 = vadd.f32 0.0, %v2067
        %2069 = vdwg.mxu0
        %v2074 = vunpack.c.l.b16 %v1991
        %v2075 = vunpack.c.l.b16 %v1992
        %v2076 = vunpack.c.l.b16 %v1993
        %v2077 = vunpack.c.l.b16 %v1994
        %v2078 = vpack.c.b16 %v2075, %v2074
        %v2079 = vpack.c.b16 %v2077, %v2076
        %v2081 = vsel %vm2010, %v2078, 0
        %v2084 = vsel %vm2010, %v2079, 0
        %2086 = vmatprep.subr.bf16.mxu0 %v1862
        %2087 = vmatpush1.bf16.msra.mxu0 %v1861
        %2088 = vmatprep.subr.bf16.mxu0 0
        %2089 = vmatpush1.bf16.msra.mxu0 0
        %2090 = vmatprep.subr.bf16.mxu0 0
        %2091 = vmatpush1.bf16.msra.mxu0 0
        %2092 = vmatprep.subr.bf16.mxu0 0
        %2093 = vmatpush1.bf16.msra.mxu0 0
        %2094 = vmatprep.subr.bf16.mxu0 0
        %2095 = vmatpush1.bf16.msra.mxu0 0
        %2096 = vmatprep.subr.bf16.mxu0 0
        %2097 = vmatpush1.bf16.msra.mxu0 0
        %2098 = vmatprep.subr.bf16.mxu0 0
        %2099 = vmatpush1.bf16.msra.mxu0 0
        %2100 = vmatprep.subr.bf16.mxu0 0
        %2101 = vmatpush1.bf16.msra.mxu0 0
        %2102 = vmatprep.subr.bf16.mxu0 0
        %2103 = vmatpush1.bf16.msra.mxu0 0
        %2104 = vmatprep.subr.bf16.mxu0 0
        %2105 = vmatpush1.bf16.msra.mxu0 0
        %2106 = vmatprep.subr.bf16.mxu0 0
        %2107 = vmatpush1.bf16.msra.mxu0 0
        %2108 = vmatprep.subr.bf16.mxu0 0
        %2109 = vmatpush1.bf16.msra.mxu0 0
        %2110 = vmatprep.subr.bf16.mxu0 0
        %2111 = vmatpush1.bf16.msra.mxu0 0
        %2112 = vmatprep.subr.bf16.mxu0 0
        %2113 = vmatpush1.bf16.msra.mxu0 0
        %2114 = vmatprep.subr.bf16.mxu0 0
        %2115 = vmatpush1.bf16.msra.mxu0 0
        %2116 = vmatprep.subr.bf16.mxu0 0
        %2117 = vmatpush1.bf16.msra.mxu0 0
        %2118 = vmatprep.mubr.bf16.mxu0 0
        %2119 = vmatmul.mubr.bf16.gmra.mrb[0].mxu0 %v2081
        %v2120 = vpop.f32.mrb[0].mxu0
        %v2121 = vadd.f32 %v2052, %v2120
        %v2122 = vpop.f32.mrb[0].mxu0
        %v2123 = vadd.f32 %v2054, %v2122
        %v2124 = vpop.f32.mrb[0].mxu0
        %v2125 = vadd.f32 %v2056, %v2124
        %v2126 = vpop.f32.mrb[0].mxu0
        %v2127 = vadd.f32 %v2058, %v2126
        %2128 = vmatprep.mubr.bf16.mxu0 0
        %2129 = vmatmul.mubr.bf16.gmra.mrb[0].mxu0 %v2084
        %v2130 = vpop.f32.mrb[0].mxu0
        %v2131 = vadd.f32 %v2062, %v2130
        %v2132 = vpop.f32.mrb[0].mxu0
        %v2133 = vadd.f32 %v2064, %v2132
        %v2134 = vpop.f32.mrb[0].mxu0
        %v2135 = vadd.f32 %v2066, %v2134
        %v2136 = vpop.f32.mrb[0].mxu0
        %v2137 = vadd.f32 %v2068, %v2136
        %2138 = vdwg.mxu0
        %s2139 = scalar_lea.vmem %s6, 32
        %v2140 = vld [vmem:[%s2139] sm:$0xf]
        %v2141 = vld [vmem:[%s2139 + $0x4] sm:$0xf]
        %v2142 = vld [vmem:[%s2139 + $0x8] sm:$0xf]
        %v2143 = vld [vmem:[%s2139 + $0xc] sm:$0xf]
        %v2148 = vunpack.c.l.b16 %v2140
        %v2149 = vunpack.c.l.b16 %v2141
        %v2150 = vunpack.c.l.b16 %v2142
        %v2151 = vunpack.c.l.b16 %v2143
        %v2152 = vpack.c.b16 %v2149, %v2148
        %v2153 = vpack.c.b16 %v2151, %v2150
        %v2155 = vsel %vm2010, %v2152, 0
        %v2158 = vsel %vm2010, %v2153, 0
        %2160 = vmatprep.subr.bf16.mxu0 %v1898
        %2161 = vmatpush1.bf16.msra.mxu0 %v1897
        %2162 = vmatprep.subr.bf16.mxu0 0
        %2163 = vmatpush1.bf16.msra.mxu0 0
        %2164 = vmatprep.subr.bf16.mxu0 0
        %2165 = vmatpush1.bf16.msra.mxu0 0
        %2166 = vmatprep.subr.bf16.mxu0 0
        %2167 = vmatpush1.bf16.msra.mxu0 0
        %2168 = vmatprep.subr.bf16.mxu0 0
        %2169 = vmatpush1.bf16.msra.mxu0 0
        %2170 = vmatprep.subr.bf16.mxu0 0
        %2171 = vmatpush1.bf16.msra.mxu0 0
        %2172 = vmatprep.subr.bf16.mxu0 0
        %2173 = vmatpush1.bf16.msra.mxu0 0
        %2174 = vmatprep.subr.bf16.mxu0 0
        %2175 = vmatpush1.bf16.msra.mxu0 0
        %2176 = vmatprep.subr.bf16.mxu0 0
        %2177 = vmatpush1.bf16.msra.mxu0 0
        %2178 = vmatprep.subr.bf16.mxu0 0
        %2179 = vmatpush1.bf16.msra.mxu0 0
        %2180 = vmatprep.subr.bf16.mxu0 0
        %2181 = vmatpush1.bf16.msra.mxu0 0
        %2182 = vmatprep.subr.bf16.mxu0 0
        %2183 = vmatpush1.bf16.msra.mxu0 0
        %2184 = vmatprep.subr.bf16.mxu0 0
        %2185 = vmatpush1.bf16.msra.mxu0 0
        %2186 = vmatprep.subr.bf16.mxu0 0
        %2187 = vmatpush1.bf16.msra.mxu0 0
        %2188 = vmatprep.subr.bf16.mxu0 0
        %2189 = vmatpush1.bf16.msra.mxu0 0
        %2190 = vmatprep.subr.bf16.mxu0 0
        %2191 = vmatpush1.bf16.msra.mxu0 0
        %2192 = vmatprep.mubr.bf16.mxu0 0
        %2193 = vmatmul.mubr.bf16.gmra.mrb[0].mxu0 %v2155
        %v2194 = vpop.f32.mrb[0].mxu0
        %v2195 = vadd.f32 0.0, %v2194
        %v2196 = vpop.f32.mrb[0].mxu0
        %v2197 = vadd.f32 0.0, %v2196
        %v2198 = vpop.f32.mrb[0].mxu0
        %v2199 = vadd.f32 0.0, %v2198
        %v2200 = vpop.f32.mrb[0].mxu0
        %v2201 = vadd.f32 0.0, %v2200
        %2202 = vmatprep.mubr.bf16.mxu0 0
        %2203 = vmatmul.mubr.bf16.gmra.mrb[0].mxu0 %v2158
        %v2204 = vpop.f32.mrb[0].mxu0
        %v2205 = vadd.f32 0.0, %v2204
        %v2206 = vpop.f32.mrb[0].mxu0
        %v2207 = vadd.f32 0.0, %v2206
        %v2208 = vpop.f32.mrb[0].mxu0
        %v2209 = vadd.f32 0.0, %v2208
        %v2210 = vpop.f32.mrb[0].mxu0
        %v2211 = vadd.f32 0.0, %v2210
        %2212 = vdwg.mxu0
        %v2213 = vadd.f32 %v2121, %v2195
        %v2214 = vadd.f32 %v2123, %v2197
        %v2215 = vadd.f32 %v2125, %v2199
        %v2216 = vadd.f32 %v2127, %v2201
        %v2217 = vadd.f32 %v2131, %v2205
        %v2218 = vadd.f32 %v2133, %v2207
        %v2219 = vadd.f32 %v2135, %v2209
        %v2220 = vadd.f32 %v2137, %v2211
        %s2221 = scalar_lea.vmem %s6, 48
        %v2222 = vld [vmem:[%s2221] sm:$0xf]
        %v2223 = vld [vmem:[%s2221 + $0x4] sm:$0xf]
        %v2224 = vld [vmem:[%s2221 + $0x8] sm:$0xf]
        %v2225 = vld [vmem:[%s2221 + $0xc] sm:$0xf]
        %v2230 = vunpack.c.l.b16 %v2222
        %v2231 = vunpack.c.l.b16 %v2223
        %v2232 = vunpack.c.l.b16 %v2224
        %v2233 = vunpack.c.l.b16 %v2225
        %v2234 = vpack.c.b16 %v2231, %v2230
        %v2235 = vpack.c.b16 %v2233, %v2232
        %v2237 = vsel %vm2010, %v2234, 0
        %v2240 = vsel %vm2010, %v2235, 0
        %2242 = vmatprep.subr.bf16.mxu0 %v1916
        %2243 = vmatpush1.bf16.msra.mxu0 %v1915
        %2244 = vmatprep.subr.bf16.mxu0 0
        %2245 = vmatpush1.bf16.msra.mxu0 0
        %2246 = vmatprep.subr.bf16.mxu0 0
        %2247 = vmatpush1.bf16.msra.mxu0 0
        %2248 = vmatprep.subr.bf16.mxu0 0
        %2249 = vmatpush1.bf16.msra.mxu0 0
        %2250 = vmatprep.subr.bf16.mxu0 0
        %2251 = vmatpush1.bf16.msra.mxu0 0
        %2252 = vmatprep.subr.bf16.mxu0 0
        %2253 = vmatpush1.bf16.msra.mxu0 0
        %2254 = vmatprep.subr.bf16.mxu0 0
        %2255 = vmatpush1.bf16.msra.mxu0 0
        %2256 = vmatprep.subr.bf16.mxu0 0
        %2257 = vmatpush1.bf16.msra.mxu0 0
        %2258 = vmatprep.subr.bf16.mxu0 0
        %2259 = vmatpush1.bf16.msra.mxu0 0
        %2260 = vmatprep.subr.bf16.mxu0 0
        %2261 = vmatpush1.bf16.msra.mxu0 0
        %2262 = vmatprep.subr.bf16.mxu0 0
        %2263 = vmatpush1.bf16.msra.mxu0 0
        %2264 = vmatprep.subr.bf16.mxu0 0
        %2265 = vmatpush1.bf16.msra.mxu0 0
        %2266 = vmatprep.subr.bf16.mxu0 0
        %2267 = vmatpush1.bf16.msra.mxu0 0
        %2268 = vmatprep.subr.bf16.mxu0 0
        %2269 = vmatpush1.bf16.msra.mxu0 0
        %2270 = vmatprep.subr.bf16.mxu0 0
        %2271 = vmatpush1.bf16.msra.mxu0 0
        %2272 = vmatprep.subr.bf16.mxu0 0
        %2273 = vmatpush1.bf16.msra.mxu0 0
        %2274 = vmatprep.mubr.bf16.mxu0 0
        %2275 = vmatmul.mubr.bf16.gmra.mrb[0].mxu0 %v2237
        %v2276 = vpop.f32.mrb[0].mxu0
        %v2277 = vadd.f32 0.0, %v2276
        %v2278 = vpop.f32.mrb[0].mxu0
        %v2279 = vadd.f32 0.0, %v2278
        %v2280 = vpop.f32.mrb[0].mxu0
        %v2281 = vadd.f32 0.0, %v2280
        %v2282 = vpop.f32.mrb[0].mxu0
        %v2283 = vadd.f32 0.0, %v2282
        %2284 = vmatprep.mubr.bf16.mxu0 0
        %2285 = vmatmul.mubr.bf16.gmra.mrb[0].mxu0 %v2240
        %v2286 = vpop.f32.mrb[0].mxu0
        %v2287 = vadd.f32 0.0, %v2286
        %v2288 = vpop.f32.mrb[0].mxu0
        %v2289 = vadd.f32 0.0, %v2288
        %v2290 = vpop.f32.mrb[0].mxu0
        %v2291 = vadd.f32 0.0, %v2290
        %v2292 = vpop.f32.mrb[0].mxu0
        %v2293 = vadd.f32 0.0, %v2292
        %2294 = vdwg.mxu0
        %v2295 = vadd.f32 %v2213, %v2277
        %v2296 = vadd.f32 %v2214, %v2279
        %v2297 = vadd.f32 %v2215, %v2281
        %v2298 = vadd.f32 %v2216, %v2283
        %v2299 = vadd.f32 %v2217, %v2287
        %v2300 = vadd.f32 %v2218, %v2289
        %v2301 = vadd.f32 %v2219, %v2291
        %v2302 = vadd.f32 %v2220, %v2293
        %s2303 = scalar_lea.vmem %s6, 64
        %v2304 = vld [vmem:[%s2303] sm:$0xf]
        %v2305 = vld [vmem:[%s2303 + $0x4] sm:$0xf]
        %v2306 = vld [vmem:[%s2303 + $0x8] sm:$0xf]
        %v2307 = vld [vmem:[%s2303 + $0xc] sm:$0xf]
        %v2312 = vunpack.c.l.b16 %v2304
        %v2313 = vunpack.c.l.b16 %v2305
        %v2314 = vunpack.c.l.b16 %v2306
        %v2315 = vunpack.c.l.b16 %v2307
        %v2316 = vpack.c.b16 %v2313, %v2312
        %v2317 = vpack.c.b16 %v2315, %v2314
        %v2319 = vsel %vm2010, %v2316, 0
        %v2322 = vsel %vm2010, %v2317, 0
        %2324 = vmatprep.subr.bf16.mxu0 %v1918
        %2325 = vmatpush1.bf16.msra.mxu0 %v1917
        %2326 = vmatprep.subr.bf16.mxu0 0
        %2327 = vmatpush1.bf16.msra.mxu0 0
        %2328 = vmatprep.subr.bf16.mxu0 0
        %2329 = vmatpush1.bf16.msra.mxu0 0
        %2330 = vmatprep.subr.bf16.mxu0 0
        %2331 = vmatpush1.bf16.msra.mxu0 0
        %2332 = vmatprep.subr.bf16.mxu0 0
        %2333 = vmatpush1.bf16.msra.mxu0 0
        %2334 = vmatprep.subr.bf16.mxu0 0
        %2335 = vmatpush1.bf16.msra.mxu0 0
        %2336 = vmatprep.subr.bf16.mxu0 0
        %2337 = vmatpush1.bf16.msra.mxu0 0
        %2338 = vmatprep.subr.bf16.mxu0 0
        %2339 = vmatpush1.bf16.msra.mxu0 0
        %2340 = vmatprep.subr.bf16.mxu0 0
        %2341 = vmatpush1.bf16.msra.mxu0 0
        %2342 = vmatprep.subr.bf16.mxu0 0
        %2343 = vmatpush1.bf16.msra.mxu0 0
        %2344 = vmatprep.subr.bf16.mxu0 0
        %2345 = vmatpush1.bf16.msra.mxu0 0
        %2346 = vmatprep.subr.bf16.mxu0 0
        %2347 = vmatpush1.bf16.msra.mxu0 0
        %2348 = vmatprep.subr.bf16.mxu0 0
        %2349 = vmatpush1.bf16.msra.mxu0 0
        %2350 = vmatprep.subr.bf16.mxu0 0
        %2351 = vmatpush1.bf16.msra.mxu0 0
        %2352 = vmatprep.subr.bf16.mxu0 0
        %2353 = vmatpush1.bf16.msra.mxu0 0
        %2354 = vmatprep.subr.bf16.mxu0 0
        %2355 = vmatpush1.bf16.msra.mxu0 0
        %2356 = vmatprep.mubr.bf16.mxu0 0
        %2357 = vmatmul.mubr.bf16.gmra.mrb[0].mxu0 %v2319
        %v2358 = vpop.f32.mrb[0].mxu0
        %v2359 = vadd.f32 0.0, %v2358
        %v2360 = vpop.f32.mrb[0].mxu0
        %v2361 = vadd.f32 0.0, %v2360
        %v2362 = vpop.f32.mrb[0].mxu0
        %v2363 = vadd.f32 0.0, %v2362
        %v2364 = vpop.f32.mrb[0].mxu0
        %v2365 = vadd.f32 0.0, %v2364
        %2366 = vmatprep.mubr.bf16.mxu0 0
        %2367 = vmatmul.mubr.bf16.gmra.mrb[0].mxu0 %v2322
        %v2368 = vpop.f32.mrb[0].mxu0
        %v2369 = vadd.f32 0.0, %v2368
        %v2370 = vpop.f32.mrb[0].mxu0
        %v2371 = vadd.f32 0.0, %v2370
        %v2372 = vpop.f32.mrb[0].mxu0
        %v2373 = vadd.f32 0.0, %v2372
        %v2374 = vpop.f32.mrb[0].mxu0
        %v2375 = vadd.f32 0.0, %v2374
        %2376 = vdwg.mxu0
        %v2377 = vadd.f32 %v2295, %v2359
        %v2378 = vadd.f32 %v2296, %v2361
        %v2379 = vadd.f32 %v2297, %v2363
        %v2380 = vadd.f32 %v2298, %v2365
        %v2381 = vadd.f32 %v2299, %v2369
        %v2382 = vadd.f32 %v2300, %v2371
        %v2383 = vadd.f32 %v2301, %v2373
        %v2384 = vadd.f32 %v2302, %v2375
        %s2385 = scalar_lea.vmem %s6, 80
        %v2386 = vld [vmem:[%s2385] sm:$0xf]
        %v2387 = vld [vmem:[%s2385 + $0x4] sm:$0xf]
        %v2388 = vld [vmem:[%s2385 + $0x8] sm:$0xf]
        %v2389 = vld [vmem:[%s2385 + $0xc] sm:$0xf]
        %v2394 = vunpack.c.l.b16 %v2386
        %v2395 = vunpack.c.l.b16 %v2387
        %v2396 = vunpack.c.l.b16 %v2388
        %v2397 = vunpack.c.l.b16 %v2389
        %v2398 = vpack.c.b16 %v2395, %v2394
        %v2399 = vpack.c.b16 %v2397, %v2396
        %v2401 = vsel %vm2010, %v2398, 0
        %v2404 = vsel %vm2010, %v2399, 0
        %2406 = vmatprep.subr.bf16.mxu0 %v1936
        %2407 = vmatpush1.bf16.msra.mxu0 %v1935
        %2408 = vmatprep.subr.bf16.mxu0 0
        %2409 = vmatpush1.bf16.msra.mxu0 0
        %2410 = vmatprep.subr.bf16.mxu0 0
        %2411 = vmatpush1.bf16.msra.mxu0 0
        %2412 = vmatprep.subr.bf16.mxu0 0
        %2413 = vmatpush1.bf16.msra.mxu0 0
        %2414 = vmatprep.subr.bf16.mxu0 0
        %2415 = vmatpush1.bf16.msra.mxu0 0
        %2416 = vmatprep.subr.bf16.mxu0 0
        %2417 = vmatpush1.bf16.msra.mxu0 0
        %2418 = vmatprep.subr.bf16.mxu0 0
        %2419 = vmatpush1.bf16.msra.mxu0 0
        %2420 = vmatprep.subr.bf16.mxu0 0
        %2421 = vmatpush1.bf16.msra.mxu0 0
        %2422 = vmatprep.subr.bf16.mxu0 0
        %2423 = vmatpush1.bf16.msra.mxu0 0
        %2424 = vmatprep.subr.bf16.mxu0 0
        %2425 = vmatpush1.bf16.msra.mxu0 0
        %2426 = vmatprep.subr.bf16.mxu0 0
        %2427 = vmatpush1.bf16.msra.mxu0 0
        %2428 = vmatprep.subr.bf16.mxu0 0
        %2429 = vmatpush1.bf16.msra.mxu0 0
        %2430 = vmatprep.subr.bf16.mxu0 0
        %2431 = vmatpush1.bf16.msra.mxu0 0
        %2432 = vmatprep.subr.bf16.mxu0 0
        %2433 = vmatpush1.bf16.msra.mxu0 0
        %2434 = vmatprep.subr.bf16.mxu0 0
        %2435 = vmatpush1.bf16.msra.mxu0 0
        %2436 = vmatprep.subr.bf16.mxu0 0
        %2437 = vmatpush1.bf16.msra.mxu0 0
        %2438 = vmatprep.mubr.bf16.mxu0 0
        %2439 = vmatmul.mubr.bf16.gmra.mrb[0].mxu0 %v2401
        %v2440 = vpop.f32.mrb[0].mxu0
        %v2441 = vadd.f32 0.0, %v2440
        %v2442 = vpop.f32.mrb[0].mxu0
        %v2443 = vadd.f32 0.0, %v2442
        %v2444 = vpop.f32.mrb[0].mxu0
        %v2445 = vadd.f32 0.0, %v2444
        %v2446 = vpop.f32.mrb[0].mxu0
        %v2447 = vadd.f32 0.0, %v2446
        %2448 = vmatprep.mubr.bf16.mxu0 0
        %2449 = vmatmul.mubr.bf16.gmra.mrb[0].mxu0 %v2404
        %v2450 = vpop.f32.mrb[0].mxu0
        %v2451 = vadd.f32 0.0, %v2450
        %v2452 = vpop.f32.mrb[0].mxu0
        %v2453 = vadd.f32 0.0, %v2452
        %v2454 = vpop.f32.mrb[0].mxu0
        %v2455 = vadd.f32 0.0, %v2454
        %v2456 = vpop.f32.mrb[0].mxu0
        %v2457 = vadd.f32 0.0, %v2456
        %2458 = vdwg.mxu0
        %v2459 = vadd.f32 %v2377, %v2441
        %v2460 = vadd.f32 %v2378, %v2443
        %v2461 = vadd.f32 %v2379, %v2445
        %v2462 = vadd.f32 %v2380, %v2447
        %v2463 = vadd.f32 %v2381, %v2451
        %v2464 = vadd.f32 %v2382, %v2453
        %v2465 = vadd.f32 %v2383, %v2455
        %v2466 = vadd.f32 %v2384, %v2457
        %s2467 = scalar_lea.vmem %s6, 96
        %v2468 = vld [vmem:[%s2467] sm:$0xf]
        %v2469 = vld [vmem:[%s2467 + $0x4] sm:$0xf]
        %v2470 = vld [vmem:[%s2467 + $0x8] sm:$0xf]
        %v2471 = vld [vmem:[%s2467 + $0xc] sm:$0xf]
        %v2476 = vunpack.c.l.b16 %v2468
        %v2477 = vunpack.c.l.b16 %v2469
        %v2478 = vunpack.c.l.b16 %v2470
        %v2479 = vunpack.c.l.b16 %v2471
        %v2480 = vpack.c.b16 %v2477, %v2476
        %v2481 = vpack.c.b16 %v2479, %v2478
        %v2483 = vsel %vm2010, %v2480, 0
        %v2486 = vsel %vm2010, %v2481, 0
        %2488 = vmatprep.subr.bf16.mxu0 %v1954
        %2489 = vmatpush1.bf16.msra.mxu0 %v1953
        %2490 = vmatprep.subr.bf16.mxu0 0
        %2491 = vmatpush1.bf16.msra.mxu0 0
        %2492 = vmatprep.subr.bf16.mxu0 0
        %2493 = vmatpush1.bf16.msra.mxu0 0
        %2494 = vmatprep.subr.bf16.mxu0 0
        %2495 = vmatpush1.bf16.msra.mxu0 0
        %2496 = vmatprep.subr.bf16.mxu0 0
        %2497 = vmatpush1.bf16.msra.mxu0 0
        %2498 = vmatprep.subr.bf16.mxu0 0
        %2499 = vmatpush1.bf16.msra.mxu0 0
        %2500 = vmatprep.subr.bf16.mxu0 0
        %2501 = vmatpush1.bf16.msra.mxu0 0
        %2502 = vmatprep.subr.bf16.mxu0 0
        %2503 = vmatpush1.bf16.msra.mxu0 0
        %2504 = vmatprep.subr.bf16.mxu0 0
        %2505 = vmatpush1.bf16.msra.mxu0 0
        %2506 = vmatprep.subr.bf16.mxu0 0
        %2507 = vmatpush1.bf16.msra.mxu0 0
        %2508 = vmatprep.subr.bf16.mxu0 0
        %2509 = vmatpush1.bf16.msra.mxu0 0
        %2510 = vmatprep.subr.bf16.mxu0 0
        %2511 = vmatpush1.bf16.msra.mxu0 0
        %2512 = vmatprep.subr.bf16.mxu0 0
        %2513 = vmatpush1.bf16.msra.mxu0 0
        %2514 = vmatprep.subr.bf16.mxu0 0
        %2515 = vmatpush1.bf16.msra.mxu0 0
        %2516 = vmatprep.subr.bf16.mxu0 0
        %2517 = vmatpush1.bf16.msra.mxu0 0
        %2518 = vmatprep.subr.bf16.mxu0 0
        %2519 = vmatpush1.bf16.msra.mxu0 0
        %2520 = vmatprep.mubr.bf16.mxu0 0
        %2521 = vmatmul.mubr.bf16.gmra.mrb[0].mxu0 %v2483
        %v2522 = vpop.f32.mrb[0].mxu0
        %v2523 = vadd.f32 0.0, %v2522
        %v2524 = vpop.f32.mrb[0].mxu0
        %v2525 = vadd.f32 0.0, %v2524
        %v2526 = vpop.f32.mrb[0].mxu0
        %v2527 = vadd.f32 0.0, %v2526
        %v2528 = vpop.f32.mrb[0].mxu0
        %v2529 = vadd.f32 0.0, %v2528
        %2530 = vmatprep.mubr.bf16.mxu0 0
        %2531 = vmatmul.mubr.bf16.gmra.mrb[0].mxu0 %v2486
        %v2532 = vpop.f32.mrb[0].mxu0
        %v2533 = vadd.f32 0.0, %v2532
        %v2534 = vpop.f32.mrb[0].mxu0
        %v2535 = vadd.f32 0.0, %v2534
        %v2536 = vpop.f32.mrb[0].mxu0
        %v2537 = vadd.f32 0.0, %v2536
        %v2538 = vpop.f32.mrb[0].mxu0
        %v2539 = vadd.f32 0.0, %v2538
        %2540 = vdwg.mxu0
        %v2541 = vadd.f32 %v2459, %v2523
        %v2542 = vadd.f32 %v2460, %v2525
        %v2543 = vadd.f32 %v2461, %v2527
        %v2544 = vadd.f32 %v2462, %v2529
        %v2545 = vadd.f32 %v2463, %v2533
        %v2546 = vadd.f32 %v2464, %v2535
        %v2547 = vadd.f32 %v2465, %v2537
        %v2548 = vadd.f32 %v2466, %v2539
        %s2549 = scalar_lea.vmem %s6, 112
        %v2550 = vld [vmem:[%s2549] sm:$0xf]
        %v2551 = vld [vmem:[%s2549 + $0x4] sm:$0xf]
        %v2552 = vld [vmem:[%s2549 + $0x8] sm:$0xf]
        %v2553 = vld [vmem:[%s2549 + $0xc] sm:$0xf]
        %v2558 = vunpack.c.l.b16 %v2550
        %v2559 = vunpack.c.l.b16 %v2551
        %v2560 = vunpack.c.l.b16 %v2552
        %v2561 = vunpack.c.l.b16 %v2553
        %v2562 = vpack.c.b16 %v2559, %v2558
        %v2563 = vpack.c.b16 %v2561, %v2560
        %v2565 = vsel %vm2010, %v2562, 0
        %v2568 = vsel %vm2010, %v2563, 0
        %2570 = vmatprep.subr.bf16.mxu0 %v1972
        %2571 = vmatpush1.bf16.msra.mxu0 %v1971
        %2572 = vmatprep.subr.bf16.mxu0 0
        %2573 = vmatpush1.bf16.msra.mxu0 0
        %2574 = vmatprep.subr.bf16.mxu0 0
        %2575 = vmatpush1.bf16.msra.mxu0 0
        %2576 = vmatprep.subr.bf16.mxu0 0
        %2577 = vmatpush1.bf16.msra.mxu0 0
        %2578 = vmatprep.subr.bf16.mxu0 0
        %2579 = vmatpush1.bf16.msra.mxu0 0
        %2580 = vmatprep.subr.bf16.mxu0 0
        %2581 = vmatpush1.bf16.msra.mxu0 0
        %2582 = vmatprep.subr.bf16.mxu0 0
        %2583 = vmatpush1.bf16.msra.mxu0 0
        %2584 = vmatprep.subr.bf16.mxu0 0
        %2585 = vmatpush1.bf16.msra.mxu0 0
        %2586 = vmatprep.subr.bf16.mxu0 0
        %2587 = vmatpush1.bf16.msra.mxu0 0
        %2588 = vmatprep.subr.bf16.mxu0 0
        %2589 = vmatpush1.bf16.msra.mxu0 0
        %2590 = vmatprep.subr.bf16.mxu0 0
        %2591 = vmatpush1.bf16.msra.mxu0 0
        %2592 = vmatprep.subr.bf16.mxu0 0
        %2593 = vmatpush1.bf16.msra.mxu0 0
        %2594 = vmatprep.subr.bf16.mxu0 0
        %2595 = vmatpush1.bf16.msra.mxu0 0
        %2596 = vmatprep.subr.bf16.mxu0 0
        %2597 = vmatpush1.bf16.msra.mxu0 0
        %2598 = vmatprep.subr.bf16.mxu0 0
        %2599 = vmatpush1.bf16.msra.mxu0 0
        %2600 = vmatprep.subr.bf16.mxu0 0
        %2601 = vmatpush1.bf16.msra.mxu0 0
        %2602 = vmatprep.mubr.bf16.mxu0 0
        %2603 = vmatmul.mubr.bf16.gmra.mrb[0].mxu0 %v2565
        %v2604 = vpop.f32.mrb[0].mxu0
        %v2605 = vadd.f32 0.0, %v2604
        %v2606 = vpop.f32.mrb[0].mxu0
        %v2607 = vadd.f32 0.0, %v2606
        %v2608 = vpop.f32.mrb[0].mxu0
        %v2609 = vadd.f32 0.0, %v2608
        %v2610 = vpop.f32.mrb[0].mxu0
        %v2611 = vadd.f32 0.0, %v2610
        %2612 = vmatprep.mubr.bf16.mxu0 0
        %2613 = vmatmul.mubr.bf16.gmra.mrb[0].mxu0 %v2568
        %v2614 = vpop.f32.mrb[0].mxu0
        %v2615 = vadd.f32 0.0, %v2614
        %v2616 = vpop.f32.mrb[0].mxu0
        %v2617 = vadd.f32 0.0, %v2616
        %v2618 = vpop.f32.mrb[0].mxu0
        %v2619 = vadd.f32 0.0, %v2618
        %v2620 = vpop.f32.mrb[0].mxu0
        %v2621 = vadd.f32 0.0, %v2620
        %2622 = vdwg.mxu0
        %v2623 = vadd.f32 %v2541, %v2605
        %v2624 = vadd.f32 %v2542, %v2607
        %v2625 = vadd.f32 %v2543, %v2609
        %v2626 = vadd.f32 %v2544, %v2611
        %v2627 = vadd.f32 %v2545, %v2615
        %v2628 = vadd.f32 %v2546, %v2617
        %v2629 = vadd.f32 %v2547, %v2619
        %v2630 = vadd.f32 %v2548, %v2621
        %s2631 = scalar_lea.vmem %s6, 128
        %v2632 = vld [vmem:[%s2631] sm:$0xf]
        %v2633 = vld [vmem:[%s2631 + $0x4] sm:$0xf]
        %v2634 = vld [vmem:[%s2631 + $0x8] sm:$0xf]
        %v2635 = vld [vmem:[%s2631 + $0xc] sm:$0xf]
        %v2640 = vunpack.c.l.b16 %v2632
        %v2641 = vunpack.c.l.b16 %v2633
        %v2642 = vunpack.c.l.b16 %v2634
        %v2643 = vunpack.c.l.b16 %v2635
        %v2644 = vpack.c.b16 %v2641, %v2640
        %v2645 = vpack.c.b16 %v2643, %v2642
        %v2647 = vsel %vm2010, %v2644, 0
        %v2650 = vsel %vm2010, %v2645, 0
        %2652 = vmatprep.subr.bf16.mxu0 %v1990
        %2653 = vmatpush1.bf16.msra.mxu0 %v1989
        %2654 = vmatprep.subr.bf16.mxu0 0
        %2655 = vmatpush1.bf16.msra.mxu0 0
        %2656 = vmatprep.subr.bf16.mxu0 0
        %2657 = vmatpush1.bf16.msra.mxu0 0
        %2658 = vmatprep.subr.bf16.mxu0 0
        %2659 = vmatpush1.bf16.msra.mxu0 0
        %2660 = vmatprep.subr.bf16.mxu0 0
        %2661 = vmatpush1.bf16.msra.mxu0 0
        %2662 = vmatprep.subr.bf16.mxu0 0
        %2663 = vmatpush1.bf16.msra.mxu0 0
        %2664 = vmatprep.subr.bf16.mxu0 0
        %2665 = vmatpush1.bf16.msra.mxu0 0
        %2666 = vmatprep.subr.bf16.mxu0 0
        %2667 = vmatpush1.bf16.msra.mxu0 0
        %2668 = vmatprep.subr.bf16.mxu0 0
        %2669 = vmatpush1.bf16.msra.mxu0 0
        %2670 = vmatprep.subr.bf16.mxu0 0
        %2671 = vmatpush1.bf16.msra.mxu0 0
        %2672 = vmatprep.subr.bf16.mxu0 0
        %2673 = vmatpush1.bf16.msra.mxu0 0
        %2674 = vmatprep.subr.bf16.mxu0 0
        %2675 = vmatpush1.bf16.msra.mxu0 0
        %2676 = vmatprep.subr.bf16.mxu0 0
        %2677 = vmatpush1.bf16.msra.mxu0 0
        %2678 = vmatprep.subr.bf16.mxu0 0
        %2679 = vmatpush1.bf16.msra.mxu0 0
        %2680 = vmatprep.subr.bf16.mxu0 0
        %2681 = vmatpush1.bf16.msra.mxu0 0
        %2682 = vmatprep.subr.bf16.mxu0 0
        %2683 = vmatpush1.bf16.msra.mxu0 0
        %2684 = vmatprep.mubr.bf16.mxu0 0
        %2685 = vmatmul.mubr.bf16.gmra.mrb[0].mxu0 %v2647
        %v2686 = vpop.f32.mrb[0].mxu0
        %v2687 = vadd.f32 0.0, %v2686
        %v2688 = vpop.f32.mrb[0].mxu0
        %v2689 = vadd.f32 0.0, %v2688
        %v2690 = vpop.f32.mrb[0].mxu0
        %v2691 = vadd.f32 0.0, %v2690
        %v2692 = vpop.f32.mrb[0].mxu0
        %v2693 = vadd.f32 0.0, %v2692
        %2694 = vmatprep.mubr.bf16.mxu0 0
        %2695 = vmatmul.mubr.bf16.gmra.mrb[0].mxu0 %v2650
        %v2696 = vpop.f32.mrb[0].mxu0
        %v2697 = vadd.f32 0.0, %v2696
        %v2698 = vpop.f32.mrb[0].mxu0
        %v2699 = vadd.f32 0.0, %v2698
        %v2700 = vpop.f32.mrb[0].mxu0
        %v2701 = vadd.f32 0.0, %v2700
        %v2702 = vpop.f32.mrb[0].mxu0
        %v2703 = vadd.f32 0.0, %v2702
        %2704 = vdwg.mxu0
        %v2705 = vadd.f32 %v2623, %v2687
        %v2706 = vadd.f32 %v2624, %v2689
        %v2707 = vadd.f32 %v2625, %v2691
        %v2708 = vadd.f32 %v2626, %v2693
        %v2709 = vadd.f32 %v2627, %v2697
        %v2710 = vadd.f32 %v2628, %v2699
        %v2711 = vadd.f32 %v2629, %v2701
        %v2712 = vadd.f32 %v2630, %v2703
        %v2713 = vld [vmem:[%s7] sm:$0xff]
        %v2714 = vld [vmem:[%s7 + $0x8] sm:$0xff]
        %v2715 = vld [vmem:[%s7 + $0x10] sm:$0xff]
        %v2716 = vld [vmem:[%s7 + $0x18] sm:$0xff]
        %2718 = vset.pattern.permute.xlu0 0
        %2719 = vperm.xlu0 %2718, %v2713
        %v2720 = vpop.permute.xlu0 %2719
        %2723 = vset.pattern.permute.xlu0 0
        %2724 = vperm.xlu0 %2723, %v2714
        %v2725 = vpop.permute.xlu0 %2724
        %2728 = vset.pattern.permute.xlu0 0
        %2729 = vperm.xlu0 %2728, %v2715
        %v2730 = vpop.permute.xlu0 %2729
        %2733 = vset.pattern.permute.xlu0 0
        %2734 = vperm.xlu0 %2733, %v2716
        %v2735 = vpop.permute.xlu0 %2734
        %v2737 = vadd.f32 %v2705, %v2720
        %v2738 = vadd.f32 %v2706, %v2720
        %v2739 = vadd.f32 %v2707, %v2725
        %v2740 = vadd.f32 %v2708, %v2725
        %v2741 = vadd.f32 %v2709, %v2730
        %v2742 = vadd.f32 %v2710, %v2730
        %v2743 = vadd.f32 %v2711, %v2735
        %v2744 = vadd.f32 %v2712, %v2735
        %v2745 = vmax.f32 %v2737, 0.0
        %v2746 = vmax.f32 %v2738, 0.0
        %v2747 = vmax.f32 %v2739, 0.0
        %v2748 = vmax.f32 %v2740, 0.0
        %v2749 = vmax.f32 %v2741, 0.0
        %v2750 = vmax.f32 %v2742, 0.0
        %v2751 = vmax.f32 %v2743, 0.0
        %v2752 = vmax.f32 %v2744, 0.0
        %v2753 = vld [vmem:[%s8] sm:$0xf]
        %v2754 = vld [vmem:[%s8 + $0x4] sm:$0xf]
        %2755 = vrot.lane.b32.xlu0 %v2745, 17
        %v2756 = vpop.permute.xlu0 %2755
        %2757 = vrot.lane.b32.xlu0 %v2747, 17
        %v2758 = vpop.permute.xlu0 %2757
        %2759 = vrot.lane.b32.xlu0 %v2749, 17
        %v2760 = vpop.permute.xlu0 %2759
        %2761 = vrot.lane.b32.xlu0 %v2751, 17
        %v2762 = vpop.permute.xlu0 %2761
        %2763 = vrot.lane.b32.xlu0 %v2746, 17
        %v2764 = vpop.permute.xlu0 %2763
        %2765 = vrot.lane.b32.xlu0 %v2748, 17
        %v2766 = vpop.permute.xlu0 %2765
        %2767 = vrot.lane.b32.xlu0 %v2750, 17
        %v2768 = vpop.permute.xlu0 %2767
        %2769 = vrot.lane.b32.xlu0 %v2752, 17
        %v2770 = vpop.permute.xlu0 %2769
        %v2771 = vsel %vm534, %v2756, %v2764
        %v2772 = vsel %vm534, %v2758, %v2766
        %v2773 = vsel %vm534, %v2760, %v2768
        %v2774 = vsel %vm534, %v2762, %v2770
        %v2775 = vsel %vm534, %v2764, %v2756
        %v2776 = vsel %vm534, %v2766, %v2758
        %v2777 = vsel %vm534, %v2768, %v2760
        %v2778 = vsel %vm534, %v2770, %v2762
        %v2779 = vmul.f32 %v2775, %v540
        %v2780 = vmul.f32 %v2771, %v544
        %v2781 = vmul.f32 %v2776, %v540
        %v2782 = vmul.f32 %v2772, %v544
        %v2783 = vmul.f32 %v2777, %v540
        %v2784 = vmul.f32 %v2773, %v544
        %v2785 = vmul.f32 %v2778, %v540
        %v2786 = vmul.f32 %v2774, %v544
        %v2787 = vpack.c.bf16 %v2781, %v2779
        %v2788 = vpack.c.bf16 %v2782, %v2780
        %v2789 = vpack.c.bf16 %v2785, %v2783
        %v2790 = vpack.c.bf16 %v2786, %v2784
        %s2791 = scalar_lea.vmem %s8, 8
        %v2792 = vld [vmem:[%s2791] sm:$0xf]
        %v2793 = vld [vmem:[%s2791 + $0x4] sm:$0xf]
        %2794 = vrot.lane.b32.xlu0 %v2745, 16
        %v2795 = vpop.permute.xlu0 %2794
        %2796 = vrot.lane.b32.xlu0 %v2747, 16
        %v2797 = vpop.permute.xlu0 %2796
        %2798 = vrot.lane.b32.xlu0 %v2749, 16
        %v2799 = vpop.permute.xlu0 %2798
        %2800 = vrot.lane.b32.xlu0 %v2751, 16
        %v2801 = vpop.permute.xlu0 %2800
        %2802 = vrot.lane.b32.xlu0 %v2746, 16
        %v2803 = vpop.permute.xlu0 %2802
        %2804 = vrot.lane.b32.xlu0 %v2748, 16
        %v2805 = vpop.permute.xlu0 %2804
        %2806 = vrot.lane.b32.xlu0 %v2750, 16
        %v2807 = vpop.permute.xlu0 %2806
        %2808 = vrot.lane.b32.xlu0 %v2752, 16
        %v2809 = vpop.permute.xlu0 %2808
        %v2810 = vsel %vm555, %v2795, %v2803
        %v2811 = vsel %vm555, %v2797, %v2805
        %v2812 = vsel %vm555, %v2799, %v2807
        %v2813 = vsel %vm555, %v2801, %v2809
        %v2814 = vsel %vm555, %v2803, %v2795
        %v2815 = vsel %vm555, %v2805, %v2797
        %v2816 = vsel %vm555, %v2807, %v2799
        %v2817 = vsel %vm555, %v2809, %v2801
        %v2818 = vmul.f32 %v2814, %v561
        %v2819 = vmul.f32 %v2810, %v565
        %v2820 = vmul.f32 %v2815, %v561
        %v2821 = vmul.f32 %v2811, %v565
        %v2822 = vmul.f32 %v2816, %v561
        %v2823 = vmul.f32 %v2812, %v565
        %v2824 = vmul.f32 %v2817, %v561
        %v2825 = vmul.f32 %v2813, %v565
        %v2826 = vpack.c.bf16 %v2820, %v2818
        %v2827 = vpack.c.bf16 %v2821, %v2819
        %v2828 = vpack.c.bf16 %v2824, %v2822
        %v2829 = vpack.c.bf16 %v2825, %v2823
        %v2832 = vunpack.c.l.b16 %v2792
        %v2833 = vunpack.c.l.b16 %v2793
        %v2834 = vpack.c.b16 %v2833, %v2832
        %vm2835 = vcmask 261120
        %v2837 = vsel %vm2835, %v2834, 0
        %2839 = vmatprep.subr.bf16.mxu0 %v2827
        %2840 = vmatpush1.bf16.msra.mxu0 %v2826
        %2841 = vmatprep.subr.bf16.mxu0 %v2829
        %2842 = vmatpush1.bf16.msra.mxu0 %v2828
        %2843 = vmatprep.subr.bf16.mxu0 0
        %2844 = vmatpush1.bf16.msra.mxu0 0
        %2845 = vmatprep.subr.bf16.mxu0 0
        %2846 = vmatpush1.bf16.msra.mxu0 0
        %2847 = vmatprep.subr.bf16.mxu0 0
        %2848 = vmatpush1.bf16.msra.mxu0 0
        %2849 = vmatprep.subr.bf16.mxu0 0
        %2850 = vmatpush1.bf16.msra.mxu0 0
        %2851 = vmatprep.subr.bf16.mxu0 0
        %2852 = vmatpush1.bf16.msra.mxu0 0
        %2853 = vmatprep.subr.bf16.mxu0 0
        %2854 = vmatpush1.bf16.msra.mxu0 0
        %2855 = vmatprep.subr.bf16.mxu0 0
        %2856 = vmatpush1.bf16.msra.mxu0 0
        %2857 = vmatprep.subr.bf16.mxu0 0
        %2858 = vmatpush1.bf16.msra.mxu0 0
        %2859 = vmatprep.subr.bf16.mxu0 0
        %2860 = vmatpush1.bf16.msra.mxu0 0
        %2861 = vmatprep.subr.bf16.mxu0 0
        %2862 = vmatpush1.bf16.msra.mxu0 0
        %2863 = vmatprep.subr.bf16.mxu0 0
        %2864 = vmatpush1.bf16.msra.mxu0 0
        %2865 = vmatprep.subr.bf16.mxu0 0
        %2866 = vmatpush1.bf16.msra.mxu0 0
        %2867 = vmatprep.subr.bf16.mxu0 0
        %2868 = vmatpush1.bf16.msra.mxu0 0
        %2869 = vmatprep.subr.bf16.mxu0 0
        %2870 = vmatpush1.bf16.msra.mxu0 0
        %2871 = vmatprep.mubr.bf16.mxu0 0
        %2872 = vmatmul.mubr.bf16.gmra.mrb[0].mxu0 %v2837
        %v2873 = vpop.f32.mrb[0].mxu0
        %v2874 = vadd.f32 0.0, %v2873
        %v2875 = vpop.f32.mrb[0].mxu0
        %v2876 = vadd.f32 0.0, %v2875
        %v2877 = vpop.f32.mrb[0].mxu0
        %v2878 = vadd.f32 0.0, %v2877
        %v2879 = vpop.f32.mrb[0].mxu0
        %v2880 = vadd.f32 0.0, %v2879
        %2881 = vdwg.mxu0
        %v2884 = vunpack.c.l.b16 %v2753
        %v2885 = vunpack.c.l.b16 %v2754
        %v2886 = vpack.c.b16 %v2885, %v2884
        %v2888 = vsel %vm2835, %v2886, 0
        %2890 = vmatprep.subr.bf16.mxu0 %v2788
        %2891 = vmatpush1.bf16.msra.mxu0 %v2787
        %2892 = vmatprep.subr.bf16.mxu0 %v2790
        %2893 = vmatpush1.bf16.msra.mxu0 %v2789
        %2894 = vmatprep.subr.bf16.mxu0 0
        %2895 = vmatpush1.bf16.msra.mxu0 0
        %2896 = vmatprep.subr.bf16.mxu0 0
        %2897 = vmatpush1.bf16.msra.mxu0 0
        %2898 = vmatprep.subr.bf16.mxu0 0
        %2899 = vmatpush1.bf16.msra.mxu0 0
        %2900 = vmatprep.subr.bf16.mxu0 0
        %2901 = vmatpush1.bf16.msra.mxu0 0
        %2902 = vmatprep.subr.bf16.mxu0 0
        %2903 = vmatpush1.bf16.msra.mxu0 0
        %2904 = vmatprep.subr.bf16.mxu0 0
        %2905 = vmatpush1.bf16.msra.mxu0 0
        %2906 = vmatprep.subr.bf16.mxu0 0
        %2907 = vmatpush1.bf16.msra.mxu0 0
        %2908 = vmatprep.subr.bf16.mxu0 0
        %2909 = vmatpush1.bf16.msra.mxu0 0
        %2910 = vmatprep.subr.bf16.mxu0 0
        %2911 = vmatpush1.bf16.msra.mxu0 0
        %2912 = vmatprep.subr.bf16.mxu0 0
        %2913 = vmatpush1.bf16.msra.mxu0 0
        %2914 = vmatprep.subr.bf16.mxu0 0
        %2915 = vmatpush1.bf16.msra.mxu0 0
        %2916 = vmatprep.subr.bf16.mxu0 0
        %2917 = vmatpush1.bf16.msra.mxu0 0
        %2918 = vmatprep.subr.bf16.mxu0 0
        %2919 = vmatpush1.bf16.msra.mxu0 0
        %2920 = vmatprep.subr.bf16.mxu0 0
        %2921 = vmatpush1.bf16.msra.mxu0 0
        %2922 = vmatprep.mubr.bf16.mxu0 0
        %2923 = vmatmul.mubr.bf16.gmra.mrb[0].mxu0 %v2888
        %v2924 = vpop.f32.mrb[0].mxu0
        %v2925 = vadd.f32 %v2874, %v2924
        %v2926 = vpop.f32.mrb[0].mxu0
        %v2927 = vadd.f32 %v2876, %v2926
        %v2928 = vpop.f32.mrb[0].mxu0
        %v2929 = vadd.f32 %v2878, %v2928
        %v2930 = vpop.f32.mrb[0].mxu0
        %v2931 = vadd.f32 %v2880, %v2930
        %2932 = vdwg.mxu0
        %s2933 = scalar_lea.vmem %s8, 16
        %v2934 = vld [vmem:[%s2933] sm:$0xf]
        %v2935 = vld [vmem:[%s2933 + $0x4] sm:$0xf]
        %2936 = vrot.lane.b32.xlu0 %v2745, 15
        %v2937 = vpop.permute.xlu0 %2936
        %2938 = vrot.lane.b32.xlu0 %v2747, 15
        %v2939 = vpop.permute.xlu0 %2938
        %2940 = vrot.lane.b32.xlu0 %v2749, 15
        %v2941 = vpop.permute.xlu0 %2940
        %2942 = vrot.lane.b32.xlu0 %v2751, 15
        %v2943 = vpop.permute.xlu0 %2942
        %2944 = vrot.lane.b32.xlu0 %v2746, 15
        %v2945 = vpop.permute.xlu0 %2944
        %2946 = vrot.lane.b32.xlu0 %v2748, 15
        %v2947 = vpop.permute.xlu0 %2946
        %2948 = vrot.lane.b32.xlu0 %v2750, 15
        %v2949 = vpop.permute.xlu0 %2948
        %2950 = vrot.lane.b32.xlu0 %v2752, 15
        %v2951 = vpop.permute.xlu0 %2950
        %v2952 = vsel %vm678, %v2937, %v2945
        %v2953 = vsel %vm678, %v2939, %v2947
        %v2954 = vsel %vm678, %v2941, %v2949
        %v2955 = vsel %vm678, %v2943, %v2951
        %v2956 = vsel %vm678, %v2945, %v2937
        %v2957 = vsel %vm678, %v2947, %v2939
        %v2958 = vsel %vm678, %v2949, %v2941
        %v2959 = vsel %vm678, %v2951, %v2943
        %v2960 = vmul.f32 %v2956, %v684
        %v2961 = vmul.f32 %v2952, %v688
        %v2962 = vmul.f32 %v2957, %v684
        %v2963 = vmul.f32 %v2953, %v688
        %v2964 = vmul.f32 %v2958, %v684
        %v2965 = vmul.f32 %v2954, %v688
        %v2966 = vmul.f32 %v2959, %v684
        %v2967 = vmul.f32 %v2955, %v688
        %v2968 = vpack.c.bf16 %v2962, %v2960
        %v2969 = vpack.c.bf16 %v2963, %v2961
        %v2970 = vpack.c.bf16 %v2966, %v2964
        %v2971 = vpack.c.bf16 %v2967, %v2965
        %v2974 = vunpack.c.l.b16 %v2934
        %v2975 = vunpack.c.l.b16 %v2935
        %v2976 = vpack.c.b16 %v2975, %v2974
        %v2978 = vsel %vm2835, %v2976, 0
        %2980 = vmatprep.subr.bf16.mxu0 %v2969
        %2981 = vmatpush1.bf16.msra.mxu0 %v2968
        %2982 = vmatprep.subr.bf16.mxu0 %v2971
        %2983 = vmatpush1.bf16.msra.mxu0 %v2970
        %2984 = vmatprep.subr.bf16.mxu0 0
        %2985 = vmatpush1.bf16.msra.mxu0 0
        %2986 = vmatprep.subr.bf16.mxu0 0
        %2987 = vmatpush1.bf16.msra.mxu0 0
        %2988 = vmatprep.subr.bf16.mxu0 0
        %2989 = vmatpush1.bf16.msra.mxu0 0
        %2990 = vmatprep.subr.bf16.mxu0 0
        %2991 = vmatpush1.bf16.msra.mxu0 0
        %2992 = vmatprep.subr.bf16.mxu0 0
        %2993 = vmatpush1.bf16.msra.mxu0 0
        %2994 = vmatprep.subr.bf16.mxu0 0
        %2995 = vmatpush1.bf16.msra.mxu0 0
        %2996 = vmatprep.subr.bf16.mxu0 0
        %2997 = vmatpush1.bf16.msra.mxu0 0
        %2998 = vmatprep.subr.bf16.mxu0 0
        %2999 = vmatpush1.bf16.msra.mxu0 0
        %3000 = vmatprep.subr.bf16.mxu0 0
        %3001 = vmatpush1.bf16.msra.mxu0 0
        %3002 = vmatprep.subr.bf16.mxu0 0
        %3003 = vmatpush1.bf16.msra.mxu0 0
        %3004 = vmatprep.subr.bf16.mxu0 0
        %3005 = vmatpush1.bf16.msra.mxu0 0
        %3006 = vmatprep.subr.bf16.mxu0 0
        %3007 = vmatpush1.bf16.msra.mxu0 0
        %3008 = vmatprep.subr.bf16.mxu0 0
        %3009 = vmatpush1.bf16.msra.mxu0 0
        %3010 = vmatprep.subr.bf16.mxu0 0
        %3011 = vmatpush1.bf16.msra.mxu0 0
        %3012 = vmatprep.mubr.bf16.mxu0 0
        %3013 = vmatmul.mubr.bf16.gmra.mrb[0].mxu0 %v2978
        %v3014 = vpop.f32.mrb[0].mxu0
        %v3015 = vadd.f32 0.0, %v3014
        %v3016 = vpop.f32.mrb[0].mxu0
        %v3017 = vadd.f32 0.0, %v3016
        %v3018 = vpop.f32.mrb[0].mxu0
        %v3019 = vadd.f32 0.0, %v3018
        %v3020 = vpop.f32.mrb[0].mxu0
        %v3021 = vadd.f32 0.0, %v3020
        %3022 = vdwg.mxu0
        %v3023 = vadd.f32 %v2925, %v3015
        %v3024 = vadd.f32 %v2927, %v3017
        %v3025 = vadd.f32 %v2929, %v3019
        %v3026 = vadd.f32 %v2931, %v3021
        %s3027 = scalar_lea.vmem %s8, 24
        %v3028 = vld [vmem:[%s3027] sm:$0xf]
        %v3029 = vld [vmem:[%s3027 + $0x4] sm:$0xf]
        %3030 = vrot.lane.b32.xlu0 %v2745, 1
        %v3031 = vpop.permute.xlu0 %3030
        %3032 = vrot.lane.b32.xlu0 %v2747, 1
        %v3033 = vpop.permute.xlu0 %3032
        %3034 = vrot.lane.b32.xlu0 %v2749, 1
        %v3035 = vpop.permute.xlu0 %3034
        %3036 = vrot.lane.b32.xlu0 %v2751, 1
        %v3037 = vpop.permute.xlu0 %3036
        %3038 = vrot.lane.b32.xlu0 %v2746, 1
        %v3039 = vpop.permute.xlu0 %3038
        %3040 = vrot.lane.b32.xlu0 %v2748, 1
        %v3041 = vpop.permute.xlu0 %3040
        %3042 = vrot.lane.b32.xlu0 %v2750, 1
        %v3043 = vpop.permute.xlu0 %3042
        %3044 = vrot.lane.b32.xlu0 %v2752, 1
        %v3045 = vpop.permute.xlu0 %3044
        %v3046 = vsel %vm751, %v3031, %v3039
        %v3047 = vsel %vm751, %v3033, %v3041
        %v3048 = vsel %vm751, %v3035, %v3043
        %v3049 = vsel %vm751, %v3037, %v3045
        %v3050 = vsel %vm751, %v3039, %v3031
        %v3051 = vsel %vm751, %v3041, %v3033
        %v3052 = vsel %vm751, %v3043, %v3035
        %v3053 = vsel %vm751, %v3045, %v3037
        %v3054 = vmul.f32 %v3050, %v757
        %v3055 = vmul.f32 %v3046, %v761
        %v3056 = vmul.f32 %v3051, %v757
        %v3057 = vmul.f32 %v3047, %v761
        %v3058 = vmul.f32 %v3052, %v757
        %v3059 = vmul.f32 %v3048, %v761
        %v3060 = vmul.f32 %v3053, %v757
        %v3061 = vmul.f32 %v3049, %v761
        %v3062 = vpack.c.bf16 %v3056, %v3054
        %v3063 = vpack.c.bf16 %v3057, %v3055
        %v3064 = vpack.c.bf16 %v3060, %v3058
        %v3065 = vpack.c.bf16 %v3061, %v3059
        %v3068 = vunpack.c.l.b16 %v3028
        %v3069 = vunpack.c.l.b16 %v3029
        %v3070 = vpack.c.b16 %v3069, %v3068
        %v3072 = vsel %vm2835, %v3070, 0
        %3074 = vmatprep.subr.bf16.mxu0 %v3063
        %3075 = vmatpush1.bf16.msra.mxu0 %v3062
        %3076 = vmatprep.subr.bf16.mxu0 %v3065
        %3077 = vmatpush1.bf16.msra.mxu0 %v3064
        %3078 = vmatprep.subr.bf16.mxu0 0
        %3079 = vmatpush1.bf16.msra.mxu0 0
        %3080 = vmatprep.subr.bf16.mxu0 0
        %3081 = vmatpush1.bf16.msra.mxu0 0
        %3082 = vmatprep.subr.bf16.mxu0 0
        %3083 = vmatpush1.bf16.msra.mxu0 0
        %3084 = vmatprep.subr.bf16.mxu0 0
        %3085 = vmatpush1.bf16.msra.mxu0 0
        %3086 = vmatprep.subr.bf16.mxu0 0
        %3087 = vmatpush1.bf16.msra.mxu0 0
        %3088 = vmatprep.subr.bf16.mxu0 0
        %3089 = vmatpush1.bf16.msra.mxu0 0
        %3090 = vmatprep.subr.bf16.mxu0 0
        %3091 = vmatpush1.bf16.msra.mxu0 0
        %3092 = vmatprep.subr.bf16.mxu0 0
        %3093 = vmatpush1.bf16.msra.mxu0 0
        %3094 = vmatprep.subr.bf16.mxu0 0
        %3095 = vmatpush1.bf16.msra.mxu0 0
        %3096 = vmatprep.subr.bf16.mxu0 0
        %3097 = vmatpush1.bf16.msra.mxu0 0
        %3098 = vmatprep.subr.bf16.mxu0 0
        %3099 = vmatpush1.bf16.msra.mxu0 0
        %3100 = vmatprep.subr.bf16.mxu0 0
        %3101 = vmatpush1.bf16.msra.mxu0 0
        %3102 = vmatprep.subr.bf16.mxu0 0
        %3103 = vmatpush1.bf16.msra.mxu0 0
        %3104 = vmatprep.subr.bf16.mxu0 0
        %3105 = vmatpush1.bf16.msra.mxu0 0
        %3106 = vmatprep.mubr.bf16.mxu0 0
        %3107 = vmatmul.mubr.bf16.gmra.mrb[0].mxu0 %v3072
        %v3108 = vpop.f32.mrb[0].mxu0
        %v3109 = vadd.f32 0.0, %v3108
        %v3110 = vpop.f32.mrb[0].mxu0
        %v3111 = vadd.f32 0.0, %v3110
        %v3112 = vpop.f32.mrb[0].mxu0
        %v3113 = vadd.f32 0.0, %v3112
        %v3114 = vpop.f32.mrb[0].mxu0
        %v3115 = vadd.f32 0.0, %v3114
        %3116 = vdwg.mxu0
        %v3117 = vadd.f32 %v3023, %v3109
        %v3118 = vadd.f32 %v3024, %v3111
        %v3119 = vadd.f32 %v3025, %v3113
        %v3120 = vadd.f32 %v3026, %v3115
        %s3121 = scalar_lea.vmem %s8, 32
        %v3122 = vld [vmem:[%s3121] sm:$0xf]
        %v3123 = vld [vmem:[%s3121 + $0x4] sm:$0xf]
        %v3124 = vpack.c.bf16 %v2747, %v2745
        %v3125 = vpack.c.bf16 %v2748, %v2746
        %v3126 = vpack.c.bf16 %v2751, %v2749
        %v3127 = vpack.c.bf16 %v2752, %v2750
        %v3130 = vunpack.c.l.b16 %v3122
        %v3131 = vunpack.c.l.b16 %v3123
        %v3132 = vpack.c.b16 %v3131, %v3130
        %v3134 = vsel %vm2835, %v3132, 0
        %3136 = vmatprep.subr.bf16.mxu0 %v3125
        %3137 = vmatpush1.bf16.msra.mxu0 %v3124
        %3138 = vmatprep.subr.bf16.mxu0 %v3127
        %3139 = vmatpush1.bf16.msra.mxu0 %v3126
        %3140 = vmatprep.subr.bf16.mxu0 0
        %3141 = vmatpush1.bf16.msra.mxu0 0
        %3142 = vmatprep.subr.bf16.mxu0 0
        %3143 = vmatpush1.bf16.msra.mxu0 0
        %3144 = vmatprep.subr.bf16.mxu0 0
        %3145 = vmatpush1.bf16.msra.mxu0 0
        %3146 = vmatprep.subr.bf16.mxu0 0
        %3147 = vmatpush1.bf16.msra.mxu0 0
        %3148 = vmatprep.subr.bf16.mxu0 0
        %3149 = vmatpush1.bf16.msra.mxu0 0
        %3150 = vmatprep.subr.bf16.mxu0 0
        %3151 = vmatpush1.bf16.msra.mxu0 0
        %3152 = vmatprep.subr.bf16.mxu0 0
        %3153 = vmatpush1.bf16.msra.mxu0 0
        %3154 = vmatprep.subr.bf16.mxu0 0
        %3155 = vmatpush1.bf16.msra.mxu0 0
        %3156 = vmatprep.subr.bf16.mxu0 0
        %3157 = vmatpush1.bf16.msra.mxu0 0
        %3158 = vmatprep.subr.bf16.mxu0 0
        %3159 = vmatpush1.bf16.msra.mxu0 0
        %3160 = vmatprep.subr.bf16.mxu0 0
        %3161 = vmatpush1.bf16.msra.mxu0 0
        %3162 = vmatprep.subr.bf16.mxu0 0
        %3163 = vmatpush1.bf16.msra.mxu0 0
        %3164 = vmatprep.subr.bf16.mxu0 0
        %3165 = vmatpush1.bf16.msra.mxu0 0
        %3166 = vmatprep.subr.bf16.mxu0 0
        %3167 = vmatpush1.bf16.msra.mxu0 0
        %3168 = vmatprep.mubr.bf16.mxu0 0
        %3169 = vmatmul.mubr.bf16.gmra.mrb[0].mxu0 %v3134
        %v3170 = vpop.f32.mrb[0].mxu0
        %v3171 = vadd.f32 0.0, %v3170
        %v3172 = vpop.f32.mrb[0].mxu0
        %v3173 = vadd.f32 0.0, %v3172
        %v3174 = vpop.f32.mrb[0].mxu0
        %v3175 = vadd.f32 0.0, %v3174
        %v3176 = vpop.f32.mrb[0].mxu0
        %v3177 = vadd.f32 0.0, %v3176
        %3178 = vdwg.mxu0
        %v3179 = vadd.f32 %v3117, %v3171
        %v3180 = vadd.f32 %v3118, %v3173
        %v3181 = vadd.f32 %v3119, %v3175
        %v3182 = vadd.f32 %v3120, %v3177
        %s3183 = scalar_lea.vmem %s8, 40
        %v3184 = vld [vmem:[%s3183] sm:$0xf]
        %v3185 = vld [vmem:[%s3183 + $0x4] sm:$0xf]
        %3186 = vrot.lane.b32.xlu0 %v2745, 127
        %v3187 = vpop.permute.xlu0 %3186
        %3188 = vrot.lane.b32.xlu0 %v2747, 127
        %v3189 = vpop.permute.xlu0 %3188
        %3190 = vrot.lane.b32.xlu0 %v2749, 127
        %v3191 = vpop.permute.xlu0 %3190
        %3192 = vrot.lane.b32.xlu0 %v2751, 127
        %v3193 = vpop.permute.xlu0 %3192
        %3194 = vrot.lane.b32.xlu0 %v2746, 127
        %v3195 = vpop.permute.xlu0 %3194
        %3196 = vrot.lane.b32.xlu0 %v2748, 127
        %v3197 = vpop.permute.xlu0 %3196
        %3198 = vrot.lane.b32.xlu0 %v2750, 127
        %v3199 = vpop.permute.xlu0 %3198
        %3200 = vrot.lane.b32.xlu0 %v2752, 127
        %v3201 = vpop.permute.xlu0 %3200
        %v3202 = vsel %vm880, %v3187, %v3195
        %v3203 = vsel %vm880, %v3189, %v3197
        %v3204 = vsel %vm880, %v3191, %v3199
        %v3205 = vsel %vm880, %v3193, %v3201
        %v3206 = vsel %vm880, %v3195, %v3187
        %v3207 = vsel %vm880, %v3197, %v3189
        %v3208 = vsel %vm880, %v3199, %v3191
        %v3209 = vsel %vm880, %v3201, %v3193
        %v3210 = vmul.f32 %v3202, %v886
        %v3211 = vmul.f32 %v3206, %v890
        %v3212 = vmul.f32 %v3203, %v886
        %v3213 = vmul.f32 %v3207, %v890
        %v3214 = vmul.f32 %v3204, %v886
        %v3215 = vmul.f32 %v3208, %v890
        %v3216 = vmul.f32 %v3205, %v886
        %v3217 = vmul.f32 %v3209, %v890
        %v3218 = vpack.c.bf16 %v3212, %v3210
        %v3219 = vpack.c.bf16 %v3213, %v3211
        %v3220 = vpack.c.bf16 %v3216, %v3214
        %v3221 = vpack.c.bf16 %v3217, %v3215
        %v3224 = vunpack.c.l.b16 %v3184
        %v3225 = vunpack.c.l.b16 %v3185
        %v3226 = vpack.c.b16 %v3225, %v3224
        %v3228 = vsel %vm2835, %v3226, 0
        %3230 = vmatprep.subr.bf16.mxu0 %v3219
        %3231 = vmatpush1.bf16.msra.mxu0 %v3218
        %3232 = vmatprep.subr.bf16.mxu0 %v3221
        %3233 = vmatpush1.bf16.msra.mxu0 %v3220
        %3234 = vmatprep.subr.bf16.mxu0 0
        %3235 = vmatpush1.bf16.msra.mxu0 0
        %3236 = vmatprep.subr.bf16.mxu0 0
        %3237 = vmatpush1.bf16.msra.mxu0 0
        %3238 = vmatprep.subr.bf16.mxu0 0
        %3239 = vmatpush1.bf16.msra.mxu0 0
        %3240 = vmatprep.subr.bf16.mxu0 0
        %3241 = vmatpush1.bf16.msra.mxu0 0
        %3242 = vmatprep.subr.bf16.mxu0 0
        %3243 = vmatpush1.bf16.msra.mxu0 0
        %3244 = vmatprep.subr.bf16.mxu0 0
        %3245 = vmatpush1.bf16.msra.mxu0 0
        %3246 = vmatprep.subr.bf16.mxu0 0
        %3247 = vmatpush1.bf16.msra.mxu0 0
        %3248 = vmatprep.subr.bf16.mxu0 0
        %3249 = vmatpush1.bf16.msra.mxu0 0
        %3250 = vmatprep.subr.bf16.mxu0 0
        %3251 = vmatpush1.bf16.msra.mxu0 0
        %3252 = vmatprep.subr.bf16.mxu0 0
        %3253 = vmatpush1.bf16.msra.mxu0 0
        %3254 = vmatprep.subr.bf16.mxu0 0
        %3255 = vmatpush1.bf16.msra.mxu0 0
        %3256 = vmatprep.subr.bf16.mxu0 0
        %3257 = vmatpush1.bf16.msra.mxu0 0
        %3258 = vmatprep.subr.bf16.mxu0 0
        %3259 = vmatpush1.bf16.msra.mxu0 0
        %3260 = vmatprep.subr.bf16.mxu0 0
        %3261 = vmatpush1.bf16.msra.mxu0 0
        %3262 = vmatprep.mubr.bf16.mxu0 0
        %3263 = vmatmul.mubr.bf16.gmra.mrb[0].mxu0 %v3228
        %v3264 = vpop.f32.mrb[0].mxu0
        %v3265 = vadd.f32 0.0, %v3264
        %v3266 = vpop.f32.mrb[0].mxu0
        %v3267 = vadd.f32 0.0, %v3266
        %v3268 = vpop.f32.mrb[0].mxu0
        %v3269 = vadd.f32 0.0, %v3268
        %v3270 = vpop.f32.mrb[0].mxu0
        %v3271 = vadd.f32 0.0, %v3270
        %3272 = vdwg.mxu0
        %v3273 = vadd.f32 %v3179, %v3265
        %v3274 = vadd.f32 %v3180, %v3267
        %v3275 = vadd.f32 %v3181, %v3269
        %v3276 = vadd.f32 %v3182, %v3271
        %s3277 = scalar_lea.vmem %s8, 48
        %v3278 = vld [vmem:[%s3277] sm:$0xf]
        %v3279 = vld [vmem:[%s3277 + $0x4] sm:$0xf]
        %3280 = vrot.lane.b32.xlu0 %v2745, 113
        %v3281 = vpop.permute.xlu0 %3280
        %3282 = vrot.lane.b32.xlu0 %v2747, 113
        %v3283 = vpop.permute.xlu0 %3282
        %3284 = vrot.lane.b32.xlu0 %v2749, 113
        %v3285 = vpop.permute.xlu0 %3284
        %3286 = vrot.lane.b32.xlu0 %v2751, 113
        %v3287 = vpop.permute.xlu0 %3286
        %3288 = vrot.lane.b32.xlu0 %v2746, 113
        %v3289 = vpop.permute.xlu0 %3288
        %3290 = vrot.lane.b32.xlu0 %v2748, 113
        %v3291 = vpop.permute.xlu0 %3290
        %3292 = vrot.lane.b32.xlu0 %v2750, 113
        %v3293 = vpop.permute.xlu0 %3292
        %3294 = vrot.lane.b32.xlu0 %v2752, 113
        %v3295 = vpop.permute.xlu0 %3294
        %v3296 = vsel %vm953, %v3281, %v3289
        %v3297 = vsel %vm953, %v3283, %v3291
        %v3298 = vsel %vm953, %v3285, %v3293
        %v3299 = vsel %vm953, %v3287, %v3295
        %v3300 = vsel %vm953, %v3289, %v3281
        %v3301 = vsel %vm953, %v3291, %v3283
        %v3302 = vsel %vm953, %v3293, %v3285
        %v3303 = vsel %vm953, %v3295, %v3287
        %v3304 = vmul.f32 %v3296, %v959
        %v3305 = vmul.f32 %v3300, %v963
        %v3306 = vmul.f32 %v3297, %v959
        %v3307 = vmul.f32 %v3301, %v963
        %v3308 = vmul.f32 %v3298, %v959
        %v3309 = vmul.f32 %v3302, %v963
        %v3310 = vmul.f32 %v3299, %v959
        %v3311 = vmul.f32 %v3303, %v963
        %v3312 = vpack.c.bf16 %v3306, %v3304
        %v3313 = vpack.c.bf16 %v3307, %v3305
        %v3314 = vpack.c.bf16 %v3310, %v3308
        %v3315 = vpack.c.bf16 %v3311, %v3309
        %v3318 = vunpack.c.l.b16 %v3278
        %v3319 = vunpack.c.l.b16 %v3279
        %v3320 = vpack.c.b16 %v3319, %v3318
        %v3322 = vsel %vm2835, %v3320, 0
        %3324 = vmatprep.subr.bf16.mxu0 %v3313
        %3325 = vmatpush1.bf16.msra.mxu0 %v3312
        %3326 = vmatprep.subr.bf16.mxu0 %v3315
        %3327 = vmatpush1.bf16.msra.mxu0 %v3314
        %3328 = vmatprep.subr.bf16.mxu0 0
        %3329 = vmatpush1.bf16.msra.mxu0 0
        %3330 = vmatprep.subr.bf16.mxu0 0
        %3331 = vmatpush1.bf16.msra.mxu0 0
        %3332 = vmatprep.subr.bf16.mxu0 0
        %3333 = vmatpush1.bf16.msra.mxu0 0
        %3334 = vmatprep.subr.bf16.mxu0 0
        %3335 = vmatpush1.bf16.msra.mxu0 0
        %3336 = vmatprep.subr.bf16.mxu0 0
        %3337 = vmatpush1.bf16.msra.mxu0 0
        %3338 = vmatprep.subr.bf16.mxu0 0
        %3339 = vmatpush1.bf16.msra.mxu0 0
        %3340 = vmatprep.subr.bf16.mxu0 0
        %3341 = vmatpush1.bf16.msra.mxu0 0
        %3342 = vmatprep.subr.bf16.mxu0 0
        %3343 = vmatpush1.bf16.msra.mxu0 0
        %3344 = vmatprep.subr.bf16.mxu0 0
        %3345 = vmatpush1.bf16.msra.mxu0 0
        %3346 = vmatprep.subr.bf16.mxu0 0
        %3347 = vmatpush1.bf16.msra.mxu0 0
        %3348 = vmatprep.subr.bf16.mxu0 0
        %3349 = vmatpush1.bf16.msra.mxu0 0
        %3350 = vmatprep.subr.bf16.mxu0 0
        %3351 = vmatpush1.bf16.msra.mxu0 0
        %3352 = vmatprep.subr.bf16.mxu0 0
        %3353 = vmatpush1.bf16.msra.mxu0 0
        %3354 = vmatprep.subr.bf16.mxu0 0
        %3355 = vmatpush1.bf16.msra.mxu0 0
        %3356 = vmatprep.mubr.bf16.mxu0 0
        %3357 = vmatmul.mubr.bf16.gmra.mrb[0].mxu0 %v3322
        %v3358 = vpop.f32.mrb[0].mxu0
        %v3359 = vadd.f32 0.0, %v3358
        %v3360 = vpop.f32.mrb[0].mxu0
        %v3361 = vadd.f32 0.0, %v3360
        %v3362 = vpop.f32.mrb[0].mxu0
        %v3363 = vadd.f32 0.0, %v3362
        %v3364 = vpop.f32.mrb[0].mxu0
        %v3365 = vadd.f32 0.0, %v3364
        %3366 = vdwg.mxu0
        %v3367 = vadd.f32 %v3273, %v3359
        %v3368 = vadd.f32 %v3274, %v3361
        %v3369 = vadd.f32 %v3275, %v3363
        %v3370 = vadd.f32 %v3276, %v3365
        %s3371 = scalar_lea.vmem %s8, 56
        %v3372 = vld [vmem:[%s3371] sm:$0xf]
        %v3373 = vld [vmem:[%s3371 + $0x4] sm:$0xf]
        %3374 = vrot.lane.b32.xlu0 %v2745, 112
        %v3375 = vpop.permute.xlu0 %3374
        %3376 = vrot.lane.b32.xlu0 %v2747, 112
        %v3377 = vpop.permute.xlu0 %3376
        %3378 = vrot.lane.b32.xlu0 %v2749, 112
        %v3379 = vpop.permute.xlu0 %3378
        %3380 = vrot.lane.b32.xlu0 %v2751, 112
        %v3381 = vpop.permute.xlu0 %3380
        %3382 = vrot.lane.b32.xlu0 %v2746, 112
        %v3383 = vpop.permute.xlu0 %3382
        %3384 = vrot.lane.b32.xlu0 %v2748, 112
        %v3385 = vpop.permute.xlu0 %3384
        %3386 = vrot.lane.b32.xlu0 %v2750, 112
        %v3387 = vpop.permute.xlu0 %3386
        %3388 = vrot.lane.b32.xlu0 %v2752, 112
        %v3389 = vpop.permute.xlu0 %3388
        %v3390 = vsel %vm1026, %v3375, %v3383
        %v3391 = vsel %vm1026, %v3377, %v3385
        %v3392 = vsel %vm1026, %v3379, %v3387
        %v3393 = vsel %vm1026, %v3381, %v3389
        %v3394 = vsel %vm1026, %v3383, %v3375
        %v3395 = vsel %vm1026, %v3385, %v3377
        %v3396 = vsel %vm1026, %v3387, %v3379
        %v3397 = vsel %vm1026, %v3389, %v3381
        %v3398 = vmul.f32 %v3390, %v1032
        %v3399 = vmul.f32 %v3394, %v1036
        %v3400 = vmul.f32 %v3391, %v1032
        %v3401 = vmul.f32 %v3395, %v1036
        %v3402 = vmul.f32 %v3392, %v1032
        %v3403 = vmul.f32 %v3396, %v1036
        %v3404 = vmul.f32 %v3393, %v1032
        %v3405 = vmul.f32 %v3397, %v1036
        %v3406 = vpack.c.bf16 %v3400, %v3398
        %v3407 = vpack.c.bf16 %v3401, %v3399
        %v3408 = vpack.c.bf16 %v3404, %v3402
        %v3409 = vpack.c.bf16 %v3405, %v3403
        %v3412 = vunpack.c.l.b16 %v3372
        %v3413 = vunpack.c.l.b16 %v3373
        %v3414 = vpack.c.b16 %v3413, %v3412
        %v3416 = vsel %vm2835, %v3414, 0
        %3418 = vmatprep.subr.bf16.mxu0 %v3407
        %3419 = vmatpush1.bf16.msra.mxu0 %v3406
        %3420 = vmatprep.subr.bf16.mxu0 %v3409
        %3421 = vmatpush1.bf16.msra.mxu0 %v3408
        %3422 = vmatprep.subr.bf16.mxu0 0
        %3423 = vmatpush1.bf16.msra.mxu0 0
        %3424 = vmatprep.subr.bf16.mxu0 0
        %3425 = vmatpush1.bf16.msra.mxu0 0
        %3426 = vmatprep.subr.bf16.mxu0 0
        %3427 = vmatpush1.bf16.msra.mxu0 0
        %3428 = vmatprep.subr.bf16.mxu0 0
        %3429 = vmatpush1.bf16.msra.mxu0 0
        %3430 = vmatprep.subr.bf16.mxu0 0
        %3431 = vmatpush1.bf16.msra.mxu0 0
        %3432 = vmatprep.subr.bf16.mxu0 0
        %3433 = vmatpush1.bf16.msra.mxu0 0
        %3434 = vmatprep.subr.bf16.mxu0 0
        %3435 = vmatpush1.bf16.msra.mxu0 0
        %3436 = vmatprep.subr.bf16.mxu0 0
        %3437 = vmatpush1.bf16.msra.mxu0 0
        %3438 = vmatprep.subr.bf16.mxu0 0
        %3439 = vmatpush1.bf16.msra.mxu0 0
        %3440 = vmatprep.subr.bf16.mxu0 0
        %3441 = vmatpush1.bf16.msra.mxu0 0
        %3442 = vmatprep.subr.bf16.mxu0 0
        %3443 = vmatpush1.bf16.msra.mxu0 0
        %3444 = vmatprep.subr.bf16.mxu0 0
        %3445 = vmatpush1.bf16.msra.mxu0 0
        %3446 = vmatprep.subr.bf16.mxu0 0
        %3447 = vmatpush1.bf16.msra.mxu0 0
        %3448 = vmatprep.subr.bf16.mxu0 0
        %3449 = vmatpush1.bf16.msra.mxu0 0
        %3450 = vmatprep.mubr.bf16.mxu0 0
        %3451 = vmatmul.mubr.bf16.gmra.mrb[0].mxu0 %v3416
        %v3452 = vpop.f32.mrb[0].mxu0
        %v3453 = vadd.f32 0.0, %v3452
        %v3454 = vpop.f32.mrb[0].mxu0
        %v3455 = vadd.f32 0.0, %v3454
        %v3456 = vpop.f32.mrb[0].mxu0
        %v3457 = vadd.f32 0.0, %v3456
        %v3458 = vpop.f32.mrb[0].mxu0
        %v3459 = vadd.f32 0.0, %v3458
        %3460 = vdwg.mxu0
        %v3461 = vadd.f32 %v3367, %v3453
        %v3462 = vadd.f32 %v3368, %v3455
        %v3463 = vadd.f32 %v3369, %v3457
        %v3464 = vadd.f32 %v3370, %v3459
        %s3465 = scalar_lea.vmem %s8, 64
        %v3466 = vld [vmem:[%s3465] sm:$0xf]
        %v3467 = vld [vmem:[%s3465 + $0x4] sm:$0xf]
        %3468 = vrot.lane.b32.xlu0 %v2745, 111
        %v3469 = vpop.permute.xlu0 %3468
        %3470 = vrot.lane.b32.xlu0 %v2747, 111
        %v3471 = vpop.permute.xlu0 %3470
        %3472 = vrot.lane.b32.xlu0 %v2749, 111
        %v3473 = vpop.permute.xlu0 %3472
        %3474 = vrot.lane.b32.xlu0 %v2751, 111
        %v3475 = vpop.permute.xlu0 %3474
        %3476 = vrot.lane.b32.xlu0 %v2746, 111
        %v3477 = vpop.permute.xlu0 %3476
        %3478 = vrot.lane.b32.xlu0 %v2748, 111
        %v3479 = vpop.permute.xlu0 %3478
        %3480 = vrot.lane.b32.xlu0 %v2750, 111
        %v3481 = vpop.permute.xlu0 %3480
        %3482 = vrot.lane.b32.xlu0 %v2752, 111
        %v3483 = vpop.permute.xlu0 %3482
        %v3484 = vsel %vm1099, %v3469, %v3477
        %v3485 = vsel %vm1099, %v3471, %v3479
        %v3486 = vsel %vm1099, %v3473, %v3481
        %v3487 = vsel %vm1099, %v3475, %v3483
        %v3488 = vsel %vm1099, %v3477, %v3469
        %v3489 = vsel %vm1099, %v3479, %v3471
        %v3490 = vsel %vm1099, %v3481, %v3473
        %v3491 = vsel %vm1099, %v3483, %v3475
        %v3492 = vmul.f32 %v3484, %v1105
        %v3493 = vmul.f32 %v3488, %v1109
        %v3494 = vmul.f32 %v3485, %v1105
        %v3495 = vmul.f32 %v3489, %v1109
        %v3496 = vmul.f32 %v3486, %v1105
        %v3497 = vmul.f32 %v3490, %v1109
        %v3498 = vmul.f32 %v3487, %v1105
        %v3499 = vmul.f32 %v3491, %v1109
        %v3500 = vpack.c.bf16 %v3494, %v3492
        %v3501 = vpack.c.bf16 %v3495, %v3493
        %v3502 = vpack.c.bf16 %v3498, %v3496
        %v3503 = vpack.c.bf16 %v3499, %v3497
        %v3506 = vunpack.c.l.b16 %v3466
        %v3507 = vunpack.c.l.b16 %v3467
        %v3508 = vpack.c.b16 %v3507, %v3506
        %v3510 = vsel %vm2835, %v3508, 0
        %3512 = vmatprep.subr.bf16.mxu0 %v3501
        %3513 = vmatpush1.bf16.msra.mxu0 %v3500
        %3514 = vmatprep.subr.bf16.mxu0 %v3503
        %3515 = vmatpush1.bf16.msra.mxu0 %v3502
        %3516 = vmatprep.subr.bf16.mxu0 0
        %3517 = vmatpush1.bf16.msra.mxu0 0
        %3518 = vmatprep.subr.bf16.mxu0 0
        %3519 = vmatpush1.bf16.msra.mxu0 0
        %3520 = vmatprep.subr.bf16.mxu0 0
        %3521 = vmatpush1.bf16.msra.mxu0 0
        %3522 = vmatprep.subr.bf16.mxu0 0
        %3523 = vmatpush1.bf16.msra.mxu0 0
        %3524 = vmatprep.subr.bf16.mxu0 0
        %3525 = vmatpush1.bf16.msra.mxu0 0
        %3526 = vmatprep.subr.bf16.mxu0 0
        %3527 = vmatpush1.bf16.msra.mxu0 0
        %3528 = vmatprep.subr.bf16.mxu0 0
        %3529 = vmatpush1.bf16.msra.mxu0 0
        %3530 = vmatprep.subr.bf16.mxu0 0
        %3531 = vmatpush1.bf16.msra.mxu0 0
        %3532 = vmatprep.subr.bf16.mxu0 0
        %3533 = vmatpush1.bf16.msra.mxu0 0
        %3534 = vmatprep.subr.bf16.mxu0 0
        %3535 = vmatpush1.bf16.msra.mxu0 0
        %3536 = vmatprep.subr.bf16.mxu0 0
        %3537 = vmatpush1.bf16.msra.mxu0 0
        %3538 = vmatprep.subr.bf16.mxu0 0
        %3539 = vmatpush1.bf16.msra.mxu0 0
        %3540 = vmatprep.subr.bf16.mxu0 0
        %3541 = vmatpush1.bf16.msra.mxu0 0
        %3542 = vmatprep.subr.bf16.mxu0 0
        %3543 = vmatpush1.bf16.msra.mxu0 0
        %3544 = vmatprep.mubr.bf16.mxu0 0
        %3545 = vmatmul.mubr.bf16.gmra.mrb[0].mxu0 %v3510
        %v3546 = vpop.f32.mrb[0].mxu0
        %v3547 = vadd.f32 0.0, %v3546
        %v3548 = vpop.f32.mrb[0].mxu0
        %v3549 = vadd.f32 0.0, %v3548
        %v3550 = vpop.f32.mrb[0].mxu0
        %v3551 = vadd.f32 0.0, %v3550
        %v3552 = vpop.f32.mrb[0].mxu0
        %v3553 = vadd.f32 0.0, %v3552
        %3554 = vdwg.mxu0
        %v3555 = vadd.f32 %v3461, %v3547
        %v3556 = vadd.f32 %v3462, %v3549
        %v3557 = vadd.f32 %v3463, %v3551
        %v3558 = vadd.f32 %v3464, %v3553
        %v3559 = vld [vmem:[%s9] sm:$0xff]
        %v3560 = vld [vmem:[%s9 + $0x8] sm:$0xff]
        %3562 = vset.pattern.permute.xlu0 0
        %3563 = vperm.xlu0 %3562, %v3559
        %v3564 = vpop.permute.xlu0 %3563
        %3567 = vset.pattern.permute.xlu0 0
        %3568 = vperm.xlu0 %3567, %v3560
        %v3569 = vpop.permute.xlu0 %3568
        %v3571 = vadd.f32 %v3555, %v3564
        %v3572 = vadd.f32 %v3556, %v3564
        %v3573 = vadd.f32 %v3557, %v3569
        %v3574 = vadd.f32 %v3558, %v3569
        %v3575 = vmax.f32 %v3571, 0.0
        %v3576 = vmax.f32 %v3572, 0.0
        %v3577 = vmax.f32 %v3573, 0.0
        %v3578 = vmax.f32 %v3574, 0.0
        %v3579 = vld [vmem:[%s10] sm:$0xf]
        %3580 = vrot.lane.b32.xlu0 %v3575, 17
        %v3581 = vpop.permute.xlu0 %3580
        %3582 = vrot.lane.b32.xlu0 %v3577, 17
        %v3583 = vpop.permute.xlu0 %3582
        %3584 = vrot.lane.b32.xlu0 %v3576, 17
        %v3585 = vpop.permute.xlu0 %3584
        %3586 = vrot.lane.b32.xlu0 %v3578, 17
        %v3587 = vpop.permute.xlu0 %3586
        %v3588 = vsel %vm534, %v3581, %v3585
        %v3589 = vsel %vm534, %v3583, %v3587
        %v3590 = vsel %vm534, %v3585, %v3581
        %v3591 = vsel %vm534, %v3587, %v3583
        %v3592 = vmul.f32 %v3590, %v540
        %v3593 = vmul.f32 %v3588, %v544
        %v3594 = vmul.f32 %v3591, %v540
        %v3595 = vmul.f32 %v3589, %v544
        %v3596 = vpack.c.bf16 %v3594, %v3592
        %v3597 = vpack.c.bf16 %v3595, %v3593
        %s3598 = scalar_lea.vmem %s10, 4
        %v3599 = vld [vmem:[%s3598] sm:$0xf]
        %3600 = vrot.lane.b32.xlu0 %v3575, 16
        %v3601 = vpop.permute.xlu0 %3600
        %3602 = vrot.lane.b32.xlu0 %v3577, 16
        %v3603 = vpop.permute.xlu0 %3602
        %3604 = vrot.lane.b32.xlu0 %v3576, 16
        %v3605 = vpop.permute.xlu0 %3604
        %3606 = vrot.lane.b32.xlu0 %v3578, 16
        %v3607 = vpop.permute.xlu0 %3606
        %v3608 = vsel %vm555, %v3601, %v3605
        %v3609 = vsel %vm555, %v3603, %v3607
        %v3610 = vsel %vm555, %v3605, %v3601
        %v3611 = vsel %vm555, %v3607, %v3603
        %v3612 = vmul.f32 %v3610, %v561
        %v3613 = vmul.f32 %v3608, %v565
        %v3614 = vmul.f32 %v3611, %v561
        %v3615 = vmul.f32 %v3609, %v565
        %v3616 = vpack.c.bf16 %v3614, %v3612
        %v3617 = vpack.c.bf16 %v3615, %v3613
        %v3619 = vsel %vm2010, %v3599, 0
        %3621 = vmatprep.subr.bf16.mxu0 %v3617
        %3622 = vmatpush1.bf16.msra.mxu0 %v3616
        %3623 = vmatprep.subr.bf16.mxu0 0
        %3624 = vmatpush1.bf16.msra.mxu0 0
        %3625 = vmatprep.subr.bf16.mxu0 0
        %3626 = vmatpush1.bf16.msra.mxu0 0
        %3627 = vmatprep.subr.bf16.mxu0 0
        %3628 = vmatpush1.bf16.msra.mxu0 0
        %3629 = vmatprep.subr.bf16.mxu0 0
        %3630 = vmatpush1.bf16.msra.mxu0 0
        %3631 = vmatprep.subr.bf16.mxu0 0
        %3632 = vmatpush1.bf16.msra.mxu0 0
        %3633 = vmatprep.subr.bf16.mxu0 0
        %3634 = vmatpush1.bf16.msra.mxu0 0
        %3635 = vmatprep.subr.bf16.mxu0 0
        %3636 = vmatpush1.bf16.msra.mxu0 0
        %3637 = vmatprep.subr.bf16.mxu0 0
        %3638 = vmatpush1.bf16.msra.mxu0 0
        %3639 = vmatprep.subr.bf16.mxu0 0
        %3640 = vmatpush1.bf16.msra.mxu0 0
        %3641 = vmatprep.subr.bf16.mxu0 0
        %3642 = vmatpush1.bf16.msra.mxu0 0
        %3643 = vmatprep.subr.bf16.mxu0 0
        %3644 = vmatpush1.bf16.msra.mxu0 0
        %3645 = vmatprep.subr.bf16.mxu0 0
        %3646 = vmatpush1.bf16.msra.mxu0 0
        %3647 = vmatprep.subr.bf16.mxu0 0
        %3648 = vmatpush1.bf16.msra.mxu0 0
        %3649 = vmatprep.subr.bf16.mxu0 0
        %3650 = vmatpush1.bf16.msra.mxu0 0
        %3651 = vmatprep.subr.bf16.mxu0 0
        %3652 = vmatpush1.bf16.msra.mxu0 0
        %3653 = vmatprep.mubr.bf16.mxu0 0
        %3654 = vmatmul.mubr.bf16.gmra.mrb[0].mxu0 %v3619
        %v3655 = vpop.f32.mrb[0].mxu0
        %v3656 = vadd.f32 0.0, %v3655
        %v3657 = vpop.f32.mrb[0].mxu0
        %v3658 = vadd.f32 0.0, %v3657
        %v3659 = vpop.f32.mrb[0].mxu0
        %v3660 = vpop.f32.mrb[0].mxu0
        %3661 = vdwg.mxu0
        %v3663 = vsel %vm2010, %v3579, 0
        %3665 = vmatprep.subr.bf16.mxu0 %v3597
        %3666 = vmatpush1.bf16.msra.mxu0 %v3596
        %3667 = vmatprep.subr.bf16.mxu0 0
        %3668 = vmatpush1.bf16.msra.mxu0 0
        %3669 = vmatprep.subr.bf16.mxu0 0
        %3670 = vmatpush1.bf16.msra.mxu0 0
        %3671 = vmatprep.subr.bf16.mxu0 0
        %3672 = vmatpush1.bf16.msra.mxu0 0
        %3673 = vmatprep.subr.bf16.mxu0 0
        %3674 = vmatpush1.bf16.msra.mxu0 0
        %3675 = vmatprep.subr.bf16.mxu0 0
        %3676 = vmatpush1.bf16.msra.mxu0 0
        %3677 = vmatprep.subr.bf16.mxu0 0
        %3678 = vmatpush1.bf16.msra.mxu0 0
        %3679 = vmatprep.subr.bf16.mxu0 0
        %3680 = vmatpush1.bf16.msra.mxu0 0
        %3681 = vmatprep.subr.bf16.mxu0 0
        %3682 = vmatpush1.bf16.msra.mxu0 0
        %3683 = vmatprep.subr.bf16.mxu0 0
        %3684 = vmatpush1.bf16.msra.mxu0 0
        %3685 = vmatprep.subr.bf16.mxu0 0
        %3686 = vmatpush1.bf16.msra.mxu0 0
        %3687 = vmatprep.subr.bf16.mxu0 0
        %3688 = vmatpush1.bf16.msra.mxu0 0
        %3689 = vmatprep.subr.bf16.mxu0 0
        %3690 = vmatpush1.bf16.msra.mxu0 0
        %3691 = vmatprep.subr.bf16.mxu0 0
        %3692 = vmatpush1.bf16.msra.mxu0 0
        %3693 = vmatprep.subr.bf16.mxu0 0
        %3694 = vmatpush1.bf16.msra.mxu0 0
        %3695 = vmatprep.subr.bf16.mxu0 0
        %3696 = vmatpush1.bf16.msra.mxu0 0
        %3697 = vmatprep.mubr.bf16.mxu0 0
        %3698 = vmatmul.mubr.bf16.gmra.mrb[0].mxu0 %v3663
        %v3699 = vpop.f32.mrb[0].mxu0
        %v3700 = vadd.f32 %v3656, %v3699
        %v3701 = vpop.f32.mrb[0].mxu0
        %v3702 = vadd.f32 %v3658, %v3701
        %v3703 = vpop.f32.mrb[0].mxu0
        %v3704 = vpop.f32.mrb[0].mxu0
        %3705 = vdwg.mxu0
        %s3706 = scalar_lea.vmem %s10, 8
        %v3707 = vld [vmem:[%s3706] sm:$0xf]
        %3708 = vrot.lane.b32.xlu0 %v3575, 15
        %v3709 = vpop.permute.xlu0 %3708
        %3710 = vrot.lane.b32.xlu0 %v3577, 15
        %v3711 = vpop.permute.xlu0 %3710
        %3712 = vrot.lane.b32.xlu0 %v3576, 15
        %v3713 = vpop.permute.xlu0 %3712
        %3714 = vrot.lane.b32.xlu0 %v3578, 15
        %v3715 = vpop.permute.xlu0 %3714
        %v3716 = vsel %vm678, %v3709, %v3713
        %v3717 = vsel %vm678, %v3711, %v3715
        %v3718 = vsel %vm678, %v3713, %v3709
        %v3719 = vsel %vm678, %v3715, %v3711
        %v3720 = vmul.f32 %v3718, %v684
        %v3721 = vmul.f32 %v3716, %v688
        %v3722 = vmul.f32 %v3719, %v684
        %v3723 = vmul.f32 %v3717, %v688
        %v3724 = vpack.c.bf16 %v3722, %v3720
        %v3725 = vpack.c.bf16 %v3723, %v3721
        %v3727 = vsel %vm2010, %v3707, 0
        %3729 = vmatprep.subr.bf16.mxu0 %v3725
        %3730 = vmatpush1.bf16.msra.mxu0 %v3724
        %3731 = vmatprep.subr.bf16.mxu0 0
        %3732 = vmatpush1.bf16.msra.mxu0 0
        %3733 = vmatprep.subr.bf16.mxu0 0
        %3734 = vmatpush1.bf16.msra.mxu0 0
        %3735 = vmatprep.subr.bf16.mxu0 0
        %3736 = vmatpush1.bf16.msra.mxu0 0
        %3737 = vmatprep.subr.bf16.mxu0 0
        %3738 = vmatpush1.bf16.msra.mxu0 0
        %3739 = vmatprep.subr.bf16.mxu0 0
        %3740 = vmatpush1.bf16.msra.mxu0 0
        %3741 = vmatprep.subr.bf16.mxu0 0
        %3742 = vmatpush1.bf16.msra.mxu0 0
        %3743 = vmatprep.subr.bf16.mxu0 0
        %3744 = vmatpush1.bf16.msra.mxu0 0
        %3745 = vmatprep.subr.bf16.mxu0 0
        %3746 = vmatpush1.bf16.msra.mxu0 0
        %3747 = vmatprep.subr.bf16.mxu0 0
        %3748 = vmatpush1.bf16.msra.mxu0 0
        %3749 = vmatprep.subr.bf16.mxu0 0
        %3750 = vmatpush1.bf16.msra.mxu0 0
        %3751 = vmatprep.subr.bf16.mxu0 0
        %3752 = vmatpush1.bf16.msra.mxu0 0
        %3753 = vmatprep.subr.bf16.mxu0 0
        %3754 = vmatpush1.bf16.msra.mxu0 0
        %3755 = vmatprep.subr.bf16.mxu0 0
        %3756 = vmatpush1.bf16.msra.mxu0 0
        %3757 = vmatprep.subr.bf16.mxu0 0
        %3758 = vmatpush1.bf16.msra.mxu0 0
        %3759 = vmatprep.subr.bf16.mxu0 0
        %3760 = vmatpush1.bf16.msra.mxu0 0
        %3761 = vmatprep.mubr.bf16.mxu0 0
        %3762 = vmatmul.mubr.bf16.gmra.mrb[0].mxu0 %v3727
        %v3763 = vpop.f32.mrb[0].mxu0
        %v3764 = vadd.f32 0.0, %v3763
        %v3765 = vpop.f32.mrb[0].mxu0
        %v3766 = vadd.f32 0.0, %v3765
        %v3767 = vpop.f32.mrb[0].mxu0
        %v3768 = vpop.f32.mrb[0].mxu0
        %3769 = vdwg.mxu0
        %v3770 = vadd.f32 %v3700, %v3764
        %v3771 = vadd.f32 %v3702, %v3766
        %s3772 = scalar_lea.vmem %s10, 12
        %v3773 = vld [vmem:[%s3772] sm:$0xf]
        %3774 = vrot.lane.b32.xlu0 %v3575, 1
        %v3775 = vpop.permute.xlu0 %3774
        %3776 = vrot.lane.b32.xlu0 %v3577, 1
        %v3777 = vpop.permute.xlu0 %3776
        %3778 = vrot.lane.b32.xlu0 %v3576, 1
        %v3779 = vpop.permute.xlu0 %3778
        %3780 = vrot.lane.b32.xlu0 %v3578, 1
        %v3781 = vpop.permute.xlu0 %3780
        %v3782 = vsel %vm751, %v3775, %v3779
        %v3783 = vsel %vm751, %v3777, %v3781
        %v3784 = vsel %vm751, %v3779, %v3775
        %v3785 = vsel %vm751, %v3781, %v3777
        %v3786 = vmul.f32 %v3784, %v757
        %v3787 = vmul.f32 %v3782, %v761
        %v3788 = vmul.f32 %v3785, %v757
        %v3789 = vmul.f32 %v3783, %v761
        %v3790 = vpack.c.bf16 %v3788, %v3786
        %v3791 = vpack.c.bf16 %v3789, %v3787
        %v3793 = vsel %vm2010, %v3773, 0
        %3795 = vmatprep.subr.bf16.mxu0 %v3791
        %3796 = vmatpush1.bf16.msra.mxu0 %v3790
        %3797 = vmatprep.subr.bf16.mxu0 0
        %3798 = vmatpush1.bf16.msra.mxu0 0
        %3799 = vmatprep.subr.bf16.mxu0 0
        %3800 = vmatpush1.bf16.msra.mxu0 0
        %3801 = vmatprep.subr.bf16.mxu0 0
        %3802 = vmatpush1.bf16.msra.mxu0 0
        %3803 = vmatprep.subr.bf16.mxu0 0
        %3804 = vmatpush1.bf16.msra.mxu0 0
        %3805 = vmatprep.subr.bf16.mxu0 0
        %3806 = vmatpush1.bf16.msra.mxu0 0
        %3807 = vmatprep.subr.bf16.mxu0 0
        %3808 = vmatpush1.bf16.msra.mxu0 0
        %3809 = vmatprep.subr.bf16.mxu0 0
        %3810 = vmatpush1.bf16.msra.mxu0 0
        %3811 = vmatprep.subr.bf16.mxu0 0
        %3812 = vmatpush1.bf16.msra.mxu0 0
        %3813 = vmatprep.subr.bf16.mxu0 0
        %3814 = vmatpush1.bf16.msra.mxu0 0
        %3815 = vmatprep.subr.bf16.mxu0 0
        %3816 = vmatpush1.bf16.msra.mxu0 0
        %3817 = vmatprep.subr.bf16.mxu0 0
        %3818 = vmatpush1.bf16.msra.mxu0 0
        %3819 = vmatprep.subr.bf16.mxu0 0
        %3820 = vmatpush1.bf16.msra.mxu0 0
        %3821 = vmatprep.subr.bf16.mxu0 0
        %3822 = vmatpush1.bf16.msra.mxu0 0
        %3823 = vmatprep.subr.bf16.mxu0 0
        %3824 = vmatpush1.bf16.msra.mxu0 0
        %3825 = vmatprep.subr.bf16.mxu0 0
        %3826 = vmatpush1.bf16.msra.mxu0 0
        %3827 = vmatprep.mubr.bf16.mxu0 0
        %3828 = vmatmul.mubr.bf16.gmra.mrb[0].mxu0 %v3793
        %v3829 = vpop.f32.mrb[0].mxu0
        %v3830 = vadd.f32 0.0, %v3829
        %v3831 = vpop.f32.mrb[0].mxu0
        %v3832 = vadd.f32 0.0, %v3831
        %v3833 = vpop.f32.mrb[0].mxu0
        %v3834 = vpop.f32.mrb[0].mxu0
        %3835 = vdwg.mxu0
        %v3836 = vadd.f32 %v3770, %v3830
        %v3837 = vadd.f32 %v3771, %v3832
        %s3838 = scalar_lea.vmem %s10, 16
        %v3839 = vld [vmem:[%s3838] sm:$0xf]
        %v3840 = vpack.c.bf16 %v3577, %v3575
        %v3841 = vpack.c.bf16 %v3578, %v3576
        %v3843 = vsel %vm2010, %v3839, 0
        %3845 = vmatprep.subr.bf16.mxu0 %v3841
        %3846 = vmatpush1.bf16.msra.mxu0 %v3840
        %3847 = vmatprep.subr.bf16.mxu0 0
        %3848 = vmatpush1.bf16.msra.mxu0 0
        %3849 = vmatprep.subr.bf16.mxu0 0
        %3850 = vmatpush1.bf16.msra.mxu0 0
        %3851 = vmatprep.subr.bf16.mxu0 0
        %3852 = vmatpush1.bf16.msra.mxu0 0
        %3853 = vmatprep.subr.bf16.mxu0 0
        %3854 = vmatpush1.bf16.msra.mxu0 0
        %3855 = vmatprep.subr.bf16.mxu0 0
        %3856 = vmatpush1.bf16.msra.mxu0 0
        %3857 = vmatprep.subr.bf16.mxu0 0
        %3858 = vmatpush1.bf16.msra.mxu0 0
        %3859 = vmatprep.subr.bf16.mxu0 0
        %3860 = vmatpush1.bf16.msra.mxu0 0
        %3861 = vmatprep.subr.bf16.mxu0 0
        %3862 = vmatpush1.bf16.msra.mxu0 0
        %3863 = vmatprep.subr.bf16.mxu0 0
        %3864 = vmatpush1.bf16.msra.mxu0 0
        %3865 = vmatprep.subr.bf16.mxu0 0
        %3866 = vmatpush1.bf16.msra.mxu0 0
        %3867 = vmatprep.subr.bf16.mxu0 0
        %3868 = vmatpush1.bf16.msra.mxu0 0
        %3869 = vmatprep.subr.bf16.mxu0 0
        %3870 = vmatpush1.bf16.msra.mxu0 0
        %3871 = vmatprep.subr.bf16.mxu0 0
        %3872 = vmatpush1.bf16.msra.mxu0 0
        %3873 = vmatprep.subr.bf16.mxu0 0
        %3874 = vmatpush1.bf16.msra.mxu0 0
        %3875 = vmatprep.subr.bf16.mxu0 0
        %3876 = vmatpush1.bf16.msra.mxu0 0
        %3877 = vmatprep.mubr.bf16.mxu0 0
        %3878 = vmatmul.mubr.bf16.gmra.mrb[0].mxu0 %v3843
        %v3879 = vpop.f32.mrb[0].mxu0
        %v3880 = vadd.f32 0.0, %v3879
        %v3881 = vpop.f32.mrb[0].mxu0
        %v3882 = vadd.f32 0.0, %v3881
        %v3883 = vpop.f32.mrb[0].mxu0
        %v3884 = vpop.f32.mrb[0].mxu0
        %3885 = vdwg.mxu0
        %v3886 = vadd.f32 %v3836, %v3880
        %v3887 = vadd.f32 %v3837, %v3882
        %s3888 = scalar_lea.vmem %s10, 20
        %v3889 = vld [vmem:[%s3888] sm:$0xf]
        %3890 = vrot.lane.b32.xlu0 %v3575, 127
        %v3891 = vpop.permute.xlu0 %3890
        %3892 = vrot.lane.b32.xlu0 %v3577, 127
        %v3893 = vpop.permute.xlu0 %3892
        %3894 = vrot.lane.b32.xlu0 %v3576, 127
        %v3895 = vpop.permute.xlu0 %3894
        %3896 = vrot.lane.b32.xlu0 %v3578, 127
        %v3897 = vpop.permute.xlu0 %3896
        %v3898 = vsel %vm880, %v3891, %v3895
        %v3899 = vsel %vm880, %v3893, %v3897
        %v3900 = vsel %vm880, %v3895, %v3891
        %v3901 = vsel %vm880, %v3897, %v3893
        %v3902 = vmul.f32 %v3898, %v886
        %v3903 = vmul.f32 %v3900, %v890
        %v3904 = vmul.f32 %v3899, %v886
        %v3905 = vmul.f32 %v3901, %v890
        %v3906 = vpack.c.bf16 %v3904, %v3902
        %v3907 = vpack.c.bf16 %v3905, %v3903
        %v3909 = vsel %vm2010, %v3889, 0
        %3911 = vmatprep.subr.bf16.mxu0 %v3907
        %3912 = vmatpush1.bf16.msra.mxu0 %v3906
        %3913 = vmatprep.subr.bf16.mxu0 0
        %3914 = vmatpush1.bf16.msra.mxu0 0
        %3915 = vmatprep.subr.bf16.mxu0 0
        %3916 = vmatpush1.bf16.msra.mxu0 0
        %3917 = vmatprep.subr.bf16.mxu0 0
        %3918 = vmatpush1.bf16.msra.mxu0 0
        %3919 = vmatprep.subr.bf16.mxu0 0
        %3920 = vmatpush1.bf16.msra.mxu0 0
        %3921 = vmatprep.subr.bf16.mxu0 0
        %3922 = vmatpush1.bf16.msra.mxu0 0
        %3923 = vmatprep.subr.bf16.mxu0 0
        %3924 = vmatpush1.bf16.msra.mxu0 0
        %3925 = vmatprep.subr.bf16.mxu0 0
        %3926 = vmatpush1.bf16.msra.mxu0 0
        %3927 = vmatprep.subr.bf16.mxu0 0
        %3928 = vmatpush1.bf16.msra.mxu0 0
        %3929 = vmatprep.subr.bf16.mxu0 0
        %3930 = vmatpush1.bf16.msra.mxu0 0
        %3931 = vmatprep.subr.bf16.mxu0 0
        %3932 = vmatpush1.bf16.msra.mxu0 0
        %3933 = vmatprep.subr.bf16.mxu0 0
        %3934 = vmatpush1.bf16.msra.mxu0 0
        %3935 = vmatprep.subr.bf16.mxu0 0
        %3936 = vmatpush1.bf16.msra.mxu0 0
        %3937 = vmatprep.subr.bf16.mxu0 0
        %3938 = vmatpush1.bf16.msra.mxu0 0
        %3939 = vmatprep.subr.bf16.mxu0 0
        %3940 = vmatpush1.bf16.msra.mxu0 0
        %3941 = vmatprep.subr.bf16.mxu0 0
        %3942 = vmatpush1.bf16.msra.mxu0 0
        %3943 = vmatprep.mubr.bf16.mxu0 0
        %3944 = vmatmul.mubr.bf16.gmra.mrb[0].mxu0 %v3909
        %v3945 = vpop.f32.mrb[0].mxu0
        %v3946 = vadd.f32 0.0, %v3945
        %v3947 = vpop.f32.mrb[0].mxu0
        %v3948 = vadd.f32 0.0, %v3947
        %v3949 = vpop.f32.mrb[0].mxu0
        %v3950 = vpop.f32.mrb[0].mxu0
        %3951 = vdwg.mxu0
        %v3952 = vadd.f32 %v3886, %v3946
        %v3953 = vadd.f32 %v3887, %v3948
        %s3954 = scalar_lea.vmem %s10, 24
        %v3955 = vld [vmem:[%s3954] sm:$0xf]
        %3956 = vrot.lane.b32.xlu0 %v3575, 113
        %v3957 = vpop.permute.xlu0 %3956
        %3958 = vrot.lane.b32.xlu0 %v3577, 113
        %v3959 = vpop.permute.xlu0 %3958
        %3960 = vrot.lane.b32.xlu0 %v3576, 113
        %v3961 = vpop.permute.xlu0 %3960
        %3962 = vrot.lane.b32.xlu0 %v3578, 113
        %v3963 = vpop.permute.xlu0 %3962
        %v3964 = vsel %vm953, %v3957, %v3961
        %v3965 = vsel %vm953, %v3959, %v3963
        %v3966 = vsel %vm953, %v3961, %v3957
        %v3967 = vsel %vm953, %v3963, %v3959
        %v3968 = vmul.f32 %v3964, %v959
        %v3969 = vmul.f32 %v3966, %v963
        %v3970 = vmul.f32 %v3965, %v959
        %v3971 = vmul.f32 %v3967, %v963
        %v3972 = vpack.c.bf16 %v3970, %v3968
        %v3973 = vpack.c.bf16 %v3971, %v3969
        %v3975 = vsel %vm2010, %v3955, 0
        %3977 = vmatprep.subr.bf16.mxu0 %v3973
        %3978 = vmatpush1.bf16.msra.mxu0 %v3972
        %3979 = vmatprep.subr.bf16.mxu0 0
        %3980 = vmatpush1.bf16.msra.mxu0 0
        %3981 = vmatprep.subr.bf16.mxu0 0
        %3982 = vmatpush1.bf16.msra.mxu0 0
        %3983 = vmatprep.subr.bf16.mxu0 0
        %3984 = vmatpush1.bf16.msra.mxu0 0
        %3985 = vmatprep.subr.bf16.mxu0 0
        %3986 = vmatpush1.bf16.msra.mxu0 0
        %3987 = vmatprep.subr.bf16.mxu0 0
        %3988 = vmatpush1.bf16.msra.mxu0 0
        %3989 = vmatprep.subr.bf16.mxu0 0
        %3990 = vmatpush1.bf16.msra.mxu0 0
        %3991 = vmatprep.subr.bf16.mxu0 0
        %3992 = vmatpush1.bf16.msra.mxu0 0
        %3993 = vmatprep.subr.bf16.mxu0 0
        %3994 = vmatpush1.bf16.msra.mxu0 0
        %3995 = vmatprep.subr.bf16.mxu0 0
        %3996 = vmatpush1.bf16.msra.mxu0 0
        %3997 = vmatprep.subr.bf16.mxu0 0
        %3998 = vmatpush1.bf16.msra.mxu0 0
        %3999 = vmatprep.subr.bf16.mxu0 0
        %4000 = vmatpush1.bf16.msra.mxu0 0
        %4001 = vmatprep.subr.bf16.mxu0 0
        %4002 = vmatpush1.bf16.msra.mxu0 0
        %4003 = vmatprep.subr.bf16.mxu0 0
        %4004 = vmatpush1.bf16.msra.mxu0 0
        %4005 = vmatprep.subr.bf16.mxu0 0
        %4006 = vmatpush1.bf16.msra.mxu0 0
        %4007 = vmatprep.subr.bf16.mxu0 0
        %4008 = vmatpush1.bf16.msra.mxu0 0
        %4009 = vmatprep.mubr.bf16.mxu0 0
        %4010 = vmatmul.mubr.bf16.gmra.mrb[0].mxu0 %v3975
        %v4011 = vpop.f32.mrb[0].mxu0
        %v4012 = vadd.f32 0.0, %v4011
        %v4013 = vpop.f32.mrb[0].mxu0
        %v4014 = vadd.f32 0.0, %v4013
        %v4015 = vpop.f32.mrb[0].mxu0
        %v4016 = vpop.f32.mrb[0].mxu0
        %4017 = vdwg.mxu0
        %v4018 = vadd.f32 %v3952, %v4012
        %v4019 = vadd.f32 %v3953, %v4014
        %s4020 = scalar_lea.vmem %s10, 28
        %v4021 = vld [vmem:[%s4020] sm:$0xf]
        %4022 = vrot.lane.b32.xlu0 %v3575, 112
        %v4023 = vpop.permute.xlu0 %4022
        %4024 = vrot.lane.b32.xlu0 %v3577, 112
        %v4025 = vpop.permute.xlu0 %4024
        %4026 = vrot.lane.b32.xlu0 %v3576, 112
        %v4027 = vpop.permute.xlu0 %4026
        %4028 = vrot.lane.b32.xlu0 %v3578, 112
        %v4029 = vpop.permute.xlu0 %4028
        %v4030 = vsel %vm1026, %v4023, %v4027
        %v4031 = vsel %vm1026, %v4025, %v4029
        %v4032 = vsel %vm1026, %v4027, %v4023
        %v4033 = vsel %vm1026, %v4029, %v4025
        %v4034 = vmul.f32 %v4030, %v1032
        %v4035 = vmul.f32 %v4032, %v1036
        %v4036 = vmul.f32 %v4031, %v1032
        %v4037 = vmul.f32 %v4033, %v1036
        %v4038 = vpack.c.bf16 %v4036, %v4034
        %v4039 = vpack.c.bf16 %v4037, %v4035
        %v4041 = vsel %vm2010, %v4021, 0
        %4043 = vmatprep.subr.bf16.mxu0 %v4039
        %4044 = vmatpush1.bf16.msra.mxu0 %v4038
        %4045 = vmatprep.subr.bf16.mxu0 0
        %4046 = vmatpush1.bf16.msra.mxu0 0
        %4047 = vmatprep.subr.bf16.mxu0 0
        %4048 = vmatpush1.bf16.msra.mxu0 0
        %4049 = vmatprep.subr.bf16.mxu0 0
        %4050 = vmatpush1.bf16.msra.mxu0 0
        %4051 = vmatprep.subr.bf16.mxu0 0
        %4052 = vmatpush1.bf16.msra.mxu0 0
        %4053 = vmatprep.subr.bf16.mxu0 0
        %4054 = vmatpush1.bf16.msra.mxu0 0
        %4055 = vmatprep.subr.bf16.mxu0 0
        %4056 = vmatpush1.bf16.msra.mxu0 0
        %4057 = vmatprep.subr.bf16.mxu0 0
        %4058 = vmatpush1.bf16.msra.mxu0 0
        %4059 = vmatprep.subr.bf16.mxu0 0
        %4060 = vmatpush1.bf16.msra.mxu0 0
        %4061 = vmatprep.subr.bf16.mxu0 0
        %4062 = vmatpush1.bf16.msra.mxu0 0
        %4063 = vmatprep.subr.bf16.mxu0 0
        %4064 = vmatpush1.bf16.msra.mxu0 0
        %4065 = vmatprep.subr.bf16.mxu0 0
        %4066 = vmatpush1.bf16.msra.mxu0 0
        %4067 = vmatprep.subr.bf16.mxu0 0
        %4068 = vmatpush1.bf16.msra.mxu0 0
        %4069 = vmatprep.subr.bf16.mxu0 0
        %4070 = vmatpush1.bf16.msra.mxu0 0
        %4071 = vmatprep.subr.bf16.mxu0 0
        %4072 = vmatpush1.bf16.msra.mxu0 0
        %4073 = vmatprep.subr.bf16.mxu0 0
        %4074 = vmatpush1.bf16.msra.mxu0 0
        %4075 = vmatprep.mubr.bf16.mxu0 0
        %4076 = vmatmul.mubr.bf16.gmra.mrb[0].mxu0 %v4041
        %v4077 = vpop.f32.mrb[0].mxu0
        %v4078 = vadd.f32 0.0, %v4077
        %v4079 = vpop.f32.mrb[0].mxu0
        %v4080 = vadd.f32 0.0, %v4079
        %v4081 = vpop.f32.mrb[0].mxu0
        %v4082 = vpop.f32.mrb[0].mxu0
        %4083 = vdwg.mxu0
        %v4084 = vadd.f32 %v4018, %v4078
        %v4085 = vadd.f32 %v4019, %v4080
        %s4086 = scalar_lea.vmem %s10, 32
        %v4087 = vld [vmem:[%s4086] sm:$0xf]
        %4088 = vrot.lane.b32.xlu0 %v3575, 111
        %v4089 = vpop.permute.xlu0 %4088
        %4090 = vrot.lane.b32.xlu0 %v3577, 111
        %v4091 = vpop.permute.xlu0 %4090
        %4092 = vrot.lane.b32.xlu0 %v3576, 111
        %v4093 = vpop.permute.xlu0 %4092
        %4094 = vrot.lane.b32.xlu0 %v3578, 111
        %v4095 = vpop.permute.xlu0 %4094
        %v4096 = vsel %vm1099, %v4089, %v4093
        %v4097 = vsel %vm1099, %v4091, %v4095
        %v4098 = vsel %vm1099, %v4093, %v4089
        %v4099 = vsel %vm1099, %v4095, %v4091
        %v4100 = vmul.f32 %v4096, %v1105
        %v4101 = vmul.f32 %v4098, %v1109
        %v4102 = vmul.f32 %v4097, %v1105
        %v4103 = vmul.f32 %v4099, %v1109
        %v4104 = vpack.c.bf16 %v4102, %v4100
        %v4105 = vpack.c.bf16 %v4103, %v4101
        %v4107 = vsel %vm2010, %v4087, 0
        %4109 = vmatprep.subr.bf16.mxu0 %v4105
        %4110 = vmatpush1.bf16.msra.mxu0 %v4104
        %4111 = vmatprep.subr.bf16.mxu0 0
        %4112 = vmatpush1.bf16.msra.mxu0 0
        %4113 = vmatprep.subr.bf16.mxu0 0
        %4114 = vmatpush1.bf16.msra.mxu0 0
        %4115 = vmatprep.subr.bf16.mxu0 0
        %4116 = vmatpush1.bf16.msra.mxu0 0
        %4117 = vmatprep.subr.bf16.mxu0 0
        %4118 = vmatpush1.bf16.msra.mxu0 0
        %4119 = vmatprep.subr.bf16.mxu0 0
        %4120 = vmatpush1.bf16.msra.mxu0 0
        %4121 = vmatprep.subr.bf16.mxu0 0
        %4122 = vmatpush1.bf16.msra.mxu0 0
        %4123 = vmatprep.subr.bf16.mxu0 0
        %4124 = vmatpush1.bf16.msra.mxu0 0
        %4125 = vmatprep.subr.bf16.mxu0 0
        %4126 = vmatpush1.bf16.msra.mxu0 0
        %4127 = vmatprep.subr.bf16.mxu0 0
        %4128 = vmatpush1.bf16.msra.mxu0 0
        %4129 = vmatprep.subr.bf16.mxu0 0
        %4130 = vmatpush1.bf16.msra.mxu0 0
        %4131 = vmatprep.subr.bf16.mxu0 0
        %4132 = vmatpush1.bf16.msra.mxu0 0
        %4133 = vmatprep.subr.bf16.mxu0 0
        %4134 = vmatpush1.bf16.msra.mxu0 0
        %4135 = vmatprep.subr.bf16.mxu0 0
        %4136 = vmatpush1.bf16.msra.mxu0 0
        %4137 = vmatprep.subr.bf16.mxu0 0
        %4138 = vmatpush1.bf16.msra.mxu0 0
        %4139 = vmatprep.subr.bf16.mxu0 0
        %4140 = vmatpush1.bf16.msra.mxu0 0
        %4141 = vmatprep.mubr.bf16.mxu0 0
        %4142 = vmatmul.mubr.bf16.gmra.mrb[0].mxu0 %v4107
        %v4143 = vpop.f32.mrb[0].mxu0
        %v4144 = vadd.f32 0.0, %v4143
        %v4145 = vpop.f32.mrb[0].mxu0
        %v4146 = vadd.f32 0.0, %v4145
        %v4147 = vpop.f32.mrb[0].mxu0
        %v4148 = vpop.f32.mrb[0].mxu0
        %4149 = vdwg.mxu0
        %v4150 = vadd.f32 %v4084, %v4144
        %v4151 = vadd.f32 %v4085, %v4146
        %v4152 = vld [vmem:[%s11] sm:$0xf]
        %v4154 = vsel %vm2010, %v4152, 0
        %4156 = vmatprep.subr.bf16.mxu0 %v1862
        %4157 = vmatpush1.bf16.msra.mxu0 %v1861
        %4158 = vmatprep.subr.bf16.mxu0 0
        %4159 = vmatpush1.bf16.msra.mxu0 0
        %4160 = vmatprep.subr.bf16.mxu0 0
        %4161 = vmatpush1.bf16.msra.mxu0 0
        %4162 = vmatprep.subr.bf16.mxu0 0
        %4163 = vmatpush1.bf16.msra.mxu0 0
        %4164 = vmatprep.subr.bf16.mxu0 0
        %4165 = vmatpush1.bf16.msra.mxu0 0
        %4166 = vmatprep.subr.bf16.mxu0 0
        %4167 = vmatpush1.bf16.msra.mxu0 0
        %4168 = vmatprep.subr.bf16.mxu0 0
        %4169 = vmatpush1.bf16.msra.mxu0 0
        %4170 = vmatprep.subr.bf16.mxu0 0
        %4171 = vmatpush1.bf16.msra.mxu0 0
        %4172 = vmatprep.subr.bf16.mxu0 0
        %4173 = vmatpush1.bf16.msra.mxu0 0
        %4174 = vmatprep.subr.bf16.mxu0 0
        %4175 = vmatpush1.bf16.msra.mxu0 0
        %4176 = vmatprep.subr.bf16.mxu0 0
        %4177 = vmatpush1.bf16.msra.mxu0 0
        %4178 = vmatprep.subr.bf16.mxu0 0
        %4179 = vmatpush1.bf16.msra.mxu0 0
        %4180 = vmatprep.subr.bf16.mxu0 0
        %4181 = vmatpush1.bf16.msra.mxu0 0
        %4182 = vmatprep.subr.bf16.mxu0 0
        %4183 = vmatpush1.bf16.msra.mxu0 0
        %4184 = vmatprep.subr.bf16.mxu0 0
        %4185 = vmatpush1.bf16.msra.mxu0 0
        %4186 = vmatprep.subr.bf16.mxu0 0
        %4187 = vmatpush1.bf16.msra.mxu0 0
        %4188 = vmatprep.mubr.bf16.mxu0 0
        %4189 = vmatmul.mubr.bf16.gmra.mrb[0].mxu0 %v4154
        %v4190 = vpop.f32.mrb[0].mxu0
        %v4191 = vadd.f32 0.0, %v4190
        %v4192 = vpop.f32.mrb[0].mxu0
        %v4193 = vadd.f32 0.0, %v4192
        %v4194 = vpop.f32.mrb[0].mxu0
        %v4195 = vpop.f32.mrb[0].mxu0
        %4196 = vdwg.mxu0
        %v4197 = vadd.f32 %v4150, %v4191
        %v4198 = vadd.f32 %v4151, %v4193
        %s4199 = scalar_lea.vmem %s11, 4
        %v4200 = vld [vmem:[%s4199] sm:$0xf]
        %v4202 = vsel %vm2010, %v4200, 0
        %4204 = vmatprep.subr.bf16.mxu0 %v1880
        %4205 = vmatpush1.bf16.msra.mxu0 %v1879
        %4206 = vmatprep.subr.bf16.mxu0 0
        %4207 = vmatpush1.bf16.msra.mxu0 0
        %4208 = vmatprep.subr.bf16.mxu0 0
        %4209 = vmatpush1.bf16.msra.mxu0 0
        %4210 = vmatprep.subr.bf16.mxu0 0
        %4211 = vmatpush1.bf16.msra.mxu0 0
        %4212 = vmatprep.subr.bf16.mxu0 0
        %4213 = vmatpush1.bf16.msra.mxu0 0
        %4214 = vmatprep.subr.bf16.mxu0 0
        %4215 = vmatpush1.bf16.msra.mxu0 0
        %4216 = vmatprep.subr.bf16.mxu0 0
        %4217 = vmatpush1.bf16.msra.mxu0 0
        %4218 = vmatprep.subr.bf16.mxu0 0
        %4219 = vmatpush1.bf16.msra.mxu0 0
        %4220 = vmatprep.subr.bf16.mxu0 0
        %4221 = vmatpush1.bf16.msra.mxu0 0
        %4222 = vmatprep.subr.bf16.mxu0 0
        %4223 = vmatpush1.bf16.msra.mxu0 0
        %4224 = vmatprep.subr.bf16.mxu0 0
        %4225 = vmatpush1.bf16.msra.mxu0 0
        %4226 = vmatprep.subr.bf16.mxu0 0
        %4227 = vmatpush1.bf16.msra.mxu0 0
        %4228 = vmatprep.subr.bf16.mxu0 0
        %4229 = vmatpush1.bf16.msra.mxu0 0
        %4230 = vmatprep.subr.bf16.mxu0 0
        %4231 = vmatpush1.bf16.msra.mxu0 0
        %4232 = vmatprep.subr.bf16.mxu0 0
        %4233 = vmatpush1.bf16.msra.mxu0 0
        %4234 = vmatprep.subr.bf16.mxu0 0
        %4235 = vmatpush1.bf16.msra.mxu0 0
        %4236 = vmatprep.mubr.bf16.mxu0 0
        %4237 = vmatmul.mubr.bf16.gmra.mrb[0].mxu0 %v4202
        %v4238 = vpop.f32.mrb[0].mxu0
        %v4239 = vadd.f32 0.0, %v4238
        %v4240 = vpop.f32.mrb[0].mxu0
        %v4241 = vadd.f32 0.0, %v4240
        %v4242 = vpop.f32.mrb[0].mxu0
        %v4243 = vpop.f32.mrb[0].mxu0
        %4244 = vdwg.mxu0
        %v4245 = vadd.f32 %v4197, %v4239
        %v4246 = vadd.f32 %v4198, %v4241
        %s4247 = scalar_lea.vmem %s11, 8
        %v4248 = vld [vmem:[%s4247] sm:$0xf]
        %v4250 = vsel %vm2010, %v4248, 0
        %4252 = vmatprep.subr.bf16.mxu0 %v1898
        %4253 = vmatpush1.bf16.msra.mxu0 %v1897
        %4254 = vmatprep.subr.bf16.mxu0 0
        %4255 = vmatpush1.bf16.msra.mxu0 0
        %4256 = vmatprep.subr.bf16.mxu0 0
        %4257 = vmatpush1.bf16.msra.mxu0 0
        %4258 = vmatprep.subr.bf16.mxu0 0
        %4259 = vmatpush1.bf16.msra.mxu0 0
        %4260 = vmatprep.subr.bf16.mxu0 0
        %4261 = vmatpush1.bf16.msra.mxu0 0
        %4262 = vmatprep.subr.bf16.mxu0 0
        %4263 = vmatpush1.bf16.msra.mxu0 0
        %4264 = vmatprep.subr.bf16.mxu0 0
        %4265 = vmatpush1.bf16.msra.mxu0 0
        %4266 = vmatprep.subr.bf16.mxu0 0
        %4267 = vmatpush1.bf16.msra.mxu0 0
        %4268 = vmatprep.subr.bf16.mxu0 0
        %4269 = vmatpush1.bf16.msra.mxu0 0
        %4270 = vmatprep.subr.bf16.mxu0 0
        %4271 = vmatpush1.bf16.msra.mxu0 0
        %4272 = vmatprep.subr.bf16.mxu0 0
        %4273 = vmatpush1.bf16.msra.mxu0 0
        %4274 = vmatprep.subr.bf16.mxu0 0
        %4275 = vmatpush1.bf16.msra.mxu0 0
        %4276 = vmatprep.subr.bf16.mxu0 0
        %4277 = vmatpush1.bf16.msra.mxu0 0
        %4278 = vmatprep.subr.bf16.mxu0 0
        %4279 = vmatpush1.bf16.msra.mxu0 0
        %4280 = vmatprep.subr.bf16.mxu0 0
        %4281 = vmatpush1.bf16.msra.mxu0 0
        %4282 = vmatprep.subr.bf16.mxu0 0
        %4283 = vmatpush1.bf16.msra.mxu0 0
        %4284 = vmatprep.mubr.bf16.mxu0 0
        %4285 = vmatmul.mubr.bf16.gmra.mrb[0].mxu0 %v4250
        %v4286 = vpop.f32.mrb[0].mxu0
        %v4287 = vadd.f32 0.0, %v4286
        %v4288 = vpop.f32.mrb[0].mxu0
        %v4289 = vadd.f32 0.0, %v4288
        %v4290 = vpop.f32.mrb[0].mxu0
        %v4291 = vpop.f32.mrb[0].mxu0
        %4292 = vdwg.mxu0
        %v4293 = vadd.f32 %v4245, %v4287
        %v4294 = vadd.f32 %v4246, %v4289
        %s4295 = scalar_lea.vmem %s11, 12
        %v4296 = vld [vmem:[%s4295] sm:$0xf]
        %v4298 = vsel %vm2010, %v4296, 0
        %4300 = vmatprep.subr.bf16.mxu0 %v1916
        %4301 = vmatpush1.bf16.msra.mxu0 %v1915
        %4302 = vmatprep.subr.bf16.mxu0 0
        %4303 = vmatpush1.bf16.msra.mxu0 0
        %4304 = vmatprep.subr.bf16.mxu0 0
        %4305 = vmatpush1.bf16.msra.mxu0 0
        %4306 = vmatprep.subr.bf16.mxu0 0
        %4307 = vmatpush1.bf16.msra.mxu0 0
        %4308 = vmatprep.subr.bf16.mxu0 0
        %4309 = vmatpush1.bf16.msra.mxu0 0
        %4310 = vmatprep.subr.bf16.mxu0 0
        %4311 = vmatpush1.bf16.msra.mxu0 0
        %4312 = vmatprep.subr.bf16.mxu0 0
        %4313 = vmatpush1.bf16.msra.mxu0 0
        %4314 = vmatprep.subr.bf16.mxu0 0
        %4315 = vmatpush1.bf16.msra.mxu0 0
        %4316 = vmatprep.subr.bf16.mxu0 0
        %4317 = vmatpush1.bf16.msra.mxu0 0
        %4318 = vmatprep.subr.bf16.mxu0 0
        %4319 = vmatpush1.bf16.msra.mxu0 0
        %4320 = vmatprep.subr.bf16.mxu0 0
        %4321 = vmatpush1.bf16.msra.mxu0 0
        %4322 = vmatprep.subr.bf16.mxu0 0
        %4323 = vmatpush1.bf16.msra.mxu0 0
        %4324 = vmatprep.subr.bf16.mxu0 0
        %4325 = vmatpush1.bf16.msra.mxu0 0
        %4326 = vmatprep.subr.bf16.mxu0 0
        %4327 = vmatpush1.bf16.msra.mxu0 0
        %4328 = vmatprep.subr.bf16.mxu0 0
        %4329 = vmatpush1.bf16.msra.mxu0 0
        %4330 = vmatprep.subr.bf16.mxu0 0
        %4331 = vmatpush1.bf16.msra.mxu0 0
        %4332 = vmatprep.mubr.bf16.mxu0 0
        %4333 = vmatmul.mubr.bf16.gmra.mrb[0].mxu0 %v4298
        %v4334 = vpop.f32.mrb[0].mxu0
        %v4335 = vadd.f32 0.0, %v4334
        %v4336 = vpop.f32.mrb[0].mxu0
        %v4337 = vadd.f32 0.0, %v4336
        %v4338 = vpop.f32.mrb[0].mxu0
        %v4339 = vpop.f32.mrb[0].mxu0
        %4340 = vdwg.mxu0
        %v4341 = vadd.f32 %v4293, %v4335
        %v4342 = vadd.f32 %v4294, %v4337
        %s4343 = scalar_lea.vmem %s11, 16
        %v4344 = vld [vmem:[%s4343] sm:$0xf]
        %v4346 = vsel %vm2010, %v4344, 0
        %4348 = vmatprep.subr.bf16.mxu0 %v1918
        %4349 = vmatpush1.bf16.msra.mxu0 %v1917
        %4350 = vmatprep.subr.bf16.mxu0 0
        %4351 = vmatpush1.bf16.msra.mxu0 0
        %4352 = vmatprep.subr.bf16.mxu0 0
        %4353 = vmatpush1.bf16.msra.mxu0 0
        %4354 = vmatprep.subr.bf16.mxu0 0
        %4355 = vmatpush1.bf16.msra.mxu0 0
        %4356 = vmatprep.subr.bf16.mxu0 0
        %4357 = vmatpush1.bf16.msra.mxu0 0
        %4358 = vmatprep.subr.bf16.mxu0 0
        %4359 = vmatpush1.bf16.msra.mxu0 0
        %4360 = vmatprep.subr.bf16.mxu0 0
        %4361 = vmatpush1.bf16.msra.mxu0 0
        %4362 = vmatprep.subr.bf16.mxu0 0
        %4363 = vmatpush1.bf16.msra.mxu0 0
        %4364 = vmatprep.subr.bf16.mxu0 0
        %4365 = vmatpush1.bf16.msra.mxu0 0
        %4366 = vmatprep.subr.bf16.mxu0 0
        %4367 = vmatpush1.bf16.msra.mxu0 0
        %4368 = vmatprep.subr.bf16.mxu0 0
        %4369 = vmatpush1.bf16.msra.mxu0 0
        %4370 = vmatprep.subr.bf16.mxu0 0
        %4371 = vmatpush1.bf16.msra.mxu0 0
        %4372 = vmatprep.subr.bf16.mxu0 0
        %4373 = vmatpush1.bf16.msra.mxu0 0
        %4374 = vmatprep.subr.bf16.mxu0 0
        %4375 = vmatpush1.bf16.msra.mxu0 0
        %4376 = vmatprep.subr.bf16.mxu0 0
        %4377 = vmatpush1.bf16.msra.mxu0 0
        %4378 = vmatprep.subr.bf16.mxu0 0
        %4379 = vmatpush1.bf16.msra.mxu0 0
        %4380 = vmatprep.mubr.bf16.mxu0 0
        %4381 = vmatmul.mubr.bf16.gmra.mrb[0].mxu0 %v4346
        %v4382 = vpop.f32.mrb[0].mxu0
        %v4383 = vadd.f32 0.0, %v4382
        %v4384 = vpop.f32.mrb[0].mxu0
        %v4385 = vadd.f32 0.0, %v4384
        %v4386 = vpop.f32.mrb[0].mxu0
        %v4387 = vpop.f32.mrb[0].mxu0
        %4388 = vdwg.mxu0
        %v4389 = vadd.f32 %v4341, %v4383
        %v4390 = vadd.f32 %v4342, %v4385
        %s4391 = scalar_lea.vmem %s11, 20
        %v4392 = vld [vmem:[%s4391] sm:$0xf]
        %v4394 = vsel %vm2010, %v4392, 0
        %4396 = vmatprep.subr.bf16.mxu0 %v1936
        %4397 = vmatpush1.bf16.msra.mxu0 %v1935
        %4398 = vmatprep.subr.bf16.mxu0 0
        %4399 = vmatpush1.bf16.msra.mxu0 0
        %4400 = vmatprep.subr.bf16.mxu0 0
        %4401 = vmatpush1.bf16.msra.mxu0 0
        %4402 = vmatprep.subr.bf16.mxu0 0
        %4403 = vmatpush1.bf16.msra.mxu0 0
        %4404 = vmatprep.subr.bf16.mxu0 0
        %4405 = vmatpush1.bf16.msra.mxu0 0
        %4406 = vmatprep.subr.bf16.mxu0 0
        %4407 = vmatpush1.bf16.msra.mxu0 0
        %4408 = vmatprep.subr.bf16.mxu0 0
        %4409 = vmatpush1.bf16.msra.mxu0 0
        %4410 = vmatprep.subr.bf16.mxu0 0
        %4411 = vmatpush1.bf16.msra.mxu0 0
        %4412 = vmatprep.subr.bf16.mxu0 0
        %4413 = vmatpush1.bf16.msra.mxu0 0
        %4414 = vmatprep.subr.bf16.mxu0 0
        %4415 = vmatpush1.bf16.msra.mxu0 0
        %4416 = vmatprep.subr.bf16.mxu0 0
        %4417 = vmatpush1.bf16.msra.mxu0 0
        %4418 = vmatprep.subr.bf16.mxu0 0
        %4419 = vmatpush1.bf16.msra.mxu0 0
        %4420 = vmatprep.subr.bf16.mxu0 0
        %4421 = vmatpush1.bf16.msra.mxu0 0
        %4422 = vmatprep.subr.bf16.mxu0 0
        %4423 = vmatpush1.bf16.msra.mxu0 0
        %4424 = vmatprep.subr.bf16.mxu0 0
        %4425 = vmatpush1.bf16.msra.mxu0 0
        %4426 = vmatprep.subr.bf16.mxu0 0
        %4427 = vmatpush1.bf16.msra.mxu0 0
        %4428 = vmatprep.mubr.bf16.mxu0 0
        %4429 = vmatmul.mubr.bf16.gmra.mrb[0].mxu0 %v4394
        %v4430 = vpop.f32.mrb[0].mxu0
        %v4431 = vadd.f32 0.0, %v4430
        %v4432 = vpop.f32.mrb[0].mxu0
        %v4433 = vadd.f32 0.0, %v4432
        %v4434 = vpop.f32.mrb[0].mxu0
        %v4435 = vpop.f32.mrb[0].mxu0
        %4436 = vdwg.mxu0
        %v4437 = vadd.f32 %v4389, %v4431
        %v4438 = vadd.f32 %v4390, %v4433
        %s4439 = scalar_lea.vmem %s11, 24
        %v4440 = vld [vmem:[%s4439] sm:$0xf]
        %v4442 = vsel %vm2010, %v4440, 0
        %4444 = vmatprep.subr.bf16.mxu0 %v1954
        %4445 = vmatpush1.bf16.msra.mxu0 %v1953
        %4446 = vmatprep.subr.bf16.mxu0 0
        %4447 = vmatpush1.bf16.msra.mxu0 0
        %4448 = vmatprep.subr.bf16.mxu0 0
        %4449 = vmatpush1.bf16.msra.mxu0 0
        %4450 = vmatprep.subr.bf16.mxu0 0
        %4451 = vmatpush1.bf16.msra.mxu0 0
        %4452 = vmatprep.subr.bf16.mxu0 0
        %4453 = vmatpush1.bf16.msra.mxu0 0
        %4454 = vmatprep.subr.bf16.mxu0 0
        %4455 = vmatpush1.bf16.msra.mxu0 0
        %4456 = vmatprep.subr.bf16.mxu0 0
        %4457 = vmatpush1.bf16.msra.mxu0 0
        %4458 = vmatprep.subr.bf16.mxu0 0
        %4459 = vmatpush1.bf16.msra.mxu0 0
        %4460 = vmatprep.subr.bf16.mxu0 0
        %4461 = vmatpush1.bf16.msra.mxu0 0
        %4462 = vmatprep.subr.bf16.mxu0 0
        %4463 = vmatpush1.bf16.msra.mxu0 0
        %4464 = vmatprep.subr.bf16.mxu0 0
        %4465 = vmatpush1.bf16.msra.mxu0 0
        %4466 = vmatprep.subr.bf16.mxu0 0
        %4467 = vmatpush1.bf16.msra.mxu0 0
        %4468 = vmatprep.subr.bf16.mxu0 0
        %4469 = vmatpush1.bf16.msra.mxu0 0
        %4470 = vmatprep.subr.bf16.mxu0 0
        %4471 = vmatpush1.bf16.msra.mxu0 0
        %4472 = vmatprep.subr.bf16.mxu0 0
        %4473 = vmatpush1.bf16.msra.mxu0 0
        %4474 = vmatprep.subr.bf16.mxu0 0
        %4475 = vmatpush1.bf16.msra.mxu0 0
        %4476 = vmatprep.mubr.bf16.mxu0 0
        %4477 = vmatmul.mubr.bf16.gmra.mrb[0].mxu0 %v4442
        %v4478 = vpop.f32.mrb[0].mxu0
        %v4479 = vadd.f32 0.0, %v4478
        %v4480 = vpop.f32.mrb[0].mxu0
        %v4481 = vadd.f32 0.0, %v4480
        %v4482 = vpop.f32.mrb[0].mxu0
        %v4483 = vpop.f32.mrb[0].mxu0
        %4484 = vdwg.mxu0
        %v4485 = vadd.f32 %v4437, %v4479
        %v4486 = vadd.f32 %v4438, %v4481
        %s4487 = scalar_lea.vmem %s11, 28
        %v4488 = vld [vmem:[%s4487] sm:$0xf]
        %v4490 = vsel %vm2010, %v4488, 0
        %4492 = vmatprep.subr.bf16.mxu0 %v1972
        %4493 = vmatpush1.bf16.msra.mxu0 %v1971
        %4494 = vmatprep.subr.bf16.mxu0 0
        %4495 = vmatpush1.bf16.msra.mxu0 0
        %4496 = vmatprep.subr.bf16.mxu0 0
        %4497 = vmatpush1.bf16.msra.mxu0 0
        %4498 = vmatprep.subr.bf16.mxu0 0
        %4499 = vmatpush1.bf16.msra.mxu0 0
        %4500 = vmatprep.subr.bf16.mxu0 0
        %4501 = vmatpush1.bf16.msra.mxu0 0
        %4502 = vmatprep.subr.bf16.mxu0 0
        %4503 = vmatpush1.bf16.msra.mxu0 0
        %4504 = vmatprep.subr.bf16.mxu0 0
        %4505 = vmatpush1.bf16.msra.mxu0 0
        %4506 = vmatprep.subr.bf16.mxu0 0
        %4507 = vmatpush1.bf16.msra.mxu0 0
        %4508 = vmatprep.subr.bf16.mxu0 0
        %4509 = vmatpush1.bf16.msra.mxu0 0
        %4510 = vmatprep.subr.bf16.mxu0 0
        %4511 = vmatpush1.bf16.msra.mxu0 0
        %4512 = vmatprep.subr.bf16.mxu0 0
        %4513 = vmatpush1.bf16.msra.mxu0 0
        %4514 = vmatprep.subr.bf16.mxu0 0
        %4515 = vmatpush1.bf16.msra.mxu0 0
        %4516 = vmatprep.subr.bf16.mxu0 0
        %4517 = vmatpush1.bf16.msra.mxu0 0
        %4518 = vmatprep.subr.bf16.mxu0 0
        %4519 = vmatpush1.bf16.msra.mxu0 0
        %4520 = vmatprep.subr.bf16.mxu0 0
        %4521 = vmatpush1.bf16.msra.mxu0 0
        %4522 = vmatprep.subr.bf16.mxu0 0
        %4523 = vmatpush1.bf16.msra.mxu0 0
        %4524 = vmatprep.mubr.bf16.mxu0 0
        %4525 = vmatmul.mubr.bf16.gmra.mrb[0].mxu0 %v4490
        %v4526 = vpop.f32.mrb[0].mxu0
        %v4527 = vadd.f32 0.0, %v4526
        %v4528 = vpop.f32.mrb[0].mxu0
        %v4529 = vadd.f32 0.0, %v4528
        %v4530 = vpop.f32.mrb[0].mxu0
        %v4531 = vpop.f32.mrb[0].mxu0
        %4532 = vdwg.mxu0
        %v4533 = vadd.f32 %v4485, %v4527
        %v4534 = vadd.f32 %v4486, %v4529
        %s4535 = scalar_lea.vmem %s11, 32
        %v4536 = vld [vmem:[%s4535] sm:$0xf]
        %v4538 = vsel %vm2010, %v4536, 0
        %4540 = vmatprep.subr.bf16.mxu0 %v1990
        %4541 = vmatpush1.bf16.msra.mxu0 %v1989
        %4542 = vmatprep.subr.bf16.mxu0 0
        %4543 = vmatpush1.bf16.msra.mxu0 0
        %4544 = vmatprep.subr.bf16.mxu0 0
        %4545 = vmatpush1.bf16.msra.mxu0 0
        %4546 = vmatprep.subr.bf16.mxu0 0
        %4547 = vmatpush1.bf16.msra.mxu0 0
        %4548 = vmatprep.subr.bf16.mxu0 0
        %4549 = vmatpush1.bf16.msra.mxu0 0
        %4550 = vmatprep.subr.bf16.mxu0 0
        %4551 = vmatpush1.bf16.msra.mxu0 0
        %4552 = vmatprep.subr.bf16.mxu0 0
        %4553 = vmatpush1.bf16.msra.mxu0 0
        %4554 = vmatprep.subr.bf16.mxu0 0
        %4555 = vmatpush1.bf16.msra.mxu0 0
        %4556 = vmatprep.subr.bf16.mxu0 0
        %4557 = vmatpush1.bf16.msra.mxu0 0
        %4558 = vmatprep.subr.bf16.mxu0 0
        %4559 = vmatpush1.bf16.msra.mxu0 0
        %4560 = vmatprep.subr.bf16.mxu0 0
        %4561 = vmatpush1.bf16.msra.mxu0 0
        %4562 = vmatprep.subr.bf16.mxu0 0
        %4563 = vmatpush1.bf16.msra.mxu0 0
        %4564 = vmatprep.subr.bf16.mxu0 0
        %4565 = vmatpush1.bf16.msra.mxu0 0
        %4566 = vmatprep.subr.bf16.mxu0 0
        %4567 = vmatpush1.bf16.msra.mxu0 0
        %4568 = vmatprep.subr.bf16.mxu0 0
        %4569 = vmatpush1.bf16.msra.mxu0 0
        %4570 = vmatprep.subr.bf16.mxu0 0
        %4571 = vmatpush1.bf16.msra.mxu0 0
        %4572 = vmatprep.mubr.bf16.mxu0 0
        %4573 = vmatmul.mubr.bf16.gmra.mrb[0].mxu0 %v4538
        %v4574 = vpop.f32.mrb[0].mxu0
        %v4575 = vadd.f32 0.0, %v4574
        %v4576 = vpop.f32.mrb[0].mxu0
        %v4577 = vadd.f32 0.0, %v4576
        %v4578 = vpop.f32.mrb[0].mxu0
        %v4579 = vpop.f32.mrb[0].mxu0
        %4580 = vdwg.mxu0
        %v4581 = vadd.f32 %v4533, %v4575
        %v4582 = vadd.f32 %v4534, %v4577
        %v4583 = vld [vmem:[%s12] sm:$0xff]
        %4585 = vset.pattern.permute.xlu0 0
        %4586 = vperm.xlu0 %4585, %v4583
        %v4587 = vpop.permute.xlu0 %4586
        %v4589 = vadd.f32 %v4581, %v4587
        %v4590 = vadd.f32 %v4582, %v4587
        %v4591 = vmax.f32 %v4589, 0.0
        %v4592 = vmax.f32 %v4590, 0.0
        %v4593 = vld [vmem:[%s13] sm:$0xf]
        %4594 = vrot.lane.b32.xlu0 %v4591, 17
        %v4595 = vpop.permute.xlu0 %4594
        %4596 = vrot.lane.b32.xlu0 %v4592, 17
        %v4597 = vpop.permute.xlu0 %4596
        %v4598 = vsel %vm534, %v4595, %v4597
        %v4599 = vsel %vm534, %v4597, %v4595
        %v4600 = vmul.f32 %v4599, %v540
        %v4601 = vmul.f32 %v4598, %v544
        %v4602 = vpack.c.bf16 %v4600, %v4600
        %v4603 = vpack.c.bf16 %v4601, %v4601
        %s4604 = scalar_lea.vmem %s13, 4
        %v4605 = vld [vmem:[%s4604] sm:$0xf]
        %4606 = vrot.lane.b32.xlu0 %v4591, 16
        %v4607 = vpop.permute.xlu0 %4606
        %4608 = vrot.lane.b32.xlu0 %v4592, 16
        %v4609 = vpop.permute.xlu0 %4608
        %v4610 = vsel %vm555, %v4607, %v4609
        %v4611 = vsel %vm555, %v4609, %v4607
        %v4612 = vmul.f32 %v4611, %v561
        %v4613 = vmul.f32 %v4610, %v565
        %v4614 = vpack.c.bf16 %v4612, %v4612
        %v4615 = vpack.c.bf16 %v4613, %v4613
        %v4617 = vsel %vm570, %v4605, 0
        %v4620 = vsel %vm574, %v4614, 0
        %v4623 = vsel %vm574, %v4615, 0
        %4625 = vmatprep.subr.bf16.mxu0 %v4623
        %4626 = vmatpush1.bf16.msra.mxu0 %v4620
        %4627 = vmatprep.subr.bf16.mxu0 0
        %4628 = vmatpush1.bf16.msra.mxu0 0
        %4629 = vmatprep.subr.bf16.mxu0 0
        %4630 = vmatpush1.bf16.msra.mxu0 0
        %4631 = vmatprep.subr.bf16.mxu0 0
        %4632 = vmatpush1.bf16.msra.mxu0 0
        %4633 = vmatprep.subr.bf16.mxu0 0
        %4634 = vmatpush1.bf16.msra.mxu0 0
        %4635 = vmatprep.subr.bf16.mxu0 0
        %4636 = vmatpush1.bf16.msra.mxu0 0
        %4637 = vmatprep.subr.bf16.mxu0 0
        %4638 = vmatpush1.bf16.msra.mxu0 0
        %4639 = vmatprep.subr.bf16.mxu0 0
        %4640 = vmatpush1.bf16.msra.mxu0 0
        %4641 = vmatprep.subr.bf16.mxu0 0
        %4642 = vmatpush1.bf16.msra.mxu0 0
        %4643 = vmatprep.subr.bf16.mxu0 0
        %4644 = vmatpush1.bf16.msra.mxu0 0
        %4645 = vmatprep.subr.bf16.mxu0 0
        %4646 = vmatpush1.bf16.msra.mxu0 0
        %4647 = vmatprep.subr.bf16.mxu0 0
        %4648 = vmatpush1.bf16.msra.mxu0 0
        %4649 = vmatprep.subr.bf16.mxu0 0
        %4650 = vmatpush1.bf16.msra.mxu0 0
        %4651 = vmatprep.subr.bf16.mxu0 0
        %4652 = vmatpush1.bf16.msra.mxu0 0
        %4653 = vmatprep.subr.bf16.mxu0 0
        %4654 = vmatpush1.bf16.msra.mxu0 0
        %4655 = vmatprep.subr.bf16.mxu0 0
        %4656 = vmatpush1.bf16.msra.mxu0 0
        %4657 = vmatprep.mubr.bf16.mxu0 0
        %4658 = vmatmul.mubr.bf16.gmra.mrb[0].mxu0 %v4617
        %v4659 = vpop.f32.mrb[0].mxu0
        %v4660 = vadd.f32 0.0, %v4659
        %v4661 = vpop.f32.mrb[0].mxu0
        %v4662 = vadd.f32 0.0, %v4661
        %v4663 = vpop.f32.mrb[0].mxu0
        %v4664 = vpop.f32.mrb[0].mxu0
        %4665 = vdwg.mxu0
        %v4667 = vsel %vm570, %v4593, 0
        %v4670 = vsel %vm574, %v4602, 0
        %v4673 = vsel %vm574, %v4603, 0
        %4675 = vmatprep.subr.bf16.mxu0 %v4673
        %4676 = vmatpush1.bf16.msra.mxu0 %v4670
        %4677 = vmatprep.subr.bf16.mxu0 0
        %4678 = vmatpush1.bf16.msra.mxu0 0
        %4679 = vmatprep.subr.bf16.mxu0 0
        %4680 = vmatpush1.bf16.msra.mxu0 0
        %4681 = vmatprep.subr.bf16.mxu0 0
        %4682 = vmatpush1.bf16.msra.mxu0 0
        %4683 = vmatprep.subr.bf16.mxu0 0
        %4684 = vmatpush1.bf16.msra.mxu0 0
        %4685 = vmatprep.subr.bf16.mxu0 0
        %4686 = vmatpush1.bf16.msra.mxu0 0
        %4687 = vmatprep.subr.bf16.mxu0 0
        %4688 = vmatpush1.bf16.msra.mxu0 0
        %4689 = vmatprep.subr.bf16.mxu0 0
        %4690 = vmatpush1.bf16.msra.mxu0 0
        %4691 = vmatprep.subr.bf16.mxu0 0
        %4692 = vmatpush1.bf16.msra.mxu0 0
        %4693 = vmatprep.subr.bf16.mxu0 0
        %4694 = vmatpush1.bf16.msra.mxu0 0
        %4695 = vmatprep.subr.bf16.mxu0 0
        %4696 = vmatpush1.bf16.msra.mxu0 0
        %4697 = vmatprep.subr.bf16.mxu0 0
        %4698 = vmatpush1.bf16.msra.mxu0 0
        %4699 = vmatprep.subr.bf16.mxu0 0
        %4700 = vmatpush1.bf16.msra.mxu0 0
        %4701 = vmatprep.subr.bf16.mxu0 0
        %4702 = vmatpush1.bf16.msra.mxu0 0
        %4703 = vmatprep.subr.bf16.mxu0 0
        %4704 = vmatpush1.bf16.msra.mxu0 0
        %4705 = vmatprep.subr.bf16.mxu0 0
        %4706 = vmatpush1.bf16.msra.mxu0 0
        %4707 = vmatprep.mubr.bf16.mxu0 0
        %4708 = vmatmul.mubr.bf16.gmra.mrb[0].mxu0 %v4667
        %v4709 = vpop.f32.mrb[0].mxu0
        %v4710 = vadd.f32 %v4660, %v4709
        %v4711 = vpop.f32.mrb[0].mxu0
        %v4712 = vadd.f32 %v4662, %v4711
        %v4713 = vpop.f32.mrb[0].mxu0
        %v4714 = vpop.f32.mrb[0].mxu0
        %4715 = vdwg.mxu0
        %s4716 = scalar_lea.vmem %s13, 8
        %v4717 = vld [vmem:[%s4716] sm:$0xf]
        %4718 = vrot.lane.b32.xlu0 %v4591, 15
        %v4719 = vpop.permute.xlu0 %4718
        %4720 = vrot.lane.b32.xlu0 %v4592, 15
        %v4721 = vpop.permute.xlu0 %4720
        %v4722 = vsel %vm678, %v4719, %v4721
        %v4723 = vsel %vm678, %v4721, %v4719
        %v4724 = vmul.f32 %v4723, %v684
        %v4725 = vmul.f32 %v4722, %v688
        %v4726 = vpack.c.bf16 %v4724, %v4724
        %v4727 = vpack.c.bf16 %v4725, %v4725
        %v4729 = vsel %vm570, %v4717, 0
        %v4732 = vsel %vm574, %v4726, 0
        %v4735 = vsel %vm574, %v4727, 0
        %4737 = vmatprep.subr.bf16.mxu0 %v4735
        %4738 = vmatpush1.bf16.msra.mxu0 %v4732
        %4739 = vmatprep.subr.bf16.mxu0 0
        %4740 = vmatpush1.bf16.msra.mxu0 0
        %4741 = vmatprep.subr.bf16.mxu0 0
        %4742 = vmatpush1.bf16.msra.mxu0 0
        %4743 = vmatprep.subr.bf16.mxu0 0
        %4744 = vmatpush1.bf16.msra.mxu0 0
        %4745 = vmatprep.subr.bf16.mxu0 0
        %4746 = vmatpush1.bf16.msra.mxu0 0
        %4747 = vmatprep.subr.bf16.mxu0 0
        %4748 = vmatpush1.bf16.msra.mxu0 0
        %4749 = vmatprep.subr.bf16.mxu0 0
        %4750 = vmatpush1.bf16.msra.mxu0 0
        %4751 = vmatprep.subr.bf16.mxu0 0
        %4752 = vmatpush1.bf16.msra.mxu0 0
        %4753 = vmatprep.subr.bf16.mxu0 0
        %4754 = vmatpush1.bf16.msra.mxu0 0
        %4755 = vmatprep.subr.bf16.mxu0 0
        %4756 = vmatpush1.bf16.msra.mxu0 0
        %4757 = vmatprep.subr.bf16.mxu0 0
        %4758 = vmatpush1.bf16.msra.mxu0 0
        %4759 = vmatprep.subr.bf16.mxu0 0
        %4760 = vmatpush1.bf16.msra.mxu0 0
        %4761 = vmatprep.subr.bf16.mxu0 0
        %4762 = vmatpush1.bf16.msra.mxu0 0
        %4763 = vmatprep.subr.bf16.mxu0 0
        %4764 = vmatpush1.bf16.msra.mxu0 0
        %4765 = vmatprep.subr.bf16.mxu0 0
        %4766 = vmatpush1.bf16.msra.mxu0 0
        %4767 = vmatprep.subr.bf16.mxu0 0
        %4768 = vmatpush1.bf16.msra.mxu0 0
        %4769 = vmatprep.mubr.bf16.mxu0 0
        %4770 = vmatmul.mubr.bf16.gmra.mrb[0].mxu0 %v4729
        %v4771 = vpop.f32.mrb[0].mxu0
        %v4772 = vadd.f32 0.0, %v4771
        %v4773 = vpop.f32.mrb[0].mxu0
        %v4774 = vadd.f32 0.0, %v4773
        %v4775 = vpop.f32.mrb[0].mxu0
        %v4776 = vpop.f32.mrb[0].mxu0
        %4777 = vdwg.mxu0
        %v4778 = vadd.f32 %v4710, %v4772
        %v4779 = vadd.f32 %v4712, %v4774
        %s4780 = scalar_lea.vmem %s13, 12
        %v4781 = vld [vmem:[%s4780] sm:$0xf]
        %4782 = vrot.lane.b32.xlu0 %v4591, 1
        %v4783 = vpop.permute.xlu0 %4782
        %4784 = vrot.lane.b32.xlu0 %v4592, 1
        %v4785 = vpop.permute.xlu0 %4784
        %v4786 = vsel %vm751, %v4783, %v4785
        %v4787 = vsel %vm751, %v4785, %v4783
        %v4788 = vmul.f32 %v4787, %v757
        %v4789 = vmul.f32 %v4786, %v761
        %v4790 = vpack.c.bf16 %v4788, %v4788
        %v4791 = vpack.c.bf16 %v4789, %v4789
        %v4793 = vsel %vm570, %v4781, 0
        %v4796 = vsel %vm574, %v4790, 0
        %v4799 = vsel %vm574, %v4791, 0
        %4801 = vmatprep.subr.bf16.mxu0 %v4799
        %4802 = vmatpush1.bf16.msra.mxu0 %v4796
        %4803 = vmatprep.subr.bf16.mxu0 0
        %4804 = vmatpush1.bf16.msra.mxu0 0
        %4805 = vmatprep.subr.bf16.mxu0 0
        %4806 = vmatpush1.bf16.msra.mxu0 0
        %4807 = vmatprep.subr.bf16.mxu0 0
        %4808 = vmatpush1.bf16.msra.mxu0 0
        %4809 = vmatprep.subr.bf16.mxu0 0
        %4810 = vmatpush1.bf16.msra.mxu0 0
        %4811 = vmatprep.subr.bf16.mxu0 0
        %4812 = vmatpush1.bf16.msra.mxu0 0
        %4813 = vmatprep.subr.bf16.mxu0 0
        %4814 = vmatpush1.bf16.msra.mxu0 0
        %4815 = vmatprep.subr.bf16.mxu0 0
        %4816 = vmatpush1.bf16.msra.mxu0 0
        %4817 = vmatprep.subr.bf16.mxu0 0
        %4818 = vmatpush1.bf16.msra.mxu0 0
        %4819 = vmatprep.subr.bf16.mxu0 0
        %4820 = vmatpush1.bf16.msra.mxu0 0
        %4821 = vmatprep.subr.bf16.mxu0 0
        %4822 = vmatpush1.bf16.msra.mxu0 0
        %4823 = vmatprep.subr.bf16.mxu0 0
        %4824 = vmatpush1.bf16.msra.mxu0 0
        %4825 = vmatprep.subr.bf16.mxu0 0
        %4826 = vmatpush1.bf16.msra.mxu0 0
        %4827 = vmatprep.subr.bf16.mxu0 0
        %4828 = vmatpush1.bf16.msra.mxu0 0
        %4829 = vmatprep.subr.bf16.mxu0 0
        %4830 = vmatpush1.bf16.msra.mxu0 0
        %4831 = vmatprep.subr.bf16.mxu0 0
        %4832 = vmatpush1.bf16.msra.mxu0 0
        %4833 = vmatprep.mubr.bf16.mxu0 0
        %4834 = vmatmul.mubr.bf16.gmra.mrb[0].mxu0 %v4793
        %v4835 = vpop.f32.mrb[0].mxu0
        %v4836 = vadd.f32 0.0, %v4835
        %v4837 = vpop.f32.mrb[0].mxu0
        %v4838 = vadd.f32 0.0, %v4837
        %v4839 = vpop.f32.mrb[0].mxu0
        %v4840 = vpop.f32.mrb[0].mxu0
        %4841 = vdwg.mxu0
        %v4842 = vadd.f32 %v4778, %v4836
        %v4843 = vadd.f32 %v4779, %v4838
        %s4844 = scalar_lea.vmem %s13, 16
        %v4845 = vld [vmem:[%s4844] sm:$0xf]
        %v4846 = vpack.c.bf16 %v4591, %v4591
        %v4847 = vpack.c.bf16 %v4592, %v4592
        %v4849 = vsel %vm570, %v4845, 0
        %v4852 = vsel %vm574, %v4846, 0
        %v4855 = vsel %vm574, %v4847, 0
        %4857 = vmatprep.subr.bf16.mxu0 %v4855
        %4858 = vmatpush1.bf16.msra.mxu0 %v4852
        %4859 = vmatprep.subr.bf16.mxu0 0
        %4860 = vmatpush1.bf16.msra.mxu0 0
        %4861 = vmatprep.subr.bf16.mxu0 0
        %4862 = vmatpush1.bf16.msra.mxu0 0
        %4863 = vmatprep.subr.bf16.mxu0 0
        %4864 = vmatpush1.bf16.msra.mxu0 0
        %4865 = vmatprep.subr.bf16.mxu0 0
        %4866 = vmatpush1.bf16.msra.mxu0 0
        %4867 = vmatprep.subr.bf16.mxu0 0
        %4868 = vmatpush1.bf16.msra.mxu0 0
        %4869 = vmatprep.subr.bf16.mxu0 0
        %4870 = vmatpush1.bf16.msra.mxu0 0
        %4871 = vmatprep.subr.bf16.mxu0 0
        %4872 = vmatpush1.bf16.msra.mxu0 0
        %4873 = vmatprep.subr.bf16.mxu0 0
        %4874 = vmatpush1.bf16.msra.mxu0 0
        %4875 = vmatprep.subr.bf16.mxu0 0
        %4876 = vmatpush1.bf16.msra.mxu0 0
        %4877 = vmatprep.subr.bf16.mxu0 0
        %4878 = vmatpush1.bf16.msra.mxu0 0
        %4879 = vmatprep.subr.bf16.mxu0 0
        %4880 = vmatpush1.bf16.msra.mxu0 0
        %4881 = vmatprep.subr.bf16.mxu0 0
        %4882 = vmatpush1.bf16.msra.mxu0 0
        %4883 = vmatprep.subr.bf16.mxu0 0
        %4884 = vmatpush1.bf16.msra.mxu0 0
        %4885 = vmatprep.subr.bf16.mxu0 0
        %4886 = vmatpush1.bf16.msra.mxu0 0
        %4887 = vmatprep.subr.bf16.mxu0 0
        %4888 = vmatpush1.bf16.msra.mxu0 0
        %4889 = vmatprep.mubr.bf16.mxu0 0
        %4890 = vmatmul.mubr.bf16.gmra.mrb[0].mxu0 %v4849
        %v4891 = vpop.f32.mrb[0].mxu0
        %v4892 = vadd.f32 0.0, %v4891
        %v4893 = vpop.f32.mrb[0].mxu0
        %v4894 = vadd.f32 0.0, %v4893
        %v4895 = vpop.f32.mrb[0].mxu0
        %v4896 = vpop.f32.mrb[0].mxu0
        %4897 = vdwg.mxu0
        %v4898 = vadd.f32 %v4842, %v4892
        %v4899 = vadd.f32 %v4843, %v4894
        %s4900 = scalar_lea.vmem %s13, 20
        %v4901 = vld [vmem:[%s4900] sm:$0xf]
        %4902 = vrot.lane.b32.xlu0 %v4591, 127
        %v4903 = vpop.permute.xlu0 %4902
        %4904 = vrot.lane.b32.xlu0 %v4592, 127
        %v4905 = vpop.permute.xlu0 %4904
        %v4906 = vsel %vm880, %v4903, %v4905
        %v4907 = vsel %vm880, %v4905, %v4903
        %v4908 = vmul.f32 %v4906, %v886
        %v4909 = vmul.f32 %v4907, %v890
        %v4910 = vpack.c.bf16 %v4908, %v4908
        %v4911 = vpack.c.bf16 %v4909, %v4909
        %v4913 = vsel %vm570, %v4901, 0
        %v4916 = vsel %vm574, %v4910, 0
        %v4919 = vsel %vm574, %v4911, 0
        %4921 = vmatprep.subr.bf16.mxu0 %v4919
        %4922 = vmatpush1.bf16.msra.mxu0 %v4916
        %4923 = vmatprep.subr.bf16.mxu0 0
        %4924 = vmatpush1.bf16.msra.mxu0 0
        %4925 = vmatprep.subr.bf16.mxu0 0
        %4926 = vmatpush1.bf16.msra.mxu0 0
        %4927 = vmatprep.subr.bf16.mxu0 0
        %4928 = vmatpush1.bf16.msra.mxu0 0
        %4929 = vmatprep.subr.bf16.mxu0 0
        %4930 = vmatpush1.bf16.msra.mxu0 0
        %4931 = vmatprep.subr.bf16.mxu0 0
        %4932 = vmatpush1.bf16.msra.mxu0 0
        %4933 = vmatprep.subr.bf16.mxu0 0
        %4934 = vmatpush1.bf16.msra.mxu0 0
        %4935 = vmatprep.subr.bf16.mxu0 0
        %4936 = vmatpush1.bf16.msra.mxu0 0
        %4937 = vmatprep.subr.bf16.mxu0 0
        %4938 = vmatpush1.bf16.msra.mxu0 0
        %4939 = vmatprep.subr.bf16.mxu0 0
        %4940 = vmatpush1.bf16.msra.mxu0 0
        %4941 = vmatprep.subr.bf16.mxu0 0
        %4942 = vmatpush1.bf16.msra.mxu0 0
        %4943 = vmatprep.subr.bf16.mxu0 0
        %4944 = vmatpush1.bf16.msra.mxu0 0
        %4945 = vmatprep.subr.bf16.mxu0 0
        %4946 = vmatpush1.bf16.msra.mxu0 0
        %4947 = vmatprep.subr.bf16.mxu0 0
        %4948 = vmatpush1.bf16.msra.mxu0 0
        %4949 = vmatprep.subr.bf16.mxu0 0
        %4950 = vmatpush1.bf16.msra.mxu0 0
        %4951 = vmatprep.subr.bf16.mxu0 0
        %4952 = vmatpush1.bf16.msra.mxu0 0
        %4953 = vmatprep.mubr.bf16.mxu0 0
        %4954 = vmatmul.mubr.bf16.gmra.mrb[0].mxu0 %v4913
        %v4955 = vpop.f32.mrb[0].mxu0
        %v4956 = vadd.f32 0.0, %v4955
        %v4957 = vpop.f32.mrb[0].mxu0
        %v4958 = vadd.f32 0.0, %v4957
        %v4959 = vpop.f32.mrb[0].mxu0
        %v4960 = vpop.f32.mrb[0].mxu0
        %4961 = vdwg.mxu0
        %v4962 = vadd.f32 %v4898, %v4956
        %v4963 = vadd.f32 %v4899, %v4958
        %s4964 = scalar_lea.vmem %s13, 24
        %v4965 = vld [vmem:[%s4964] sm:$0xf]
        %4966 = vrot.lane.b32.xlu0 %v4591, 113
        %v4967 = vpop.permute.xlu0 %4966
        %4968 = vrot.lane.b32.xlu0 %v4592, 113
        %v4969 = vpop.permute.xlu0 %4968
        %v4970 = vsel %vm953, %v4967, %v4969
        %v4971 = vsel %vm953, %v4969, %v4967
        %v4972 = vmul.f32 %v4970, %v959
        %v4973 = vmul.f32 %v4971, %v963
        %v4974 = vpack.c.bf16 %v4972, %v4972
        %v4975 = vpack.c.bf16 %v4973, %v4973
        %v4977 = vsel %vm570, %v4965, 0
        %v4980 = vsel %vm574, %v4974, 0
        %v4983 = vsel %vm574, %v4975, 0
        %4985 = vmatprep.subr.bf16.mxu0 %v4983
        %4986 = vmatpush1.bf16.msra.mxu0 %v4980
        %4987 = vmatprep.subr.bf16.mxu0 0
        %4988 = vmatpush1.bf16.msra.mxu0 0
        %4989 = vmatprep.subr.bf16.mxu0 0
        %4990 = vmatpush1.bf16.msra.mxu0 0
        %4991 = vmatprep.subr.bf16.mxu0 0
        %4992 = vmatpush1.bf16.msra.mxu0 0
        %4993 = vmatprep.subr.bf16.mxu0 0
        %4994 = vmatpush1.bf16.msra.mxu0 0
        %4995 = vmatprep.subr.bf16.mxu0 0
        %4996 = vmatpush1.bf16.msra.mxu0 0
        %4997 = vmatprep.subr.bf16.mxu0 0
        %4998 = vmatpush1.bf16.msra.mxu0 0
        %4999 = vmatprep.subr.bf16.mxu0 0
        %5000 = vmatpush1.bf16.msra.mxu0 0
        %5001 = vmatprep.subr.bf16.mxu0 0
        %5002 = vmatpush1.bf16.msra.mxu0 0
        %5003 = vmatprep.subr.bf16.mxu0 0
        %5004 = vmatpush1.bf16.msra.mxu0 0
        %5005 = vmatprep.subr.bf16.mxu0 0
        %5006 = vmatpush1.bf16.msra.mxu0 0
        %5007 = vmatprep.subr.bf16.mxu0 0
        %5008 = vmatpush1.bf16.msra.mxu0 0
        %5009 = vmatprep.subr.bf16.mxu0 0
        %5010 = vmatpush1.bf16.msra.mxu0 0
        %5011 = vmatprep.subr.bf16.mxu0 0
        %5012 = vmatpush1.bf16.msra.mxu0 0
        %5013 = vmatprep.subr.bf16.mxu0 0
        %5014 = vmatpush1.bf16.msra.mxu0 0
        %5015 = vmatprep.subr.bf16.mxu0 0
        %5016 = vmatpush1.bf16.msra.mxu0 0
        %5017 = vmatprep.mubr.bf16.mxu0 0
        %5018 = vmatmul.mubr.bf16.gmra.mrb[0].mxu0 %v4977
        %v5019 = vpop.f32.mrb[0].mxu0
        %v5020 = vadd.f32 0.0, %v5019
        %v5021 = vpop.f32.mrb[0].mxu0
        %v5022 = vadd.f32 0.0, %v5021
        %v5023 = vpop.f32.mrb[0].mxu0
        %v5024 = vpop.f32.mrb[0].mxu0
        %5025 = vdwg.mxu0
        %v5026 = vadd.f32 %v4962, %v5020
        %v5027 = vadd.f32 %v4963, %v5022
        %s5028 = scalar_lea.vmem %s13, 28
        %v5029 = vld [vmem:[%s5028] sm:$0xf]
        %5030 = vrot.lane.b32.xlu0 %v4591, 112
        %v5031 = vpop.permute.xlu0 %5030
        %5032 = vrot.lane.b32.xlu0 %v4592, 112
        %v5033 = vpop.permute.xlu0 %5032
        %v5034 = vsel %vm1026, %v5031, %v5033
        %v5035 = vsel %vm1026, %v5033, %v5031
        %v5036 = vmul.f32 %v5034, %v1032
        %v5037 = vmul.f32 %v5035, %v1036
        %v5038 = vpack.c.bf16 %v5036, %v5036
        %v5039 = vpack.c.bf16 %v5037, %v5037
        %v5041 = vsel %vm570, %v5029, 0
        %v5044 = vsel %vm574, %v5038, 0
        %v5047 = vsel %vm574, %v5039, 0
        %5049 = vmatprep.subr.bf16.mxu0 %v5047
        %5050 = vmatpush1.bf16.msra.mxu0 %v5044
        %5051 = vmatprep.subr.bf16.mxu0 0
        %5052 = vmatpush1.bf16.msra.mxu0 0
        %5053 = vmatprep.subr.bf16.mxu0 0
        %5054 = vmatpush1.bf16.msra.mxu0 0
        %5055 = vmatprep.subr.bf16.mxu0 0
        %5056 = vmatpush1.bf16.msra.mxu0 0
        %5057 = vmatprep.subr.bf16.mxu0 0
        %5058 = vmatpush1.bf16.msra.mxu0 0
        %5059 = vmatprep.subr.bf16.mxu0 0
        %5060 = vmatpush1.bf16.msra.mxu0 0
        %5061 = vmatprep.subr.bf16.mxu0 0
        %5062 = vmatpush1.bf16.msra.mxu0 0
        %5063 = vmatprep.subr.bf16.mxu0 0
        %5064 = vmatpush1.bf16.msra.mxu0 0
        %5065 = vmatprep.subr.bf16.mxu0 0
        %5066 = vmatpush1.bf16.msra.mxu0 0
        %5067 = vmatprep.subr.bf16.mxu0 0
        %5068 = vmatpush1.bf16.msra.mxu0 0
        %5069 = vmatprep.subr.bf16.mxu0 0
        %5070 = vmatpush1.bf16.msra.mxu0 0
        %5071 = vmatprep.subr.bf16.mxu0 0
        %5072 = vmatpush1.bf16.msra.mxu0 0
        %5073 = vmatprep.subr.bf16.mxu0 0
        %5074 = vmatpush1.bf16.msra.mxu0 0
        %5075 = vmatprep.subr.bf16.mxu0 0
        %5076 = vmatpush1.bf16.msra.mxu0 0
        %5077 = vmatprep.subr.bf16.mxu0 0
        %5078 = vmatpush1.bf16.msra.mxu0 0
        %5079 = vmatprep.subr.bf16.mxu0 0
        %5080 = vmatpush1.bf16.msra.mxu0 0
        %5081 = vmatprep.mubr.bf16.mxu0 0
        %5082 = vmatmul.mubr.bf16.gmra.mrb[0].mxu0 %v5041
        %v5083 = vpop.f32.mrb[0].mxu0
        %v5084 = vadd.f32 0.0, %v5083
        %v5085 = vpop.f32.mrb[0].mxu0
        %v5086 = vadd.f32 0.0, %v5085
        %v5087 = vpop.f32.mrb[0].mxu0
        %v5088 = vpop.f32.mrb[0].mxu0
        %5089 = vdwg.mxu0
        %v5090 = vadd.f32 %v5026, %v5084
        %v5091 = vadd.f32 %v5027, %v5086
        %s5092 = scalar_lea.vmem %s13, 32
        %v5093 = vld [vmem:[%s5092] sm:$0xf]
        %5094 = vrot.lane.b32.xlu0 %v4591, 111
        %v5095 = vpop.permute.xlu0 %5094
        %5096 = vrot.lane.b32.xlu0 %v4592, 111
        %v5097 = vpop.permute.xlu0 %5096
        %v5098 = vsel %vm1099, %v5095, %v5097
        %v5099 = vsel %vm1099, %v5097, %v5095
        %v5100 = vmul.f32 %v5098, %v1105
        %v5101 = vmul.f32 %v5099, %v1109
        %v5102 = vpack.c.bf16 %v5100, %v5100
        %v5103 = vpack.c.bf16 %v5101, %v5101
        %v5105 = vsel %vm570, %v5093, 0
        %v5108 = vsel %vm574, %v5102, 0
        %v5111 = vsel %vm574, %v5103, 0
        %5113 = vmatprep.subr.bf16.mxu0 %v5111
        %5114 = vmatpush1.bf16.msra.mxu0 %v5108
        %5115 = vmatprep.subr.bf16.mxu0 0
        %5116 = vmatpush1.bf16.msra.mxu0 0
        %5117 = vmatprep.subr.bf16.mxu0 0
        %5118 = vmatpush1.bf16.msra.mxu0 0
        %5119 = vmatprep.subr.bf16.mxu0 0
        %5120 = vmatpush1.bf16.msra.mxu0 0
        %5121 = vmatprep.subr.bf16.mxu0 0
        %5122 = vmatpush1.bf16.msra.mxu0 0
        %5123 = vmatprep.subr.bf16.mxu0 0
        %5124 = vmatpush1.bf16.msra.mxu0 0
        %5125 = vmatprep.subr.bf16.mxu0 0
        %5126 = vmatpush1.bf16.msra.mxu0 0
        %5127 = vmatprep.subr.bf16.mxu0 0
        %5128 = vmatpush1.bf16.msra.mxu0 0
        %5129 = vmatprep.subr.bf16.mxu0 0
        %5130 = vmatpush1.bf16.msra.mxu0 0
        %5131 = vmatprep.subr.bf16.mxu0 0
        %5132 = vmatpush1.bf16.msra.mxu0 0
        %5133 = vmatprep.subr.bf16.mxu0 0
        %5134 = vmatpush1.bf16.msra.mxu0 0
        %5135 = vmatprep.subr.bf16.mxu0 0
        %5136 = vmatpush1.bf16.msra.mxu0 0
        %5137 = vmatprep.subr.bf16.mxu0 0
        %5138 = vmatpush1.bf16.msra.mxu0 0
        %5139 = vmatprep.subr.bf16.mxu0 0
        %5140 = vmatpush1.bf16.msra.mxu0 0
        %5141 = vmatprep.subr.bf16.mxu0 0
        %5142 = vmatpush1.bf16.msra.mxu0 0
        %5143 = vmatprep.subr.bf16.mxu0 0
        %5144 = vmatpush1.bf16.msra.mxu0 0
        %5145 = vmatprep.mubr.bf16.mxu0 0
        %5146 = vmatmul.mubr.bf16.gmra.mrb[0].mxu0 %v5105
        %v5147 = vpop.f32.mrb[0].mxu0
        %v5148 = vadd.f32 0.0, %v5147
        %v5149 = vpop.f32.mrb[0].mxu0
        %v5150 = vadd.f32 0.0, %v5149
        %v5151 = vpop.f32.mrb[0].mxu0
        %v5152 = vpop.f32.mrb[0].mxu0
        %5153 = vdwg.mxu0
        %v5154 = vadd.f32 %v5090, %v5148
        %v5155 = vadd.f32 %v5091, %v5150
        %v5156 = vld [vmem:[%s14] sm:$0xf]
        %v5158 = vsel %vm570, %v5156, 0
        %5160 = vmatprep.subr.bf16.mxu0 %v1332
        %5161 = vmatpush1.bf16.msra.mxu0 %v1329
        %5162 = vmatprep.subr.bf16.mxu0 0
        %5163 = vmatpush1.bf16.msra.mxu0 0
        %5164 = vmatprep.subr.bf16.mxu0 0
        %5165 = vmatpush1.bf16.msra.mxu0 0
        %5166 = vmatprep.subr.bf16.mxu0 0
        %5167 = vmatpush1.bf16.msra.mxu0 0
        %5168 = vmatprep.subr.bf16.mxu0 0
        %5169 = vmatpush1.bf16.msra.mxu0 0
        %5170 = vmatprep.subr.bf16.mxu0 0
        %5171 = vmatpush1.bf16.msra.mxu0 0
        %5172 = vmatprep.subr.bf16.mxu0 0
        %5173 = vmatpush1.bf16.msra.mxu0 0
        %5174 = vmatprep.subr.bf16.mxu0 0
        %5175 = vmatpush1.bf16.msra.mxu0 0
        %5176 = vmatprep.subr.bf16.mxu0 0
        %5177 = vmatpush1.bf16.msra.mxu0 0
        %5178 = vmatprep.subr.bf16.mxu0 0
        %5179 = vmatpush1.bf16.msra.mxu0 0
        %5180 = vmatprep.subr.bf16.mxu0 0
        %5181 = vmatpush1.bf16.msra.mxu0 0
        %5182 = vmatprep.subr.bf16.mxu0 0
        %5183 = vmatpush1.bf16.msra.mxu0 0
        %5184 = vmatprep.subr.bf16.mxu0 0
        %5185 = vmatpush1.bf16.msra.mxu0 0
        %5186 = vmatprep.subr.bf16.mxu0 0
        %5187 = vmatpush1.bf16.msra.mxu0 0
        %5188 = vmatprep.subr.bf16.mxu0 0
        %5189 = vmatpush1.bf16.msra.mxu0 0
        %5190 = vmatprep.subr.bf16.mxu0 0
        %5191 = vmatpush1.bf16.msra.mxu0 0
        %5192 = vmatprep.mubr.bf16.mxu0 0
        %5193 = vmatmul.mubr.bf16.gmra.mrb[0].mxu0 %v5158
        %v5194 = vpop.f32.mrb[0].mxu0
        %v5195 = vadd.f32 0.0, %v5194
        %v5196 = vpop.f32.mrb[0].mxu0
        %v5197 = vadd.f32 0.0, %v5196
        %v5198 = vpop.f32.mrb[0].mxu0
        %v5199 = vpop.f32.mrb[0].mxu0
        %5200 = vdwg.mxu0
        %v5201 = vadd.f32 %v5154, %v5195
        %v5202 = vadd.f32 %v5155, %v5197
        %s5203 = scalar_lea.vmem %s14, 4
        %v5204 = vld [vmem:[%s5203] sm:$0xf]
        %v5206 = vsel %vm570, %v5204, 0
        %5208 = vmatprep.subr.bf16.mxu0 %v1275
        %5209 = vmatpush1.bf16.msra.mxu0 %v1272
        %5210 = vmatprep.subr.bf16.mxu0 0
        %5211 = vmatpush1.bf16.msra.mxu0 0
        %5212 = vmatprep.subr.bf16.mxu0 0
        %5213 = vmatpush1.bf16.msra.mxu0 0
        %5214 = vmatprep.subr.bf16.mxu0 0
        %5215 = vmatpush1.bf16.msra.mxu0 0
        %5216 = vmatprep.subr.bf16.mxu0 0
        %5217 = vmatpush1.bf16.msra.mxu0 0
        %5218 = vmatprep.subr.bf16.mxu0 0
        %5219 = vmatpush1.bf16.msra.mxu0 0
        %5220 = vmatprep.subr.bf16.mxu0 0
        %5221 = vmatpush1.bf16.msra.mxu0 0
        %5222 = vmatprep.subr.bf16.mxu0 0
        %5223 = vmatpush1.bf16.msra.mxu0 0
        %5224 = vmatprep.subr.bf16.mxu0 0
        %5225 = vmatpush1.bf16.msra.mxu0 0
        %5226 = vmatprep.subr.bf16.mxu0 0
        %5227 = vmatpush1.bf16.msra.mxu0 0
        %5228 = vmatprep.subr.bf16.mxu0 0
        %5229 = vmatpush1.bf16.msra.mxu0 0
        %5230 = vmatprep.subr.bf16.mxu0 0
        %5231 = vmatpush1.bf16.msra.mxu0 0
        %5232 = vmatprep.subr.bf16.mxu0 0
        %5233 = vmatpush1.bf16.msra.mxu0 0
        %5234 = vmatprep.subr.bf16.mxu0 0
        %5235 = vmatpush1.bf16.msra.mxu0 0
        %5236 = vmatprep.subr.bf16.mxu0 0
        %5237 = vmatpush1.bf16.msra.mxu0 0
        %5238 = vmatprep.subr.bf16.mxu0 0
        %5239 = vmatpush1.bf16.msra.mxu0 0
        %5240 = vmatprep.mubr.bf16.mxu0 0
        %5241 = vmatmul.mubr.bf16.gmra.mrb[0].mxu0 %v5206
        %v5242 = vpop.f32.mrb[0].mxu0
        %v5243 = vadd.f32 0.0, %v5242
        %v5244 = vpop.f32.mrb[0].mxu0
        %v5245 = vadd.f32 0.0, %v5244
        %v5246 = vpop.f32.mrb[0].mxu0
        %v5247 = vpop.f32.mrb[0].mxu0
        %5248 = vdwg.mxu0
        %v5249 = vadd.f32 %v5201, %v5243
        %v5250 = vadd.f32 %v5202, %v5245
        %s5251 = scalar_lea.vmem %s14, 8
        %v5252 = vld [vmem:[%s5251] sm:$0xf]
        %v5254 = vsel %vm570, %v5252, 0
        %5256 = vmatprep.subr.bf16.mxu0 %v1392
        %5257 = vmatpush1.bf16.msra.mxu0 %v1389
        %5258 = vmatprep.subr.bf16.mxu0 0
        %5259 = vmatpush1.bf16.msra.mxu0 0
        %5260 = vmatprep.subr.bf16.mxu0 0
        %5261 = vmatpush1.bf16.msra.mxu0 0
        %5262 = vmatprep.subr.bf16.mxu0 0
        %5263 = vmatpush1.bf16.msra.mxu0 0
        %5264 = vmatprep.subr.bf16.mxu0 0
        %5265 = vmatpush1.bf16.msra.mxu0 0
        %5266 = vmatprep.subr.bf16.mxu0 0
        %5267 = vmatpush1.bf16.msra.mxu0 0
        %5268 = vmatprep.subr.bf16.mxu0 0
        %5269 = vmatpush1.bf16.msra.mxu0 0
        %5270 = vmatprep.subr.bf16.mxu0 0
        %5271 = vmatpush1.bf16.msra.mxu0 0
        %5272 = vmatprep.subr.bf16.mxu0 0
        %5273 = vmatpush1.bf16.msra.mxu0 0
        %5274 = vmatprep.subr.bf16.mxu0 0
        %5275 = vmatpush1.bf16.msra.mxu0 0
        %5276 = vmatprep.subr.bf16.mxu0 0
        %5277 = vmatpush1.bf16.msra.mxu0 0
        %5278 = vmatprep.subr.bf16.mxu0 0
        %5279 = vmatpush1.bf16.msra.mxu0 0
        %5280 = vmatprep.subr.bf16.mxu0 0
        %5281 = vmatpush1.bf16.msra.mxu0 0
        %5282 = vmatprep.subr.bf16.mxu0 0
        %5283 = vmatpush1.bf16.msra.mxu0 0
        %5284 = vmatprep.subr.bf16.mxu0 0
        %5285 = vmatpush1.bf16.msra.mxu0 0
        %5286 = vmatprep.subr.bf16.mxu0 0
        %5287 = vmatpush1.bf16.msra.mxu0 0
        %5288 = vmatprep.mubr.bf16.mxu0 0
        %5289 = vmatmul.mubr.bf16.gmra.mrb[0].mxu0 %v5254
        %v5290 = vpop.f32.mrb[0].mxu0
        %v5291 = vadd.f32 0.0, %v5290
        %v5292 = vpop.f32.mrb[0].mxu0
        %v5293 = vadd.f32 0.0, %v5292
        %v5294 = vpop.f32.mrb[0].mxu0
        %v5295 = vpop.f32.mrb[0].mxu0
        %5296 = vdwg.mxu0
        %v5297 = vadd.f32 %v5249, %v5291
        %v5298 = vadd.f32 %v5250, %v5293
        %s5299 = scalar_lea.vmem %s14, 12
        %v5300 = vld [vmem:[%s5299] sm:$0xf]
        %v5302 = vsel %vm570, %v5300, 0
        %5304 = vmatprep.subr.bf16.mxu0 %v1456
        %5305 = vmatpush1.bf16.msra.mxu0 %v1453
        %5306 = vmatprep.subr.bf16.mxu0 0
        %5307 = vmatpush1.bf16.msra.mxu0 0
        %5308 = vmatprep.subr.bf16.mxu0 0
        %5309 = vmatpush1.bf16.msra.mxu0 0
        %5310 = vmatprep.subr.bf16.mxu0 0
        %5311 = vmatpush1.bf16.msra.mxu0 0
        %5312 = vmatprep.subr.bf16.mxu0 0
        %5313 = vmatpush1.bf16.msra.mxu0 0
        %5314 = vmatprep.subr.bf16.mxu0 0
        %5315 = vmatpush1.bf16.msra.mxu0 0
        %5316 = vmatprep.subr.bf16.mxu0 0
        %5317 = vmatpush1.bf16.msra.mxu0 0
        %5318 = vmatprep.subr.bf16.mxu0 0
        %5319 = vmatpush1.bf16.msra.mxu0 0
        %5320 = vmatprep.subr.bf16.mxu0 0
        %5321 = vmatpush1.bf16.msra.mxu0 0
        %5322 = vmatprep.subr.bf16.mxu0 0
        %5323 = vmatpush1.bf16.msra.mxu0 0
        %5324 = vmatprep.subr.bf16.mxu0 0
        %5325 = vmatpush1.bf16.msra.mxu0 0
        %5326 = vmatprep.subr.bf16.mxu0 0
        %5327 = vmatpush1.bf16.msra.mxu0 0
        %5328 = vmatprep.subr.bf16.mxu0 0
        %5329 = vmatpush1.bf16.msra.mxu0 0
        %5330 = vmatprep.subr.bf16.mxu0 0
        %5331 = vmatpush1.bf16.msra.mxu0 0
        %5332 = vmatprep.subr.bf16.mxu0 0
        %5333 = vmatpush1.bf16.msra.mxu0 0
        %5334 = vmatprep.subr.bf16.mxu0 0
        %5335 = vmatpush1.bf16.msra.mxu0 0
        %5336 = vmatprep.mubr.bf16.mxu0 0
        %5337 = vmatmul.mubr.bf16.gmra.mrb[0].mxu0 %v5302
        %v5338 = vpop.f32.mrb[0].mxu0
        %v5339 = vadd.f32 0.0, %v5338
        %v5340 = vpop.f32.mrb[0].mxu0
        %v5341 = vadd.f32 0.0, %v5340
        %v5342 = vpop.f32.mrb[0].mxu0
        %v5343 = vpop.f32.mrb[0].mxu0
        %5344 = vdwg.mxu0
        %v5345 = vadd.f32 %v5297, %v5339
        %v5346 = vadd.f32 %v5298, %v5341
        %s5347 = scalar_lea.vmem %s14, 16
        %v5348 = vld [vmem:[%s5347] sm:$0xf]
        %v5350 = vsel %vm570, %v5348, 0
        %5352 = vmatprep.subr.bf16.mxu0 %v1520
        %5353 = vmatpush1.bf16.msra.mxu0 %v1517
        %5354 = vmatprep.subr.bf16.mxu0 0
        %5355 = vmatpush1.bf16.msra.mxu0 0
        %5356 = vmatprep.subr.bf16.mxu0 0
        %5357 = vmatpush1.bf16.msra.mxu0 0
        %5358 = vmatprep.subr.bf16.mxu0 0
        %5359 = vmatpush1.bf16.msra.mxu0 0
        %5360 = vmatprep.subr.bf16.mxu0 0
        %5361 = vmatpush1.bf16.msra.mxu0 0
        %5362 = vmatprep.subr.bf16.mxu0 0
        %5363 = vmatpush1.bf16.msra.mxu0 0
        %5364 = vmatprep.subr.bf16.mxu0 0
        %5365 = vmatpush1.bf16.msra.mxu0 0
        %5366 = vmatprep.subr.bf16.mxu0 0
        %5367 = vmatpush1.bf16.msra.mxu0 0
        %5368 = vmatprep.subr.bf16.mxu0 0
        %5369 = vmatpush1.bf16.msra.mxu0 0
        %5370 = vmatprep.subr.bf16.mxu0 0
        %5371 = vmatpush1.bf16.msra.mxu0 0
        %5372 = vmatprep.subr.bf16.mxu0 0
        %5373 = vmatpush1.bf16.msra.mxu0 0
        %5374 = vmatprep.subr.bf16.mxu0 0
        %5375 = vmatpush1.bf16.msra.mxu0 0
        %5376 = vmatprep.subr.bf16.mxu0 0
        %5377 = vmatpush1.bf16.msra.mxu0 0
        %5378 = vmatprep.subr.bf16.mxu0 0
        %5379 = vmatpush1.bf16.msra.mxu0 0
        %5380 = vmatprep.subr.bf16.mxu0 0
        %5381 = vmatpush1.bf16.msra.mxu0 0
        %5382 = vmatprep.subr.bf16.mxu0 0
        %5383 = vmatpush1.bf16.msra.mxu0 0
        %5384 = vmatprep.mubr.bf16.mxu0 0
        %5385 = vmatmul.mubr.bf16.gmra.mrb[0].mxu0 %v5350
        %v5386 = vpop.f32.mrb[0].mxu0
        %v5387 = vadd.f32 0.0, %v5386
        %v5388 = vpop.f32.mrb[0].mxu0
        %v5389 = vadd.f32 0.0, %v5388
        %v5390 = vpop.f32.mrb[0].mxu0
        %v5391 = vpop.f32.mrb[0].mxu0
        %5392 = vdwg.mxu0
        %v5393 = vadd.f32 %v5345, %v5387
        %v5394 = vadd.f32 %v5346, %v5389
        %s5395 = scalar_lea.vmem %s14, 20
        %v5396 = vld [vmem:[%s5395] sm:$0xf]
        %v5398 = vsel %vm570, %v5396, 0
        %5400 = vmatprep.subr.bf16.mxu0 %v1584
        %5401 = vmatpush1.bf16.msra.mxu0 %v1581
        %5402 = vmatprep.subr.bf16.mxu0 0
        %5403 = vmatpush1.bf16.msra.mxu0 0
        %5404 = vmatprep.subr.bf16.mxu0 0
        %5405 = vmatpush1.bf16.msra.mxu0 0
        %5406 = vmatprep.subr.bf16.mxu0 0
        %5407 = vmatpush1.bf16.msra.mxu0 0
        %5408 = vmatprep.subr.bf16.mxu0 0
        %5409 = vmatpush1.bf16.msra.mxu0 0
        %5410 = vmatprep.subr.bf16.mxu0 0
        %5411 = vmatpush1.bf16.msra.mxu0 0
        %5412 = vmatprep.subr.bf16.mxu0 0
        %5413 = vmatpush1.bf16.msra.mxu0 0
        %5414 = vmatprep.subr.bf16.mxu0 0
        %5415 = vmatpush1.bf16.msra.mxu0 0
        %5416 = vmatprep.subr.bf16.mxu0 0
        %5417 = vmatpush1.bf16.msra.mxu0 0
        %5418 = vmatprep.subr.bf16.mxu0 0
        %5419 = vmatpush1.bf16.msra.mxu0 0
        %5420 = vmatprep.subr.bf16.mxu0 0
        %5421 = vmatpush1.bf16.msra.mxu0 0
        %5422 = vmatprep.subr.bf16.mxu0 0
        %5423 = vmatpush1.bf16.msra.mxu0 0
        %5424 = vmatprep.subr.bf16.mxu0 0
        %5425 = vmatpush1.bf16.msra.mxu0 0
        %5426 = vmatprep.subr.bf16.mxu0 0
        %5427 = vmatpush1.bf16.msra.mxu0 0
        %5428 = vmatprep.subr.bf16.mxu0 0
        %5429 = vmatpush1.bf16.msra.mxu0 0
        %5430 = vmatprep.subr.bf16.mxu0 0
        %5431 = vmatpush1.bf16.msra.mxu0 0
        %5432 = vmatprep.mubr.bf16.mxu0 0
        %5433 = vmatmul.mubr.bf16.gmra.mrb[0].mxu0 %v5398
        %v5434 = vpop.f32.mrb[0].mxu0
        %v5435 = vadd.f32 0.0, %v5434
        %v5436 = vpop.f32.mrb[0].mxu0
        %v5437 = vadd.f32 0.0, %v5436
        %v5438 = vpop.f32.mrb[0].mxu0
        %v5439 = vpop.f32.mrb[0].mxu0
        %5440 = vdwg.mxu0
        %v5441 = vadd.f32 %v5393, %v5435
        %v5442 = vadd.f32 %v5394, %v5437
        %s5443 = scalar_lea.vmem %s14, 24
        %v5444 = vld [vmem:[%s5443] sm:$0xf]
        %v5446 = vsel %vm570, %v5444, 0
        %5448 = vmatprep.subr.bf16.mxu0 %v1648
        %5449 = vmatpush1.bf16.msra.mxu0 %v1645
        %5450 = vmatprep.subr.bf16.mxu0 0
        %5451 = vmatpush1.bf16.msra.mxu0 0
        %5452 = vmatprep.subr.bf16.mxu0 0
        %5453 = vmatpush1.bf16.msra.mxu0 0
        %5454 = vmatprep.subr.bf16.mxu0 0
        %5455 = vmatpush1.bf16.msra.mxu0 0
        %5456 = vmatprep.subr.bf16.mxu0 0
        %5457 = vmatpush1.bf16.msra.mxu0 0
        %5458 = vmatprep.subr.bf16.mxu0 0
        %5459 = vmatpush1.bf16.msra.mxu0 0
        %5460 = vmatprep.subr.bf16.mxu0 0
        %5461 = vmatpush1.bf16.msra.mxu0 0
        %5462 = vmatprep.subr.bf16.mxu0 0
        %5463 = vmatpush1.bf16.msra.mxu0 0
        %5464 = vmatprep.subr.bf16.mxu0 0
        %5465 = vmatpush1.bf16.msra.mxu0 0
        %5466 = vmatprep.subr.bf16.mxu0 0
        %5467 = vmatpush1.bf16.msra.mxu0 0
        %5468 = vmatprep.subr.bf16.mxu0 0
        %5469 = vmatpush1.bf16.msra.mxu0 0
        %5470 = vmatprep.subr.bf16.mxu0 0
        %5471 = vmatpush1.bf16.msra.mxu0 0
        %5472 = vmatprep.subr.bf16.mxu0 0
        %5473 = vmatpush1.bf16.msra.mxu0 0
        %5474 = vmatprep.subr.bf16.mxu0 0
        %5475 = vmatpush1.bf16.msra.mxu0 0
        %5476 = vmatprep.subr.bf16.mxu0 0
        %5477 = vmatpush1.bf16.msra.mxu0 0
        %5478 = vmatprep.subr.bf16.mxu0 0
        %5479 = vmatpush1.bf16.msra.mxu0 0
        %5480 = vmatprep.mubr.bf16.mxu0 0
        %5481 = vmatmul.mubr.bf16.gmra.mrb[0].mxu0 %v5446
        %v5482 = vpop.f32.mrb[0].mxu0
        %v5483 = vadd.f32 0.0, %v5482
        %v5484 = vpop.f32.mrb[0].mxu0
        %v5485 = vadd.f32 0.0, %v5484
        %v5486 = vpop.f32.mrb[0].mxu0
        %v5487 = vpop.f32.mrb[0].mxu0
        %5488 = vdwg.mxu0
        %v5489 = vadd.f32 %v5441, %v5483
        %v5490 = vadd.f32 %v5442, %v5485
        %s5491 = scalar_lea.vmem %s14, 28
        %v5492 = vld [vmem:[%s5491] sm:$0xf]
        %v5494 = vsel %vm570, %v5492, 0
        %5496 = vmatprep.subr.bf16.mxu0 %v1712
        %5497 = vmatpush1.bf16.msra.mxu0 %v1709
        %5498 = vmatprep.subr.bf16.mxu0 0
        %5499 = vmatpush1.bf16.msra.mxu0 0
        %5500 = vmatprep.subr.bf16.mxu0 0
        %5501 = vmatpush1.bf16.msra.mxu0 0
        %5502 = vmatprep.subr.bf16.mxu0 0
        %5503 = vmatpush1.bf16.msra.mxu0 0
        %5504 = vmatprep.subr.bf16.mxu0 0
        %5505 = vmatpush1.bf16.msra.mxu0 0
        %5506 = vmatprep.subr.bf16.mxu0 0
        %5507 = vmatpush1.bf16.msra.mxu0 0
        %5508 = vmatprep.subr.bf16.mxu0 0
        %5509 = vmatpush1.bf16.msra.mxu0 0
        %5510 = vmatprep.subr.bf16.mxu0 0
        %5511 = vmatpush1.bf16.msra.mxu0 0
        %5512 = vmatprep.subr.bf16.mxu0 0
        %5513 = vmatpush1.bf16.msra.mxu0 0
        %5514 = vmatprep.subr.bf16.mxu0 0
        %5515 = vmatpush1.bf16.msra.mxu0 0
        %5516 = vmatprep.subr.bf16.mxu0 0
        %5517 = vmatpush1.bf16.msra.mxu0 0
        %5518 = vmatprep.subr.bf16.mxu0 0
        %5519 = vmatpush1.bf16.msra.mxu0 0
        %5520 = vmatprep.subr.bf16.mxu0 0
        %5521 = vmatpush1.bf16.msra.mxu0 0
        %5522 = vmatprep.subr.bf16.mxu0 0
        %5523 = vmatpush1.bf16.msra.mxu0 0
        %5524 = vmatprep.subr.bf16.mxu0 0
        %5525 = vmatpush1.bf16.msra.mxu0 0
        %5526 = vmatprep.subr.bf16.mxu0 0
        %5527 = vmatpush1.bf16.msra.mxu0 0
        %5528 = vmatprep.mubr.bf16.mxu0 0
        %5529 = vmatmul.mubr.bf16.gmra.mrb[0].mxu0 %v5494
        %v5530 = vpop.f32.mrb[0].mxu0
        %v5531 = vadd.f32 0.0, %v5530
        %v5532 = vpop.f32.mrb[0].mxu0
        %v5533 = vadd.f32 0.0, %v5532
        %v5534 = vpop.f32.mrb[0].mxu0
        %v5535 = vpop.f32.mrb[0].mxu0
        %5536 = vdwg.mxu0
        %v5537 = vadd.f32 %v5489, %v5531
        %v5538 = vadd.f32 %v5490, %v5533
        %s5539 = scalar_lea.vmem %s14, 32
        %v5540 = vld [vmem:[%s5539] sm:$0xf]
        %v5542 = vsel %vm570, %v5540, 0
        %5544 = vmatprep.subr.bf16.mxu0 %v1776
        %5545 = vmatpush1.bf16.msra.mxu0 %v1773
        %5546 = vmatprep.subr.bf16.mxu0 0
        %5547 = vmatpush1.bf16.msra.mxu0 0
        %5548 = vmatprep.subr.bf16.mxu0 0
        %5549 = vmatpush1.bf16.msra.mxu0 0
        %5550 = vmatprep.subr.bf16.mxu0 0
        %5551 = vmatpush1.bf16.msra.mxu0 0
        %5552 = vmatprep.subr.bf16.mxu0 0
        %5553 = vmatpush1.bf16.msra.mxu0 0
        %5554 = vmatprep.subr.bf16.mxu0 0
        %5555 = vmatpush1.bf16.msra.mxu0 0
        %5556 = vmatprep.subr.bf16.mxu0 0
        %5557 = vmatpush1.bf16.msra.mxu0 0
        %5558 = vmatprep.subr.bf16.mxu0 0
        %5559 = vmatpush1.bf16.msra.mxu0 0
        %5560 = vmatprep.subr.bf16.mxu0 0
        %5561 = vmatpush1.bf16.msra.mxu0 0
        %5562 = vmatprep.subr.bf16.mxu0 0
        %5563 = vmatpush1.bf16.msra.mxu0 0
        %5564 = vmatprep.subr.bf16.mxu0 0
        %5565 = vmatpush1.bf16.msra.mxu0 0
        %5566 = vmatprep.subr.bf16.mxu0 0
        %5567 = vmatpush1.bf16.msra.mxu0 0
        %5568 = vmatprep.subr.bf16.mxu0 0
        %5569 = vmatpush1.bf16.msra.mxu0 0
        %5570 = vmatprep.subr.bf16.mxu0 0
        %5571 = vmatpush1.bf16.msra.mxu0 0
        %5572 = vmatprep.subr.bf16.mxu0 0
        %5573 = vmatpush1.bf16.msra.mxu0 0
        %5574 = vmatprep.subr.bf16.mxu0 0
        %5575 = vmatpush1.bf16.msra.mxu0 0
        %5576 = vmatprep.mubr.bf16.mxu0 0
        %5577 = vmatmul.mubr.bf16.gmra.mrb[0].mxu0 %v5542
        %v5578 = vpop.f32.mrb[0].mxu0
        %v5579 = vadd.f32 0.0, %v5578
        %v5580 = vpop.f32.mrb[0].mxu0
        %v5581 = vadd.f32 0.0, %v5580
        %v5582 = vpop.f32.mrb[0].mxu0
        %v5583 = vpop.f32.mrb[0].mxu0
        %5584 = vdwg.mxu0
        %v5585 = vadd.f32 %v5537, %v5579
        %v5586 = vadd.f32 %v5538, %v5581
        %v5587 = vld [vmem:[%s15] sm:$0xff]
        %5589 = vset.pattern.permute.xlu0 0
        %5590 = vperm.xlu0 %5589, %v5587
        %v5591 = vpop.permute.xlu0 %5590
        %v5593 = vadd.f32 %v5585, %v5591
        %v5594 = vadd.f32 %v5586, %v5591
        %5595 = vst [vmem:[%s514] sm:$0xff] %v5593
        %5596 = vst [vmem:[%s514 + $0x8] sm:$0xff] %v5594
        %s5597 = sand.u32 %s379, 1
        %s5598 = scalar_lea.sflag [#allocation3], %s5597
        %s5599 = sand.u32 %s379, 1
        %s5600 = smul.addr %s5599, 16
        %s5601 = scalar_lea.vmem [#allocation2], %s5600
        // Predicated region
        $region85: #{tpu_custom_call.1} parent=83 // pred_check
          %p5602 = pneg %p389
        $region86: #{tpu_custom_call.1} parent=83 // pred_check_branch
          %5604 = sbr.rel (%p5602) target = $region88
        $region87: #{tpu_custom_call.1} parent=83 // pred_region
          %s5606 = ssub.s32 256, 256
          %5607 = vsyncadd %s5598, %s5606
          %s5608 = smul.addr %s30, 2
          %s5609 = smul.addr %s5608, 128
          %s5610 = scalar_lea.hbm %s16, %s5609
          %s5612 = sshll.u32 %s5601, 4
          %s5613 = int_to_ptr.vmem [resolvable:$true] %s5612
          %5615 = dma.vmem_to_hbm [thread:$0]  %s5613, 256, %s5610, %s5598
        $region88: #{tpu_custom_call.1} parent=83 // pred_fallthru
          _
      $region84: #{tpu_custom_call.1} parent=5 // pred_fallthru
        _
      %p5616 = scmp.le.s32.totalorder 2, %s25
      // Predicated region
      $region89: #{tpu_custom_call.1} parent=5 // pred_check
        %p5617 = pneg %p5616
      $region90: #{tpu_custom_call.1} parent=5 // pred_check_branch
        %5619 = sbr.rel (%p5617) target = $region92
      $region91: #{tpu_custom_call.1} parent=5 // pred_region
        %s5620 = ssub.s32 %s25, 2
        // Predicated region
        $region93: #{tpu_custom_call.1} parent=91 // pred_check
          %p5621 = pneg %p395
        $region94: #{tpu_custom_call.1} parent=91 // pred_check_branch
          %5623 = sbr.rel (%p5621) target = $region96
        $region95: #{tpu_custom_call.1} parent=91 // pred_region
          %s5624 = sand.u32 %s380, 1
          %s5625 = scalar_lea.sflag [#allocation3], %s5624
          %s5626 = sand.u32 %s380, 1
          %s5627 = smul.addr %s5626, 16
          %s5628 = scalar_lea.vmem [#allocation2], %s5627
          %5629 = dma.done %s5625, 256
        $region96: #{tpu_custom_call.1} parent=91 // pred_fallthru
          _
      $region92: #{tpu_custom_call.1} parent=5 // pred_fallthru
        _
    $region6: #{tpu_custom_call.1} parent=1 // loop_footer
      %s29 = sadd.s32 1, %s25
    $region7: #{tpu_custom_call.1} parent=1 // loop_footer_branch
      %24 = sbr.rel target = $region3
    $region8: #{tpu_custom_call.1} parent=1 // loop_exit
      _
    %5630 = vsyncpa [#allocation3], 1
    %s5631 = scalar_lea.sflag [#allocation3], 1
    %5632 = vsyncpa %s5631, 1

</llo_original>
